<compile_context>
chip_gen: v5e
topology: v5e:2x2
jax: 0.10.0
libtpu: 0.0.40
codegen_flags: <defaults>
</compile_context>

<pallas_src>
import functools

import jax
import jax.numpy as jnp
from jax.experimental import pallas as pl
from jax.experimental.pallas import tpu as pltpu

# Architecture constants implied by the PyTorch module:
# Linear(192, 64) after the 32-channel conv => 6 positions => input length 48.
C_IN = 768
L_IN = 48
NUM_CLASSES = 13
BT = 8  # batch tile (keeps every row count a multiple of 8); raise to 16/32 on v6e/v7x


# ----------------------------------------------------------------------------
# Fused Pallas kernel: whole forward pass for BT batch elements per grid step.
# Activation rows are position-major: row r = l * bt + b.
# ----------------------------------------------------------------------------
def _fused_kernel(x_ref, w1, b1, w2, b2, w3, b3, w4, b4,
                  wfc1, bfc1, wfc2, bfc2, out_ref, *, bt, l_in):

    def conv_stage(act_bf16, w_ref, b_ref, length, pool):
        # act_bf16: (length*bt, Cin) bf16, rows ordered r = l*bt + b.
        m = length * bt
        cout = w_ref.shape[-1]
        # Three stride-1 matmuls on the unshifted activation (f32 accumulate, MXU).
        p0 = jnp.dot(act_bf16, w_ref[0], preferred_element_type=jnp.float32)
        p1 = jnp.dot(act_bf16, w_ref[1], preferred_element_type=jnp.float32)
        p2 = jnp.dot(act_bf16, w_ref[2], preferred_element_type=jnp.float32)
        # Conv1d(k=3,pad=1): y[l] = p0[l-1] + p1[l] + p2[l+1].
        # Position shift == aligned bt-row shift (zero block at the boundary).
        zrow = jnp.zeros((bt, cout), jnp.float32)
        y = (jnp.concatenate([zrow, p0[: m - bt, :]], axis=0)
             + p1
             + jnp.concatenate([p2[bt:, :], zrow], axis=0))
        if pool:
            # MaxPool1d(2,2): aligned even/odd position-block max.
            y = jnp.concatenate(
                [jnp.maximum(y[(2 * p) * bt:(2 * p + 1) * bt, :],
                             y[(2 * p + 1) * bt:(2 * p + 2) * bt, :])
                 for p in range(length // 2)], axis=0)
        # Shared per-channel bias + monotone ReLU commute with the max.
        return jnp.maximum(y + b_ref[...], 0.0)            # f32

    act = x_ref[...]                                                      # (48*bt, 768) bf16
    a1 = conv_stage(act, w1, b1, l_in, True).astype(jnp.bfloat16)         # (24*bt, 256)
    a2 = conv_stage(a1, w2, b2, l_in // 2, True).astype(jnp.bfloat16)     # (12*bt, 128)
    a3 = conv_stage(a2, w3, b3, l_in // 4, True).astype(jnp.bfloat16)     # (6*bt, 64)
    y4 = conv_stage(a3, w4, b4, l_in // 8, False)                         # (6*bt, 32) f32

    # Flatten (PyTorch c*6+l order is folded into wfc1): lane-concat the six
    # aligned position blocks -> (bt, 192), then ONE K=192 contraction.
    n_pos = l_in // 8
    wide = jnp.concatenate([y4[l * bt:(l + 1) * bt, :] for l in range(n_pos)],
                           axis=1).astype(jnp.bfloat16)                   # (bt, 192)
    h = jnp.maximum(
        jnp.dot(wide, wfc1[...], preferred_element_type=jnp.float32) + bfc1[...],
        0.0)                                                              # (bt, 64) f32
    logits = jnp.dot(h.astype(jnp.bfloat16), wfc2[...],
                     preferred_element_type=jnp.float32) + bfc2[...]      # (bt, 128)
    out_ref[...] = logits                                                 # lane-dense store


# ----------------------------------------------------------------------------
# Wrapper
# ----------------------------------------------------------------------------
def text_classifier_forward(x_ncl, prep, *, bt=BT):
    """x_ncl: PyTorch-style (B, 768, 48) float32 -> (B, NUM_CLASSES) float32 logits."""
    B, cin, lin = x_ncl.shape
    assert cin == C_IN and lin == L_IN, (cin, lin)
    nc_pad = prep["wfc2"].shape[-1]                        # 128 (lane-dense)

    b_pad = ((B + bt - 1) // bt) * bt
    if b_pad != B:
        x_ncl = jnp.pad(x_ncl, ((0, b_pad - B), (0, 0), (0, 0)))
    nb = b_pad // bt

    # NCL -> position-major rows (tile, l, b, c) -> (nb*lin*bt, cin), cast to bf16.
    # One fused XLA transpose+convert pass over x.
    x_rows = (x_ncl.reshape(nb, bt, cin, lin)
              .transpose(0, 3, 1, 2)
              .reshape(nb * lin * bt, cin)
              .astype(jnp.bfloat16))

    kernel = functools.partial(_fused_kernel, bt=bt, l_in=lin)

    in_specs = [
        pl.BlockSpec((lin * bt, cin), lambda i: (i, 0)),   # x rows (per-step block)
        pl.BlockSpec((3, C_IN, 256), lambda i: (0, 0, 0)),  # w1 (VMEM resident)
        pl.BlockSpec((1, 256), lambda i: (0, 0)),           # b1
        pl.BlockSpec((3, 256, 128), lambda i: (0, 0, 0)),   # w2
        pl.BlockSpec((1, 128), lambda i: (0, 0)),           # b2
        pl.BlockSpec((3, 128, 64), lambda i: (0, 0, 0)),    # w3
        pl.BlockSpec((1, 64), lambda i: (0, 0)),            # b3
        pl.BlockSpec((3, 64, 32), lambda i: (0, 0, 0)),     # w4
        pl.BlockSpec((1, 32), lambda i: (0, 0)),            # b4
        pl.BlockSpec((192, 64), lambda i: (0, 0)),          # wfc1 (flatten folded)
        pl.BlockSpec((1, 64), lambda i: (0, 0)),            # bfc1
        pl.BlockSpec((64, nc_pad), lambda i: (0, 0)),       # wfc2 (padded to 128 lanes)
        pl.BlockSpec((1, nc_pad), lambda i: (0, 0)),        # bfc2 (padded to 128 lanes)
    ]

    out = pl.pallas_call(
        kernel,
        out_shape=jax.ShapeDtypeStruct((b_pad, nc_pad), jnp.float32),
        grid=(nb,),
        in_specs=in_specs,
        out_specs=pl.BlockSpec((bt, nc_pad), lambda i: (i, 0)),
        compiler_params=pltpu.CompilerParams(
            dimension_semantics=("parallel",),
            vmem_limit_bytes=32 * 1024 * 1024),
    )(x_rows, prep["w1"], prep["b1"], prep["w2"], prep["b2"],
      prep["w3"], prep["b3"], prep["w4"], prep["b4"],
      prep["wfc1"], prep["bfc1"], prep["wfc2"], prep["bfc2"])

    return out[:B, :NUM_CLASSES]


# ----------------------------------------------------------------------------
# Parameters: PyTorch-shaped init + one-time kernel-ready layout prep.
# ----------------------------------------------------------------------------
def init_params(key, input_size=C_IN, num_classes=NUM_CLASSES):
    keys = jax.random.split(key, 12)

    def conv_init(kw, kb, cout, cin, ksz):
        scale = 1.0 / jnp.sqrt(cin * ksz)
        w = jax.random.uniform(kw, (cout, cin, ksz), jnp.float32, -scale, scale)
        b = jax.random.uniform(kb, (cout,), jnp.float32, -scale, scale)
        return w, b

    def lin_init(kw, kb, out_f, in_f):
        scale = 1.0 / jnp.sqrt(in_f)
        w = jax.random.uniform(kw, (out_f, in_f), jnp.float32, -scale, scale)
        b = jax.random.uniform(kb, (out_f,), jnp.float32, -scale, scale)
        return w, b

    p = {}
    p["w1"], p["b1"] = conv_init(keys[0], keys[1], 256, input_size, 3)
    p["w2"], p["b2"] = conv_init(keys[2], keys[3], 128, 256, 3)
    p["w3"], p["b3"] = conv_init(keys[4], keys[5], 64, 128, 3)
    p["w4"], p["b4"] = conv_init(keys[6], keys[7], 32, 64, 3)
    p["fc1_w"], p["fc1_b"] = lin_init(keys[8], keys[9], 64, 192)
    p["fc2_w"], p["fc2_b"] = lin_init(keys[10], keys[11], num_classes, 64)
    return p


def prepare_params(p, nc_pad=128):
    """One-time (outside jit) layout/dtype prep into kernel-ready tensors."""
    prep = {}
    for i in (1, 2, 3, 4):
        # Conv1d weight (Cout, Cin, 3) -> per-tap matrices (3, Cin, Cout), bf16.
        prep[f"w{i}"] = jnp.transpose(p[f"w{i}"], (2, 1, 0)).astype(jnp.bfloat16)
        prep[f"b{i}"] = p[f"b{i}"].reshape(1, -1).astype(jnp.float32)
    # Linear(192, 64): fold the PyTorch Flatten order (idx = c*6 + l) into the
    # weight so the kernel's lane-concat order (idx = l*32 + c) maps correctly.
    wfc1 = p["fc1_w"].reshape(64, 32, 6)                        # [j, c, l]
    wfc1 = jnp.transpose(wfc1, (2, 1, 0)).reshape(192, 64)      # row = l*32 + c
    prep["wfc1"] = wfc1.astype(jnp.bfloat16)
    prep["bfc1"] = p["fc1_b"].reshape(1, -1).astype(jnp.float32)
    # Linear(64, nc): transpose and zero-pad to 128 lanes for an unmasked store.
    nc = p["fc2_w"].shape[0]
    wfc2 = jnp.zeros((64, nc_pad), jnp.float32).at[:, :nc].set(p["fc2_w"].T)
    prep["wfc2"] = wfc2.astype(jnp.bfloat16)
    prep["bfc2"] = jnp.zeros((1, nc_pad), jnp.float32).at[:, :nc].set(
        p["fc2_b"].reshape(1, -1))
    return prep


# ----------------------------------------------------------------------------
# Pure-JAX f32 reference (mirrors the PyTorch module) for a numeric self-check.
# ----------------------------------------------------------------------------
def _reference_forward(x_ncl, p):
    x = jnp.transpose(x_ncl, (0, 2, 1))  # NLC

    def conv_relu(x_nlc, w, b):
        B, L, Cin = x_nlc.shape
        xp = jnp.pad(x_nlc, ((0, 0), (1, 1), (0, 0)))
        patches = jnp.concatenate([xp[:, k:k + L, :] for k in range(3)], axis=-1)
        w_mat = jnp.transpose(w, (2, 1, 0)).reshape(3 * Cin, -1)
        y = patches.reshape(B * L, 3 * Cin) @ w_mat + b
        return jnp.maximum(y, 0.0).reshape(B, L, -1)

    def pool(x_nlc):
        L = x_nlc.shape[1]
        return jnp.maximum(x_nlc[:, 0:L:2, :], x_nlc[:, 1:L:2, :])

    x = pool(conv_relu(x, p["w1"], p["b1"]))
    x = pool(conv_relu(x, p["w2"], p["b2"]))
    x = pool(conv_relu(x, p["w3"], p["b3"]))
    x = conv_relu(x, p["w4"], p["b4"])
    B, L, C = x.shape
    flat = jnp.transpose(x, (0, 2, 1)).reshape(B, C * L)   # PyTorch Flatten (c*L + l)
    h = jnp.maximum(flat @ p["fc1_w"].T + p["fc1_b"], 0.0)
    return h @ p["fc2_w"].T + p["fc2_b"]


if __name__ == "__main__":
    B = 2
    key = jax.random.PRNGKey(0)
    k_params, k_x = jax.random.split(key)
    params = init_params(k_params)
    prep = prepare_params(params)

    x = jax.random.normal(k_x, (B, C_IN, L_IN), dtype=jnp.float32)  # PyTorch NCL

    fwd = jax.jit(text_classifier_forward)
    logits = fwd(x, prep)
    jax.block_until_ready(logits)

    assert logits.shape == (B, NUM_CLASSES), logits.shape
    assert logits.dtype == jnp.float32

    # Loose tolerance: weights AND activations are bf16 inside the kernel,
    # reference is pure f32.
    ref = _reference_forward(x, params)
    err = float(jnp.max(jnp.abs(logits - ref)))
    assert jnp.allclose(logits, ref, atol=1e-1, rtol=1e-1), err

    print("KERNEL_OK")
</pallas_src>

<mosaic_0001>
module attributes {stable_mosaic.version = 11 : i64} {
  func.func @_fused_kernel(%arg0: i32, %arg1: memref<384x768xbf16, #tpu.memory_space<vmem>>, %arg2: memref<3x768x256xbf16, #tpu.memory_space<vmem>>, %arg3: memref<1x256xf32, #tpu.memory_space<vmem>>, %arg4: memref<3x256x128xbf16, #tpu.memory_space<vmem>>, %arg5: memref<1x128xf32, #tpu.memory_space<vmem>>, %arg6: memref<3x128x64xbf16, #tpu.memory_space<vmem>>, %arg7: memref<1x64xf32, #tpu.memory_space<vmem>>, %arg8: memref<3x64x32xbf16, #tpu.memory_space<vmem>>, %arg9: memref<1x32xf32, #tpu.memory_space<vmem>>, %arg10: memref<192x64xbf16, #tpu.memory_space<vmem>>, %arg11: memref<1x64xf32, #tpu.memory_space<vmem>>, %arg12: memref<64x128xbf16, #tpu.memory_space<vmem>>, %arg13: memref<1x128xf32, #tpu.memory_space<vmem>>, %arg14: memref<8x128xf32, #tpu.memory_space<vmem>>) attributes {dimension_semantics = [#tpu.dimension_semantics<parallel>], iteration_bounds = array<i64: 1>, scalar_prefetch = 0 : i64, scratch_operands = 0 : i64, tpu.core_type = #tpu.core_type<tc>, window_params = [{transform_indices = @transform_0, window_bounds = array<i64: 384, 768>}, {pipeline_mode = #tpu.pipeline_mode<synchronous>, transform_indices = @transform_1, window_bounds = array<i64: 3, 768, 256>}, {pipeline_mode = #tpu.pipeline_mode<synchronous>, transform_indices = @transform_2, window_bounds = array<i64: 1, 256>}, {pipeline_mode = #tpu.pipeline_mode<synchronous>, transform_indices = @transform_3, window_bounds = array<i64: 3, 256, 128>}, {pipeline_mode = #tpu.pipeline_mode<synchronous>, transform_indices = @transform_4, window_bounds = array<i64: 1, 128>}, {pipeline_mode = #tpu.pipeline_mode<synchronous>, transform_indices = @transform_5, window_bounds = array<i64: 3, 128, 64>}, {pipeline_mode = #tpu.pipeline_mode<synchronous>, transform_indices = @transform_6, window_bounds = array<i64: 1, 64>}, {pipeline_mode = #tpu.pipeline_mode<synchronous>, transform_indices = @transform_7, window_bounds = array<i64: 3, 64, 32>}, {pipeline_mode = #tpu.pipeline_mode<synchronous>, transform_indices = @transform_8, window_bounds = array<i64: 1, 32>}, {pipeline_mode = #tpu.pipeline_mode<synchronous>, transform_indices = @transform_9, window_bounds = array<i64: 192, 64>}, {pipeline_mode = #tpu.pipeline_mode<synchronous>, transform_indices = @transform_10, window_bounds = array<i64: 1, 64>}, {pipeline_mode = #tpu.pipeline_mode<synchronous>, transform_indices = @transform_11, window_bounds = array<i64: 64, 128>}, {pipeline_mode = #tpu.pipeline_mode<synchronous>, transform_indices = @transform_12, window_bounds = array<i64: 1, 128>}, {transform_indices = @transform_13, window_bounds = array<i64: 8, 128>}]} {
    %c0 = arith.constant 0 : index
    %c0_0 = arith.constant 0 : index
    %0 = vector.load %arg1[%c0, %c0_0] : memref<384x768xbf16, #tpu.memory_space<vmem>>, vector<384x768xbf16>
    %c0_1 = arith.constant 0 : index
    %c0_2 = arith.constant 0 : index
    %c0_3 = arith.constant 0 : index
    %1 = vector.load %arg2[%c0_1, %c0_2, %c0_3] : memref<3x768x256xbf16, #tpu.memory_space<vmem>>, vector<1x768x256xbf16>
    %2 = vector.shape_cast %1 : vector<1x768x256xbf16> to vector<768x256xbf16>
    %cst = arith.constant dense<0.000000e+00> : vector<384x256xf32>
    %3 = tpu.matmul %0, %2, %cst {dimension_numbers = #tpu.dot_dimension_numbers<[1], [0], [0], [1], [0, 0, 1, 1], [], []>} : vector<384x768xbf16>, vector<768x256xbf16>, vector<384x256xf32> -> vector<384x256xf32>
    %c1 = arith.constant 1 : index
    %c0_4 = arith.constant 0 : index
    %c0_5 = arith.constant 0 : index
    %4 = vector.load %arg2[%c1, %c0_4, %c0_5] : memref<3x768x256xbf16, #tpu.memory_space<vmem>>, vector<1x768x256xbf16>
    %5 = vector.shape_cast %4 : vector<1x768x256xbf16> to vector<768x256xbf16>
    %cst_6 = arith.constant dense<0.000000e+00> : vector<384x256xf32>
    %6 = tpu.matmul %0, %5, %cst_6 {dimension_numbers = #tpu.dot_dimension_numbers<[1], [0], [0], [1], [0, 0, 1, 1], [], []>} : vector<384x768xbf16>, vector<768x256xbf16>, vector<384x256xf32> -> vector<384x256xf32>
    %c2 = arith.constant 2 : index
    %c0_7 = arith.constant 0 : index
    %c0_8 = arith.constant 0 : index
    %7 = vector.load %arg2[%c2, %c0_7, %c0_8] : memref<3x768x256xbf16, #tpu.memory_space<vmem>>, vector<1x768x256xbf16>
    %8 = vector.shape_cast %7 : vector<1x768x256xbf16> to vector<768x256xbf16>
    %cst_9 = arith.constant dense<0.000000e+00> : vector<384x256xf32>
    %9 = tpu.matmul %0, %8, %cst_9 {dimension_numbers = #tpu.dot_dimension_numbers<[1], [0], [0], [1], [0, 0, 1, 1], [], []>} : vector<384x768xbf16>, vector<768x256xbf16>, vector<384x256xf32> -> vector<384x256xf32>
    %cst_10 = arith.constant 0.000000e+00 : f32
    %10 = vector.broadcast %cst_10 : f32 to vector<8x256xf32>
    %11 = vector.extract_strided_slice %3 {offsets = [0, 0], sizes = [376, 256], strides = [1, 1]} : vector<384x256xf32> to vector<376x256xf32>
    %12 = tpu.concatenate %10, %11 in 0 : vector<8x256xf32>, vector<376x256xf32> -> vector<384x256xf32>
    %13 = arith.addf %12, %6 : vector<384x256xf32>
    %14 = vector.extract_strided_slice %9 {offsets = [8, 0], sizes = [376, 256], strides = [1, 1]} : vector<384x256xf32> to vector<376x256xf32>
    %15 = tpu.concatenate %14, %10 in 0 : vector<376x256xf32>, vector<8x256xf32> -> vector<384x256xf32>
    %16 = arith.addf %13, %15 : vector<384x256xf32>
    %17 = vector.extract_strided_slice %16 {offsets = [0, 0], sizes = [8, 256], strides = [1, 1]} : vector<384x256xf32> to vector<8x256xf32>
    %18 = vector.extract_strided_slice %16 {offsets = [8, 0], sizes = [8, 256], strides = [1, 1]} : vector<384x256xf32> to vector<8x256xf32>
    %19 = arith.maximumf %17, %18 : vector<8x256xf32>
    %20 = vector.extract_strided_slice %16 {offsets = [16, 0], sizes = [8, 256], strides = [1, 1]} : vector<384x256xf32> to vector<8x256xf32>
    %21 = vector.extract_strided_slice %16 {offsets = [24, 0], sizes = [8, 256], strides = [1, 1]} : vector<384x256xf32> to vector<8x256xf32>
    %22 = arith.maximumf %20, %21 : vector<8x256xf32>
    %23 = vector.extract_strided_slice %16 {offsets = [32, 0], sizes = [8, 256], strides = [1, 1]} : vector<384x256xf32> to vector<8x256xf32>
    %24 = vector.extract_strided_slice %16 {offsets = [40, 0], sizes = [8, 256], strides = [1, 1]} : vector<384x256xf32> to vector<8x256xf32>
    %25 = arith.maximumf %23, %24 : vector<8x256xf32>
    %26 = vector.extract_strided_slice %16 {offsets = [48, 0], sizes = [8, 256], strides = [1, 1]} : vector<384x256xf32> to vector<8x256xf32>
    %27 = vector.extract_strided_slice %16 {offsets = [56, 0], sizes = [8, 256], strides = [1, 1]} : vector<384x256xf32> to vector<8x256xf32>
    %28 = arith.maximumf %26, %27 : vector<8x256xf32>
    %29 = vector.extract_strided_slice %16 {offsets = [64, 0], sizes = [8, 256], strides = [1, 1]} : vector<384x256xf32> to vector<8x256xf32>
    %30 = vector.extract_strided_slice %16 {offsets = [72, 0], sizes = [8, 256], strides = [1, 1]} : vector<384x256xf32> to vector<8x256xf32>
    %31 = arith.maximumf %29, %30 : vector<8x256xf32>
    %32 = vector.extract_strided_slice %16 {offsets = [80, 0], sizes = [8, 256], strides = [1, 1]} : vector<384x256xf32> to vector<8x256xf32>
    %33 = vector.extract_strided_slice %16 {offsets = [88, 0], sizes = [8, 256], strides = [1, 1]} : vector<384x256xf32> to vector<8x256xf32>
    %34 = arith.maximumf %32, %33 : vector<8x256xf32>
    %35 = vector.extract_strided_slice %16 {offsets = [96, 0], sizes = [8, 256], strides = [1, 1]} : vector<384x256xf32> to vector<8x256xf32>
    %36 = vector.extract_strided_slice %16 {offsets = [104, 0], sizes = [8, 256], strides = [1, 1]} : vector<384x256xf32> to vector<8x256xf32>
    %37 = arith.maximumf %35, %36 : vector<8x256xf32>
    %38 = vector.extract_strided_slice %16 {offsets = [112, 0], sizes = [8, 256], strides = [1, 1]} : vector<384x256xf32> to vector<8x256xf32>
    %39 = vector.extract_strided_slice %16 {offsets = [120, 0], sizes = [8, 256], strides = [1, 1]} : vector<384x256xf32> to vector<8x256xf32>
    %40 = arith.maximumf %38, %39 : vector<8x256xf32>
    %41 = vector.extract_strided_slice %16 {offsets = [128, 0], sizes = [8, 256], strides = [1, 1]} : vector<384x256xf32> to vector<8x256xf32>
    %42 = vector.extract_strided_slice %16 {offsets = [136, 0], sizes = [8, 256], strides = [1, 1]} : vector<384x256xf32> to vector<8x256xf32>
    %43 = arith.maximumf %41, %42 : vector<8x256xf32>
    %44 = vector.extract_strided_slice %16 {offsets = [144, 0], sizes = [8, 256], strides = [1, 1]} : vector<384x256xf32> to vector<8x256xf32>
    %45 = vector.extract_strided_slice %16 {offsets = [152, 0], sizes = [8, 256], strides = [1, 1]} : vector<384x256xf32> to vector<8x256xf32>
    %46 = arith.maximumf %44, %45 : vector<8x256xf32>
    %47 = vector.extract_strided_slice %16 {offsets = [160, 0], sizes = [8, 256], strides = [1, 1]} : vector<384x256xf32> to vector<8x256xf32>
    %48 = vector.extract_strided_slice %16 {offsets = [168, 0], sizes = [8, 256], strides = [1, 1]} : vector<384x256xf32> to vector<8x256xf32>
    %49 = arith.maximumf %47, %48 : vector<8x256xf32>
    %50 = vector.extract_strided_slice %16 {offsets = [176, 0], sizes = [8, 256], strides = [1, 1]} : vector<384x256xf32> to vector<8x256xf32>
    %51 = vector.extract_strided_slice %16 {offsets = [184, 0], sizes = [8, 256], strides = [1, 1]} : vector<384x256xf32> to vector<8x256xf32>
    %52 = arith.maximumf %50, %51 : vector<8x256xf32>
    %53 = vector.extract_strided_slice %16 {offsets = [192, 0], sizes = [8, 256], strides = [1, 1]} : vector<384x256xf32> to vector<8x256xf32>
    %54 = vector.extract_strided_slice %16 {offsets = [200, 0], sizes = [8, 256], strides = [1, 1]} : vector<384x256xf32> to vector<8x256xf32>
    %55 = arith.maximumf %53, %54 : vector<8x256xf32>
    %56 = vector.extract_strided_slice %16 {offsets = [208, 0], sizes = [8, 256], strides = [1, 1]} : vector<384x256xf32> to vector<8x256xf32>
    %57 = vector.extract_strided_slice %16 {offsets = [216, 0], sizes = [8, 256], strides = [1, 1]} : vector<384x256xf32> to vector<8x256xf32>
    %58 = arith.maximumf %56, %57 : vector<8x256xf32>
    %59 = vector.extract_strided_slice %16 {offsets = [224, 0], sizes = [8, 256], strides = [1, 1]} : vector<384x256xf32> to vector<8x256xf32>
    %60 = vector.extract_strided_slice %16 {offsets = [232, 0], sizes = [8, 256], strides = [1, 1]} : vector<384x256xf32> to vector<8x256xf32>
    %61 = arith.maximumf %59, %60 : vector<8x256xf32>
    %62 = vector.extract_strided_slice %16 {offsets = [240, 0], sizes = [8, 256], strides = [1, 1]} : vector<384x256xf32> to vector<8x256xf32>
    %63 = vector.extract_strided_slice %16 {offsets = [248, 0], sizes = [8, 256], strides = [1, 1]} : vector<384x256xf32> to vector<8x256xf32>
    %64 = arith.maximumf %62, %63 : vector<8x256xf32>
    %65 = vector.extract_strided_slice %16 {offsets = [256, 0], sizes = [8, 256], strides = [1, 1]} : vector<384x256xf32> to vector<8x256xf32>
    %66 = vector.extract_strided_slice %16 {offsets = [264, 0], sizes = [8, 256], strides = [1, 1]} : vector<384x256xf32> to vector<8x256xf32>
    %67 = arith.maximumf %65, %66 : vector<8x256xf32>
    %68 = vector.extract_strided_slice %16 {offsets = [272, 0], sizes = [8, 256], strides = [1, 1]} : vector<384x256xf32> to vector<8x256xf32>
    %69 = vector.extract_strided_slice %16 {offsets = [280, 0], sizes = [8, 256], strides = [1, 1]} : vector<384x256xf32> to vector<8x256xf32>
    %70 = arith.maximumf %68, %69 : vector<8x256xf32>
    %71 = vector.extract_strided_slice %16 {offsets = [288, 0], sizes = [8, 256], strides = [1, 1]} : vector<384x256xf32> to vector<8x256xf32>
    %72 = vector.extract_strided_slice %16 {offsets = [296, 0], sizes = [8, 256], strides = [1, 1]} : vector<384x256xf32> to vector<8x256xf32>
    %73 = arith.maximumf %71, %72 : vector<8x256xf32>
    %74 = vector.extract_strided_slice %16 {offsets = [304, 0], sizes = [8, 256], strides = [1, 1]} : vector<384x256xf32> to vector<8x256xf32>
    %75 = vector.extract_strided_slice %16 {offsets = [312, 0], sizes = [8, 256], strides = [1, 1]} : vector<384x256xf32> to vector<8x256xf32>
    %76 = arith.maximumf %74, %75 : vector<8x256xf32>
    %77 = vector.extract_strided_slice %16 {offsets = [320, 0], sizes = [8, 256], strides = [1, 1]} : vector<384x256xf32> to vector<8x256xf32>
    %78 = vector.extract_strided_slice %16 {offsets = [328, 0], sizes = [8, 256], strides = [1, 1]} : vector<384x256xf32> to vector<8x256xf32>
    %79 = arith.maximumf %77, %78 : vector<8x256xf32>
    %80 = vector.extract_strided_slice %16 {offsets = [336, 0], sizes = [8, 256], strides = [1, 1]} : vector<384x256xf32> to vector<8x256xf32>
    %81 = vector.extract_strided_slice %16 {offsets = [344, 0], sizes = [8, 256], strides = [1, 1]} : vector<384x256xf32> to vector<8x256xf32>
    %82 = arith.maximumf %80, %81 : vector<8x256xf32>
    %83 = vector.extract_strided_slice %16 {offsets = [352, 0], sizes = [8, 256], strides = [1, 1]} : vector<384x256xf32> to vector<8x256xf32>
    %84 = vector.extract_strided_slice %16 {offsets = [360, 0], sizes = [8, 256], strides = [1, 1]} : vector<384x256xf32> to vector<8x256xf32>
    %85 = arith.maximumf %83, %84 : vector<8x256xf32>
    %86 = vector.extract_strided_slice %16 {offsets = [368, 0], sizes = [8, 256], strides = [1, 1]} : vector<384x256xf32> to vector<8x256xf32>
    %87 = vector.extract_strided_slice %16 {offsets = [376, 0], sizes = [8, 256], strides = [1, 1]} : vector<384x256xf32> to vector<8x256xf32>
    %88 = arith.maximumf %86, %87 : vector<8x256xf32>
    %89 = tpu.concatenate %19, %22, %25, %28, %31, %34, %37, %40, %43, %46, %49, %52, %55, %58, %61, %64 in 0 : vector<8x256xf32>, vector<8x256xf32>, vector<8x256xf32>, vector<8x256xf32>, vector<8x256xf32>, vector<8x256xf32>, vector<8x256xf32>, vector<8x256xf32>, vector<8x256xf32>, vector<8x256xf32>, vector<8x256xf32>, vector<8x256xf32>, vector<8x256xf32>, vector<8x256xf32>, vector<8x256xf32>, vector<8x256xf32> -> vector<128x256xf32>
    %90 = tpu.concatenate %67, %70, %73, %76, %79, %82, %85, %88 in 0 : vector<8x256xf32>, vector<8x256xf32>, vector<8x256xf32>, vector<8x256xf32>, vector<8x256xf32>, vector<8x256xf32>, vector<8x256xf32>, vector<8x256xf32> -> vector<64x256xf32>
    %91 = tpu.concatenate %89, %90 in 0 : vector<128x256xf32>, vector<64x256xf32> -> vector<192x256xf32>
    %c0_11 = arith.constant 0 : index
    %c0_12 = arith.constant 0 : index
    %92 = vector.load %arg3[%c0_11, %c0_12] : memref<1x256xf32, #tpu.memory_space<vmem>>, vector<1x256xf32>
    %93 = vector.broadcast %92 : vector<1x256xf32> to vector<192x256xf32>
    %94 = arith.addf %91, %93 : vector<192x256xf32>
    %cst_13 = arith.constant 0.000000e+00 : f32
    %95 = vector.broadcast %cst_13 : f32 to vector<192x256xf32>
    %96 = arith.maximumf %94, %95 : vector<192x256xf32>
    %97 = arith.truncf %96 : vector<192x256xf32> to vector<192x256xbf16>
    %c0_14 = arith.constant 0 : index
    %c0_15 = arith.constant 0 : index
    %c0_16 = arith.constant 0 : index
    %98 = vector.load %arg4[%c0_14, %c0_15, %c0_16] : memref<3x256x128xbf16, #tpu.memory_space<vmem>>, vector<1x256x128xbf16>
    %99 = vector.shape_cast %98 : vector<1x256x128xbf16> to vector<256x128xbf16>
    %cst_17 = arith.constant dense<0.000000e+00> : vector<192x128xf32>
    %100 = tpu.matmul %97, %99, %cst_17 {dimension_numbers = #tpu.dot_dimension_numbers<[1], [0], [0], [1], [0, 0, 1, 1], [], []>} : vector<192x256xbf16>, vector<256x128xbf16>, vector<192x128xf32> -> vector<192x128xf32>
    %c1_18 = arith.constant 1 : index
    %c0_19 = arith.constant 0 : index
    %c0_20 = arith.constant 0 : index
    %101 = vector.load %arg4[%c1_18, %c0_19, %c0_20] : memref<3x256x128xbf16, #tpu.memory_space<vmem>>, vector<1x256x128xbf16>
    %102 = vector.shape_cast %101 : vector<1x256x128xbf16> to vector<256x128xbf16>
    %cst_21 = arith.constant dense<0.000000e+00> : vector<192x128xf32>
    %103 = tpu.matmul %97, %102, %cst_21 {dimension_numbers = #tpu.dot_dimension_numbers<[1], [0], [0], [1], [0, 0, 1, 1], [], []>} : vector<192x256xbf16>, vector<256x128xbf16>, vector<192x128xf32> -> vector<192x128xf32>
    %c2_22 = arith.constant 2 : index
    %c0_23 = arith.constant 0 : index
    %c0_24 = arith.constant 0 : index
    %104 = vector.load %arg4[%c2_22, %c0_23, %c0_24] : memref<3x256x128xbf16, #tpu.memory_space<vmem>>, vector<1x256x128xbf16>
    %105 = vector.shape_cast %104 : vector<1x256x128xbf16> to vector<256x128xbf16>
    %cst_25 = arith.constant dense<0.000000e+00> : vector<192x128xf32>
    %106 = tpu.matmul %97, %105, %cst_25 {dimension_numbers = #tpu.dot_dimension_numbers<[1], [0], [0], [1], [0, 0, 1, 1], [], []>} : vector<192x256xbf16>, vector<256x128xbf16>, vector<192x128xf32> -> vector<192x128xf32>
    %cst_26 = arith.constant 0.000000e+00 : f32
    %107 = vector.broadcast %cst_26 : f32 to vector<8x128xf32>
    %108 = vector.extract_strided_slice %100 {offsets = [0, 0], sizes = [184, 128], strides = [1, 1]} : vector<192x128xf32> to vector<184x128xf32>
    %109 = tpu.concatenate %107, %108 in 0 : vector<8x128xf32>, vector<184x128xf32> -> vector<192x128xf32>
    %110 = arith.addf %109, %103 : vector<192x128xf32>
    %111 = vector.extract_strided_slice %106 {offsets = [8, 0], sizes = [184, 128], strides = [1, 1]} : vector<192x128xf32> to vector<184x128xf32>
    %112 = tpu.concatenate %111, %107 in 0 : vector<184x128xf32>, vector<8x128xf32> -> vector<192x128xf32>
    %113 = arith.addf %110, %112 : vector<192x128xf32>
    %114 = vector.extract_strided_slice %113 {offsets = [0, 0], sizes = [8, 128], strides = [1, 1]} : vector<192x128xf32> to vector<8x128xf32>
    %115 = vector.extract_strided_slice %113 {offsets = [8, 0], sizes = [8, 128], strides = [1, 1]} : vector<192x128xf32> to vector<8x128xf32>
    %116 = arith.maximumf %114, %115 : vector<8x128xf32>
    %117 = vector.extract_strided_slice %113 {offsets = [16, 0], sizes = [8, 128], strides = [1, 1]} : vector<192x128xf32> to vector<8x128xf32>
    %118 = vector.extract_strided_slice %113 {offsets = [24, 0], sizes = [8, 128], strides = [1, 1]} : vector<192x128xf32> to vector<8x128xf32>
    %119 = arith.maximumf %117, %118 : vector<8x128xf32>
    %120 = vector.extract_strided_slice %113 {offsets = [32, 0], sizes = [8, 128], strides = [1, 1]} : vector<192x128xf32> to vector<8x128xf32>
    %121 = vector.extract_strided_slice %113 {offsets = [40, 0], sizes = [8, 128], strides = [1, 1]} : vector<192x128xf32> to vector<8x128xf32>
    %122 = arith.maximumf %120, %121 : vector<8x128xf32>
    %123 = vector.extract_strided_slice %113 {offsets = [48, 0], sizes = [8, 128], strides = [1, 1]} : vector<192x128xf32> to vector<8x128xf32>
    %124 = vector.extract_strided_slice %113 {offsets = [56, 0], sizes = [8, 128], strides = [1, 1]} : vector<192x128xf32> to vector<8x128xf32>
    %125 = arith.maximumf %123, %124 : vector<8x128xf32>
    %126 = vector.extract_strided_slice %113 {offsets = [64, 0], sizes = [8, 128], strides = [1, 1]} : vector<192x128xf32> to vector<8x128xf32>
    %127 = vector.extract_strided_slice %113 {offsets = [72, 0], sizes = [8, 128], strides = [1, 1]} : vector<192x128xf32> to vector<8x128xf32>
    %128 = arith.maximumf %126, %127 : vector<8x128xf32>
    %129 = vector.extract_strided_slice %113 {offsets = [80, 0], sizes = [8, 128], strides = [1, 1]} : vector<192x128xf32> to vector<8x128xf32>
    %130 = vector.extract_strided_slice %113 {offsets = [88, 0], sizes = [8, 128], strides = [1, 1]} : vector<192x128xf32> to vector<8x128xf32>
    %131 = arith.maximumf %129, %130 : vector<8x128xf32>
    %132 = vector.extract_strided_slice %113 {offsets = [96, 0], sizes = [8, 128], strides = [1, 1]} : vector<192x128xf32> to vector<8x128xf32>
    %133 = vector.extract_strided_slice %113 {offsets = [104, 0], sizes = [8, 128], strides = [1, 1]} : vector<192x128xf32> to vector<8x128xf32>
    %134 = arith.maximumf %132, %133 : vector<8x128xf32>
    %135 = vector.extract_strided_slice %113 {offsets = [112, 0], sizes = [8, 128], strides = [1, 1]} : vector<192x128xf32> to vector<8x128xf32>
    %136 = vector.extract_strided_slice %113 {offsets = [120, 0], sizes = [8, 128], strides = [1, 1]} : vector<192x128xf32> to vector<8x128xf32>
    %137 = arith.maximumf %135, %136 : vector<8x128xf32>
    %138 = vector.extract_strided_slice %113 {offsets = [128, 0], sizes = [8, 128], strides = [1, 1]} : vector<192x128xf32> to vector<8x128xf32>
    %139 = vector.extract_strided_slice %113 {offsets = [136, 0], sizes = [8, 128], strides = [1, 1]} : vector<192x128xf32> to vector<8x128xf32>
    %140 = arith.maximumf %138, %139 : vector<8x128xf32>
    %141 = vector.extract_strided_slice %113 {offsets = [144, 0], sizes = [8, 128], strides = [1, 1]} : vector<192x128xf32> to vector<8x128xf32>
    %142 = vector.extract_strided_slice %113 {offsets = [152, 0], sizes = [8, 128], strides = [1, 1]} : vector<192x128xf32> to vector<8x128xf32>
    %143 = arith.maximumf %141, %142 : vector<8x128xf32>
    %144 = vector.extract_strided_slice %113 {offsets = [160, 0], sizes = [8, 128], strides = [1, 1]} : vector<192x128xf32> to vector<8x128xf32>
    %145 = vector.extract_strided_slice %113 {offsets = [168, 0], sizes = [8, 128], strides = [1, 1]} : vector<192x128xf32> to vector<8x128xf32>
    %146 = arith.maximumf %144, %145 : vector<8x128xf32>
    %147 = vector.extract_strided_slice %113 {offsets = [176, 0], sizes = [8, 128], strides = [1, 1]} : vector<192x128xf32> to vector<8x128xf32>
    %148 = vector.extract_strided_slice %113 {offsets = [184, 0], sizes = [8, 128], strides = [1, 1]} : vector<192x128xf32> to vector<8x128xf32>
    %149 = arith.maximumf %147, %148 : vector<8x128xf32>
    %150 = tpu.concatenate %116, %119, %122, %125, %128, %131, %134, %137, %140, %143, %146, %149 in 0 : vector<8x128xf32>, vector<8x128xf32>, vector<8x128xf32>, vector<8x128xf32>, vector<8x128xf32>, vector<8x128xf32>, vector<8x128xf32>, vector<8x128xf32>, vector<8x128xf32>, vector<8x128xf32>, vector<8x128xf32>, vector<8x128xf32> -> vector<96x128xf32>
    %c0_27 = arith.constant 0 : index
    %c0_28 = arith.constant 0 : index
    %151 = vector.load %arg5[%c0_27, %c0_28] : memref<1x128xf32, #tpu.memory_space<vmem>>, vector<1x128xf32>
    %152 = vector.broadcast %151 : vector<1x128xf32> to vector<96x128xf32>
    %153 = arith.addf %150, %152 : vector<96x128xf32>
    %cst_29 = arith.constant 0.000000e+00 : f32
    %154 = vector.broadcast %cst_29 : f32 to vector<96x128xf32>
    %155 = arith.maximumf %153, %154 : vector<96x128xf32>
    %156 = arith.truncf %155 : vector<96x128xf32> to vector<96x128xbf16>
    %c0_30 = arith.constant 0 : index
    %c0_31 = arith.constant 0 : index
    %c0_32 = arith.constant 0 : index
    %157 = vector.load %arg6[%c0_30, %c0_31, %c0_32] : memref<3x128x64xbf16, #tpu.memory_space<vmem>>, vector<1x128x64xbf16>
    %158 = vector.shape_cast %157 : vector<1x128x64xbf16> to vector<128x64xbf16>
    %cst_33 = arith.constant dense<0.000000e+00> : vector<96x64xf32>
    %159 = tpu.matmul %156, %158, %cst_33 {dimension_numbers = #tpu.dot_dimension_numbers<[1], [0], [0], [1], [0, 0, 1, 1], [], []>} : vector<96x128xbf16>, vector<128x64xbf16>, vector<96x64xf32> -> vector<96x64xf32>
    %c1_34 = arith.constant 1 : index
    %c0_35 = arith.constant 0 : index
    %c0_36 = arith.constant 0 : index
    %160 = vector.load %arg6[%c1_34, %c0_35, %c0_36] : memref<3x128x64xbf16, #tpu.memory_space<vmem>>, vector<1x128x64xbf16>
    %161 = vector.shape_cast %160 : vector<1x128x64xbf16> to vector<128x64xbf16>
    %cst_37 = arith.constant dense<0.000000e+00> : vector<96x64xf32>
    %162 = tpu.matmul %156, %161, %cst_37 {dimension_numbers = #tpu.dot_dimension_numbers<[1], [0], [0], [1], [0, 0, 1, 1], [], []>} : vector<96x128xbf16>, vector<128x64xbf16>, vector<96x64xf32> -> vector<96x64xf32>
    %c2_38 = arith.constant 2 : index
    %c0_39 = arith.constant 0 : index
    %c0_40 = arith.constant 0 : index
    %163 = vector.load %arg6[%c2_38, %c0_39, %c0_40] : memref<3x128x64xbf16, #tpu.memory_space<vmem>>, vector<1x128x64xbf16>
    %164 = vector.shape_cast %163 : vector<1x128x64xbf16> to vector<128x64xbf16>
    %cst_41 = arith.constant dense<0.000000e+00> : vector<96x64xf32>
    %165 = tpu.matmul %156, %164, %cst_41 {dimension_numbers = #tpu.dot_dimension_numbers<[1], [0], [0], [1], [0, 0, 1, 1], [], []>} : vector<96x128xbf16>, vector<128x64xbf16>, vector<96x64xf32> -> vector<96x64xf32>
    %cst_42 = arith.constant 0.000000e+00 : f32
    %166 = vector.broadcast %cst_42 : f32 to vector<8x64xf32>
    %167 = vector.extract_strided_slice %159 {offsets = [0, 0], sizes = [88, 64], strides = [1, 1]} : vector<96x64xf32> to vector<88x64xf32>
    %168 = tpu.concatenate %166, %167 in 0 : vector<8x64xf32>, vector<88x64xf32> -> vector<96x64xf32>
    %169 = arith.addf %168, %162 : vector<96x64xf32>
    %170 = vector.extract_strided_slice %165 {offsets = [8, 0], sizes = [88, 64], strides = [1, 1]} : vector<96x64xf32> to vector<88x64xf32>
    %171 = tpu.concatenate %170, %166 in 0 : vector<88x64xf32>, vector<8x64xf32> -> vector<96x64xf32>
    %172 = arith.addf %169, %171 : vector<96x64xf32>
    %173 = vector.extract_strided_slice %172 {offsets = [0, 0], sizes = [8, 64], strides = [1, 1]} : vector<96x64xf32> to vector<8x64xf32>
    %174 = vector.extract_strided_slice %172 {offsets = [8, 0], sizes = [8, 64], strides = [1, 1]} : vector<96x64xf32> to vector<8x64xf32>
    %175 = arith.maximumf %173, %174 : vector<8x64xf32>
    %176 = vector.extract_strided_slice %172 {offsets = [16, 0], sizes = [8, 64], strides = [1, 1]} : vector<96x64xf32> to vector<8x64xf32>
    %177 = vector.extract_strided_slice %172 {offsets = [24, 0], sizes = [8, 64], strides = [1, 1]} : vector<96x64xf32> to vector<8x64xf32>
    %178 = arith.maximumf %176, %177 : vector<8x64xf32>
    %179 = vector.extract_strided_slice %172 {offsets = [32, 0], sizes = [8, 64], strides = [1, 1]} : vector<96x64xf32> to vector<8x64xf32>
    %180 = vector.extract_strided_slice %172 {offsets = [40, 0], sizes = [8, 64], strides = [1, 1]} : vector<96x64xf32> to vector<8x64xf32>
    %181 = arith.maximumf %179, %180 : vector<8x64xf32>
    %182 = vector.extract_strided_slice %172 {offsets = [48, 0], sizes = [8, 64], strides = [1, 1]} : vector<96x64xf32> to vector<8x64xf32>
    %183 = vector.extract_strided_slice %172 {offsets = [56, 0], sizes = [8, 64], strides = [1, 1]} : vector<96x64xf32> to vector<8x64xf32>
    %184 = arith.maximumf %182, %183 : vector<8x64xf32>
    %185 = vector.extract_strided_slice %172 {offsets = [64, 0], sizes = [8, 64], strides = [1, 1]} : vector<96x64xf32> to vector<8x64xf32>
    %186 = vector.extract_strided_slice %172 {offsets = [72, 0], sizes = [8, 64], strides = [1, 1]} : vector<96x64xf32> to vector<8x64xf32>
    %187 = arith.maximumf %185, %186 : vector<8x64xf32>
    %188 = vector.extract_strided_slice %172 {offsets = [80, 0], sizes = [8, 64], strides = [1, 1]} : vector<96x64xf32> to vector<8x64xf32>
    %189 = vector.extract_strided_slice %172 {offsets = [88, 0], sizes = [8, 64], strides = [1, 1]} : vector<96x64xf32> to vector<8x64xf32>
    %190 = arith.maximumf %188, %189 : vector<8x64xf32>
    %191 = tpu.concatenate %175, %178, %181, %184, %187, %190 in 0 : vector<8x64xf32>, vector<8x64xf32>, vector<8x64xf32>, vector<8x64xf32>, vector<8x64xf32>, vector<8x64xf32> -> vector<48x64xf32>
    %c0_43 = arith.constant 0 : index
    %c0_44 = arith.constant 0 : index
    %192 = vector.load %arg7[%c0_43, %c0_44] : memref<1x64xf32, #tpu.memory_space<vmem>>, vector<1x64xf32>
    %193 = vector.broadcast %192 : vector<1x64xf32> to vector<48x64xf32>
    %194 = arith.addf %191, %193 : vector<48x64xf32>
    %cst_45 = arith.constant 0.000000e+00 : f32
    %195 = vector.broadcast %cst_45 : f32 to vector<48x64xf32>
    %196 = arith.maximumf %194, %195 : vector<48x64xf32>
    %197 = arith.truncf %196 : vector<48x64xf32> to vector<48x64xbf16>
    %c0_46 = arith.constant 0 : index
    %c0_47 = arith.constant 0 : index
    %c0_48 = arith.constant 0 : index
    %198 = vector.load %arg8[%c0_46, %c0_47, %c0_48] : memref<3x64x32xbf16, #tpu.memory_space<vmem>>, vector<1x64x32xbf16>
    %199 = vector.shape_cast %198 : vector<1x64x32xbf16> to vector<64x32xbf16>
    %cst_49 = arith.constant dense<0.000000e+00> : vector<48x32xf32>
    %200 = tpu.matmul %197, %199, %cst_49 {dimension_numbers = #tpu.dot_dimension_numbers<[1], [0], [0], [1], [0, 0, 1, 1], [], []>} : vector<48x64xbf16>, vector<64x32xbf16>, vector<48x32xf32> -> vector<48x32xf32>
    %c1_50 = arith.constant 1 : index
    %c0_51 = arith.constant 0 : index
    %c0_52 = arith.constant 0 : index
    %201 = vector.load %arg8[%c1_50, %c0_51, %c0_52] : memref<3x64x32xbf16, #tpu.memory_space<vmem>>, vector<1x64x32xbf16>
    %202 = vector.shape_cast %201 : vector<1x64x32xbf16> to vector<64x32xbf16>
    %cst_53 = arith.constant dense<0.000000e+00> : vector<48x32xf32>
    %203 = tpu.matmul %197, %202, %cst_53 {dimension_numbers = #tpu.dot_dimension_numbers<[1], [0], [0], [1], [0, 0, 1, 1], [], []>} : vector<48x64xbf16>, vector<64x32xbf16>, vector<48x32xf32> -> vector<48x32xf32>
    %c2_54 = arith.constant 2 : index
    %c0_55 = arith.constant 0 : index
    %c0_56 = arith.constant 0 : index
    %204 = vector.load %arg8[%c2_54, %c0_55, %c0_56] : memref<3x64x32xbf16, #tpu.memory_space<vmem>>, vector<1x64x32xbf16>
    %205 = vector.shape_cast %204 : vector<1x64x32xbf16> to vector<64x32xbf16>
    %cst_57 = arith.constant dense<0.000000e+00> : vector<48x32xf32>
    %206 = tpu.matmul %197, %205, %cst_57 {dimension_numbers = #tpu.dot_dimension_numbers<[1], [0], [0], [1], [0, 0, 1, 1], [], []>} : vector<48x64xbf16>, vector<64x32xbf16>, vector<48x32xf32> -> vector<48x32xf32>
    %cst_58 = arith.constant 0.000000e+00 : f32
    %207 = vector.broadcast %cst_58 : f32 to vector<8x32xf32>
    %208 = vector.extract_strided_slice %200 {offsets = [0, 0], sizes = [40, 32], strides = [1, 1]} : vector<48x32xf32> to vector<40x32xf32>
    %209 = tpu.concatenate %207, %208 in 0 : vector<8x32xf32>, vector<40x32xf32> -> vector<48x32xf32>
    %210 = arith.addf %209, %203 : vector<48x32xf32>
    %211 = vector.extract_strided_slice %206 {offsets = [8, 0], sizes = [40, 32], strides = [1, 1]} : vector<48x32xf32> to vector<40x32xf32>
    %212 = tpu.concatenate %211, %207 in 0 : vector<40x32xf32>, vector<8x32xf32> -> vector<48x32xf32>
    %213 = arith.addf %210, %212 : vector<48x32xf32>
    %c0_59 = arith.constant 0 : index
    %c0_60 = arith.constant 0 : index
    %214 = vector.load %arg9[%c0_59, %c0_60] : memref<1x32xf32, #tpu.memory_space<vmem>>, vector<1x32xf32>
    %215 = vector.broadcast %214 : vector<1x32xf32> to vector<48x32xf32>
    %216 = arith.addf %213, %215 : vector<48x32xf32>
    %cst_61 = arith.constant 0.000000e+00 : f32
    %217 = vector.broadcast %cst_61 : f32 to vector<48x32xf32>
    %218 = arith.maximumf %216, %217 : vector<48x32xf32>
    %219 = vector.extract_strided_slice %218 {offsets = [0, 0], sizes = [8, 32], strides = [1, 1]} : vector<48x32xf32> to vector<8x32xf32>
    %220 = vector.extract_strided_slice %218 {offsets = [8, 0], sizes = [8, 32], strides = [1, 1]} : vector<48x32xf32> to vector<8x32xf32>
    %221 = vector.extract_strided_slice %218 {offsets = [16, 0], sizes = [8, 32], strides = [1, 1]} : vector<48x32xf32> to vector<8x32xf32>
    %222 = vector.extract_strided_slice %218 {offsets = [24, 0], sizes = [8, 32], strides = [1, 1]} : vector<48x32xf32> to vector<8x32xf32>
    %223 = vector.extract_strided_slice %218 {offsets = [32, 0], sizes = [8, 32], strides = [1, 1]} : vector<48x32xf32> to vector<8x32xf32>
    %224 = vector.extract_strided_slice %218 {offsets = [40, 0], sizes = [8, 32], strides = [1, 1]} : vector<48x32xf32> to vector<8x32xf32>
    %225 = tpu.concatenate %219, %220, %221, %222, %223, %224 in 1 : vector<8x32xf32>, vector<8x32xf32>, vector<8x32xf32>, vector<8x32xf32>, vector<8x32xf32>, vector<8x32xf32> -> vector<8x192xf32>
    %226 = arith.truncf %225 : vector<8x192xf32> to vector<8x192xbf16>
    %c0_62 = arith.constant 0 : index
    %c0_63 = arith.constant 0 : index
    %227 = vector.load %arg10[%c0_62, %c0_63] : memref<192x64xbf16, #tpu.memory_space<vmem>>, vector<192x64xbf16>
    %cst_64 = arith.constant dense<0.000000e+00> : vector<8x64xf32>
    %228 = tpu.matmul %226, %227, %cst_64 {dimension_numbers = #tpu.dot_dimension_numbers<[1], [0], [0], [1], [0, 0, 1, 1], [], []>} : vector<8x192xbf16>, vector<192x64xbf16>, vector<8x64xf32> -> vector<8x64xf32>
    %c0_65 = arith.constant 0 : index
    %c0_66 = arith.constant 0 : index
    %229 = vector.load %arg11[%c0_65, %c0_66] : memref<1x64xf32, #tpu.memory_space<vmem>>, vector<1x64xf32>
    %230 = vector.broadcast %229 : vector<1x64xf32> to vector<8x64xf32>
    %231 = arith.addf %228, %230 : vector<8x64xf32>
    %cst_67 = arith.constant 0.000000e+00 : f32
    %232 = vector.broadcast %cst_67 : f32 to vector<8x64xf32>
    %233 = arith.maximumf %231, %232 : vector<8x64xf32>
    %234 = arith.truncf %233 : vector<8x64xf32> to vector<8x64xbf16>
    %c0_68 = arith.constant 0 : index
    %c0_69 = arith.constant 0 : index
    %235 = vector.load %arg12[%c0_68, %c0_69] : memref<64x128xbf16, #tpu.memory_space<vmem>>, vector<64x128xbf16>
    %cst_70 = arith.constant dense<0.000000e+00> : vector<8x128xf32>
    %236 = tpu.matmul %234, %235, %cst_70 {dimension_numbers = #tpu.dot_dimension_numbers<[1], [0], [0], [1], [0, 0, 1, 1], [], []>} : vector<8x64xbf16>, vector<64x128xbf16>, vector<8x128xf32> -> vector<8x128xf32>
    %c0_71 = arith.constant 0 : index
    %c0_72 = arith.constant 0 : index
    %237 = vector.load %arg13[%c0_71, %c0_72] : memref<1x128xf32, #tpu.memory_space<vmem>>, vector<1x128xf32>
    %238 = vector.broadcast %237 : vector<1x128xf32> to vector<8x128xf32>
    %239 = arith.addf %236, %238 : vector<8x128xf32>
    %c0_73 = arith.constant 0 : index
    %c0_74 = arith.constant 0 : index
    %240 = vector.load %arg14[%c0_73, %c0_74] : memref<8x128xf32, #tpu.memory_space<vmem>>, vector<8x128xf32>
    tpu.vector_store %arg14[%c0_73, %c0_74], %239 {strides = array<i32>} : memref<8x128xf32, #tpu.memory_space<vmem>>, vector<8x128xf32>,
    return
  }
  func.func @transform_0(%arg0: i32) -> (i32, i32) {
    %c0_i32 = arith.constant 0 : i32
    %c0_i32_0 = arith.constant 0 : i32
    return %arg0, %c0_i32 : i32, i32
  }
  func.func @transform_1(%arg0: i32) -> (i32, i32, i32) {
    %c0_i32 = arith.constant 0 : i32
    %c0_i32_0 = arith.constant 0 : i32
    %c0_i32_1 = arith.constant 0 : i32
    %c0_i32_2 = arith.constant 0 : i32
    return %c0_i32, %c0_i32_0, %c0_i32_1 : i32, i32, i32
  }
  func.func @transform_2(%arg0: i32) -> (i32, i32) {
    %c0_i32 = arith.constant 0 : i32
    %c0_i32_0 = arith.constant 0 : i32
    %c0_i32_1 = arith.constant 0 : i32
    return %c0_i32, %c0_i32_0 : i32, i32
  }
  func.func @transform_3(%arg0: i32) -> (i32, i32, i32) {
    %c0_i32 = arith.constant 0 : i32
    %c0_i32_0 = arith.constant 0 : i32
    %c0_i32_1 = arith.constant 0 : i32
    %c0_i32_2 = arith.constant 0 : i32
    return %c0_i32, %c0_i32_0, %c0_i32_1 : i32, i32, i32
  }
  func.func @transform_4(%arg0: i32) -> (i32, i32) {
    %c0_i32 = arith.constant 0 : i32
    %c0_i32_0 = arith.constant 0 : i32
    %c0_i32_1 = arith.constant 0 : i32
    return %c0_i32, %c0_i32_0 : i32, i32
  }
  func.func @transform_5(%arg0: i32) -> (i32, i32, i32) {
    %c0_i32 = arith.constant 0 : i32
    %c0_i32_0 = arith.constant 0 : i32
    %c0_i32_1 = arith.constant 0 : i32
    %c0_i32_2 = arith.constant 0 : i32
    return %c0_i32, %c0_i32_0, %c0_i32_1 : i32, i32, i32
  }
  func.func @transform_6(%arg0: i32) -> (i32, i32) {
    %c0_i32 = arith.constant 0 : i32
    %c0_i32_0 = arith.constant 0 : i32
    %c0_i32_1 = arith.constant 0 : i32
    return %c0_i32, %c0_i32_0 : i32, i32
  }
  func.func @transform_7(%arg0: i32) -> (i32, i32, i32) {
    %c0_i32 = arith.constant 0 : i32
    %c0_i32_0 = arith.constant 0 : i32
    %c0_i32_1 = arith.constant 0 : i32
    %c0_i32_2 = arith.constant 0 : i32
    return %c0_i32, %c0_i32_0, %c0_i32_1 : i32, i32, i32
  }
  func.func @transform_8(%arg0: i32) -> (i32, i32) {
    %c0_i32 = arith.constant 0 : i32
    %c0_i32_0 = arith.constant 0 : i32
    %c0_i32_1 = arith.constant 0 : i32
    return %c0_i32, %c0_i32_0 : i32, i32
  }
  func.func @transform_9(%arg0: i32) -> (i32, i32) {
    %c0_i32 = arith.constant 0 : i32
    %c0_i32_0 = arith.constant 0 : i32
    %c0_i32_1 = arith.constant 0 : i32
    return %c0_i32, %c0_i32_0 : i32, i32
  }
  func.func @transform_10(%arg0: i32) -> (i32, i32) {
    %c0_i32 = arith.constant 0 : i32
    %c0_i32_0 = arith.constant 0 : i32
    %c0_i32_1 = arith.constant 0 : i32
    return %c0_i32, %c0_i32_0 : i32, i32
  }
  func.func @transform_11(%arg0: i32) -> (i32, i32) {
    %c0_i32 = arith.constant 0 : i32
    %c0_i32_0 = arith.constant 0 : i32
    %c0_i32_1 = arith.constant 0 : i32
    return %c0_i32, %c0_i32_0 : i32, i32
  }
  func.func @transform_12(%arg0: i32) -> (i32, i32) {
    %c0_i32 = arith.constant 0 : i32
    %c0_i32_0 = arith.constant 0 : i32
    %c0_i32_1 = arith.constant 0 : i32
    return %c0_i32, %c0_i32_0 : i32, i32
  }
  func.func @transform_13(%arg0: i32) -> (i32, i32) {
    %c0_i32 = arith.constant 0 : i32
    %c0_i32_0 = arith.constant 0 : i32
    return %arg0, %c0_i32 : i32, i32
  }
}

</mosaic_0001>

<llo_original>
// kernel: text_classifier_forward.1
$region0: #{text_classifier_forward.1}
  #allocation0 [shape = 'u32[]', space=smem, size = 0x4, offset = 0x4, fixed_abs, tag = 'smem constant byte address 0x4 - core index']
  #allocation1 [shape = 'u32[72,128]{1,0:T(1,128)}', space=vmem, size = 0x9000, scoped, tag = 'internal scratch']
  %s0 = inlined_call_operand.vmem [shape: bf16[384,768], index: 0, kind: input, shape index: {}]
  %s1 = inlined_call_operand.vmem [shape: bf16[3,768,256], index: 1, kind: input, shape index: {}]
  %s2 = inlined_call_operand.vmem [shape: f32[1,256], index: 2, kind: input, shape index: {}]
  %s3 = inlined_call_operand.vmem [shape: bf16[3,256,128], index: 3, kind: input, shape index: {}]
  %s4 = inlined_call_operand.vmem [shape: f32[1,128], index: 4, kind: input, shape index: {}]
  %s5 = inlined_call_operand.vmem [shape: bf16[3,128,64], index: 5, kind: input, shape index: {}]
  %s6 = inlined_call_operand.vmem [shape: f32[1,64], index: 6, kind: input, shape index: {}]
  %s7 = inlined_call_operand.vmem [shape: bf16[3,64,32], index: 7, kind: input, shape index: {}]
  %s8 = inlined_call_operand.vmem [shape: f32[1,32], index: 8, kind: input, shape index: {}]
  %s9 = inlined_call_operand.vmem [shape: bf16[192,64], index: 9, kind: input, shape index: {}]
  %s10 = inlined_call_operand.vmem [shape: f32[1,64], index: 10, kind: input, shape index: {}]
  %s11 = inlined_call_operand.vmem [shape: bf16[64,128], index: 11, kind: input, shape index: {}]
  %s12 = inlined_call_operand.vmem [shape: f32[1,128], index: 12, kind: input, shape index: {}]
  %s13 = inlined_call_operand.vmem [shape: f32[8,128], index: 13, kind: output, shape index: {}]
  %s14 = sld [smem:[#allocation0]]
  $region62: #{text_classifier_forward.1} parent=0
    _
  %s16 = ssub.s32 1, %s14
  %s17 = scalar_select 0, %s16, %s14
  // Predicated region
  $region2: #{text_classifier_forward.1} parent=0 // pred_check
    _
  $region3: #{text_classifier_forward.1} parent=0 // pred_check_branch
    %19 = sbr.rel (0) target = $region5
  $region4: #{text_classifier_forward.1} parent=0 // pred_region
    _
  $region5: #{text_classifier_forward.1} parent=0 // pred_fallthru
    _
  // Predicated region
  $region6: #{text_classifier_forward.1} parent=0 // pred_check
    _
  $region7: #{text_classifier_forward.1} parent=0 // pred_check_branch
    %21 = sbr.rel (0) target = $region9
  $region8: #{text_classifier_forward.1} parent=0 // pred_region
    _
  $region9: #{text_classifier_forward.1} parent=0 // pred_fallthru
    _
  // Predicated region
  $region10: #{text_classifier_forward.1} parent=0 // pred_check
    _
  $region11: #{text_classifier_forward.1} parent=0 // pred_check_branch
    %23 = sbr.rel (0) target = $region13
  $region12: #{text_classifier_forward.1} parent=0 // pred_region
    _
  $region13: #{text_classifier_forward.1} parent=0 // pred_fallthru
    _
  // Predicated region
  $region14: #{text_classifier_forward.1} parent=0 // pred_check
    _
  $region15: #{text_classifier_forward.1} parent=0 // pred_check_branch
    %25 = sbr.rel (0) target = $region17
  $region16: #{text_classifier_forward.1} parent=0 // pred_region
    _
  $region17: #{text_classifier_forward.1} parent=0 // pred_fallthru
    _
  // Predicated region
  $region18: #{text_classifier_forward.1} parent=0 // pred_check
    _
  $region19: #{text_classifier_forward.1} parent=0 // pred_check_branch
    %27 = sbr.rel (0) target = $region21
  $region20: #{text_classifier_forward.1} parent=0 // pred_region
    _
  $region21: #{text_classifier_forward.1} parent=0 // pred_fallthru
    _
  // Predicated region
  $region22: #{text_classifier_forward.1} parent=0 // pred_check
    _
  $region23: #{text_classifier_forward.1} parent=0 // pred_check_branch
    %29 = sbr.rel (0) target = $region25
  $region24: #{text_classifier_forward.1} parent=0 // pred_region
    _
  $region25: #{text_classifier_forward.1} parent=0 // pred_fallthru
    _
  // Predicated region
  $region26: #{text_classifier_forward.1} parent=0 // pred_check
    _
  $region27: #{text_classifier_forward.1} parent=0 // pred_check_branch
    %31 = sbr.rel (0) target = $region29
  $region28: #{text_classifier_forward.1} parent=0 // pred_region
    _
  $region29: #{text_classifier_forward.1} parent=0 // pred_fallthru
    _
  // Predicated region
  $region30: #{text_classifier_forward.1} parent=0 // pred_check
    _
  $region31: #{text_classifier_forward.1} parent=0 // pred_check_branch
    %33 = sbr.rel (0) target = $region33
  $region32: #{text_classifier_forward.1} parent=0 // pred_region
    _
  $region33: #{text_classifier_forward.1} parent=0 // pred_fallthru
    _
  // Predicated region
  $region34: #{text_classifier_forward.1} parent=0 // pred_check
    _
  $region35: #{text_classifier_forward.1} parent=0 // pred_check_branch
    %35 = sbr.rel (0) target = $region37
  $region36: #{text_classifier_forward.1} parent=0 // pred_region
    _
  $region37: #{text_classifier_forward.1} parent=0 // pred_fallthru
    _
  // Predicated region
  $region38: #{text_classifier_forward.1} parent=0 // pred_check
    _
  $region39: #{text_classifier_forward.1} parent=0 // pred_check_branch
    %37 = sbr.rel (0) target = $region41
  $region40: #{text_classifier_forward.1} parent=0 // pred_region
    _
  $region41: #{text_classifier_forward.1} parent=0 // pred_fallthru
    _
  // Predicated region
  $region42: #{text_classifier_forward.1} parent=0 // pred_check
    _
  $region43: #{text_classifier_forward.1} parent=0 // pred_check_branch
    %39 = sbr.rel (0) target = $region45
  $region44: #{text_classifier_forward.1} parent=0 // pred_region
    _
  $region45: #{text_classifier_forward.1} parent=0 // pred_fallthru
    _
  // Predicated region
  $region46: #{text_classifier_forward.1} parent=0 // pred_check
    _
  $region47: #{text_classifier_forward.1} parent=0 // pred_check_branch
    %41 = sbr.rel (0) target = $region49
  $region48: #{text_classifier_forward.1} parent=0 // pred_region
    _
  $region49: #{text_classifier_forward.1} parent=0 // pred_fallthru
    _
  // Predicated region
  $region50: #{text_classifier_forward.1} parent=0 // pred_check
    _
  $region51: #{text_classifier_forward.1} parent=0 // pred_check_branch
    %43 = sbr.rel (0) target = $region53
  $region52: #{text_classifier_forward.1} parent=0 // pred_region
    _
  $region53: #{text_classifier_forward.1} parent=0 // pred_fallthru
    _
  %v45 = vld [vmem:[%s0] sm:$0xff]
  %v46 = vld [vmem:[%s0 + $0x8] sm:$0xff]
  %v47 = vld [vmem:[%s0 + $0x10] sm:$0xff]
  %v48 = vld [vmem:[%s0 + $0x18] sm:$0xff]
  %v49 = vld [vmem:[%s0 + $0x20] sm:$0xff]
  %v50 = vld [vmem:[%s0 + $0x28] sm:$0xff]
  %v51 = vld [vmem:[%s0 + $0x30] sm:$0xff]
  %v52 = vld [vmem:[%s0 + $0x38] sm:$0xff]
  %v53 = vld [vmem:[%s0 + $0x40] sm:$0xff]
  %v54 = vld [vmem:[%s0 + $0x48] sm:$0xff]
  %v55 = vld [vmem:[%s0 + $0x50] sm:$0xff]
  %v56 = vld [vmem:[%s0 + $0x58] sm:$0xff]
  %v57 = vld [vmem:[%s0 + $0x60] sm:$0xff]
  %v58 = vld [vmem:[%s0 + $0x68] sm:$0xff]
  %v59 = vld [vmem:[%s0 + $0x70] sm:$0xff]
  %v60 = vld [vmem:[%s0 + $0x78] sm:$0xff]
  %v61 = vld [vmem:[%s0 + $0x80] sm:$0xff]
  %v62 = vld [vmem:[%s0 + $0x88] sm:$0xff]
  %v63 = vld [vmem:[%s0 + $0x90] sm:$0xff]
  %v64 = vld [vmem:[%s0 + $0x98] sm:$0xff]
  %v65 = vld [vmem:[%s0 + $0xa0] sm:$0xff]
  %v66 = vld [vmem:[%s0 + $0xa8] sm:$0xff]
  %v67 = vld [vmem:[%s0 + $0xb0] sm:$0xff]
  %v68 = vld [vmem:[%s0 + $0xb8] sm:$0xff]
  %v69 = vld [vmem:[%s0 + $0xc0] sm:$0xff]
  %v70 = vld [vmem:[%s0 + $0xc8] sm:$0xff]
  %v71 = vld [vmem:[%s0 + $0xd0] sm:$0xff]
  %v72 = vld [vmem:[%s0 + $0xd8] sm:$0xff]
  %v73 = vld [vmem:[%s0 + $0xe0] sm:$0xff]
  %v74 = vld [vmem:[%s0 + $0xe8] sm:$0xff]
  %v75 = vld [vmem:[%s0 + $0xf0] sm:$0xff]
  %v76 = vld [vmem:[%s0 + $0xf8] sm:$0xff]
  %v77 = vld [vmem:[%s0 + $0x100] sm:$0xff]
  %v78 = vld [vmem:[%s0 + $0x108] sm:$0xff]
  %v79 = vld [vmem:[%s0 + $0x110] sm:$0xff]
  %v80 = vld [vmem:[%s0 + $0x118] sm:$0xff]
  %v81 = vld [vmem:[%s0 + $0x120] sm:$0xff]
  %v82 = vld [vmem:[%s0 + $0x128] sm:$0xff]
  %v83 = vld [vmem:[%s0 + $0x130] sm:$0xff]
  %v84 = vld [vmem:[%s0 + $0x138] sm:$0xff]
  %v85 = vld [vmem:[%s0 + $0x140] sm:$0xff]
  %v86 = vld [vmem:[%s0 + $0x148] sm:$0xff]
  %v87 = vld [vmem:[%s0 + $0x150] sm:$0xff]
  %v88 = vld [vmem:[%s0 + $0x158] sm:$0xff]
  %v89 = vld [vmem:[%s0 + $0x160] sm:$0xff]
  %v90 = vld [vmem:[%s0 + $0x168] sm:$0xff]
  %v91 = vld [vmem:[%s0 + $0x170] sm:$0xff]
  %v92 = vld [vmem:[%s0 + $0x178] sm:$0xff]
  %v93 = vld [vmem:[%s0 + $0x180] sm:$0xff]
  %v94 = vld [vmem:[%s0 + $0x188] sm:$0xff]
  %v95 = vld [vmem:[%s0 + $0x190] sm:$0xff]
  %v96 = vld [vmem:[%s0 + $0x198] sm:$0xff]
  %v97 = vld [vmem:[%s0 + $0x1a0] sm:$0xff]
  %v98 = vld [vmem:[%s0 + $0x1a8] sm:$0xff]
  %v99 = vld [vmem:[%s0 + $0x1b0] sm:$0xff]
  %v100 = vld [vmem:[%s0 + $0x1b8] sm:$0xff]
  %v101 = vld [vmem:[%s0 + $0x1c0] sm:$0xff]
  %v102 = vld [vmem:[%s0 + $0x1c8] sm:$0xff]
  %v103 = vld [vmem:[%s0 + $0x1d0] sm:$0xff]
  %v104 = vld [vmem:[%s0 + $0x1d8] sm:$0xff]
  %v105 = vld [vmem:[%s0 + $0x1e0] sm:$0xff]
  %v106 = vld [vmem:[%s0 + $0x1e8] sm:$0xff]
  %v107 = vld [vmem:[%s0 + $0x1f0] sm:$0xff]
  %v108 = vld [vmem:[%s0 + $0x1f8] sm:$0xff]
  %v109 = vld [vmem:[%s0 + $0x200] sm:$0xff]
  %v110 = vld [vmem:[%s0 + $0x208] sm:$0xff]
  %v111 = vld [vmem:[%s0 + $0x210] sm:$0xff]
  %v112 = vld [vmem:[%s0 + $0x218] sm:$0xff]
  %v113 = vld [vmem:[%s0 + $0x220] sm:$0xff]
  %v114 = vld [vmem:[%s0 + $0x228] sm:$0xff]
  %v115 = vld [vmem:[%s0 + $0x230] sm:$0xff]
  %v116 = vld [vmem:[%s0 + $0x238] sm:$0xff]
  %v117 = vld [vmem:[%s0 + $0x240] sm:$0xff]
  %v118 = vld [vmem:[%s0 + $0x248] sm:$0xff]
  %v119 = vld [vmem:[%s0 + $0x250] sm:$0xff]
  %v120 = vld [vmem:[%s0 + $0x258] sm:$0xff]
  %v121 = vld [vmem:[%s0 + $0x260] sm:$0xff]
  %v122 = vld [vmem:[%s0 + $0x268] sm:$0xff]
  %v123 = vld [vmem:[%s0 + $0x270] sm:$0xff]
  %v124 = vld [vmem:[%s0 + $0x278] sm:$0xff]
  %v125 = vld [vmem:[%s0 + $0x280] sm:$0xff]
  %v126 = vld [vmem:[%s0 + $0x288] sm:$0xff]
  %v127 = vld [vmem:[%s0 + $0x290] sm:$0xff]
  %v128 = vld [vmem:[%s0 + $0x298] sm:$0xff]
  %v129 = vld [vmem:[%s0 + $0x2a0] sm:$0xff]
  %v130 = vld [vmem:[%s0 + $0x2a8] sm:$0xff]
  %v131 = vld [vmem:[%s0 + $0x2b0] sm:$0xff]
  %v132 = vld [vmem:[%s0 + $0x2b8] sm:$0xff]
  %v133 = vld [vmem:[%s0 + $0x2c0] sm:$0xff]
  %v134 = vld [vmem:[%s0 + $0x2c8] sm:$0xff]
  %v135 = vld [vmem:[%s0 + $0x2d0] sm:$0xff]
  %v136 = vld [vmem:[%s0 + $0x2d8] sm:$0xff]
  %v137 = vld [vmem:[%s0 + $0x2e0] sm:$0xff]
  %v138 = vld [vmem:[%s0 + $0x2e8] sm:$0xff]
  %v139 = vld [vmem:[%s0 + $0x2f0] sm:$0xff]
  %v140 = vld [vmem:[%s0 + $0x2f8] sm:$0xff]
  %v141 = vld [vmem:[%s0 + $0x300] sm:$0xff]
  %v142 = vld [vmem:[%s0 + $0x308] sm:$0xff]
  %v143 = vld [vmem:[%s0 + $0x310] sm:$0xff]
  %v144 = vld [vmem:[%s0 + $0x318] sm:$0xff]
  %v145 = vld [vmem:[%s0 + $0x320] sm:$0xff]
  %v146 = vld [vmem:[%s0 + $0x328] sm:$0xff]
  %v147 = vld [vmem:[%s0 + $0x330] sm:$0xff]
  %v148 = vld [vmem:[%s0 + $0x338] sm:$0xff]
  %v149 = vld [vmem:[%s0 + $0x340] sm:$0xff]
  %v150 = vld [vmem:[%s0 + $0x348] sm:$0xff]
  %v151 = vld [vmem:[%s0 + $0x350] sm:$0xff]
  %v152 = vld [vmem:[%s0 + $0x358] sm:$0xff]
  %v153 = vld [vmem:[%s0 + $0x360] sm:$0xff]
  %v154 = vld [vmem:[%s0 + $0x368] sm:$0xff]
  %v155 = vld [vmem:[%s0 + $0x370] sm:$0xff]
  %v156 = vld [vmem:[%s0 + $0x378] sm:$0xff]
  %v157 = vld [vmem:[%s0 + $0x380] sm:$0xff]
  %v158 = vld [vmem:[%s0 + $0x388] sm:$0xff]
  %v159 = vld [vmem:[%s0 + $0x390] sm:$0xff]
  %v160 = vld [vmem:[%s0 + $0x398] sm:$0xff]
  %v161 = vld [vmem:[%s0 + $0x3a0] sm:$0xff]
  %v162 = vld [vmem:[%s0 + $0x3a8] sm:$0xff]
  %v163 = vld [vmem:[%s0 + $0x3b0] sm:$0xff]
  %v164 = vld [vmem:[%s0 + $0x3b8] sm:$0xff]
  %v165 = vld [vmem:[%s0 + $0x3c0] sm:$0xff]
  %v166 = vld [vmem:[%s0 + $0x3c8] sm:$0xff]
  %v167 = vld [vmem:[%s0 + $0x3d0] sm:$0xff]
  %v168 = vld [vmem:[%s0 + $0x3d8] sm:$0xff]
  %v169 = vld [vmem:[%s0 + $0x3e0] sm:$0xff]
  %v170 = vld [vmem:[%s0 + $0x3e8] sm:$0xff]
  %v171 = vld [vmem:[%s0 + $0x3f0] sm:$0xff]
  %v172 = vld [vmem:[%s0 + $0x3f8] sm:$0xff]
  %v173 = vld [vmem:[%s0 + $0x400] sm:$0xff]
  %v174 = vld [vmem:[%s0 + $0x408] sm:$0xff]
  %v175 = vld [vmem:[%s0 + $0x410] sm:$0xff]
  %v176 = vld [vmem:[%s0 + $0x418] sm:$0xff]
  %v177 = vld [vmem:[%s0 + $0x420] sm:$0xff]
  %v178 = vld [vmem:[%s0 + $0x428] sm:$0xff]
  %v179 = vld [vmem:[%s0 + $0x430] sm:$0xff]
  %v180 = vld [vmem:[%s0 + $0x438] sm:$0xff]
  %v181 = vld [vmem:[%s0 + $0x440] sm:$0xff]
  %v182 = vld [vmem:[%s0 + $0x448] sm:$0xff]
  %v183 = vld [vmem:[%s0 + $0x450] sm:$0xff]
  %v184 = vld [vmem:[%s0 + $0x458] sm:$0xff]
  %v185 = vld [vmem:[%s0 + $0x460] sm:$0xff]
  %v186 = vld [vmem:[%s0 + $0x468] sm:$0xff]
  %v187 = vld [vmem:[%s0 + $0x470] sm:$0xff]
  %v188 = vld [vmem:[%s0 + $0x478] sm:$0xff]
  %v189 = vld [vmem:[%s1] sm:$0xff]
  %v190 = vld [vmem:[%s1 + $0x8] sm:$0xff]
  %v191 = vld [vmem:[%s1 + $0x10] sm:$0xff]
  %v192 = vld [vmem:[%s1 + $0x18] sm:$0xff]
  %v193 = vld [vmem:[%s1 + $0x20] sm:$0xff]
  %v194 = vld [vmem:[%s1 + $0x28] sm:$0xff]
  %v195 = vld [vmem:[%s1 + $0x30] sm:$0xff]
  %v196 = vld [vmem:[%s1 + $0x38] sm:$0xff]
  %v197 = vld [vmem:[%s1 + $0x40] sm:$0xff]
  %v198 = vld [vmem:[%s1 + $0x48] sm:$0xff]
  %v199 = vld [vmem:[%s1 + $0x50] sm:$0xff]
  %v200 = vld [vmem:[%s1 + $0x58] sm:$0xff]
  %v201 = vld [vmem:[%s1 + $0x60] sm:$0xff]
  %v202 = vld [vmem:[%s1 + $0x68] sm:$0xff]
  %v203 = vld [vmem:[%s1 + $0x70] sm:$0xff]
  %v204 = vld [vmem:[%s1 + $0x78] sm:$0xff]
  %v205 = vld [vmem:[%s1 + $0x80] sm:$0xff]
  %v206 = vld [vmem:[%s1 + $0x88] sm:$0xff]
  %v207 = vld [vmem:[%s1 + $0x90] sm:$0xff]
  %v208 = vld [vmem:[%s1 + $0x98] sm:$0xff]
  %v209 = vld [vmem:[%s1 + $0xa0] sm:$0xff]
  %v210 = vld [vmem:[%s1 + $0xa8] sm:$0xff]
  %v211 = vld [vmem:[%s1 + $0xb0] sm:$0xff]
  %v212 = vld [vmem:[%s1 + $0xb8] sm:$0xff]
  %v213 = vld [vmem:[%s1 + $0xc0] sm:$0xff]
  %v214 = vld [vmem:[%s1 + $0xc8] sm:$0xff]
  %v215 = vld [vmem:[%s1 + $0xd0] sm:$0xff]
  %v216 = vld [vmem:[%s1 + $0xd8] sm:$0xff]
  %v217 = vld [vmem:[%s1 + $0xe0] sm:$0xff]
  %v218 = vld [vmem:[%s1 + $0xe8] sm:$0xff]
  %v219 = vld [vmem:[%s1 + $0xf0] sm:$0xff]
  %v220 = vld [vmem:[%s1 + $0xf8] sm:$0xff]
  %v221 = vld [vmem:[%s1 + $0x100] sm:$0xff]
  %v222 = vld [vmem:[%s1 + $0x108] sm:$0xff]
  %v223 = vld [vmem:[%s1 + $0x110] sm:$0xff]
  %v224 = vld [vmem:[%s1 + $0x118] sm:$0xff]
  %v225 = vld [vmem:[%s1 + $0x120] sm:$0xff]
  %v226 = vld [vmem:[%s1 + $0x128] sm:$0xff]
  %v227 = vld [vmem:[%s1 + $0x130] sm:$0xff]
  %v228 = vld [vmem:[%s1 + $0x138] sm:$0xff]
  %v229 = vld [vmem:[%s1 + $0x140] sm:$0xff]
  %v230 = vld [vmem:[%s1 + $0x148] sm:$0xff]
  %v231 = vld [vmem:[%s1 + $0x150] sm:$0xff]
  %v232 = vld [vmem:[%s1 + $0x158] sm:$0xff]
  %v233 = vld [vmem:[%s1 + $0x160] sm:$0xff]
  %v234 = vld [vmem:[%s1 + $0x168] sm:$0xff]
  %v235 = vld [vmem:[%s1 + $0x170] sm:$0xff]
  %v236 = vld [vmem:[%s1 + $0x178] sm:$0xff]
  %v237 = vld [vmem:[%s1 + $0x180] sm:$0xff]
  %v238 = vld [vmem:[%s1 + $0x188] sm:$0xff]
  %v239 = vld [vmem:[%s1 + $0x190] sm:$0xff]
  %v240 = vld [vmem:[%s1 + $0x198] sm:$0xff]
  %v241 = vld [vmem:[%s1 + $0x1a0] sm:$0xff]
  %v242 = vld [vmem:[%s1 + $0x1a8] sm:$0xff]
  %v243 = vld [vmem:[%s1 + $0x1b0] sm:$0xff]
  %v244 = vld [vmem:[%s1 + $0x1b8] sm:$0xff]
  %v245 = vld [vmem:[%s1 + $0x1c0] sm:$0xff]
  %v246 = vld [vmem:[%s1 + $0x1c8] sm:$0xff]
  %v247 = vld [vmem:[%s1 + $0x1d0] sm:$0xff]
  %v248 = vld [vmem:[%s1 + $0x1d8] sm:$0xff]
  %v249 = vld [vmem:[%s1 + $0x1e0] sm:$0xff]
  %v250 = vld [vmem:[%s1 + $0x1e8] sm:$0xff]
  %v251 = vld [vmem:[%s1 + $0x1f0] sm:$0xff]
  %v252 = vld [vmem:[%s1 + $0x1f8] sm:$0xff]
  %v253 = vld [vmem:[%s1 + $0x200] sm:$0xff]
  %v254 = vld [vmem:[%s1 + $0x208] sm:$0xff]
  %v255 = vld [vmem:[%s1 + $0x210] sm:$0xff]
  %v256 = vld [vmem:[%s1 + $0x218] sm:$0xff]
  %v257 = vld [vmem:[%s1 + $0x220] sm:$0xff]
  %v258 = vld [vmem:[%s1 + $0x228] sm:$0xff]
  %v259 = vld [vmem:[%s1 + $0x230] sm:$0xff]
  %v260 = vld [vmem:[%s1 + $0x238] sm:$0xff]
  %v261 = vld [vmem:[%s1 + $0x240] sm:$0xff]
  %v262 = vld [vmem:[%s1 + $0x248] sm:$0xff]
  %v263 = vld [vmem:[%s1 + $0x250] sm:$0xff]
  %v264 = vld [vmem:[%s1 + $0x258] sm:$0xff]
  %v265 = vld [vmem:[%s1 + $0x260] sm:$0xff]
  %v266 = vld [vmem:[%s1 + $0x268] sm:$0xff]
  %v267 = vld [vmem:[%s1 + $0x270] sm:$0xff]
  %v268 = vld [vmem:[%s1 + $0x278] sm:$0xff]
  %v269 = vld [vmem:[%s1 + $0x280] sm:$0xff]
  %v270 = vld [vmem:[%s1 + $0x288] sm:$0xff]
  %v271 = vld [vmem:[%s1 + $0x290] sm:$0xff]
  %v272 = vld [vmem:[%s1 + $0x298] sm:$0xff]
  %v273 = vld [vmem:[%s1 + $0x2a0] sm:$0xff]
  %v274 = vld [vmem:[%s1 + $0x2a8] sm:$0xff]
  %v275 = vld [vmem:[%s1 + $0x2b0] sm:$0xff]
  %v276 = vld [vmem:[%s1 + $0x2b8] sm:$0xff]
  %v277 = vld [vmem:[%s1 + $0x2c0] sm:$0xff]
  %v278 = vld [vmem:[%s1 + $0x2c8] sm:$0xff]
  %v279 = vld [vmem:[%s1 + $0x2d0] sm:$0xff]
  %v280 = vld [vmem:[%s1 + $0x2d8] sm:$0xff]
  %v281 = vld [vmem:[%s1 + $0x2e0] sm:$0xff]
  %v282 = vld [vmem:[%s1 + $0x2e8] sm:$0xff]
  %v283 = vld [vmem:[%s1 + $0x2f0] sm:$0xff]
  %v284 = vld [vmem:[%s1 + $0x2f8] sm:$0xff]
  %v429 = vunpack.c.l.b16 %v45
  %v430 = vunpack.c.h.b16 %v45
  %v431 = vunpack.c.l.b16 %v46
  %v432 = vunpack.c.h.b16 %v46
  %v433 = vunpack.c.l.b16 %v47
  %v434 = vunpack.c.h.b16 %v47
  %v435 = vunpack.c.l.b16 %v48
  %v436 = vunpack.c.h.b16 %v48
  %v437 = vunpack.c.l.b16 %v49
  %v438 = vunpack.c.h.b16 %v49
  %v439 = vunpack.c.l.b16 %v50
  %v440 = vunpack.c.h.b16 %v50
  %v441 = vunpack.c.l.b16 %v51
  %v442 = vunpack.c.h.b16 %v51
  %v443 = vunpack.c.l.b16 %v52
  %v444 = vunpack.c.h.b16 %v52
  %v445 = vunpack.c.l.b16 %v53
  %v446 = vunpack.c.h.b16 %v53
  %v447 = vunpack.c.l.b16 %v54
  %v448 = vunpack.c.h.b16 %v54
  %v449 = vunpack.c.l.b16 %v55
  %v450 = vunpack.c.h.b16 %v55
  %v451 = vunpack.c.l.b16 %v56
  %v452 = vunpack.c.h.b16 %v56
  %v453 = vunpack.c.l.b16 %v57
  %v454 = vunpack.c.h.b16 %v57
  %v455 = vunpack.c.l.b16 %v58
  %v456 = vunpack.c.h.b16 %v58
  %v457 = vunpack.c.l.b16 %v59
  %v458 = vunpack.c.h.b16 %v59
  %v459 = vunpack.c.l.b16 %v60
  %v460 = vunpack.c.h.b16 %v60
  %v461 = vunpack.c.l.b16 %v61
  %v462 = vunpack.c.h.b16 %v61
  %v463 = vunpack.c.l.b16 %v62
  %v464 = vunpack.c.h.b16 %v62
  %v465 = vunpack.c.l.b16 %v63
  %v466 = vunpack.c.h.b16 %v63
  %v467 = vunpack.c.l.b16 %v64
  %v468 = vunpack.c.h.b16 %v64
  %v469 = vunpack.c.l.b16 %v65
  %v470 = vunpack.c.h.b16 %v65
  %v471 = vunpack.c.l.b16 %v66
  %v472 = vunpack.c.h.b16 %v66
  %v473 = vunpack.c.l.b16 %v67
  %v474 = vunpack.c.h.b16 %v67
  %v475 = vunpack.c.l.b16 %v68
  %v476 = vunpack.c.h.b16 %v68
  %v477 = vunpack.c.l.b16 %v69
  %v478 = vunpack.c.h.b16 %v69
  %v479 = vunpack.c.l.b16 %v70
  %v480 = vunpack.c.h.b16 %v70
  %v481 = vunpack.c.l.b16 %v71
  %v482 = vunpack.c.h.b16 %v71
  %v483 = vunpack.c.l.b16 %v72
  %v484 = vunpack.c.h.b16 %v72
  %v485 = vunpack.c.l.b16 %v73
  %v486 = vunpack.c.h.b16 %v73
  %v487 = vunpack.c.l.b16 %v74
  %v488 = vunpack.c.h.b16 %v74
  %v489 = vunpack.c.l.b16 %v75
  %v490 = vunpack.c.h.b16 %v75
  %v491 = vunpack.c.l.b16 %v76
  %v492 = vunpack.c.h.b16 %v76
  %v493 = vunpack.c.l.b16 %v77
  %v494 = vunpack.c.h.b16 %v77
  %v495 = vunpack.c.l.b16 %v78
  %v496 = vunpack.c.h.b16 %v78
  %v497 = vunpack.c.l.b16 %v79
  %v498 = vunpack.c.h.b16 %v79
  %v499 = vunpack.c.l.b16 %v80
  %v500 = vunpack.c.h.b16 %v80
  %v501 = vunpack.c.l.b16 %v81
  %v502 = vunpack.c.h.b16 %v81
  %v503 = vunpack.c.l.b16 %v82
  %v504 = vunpack.c.h.b16 %v82
  %v505 = vunpack.c.l.b16 %v83
  %v506 = vunpack.c.h.b16 %v83
  %v507 = vunpack.c.l.b16 %v84
  %v508 = vunpack.c.h.b16 %v84
  %v509 = vunpack.c.l.b16 %v85
  %v510 = vunpack.c.h.b16 %v85
  %v511 = vunpack.c.l.b16 %v86
  %v512 = vunpack.c.h.b16 %v86
  %v513 = vunpack.c.l.b16 %v87
  %v514 = vunpack.c.h.b16 %v87
  %v515 = vunpack.c.l.b16 %v88
  %v516 = vunpack.c.h.b16 %v88
  %v517 = vunpack.c.l.b16 %v89
  %v518 = vunpack.c.h.b16 %v89
  %v519 = vunpack.c.l.b16 %v90
  %v520 = vunpack.c.h.b16 %v90
  %v521 = vunpack.c.l.b16 %v91
  %v522 = vunpack.c.h.b16 %v91
  %v523 = vunpack.c.l.b16 %v92
  %v524 = vunpack.c.h.b16 %v92
  %v525 = vunpack.c.l.b16 %v93
  %v526 = vunpack.c.h.b16 %v93
  %v527 = vunpack.c.l.b16 %v94
  %v528 = vunpack.c.h.b16 %v94
  %v529 = vunpack.c.l.b16 %v95
  %v530 = vunpack.c.h.b16 %v95
  %v531 = vunpack.c.l.b16 %v96
  %v532 = vunpack.c.h.b16 %v96
  %v533 = vunpack.c.l.b16 %v97
  %v534 = vunpack.c.h.b16 %v97
  %v535 = vunpack.c.l.b16 %v98
  %v536 = vunpack.c.h.b16 %v98
  %v537 = vunpack.c.l.b16 %v99
  %v538 = vunpack.c.h.b16 %v99
  %v539 = vunpack.c.l.b16 %v100
  %v540 = vunpack.c.h.b16 %v100
  %v541 = vunpack.c.l.b16 %v101
  %v542 = vunpack.c.h.b16 %v101
  %v543 = vunpack.c.l.b16 %v102
  %v544 = vunpack.c.h.b16 %v102
  %v545 = vunpack.c.l.b16 %v103
  %v546 = vunpack.c.h.b16 %v103
  %v547 = vunpack.c.l.b16 %v104
  %v548 = vunpack.c.h.b16 %v104
  %v549 = vunpack.c.l.b16 %v105
  %v550 = vunpack.c.h.b16 %v105
  %v551 = vunpack.c.l.b16 %v106
  %v552 = vunpack.c.h.b16 %v106
  %v553 = vunpack.c.l.b16 %v107
  %v554 = vunpack.c.h.b16 %v107
  %v555 = vunpack.c.l.b16 %v108
  %v556 = vunpack.c.h.b16 %v108
  %v557 = vunpack.c.l.b16 %v109
  %v558 = vunpack.c.h.b16 %v109
  %v559 = vunpack.c.l.b16 %v110
  %v560 = vunpack.c.h.b16 %v110
  %v561 = vunpack.c.l.b16 %v111
  %v562 = vunpack.c.h.b16 %v111
  %v563 = vunpack.c.l.b16 %v112
  %v564 = vunpack.c.h.b16 %v112
  %v565 = vunpack.c.l.b16 %v113
  %v566 = vunpack.c.h.b16 %v113
  %v567 = vunpack.c.l.b16 %v114
  %v568 = vunpack.c.h.b16 %v114
  %v569 = vunpack.c.l.b16 %v115
  %v570 = vunpack.c.h.b16 %v115
  %v571 = vunpack.c.l.b16 %v116
  %v572 = vunpack.c.h.b16 %v116
  %v573 = vunpack.c.l.b16 %v117
  %v574 = vunpack.c.h.b16 %v117
  %v575 = vunpack.c.l.b16 %v118
  %v576 = vunpack.c.h.b16 %v118
  %v577 = vunpack.c.l.b16 %v119
  %v578 = vunpack.c.h.b16 %v119
  %v579 = vunpack.c.l.b16 %v120
  %v580 = vunpack.c.h.b16 %v120
  %v581 = vunpack.c.l.b16 %v121
  %v582 = vunpack.c.h.b16 %v121
  %v583 = vunpack.c.l.b16 %v122
  %v584 = vunpack.c.h.b16 %v122
  %v585 = vunpack.c.l.b16 %v123
  %v586 = vunpack.c.h.b16 %v123
  %v587 = vunpack.c.l.b16 %v124
  %v588 = vunpack.c.h.b16 %v124
  %v589 = vunpack.c.l.b16 %v125
  %v590 = vunpack.c.h.b16 %v125
  %v591 = vunpack.c.l.b16 %v126
  %v592 = vunpack.c.h.b16 %v126
  %v593 = vunpack.c.l.b16 %v127
  %v594 = vunpack.c.h.b16 %v127
  %v595 = vunpack.c.l.b16 %v128
  %v596 = vunpack.c.h.b16 %v128
  %v597 = vunpack.c.l.b16 %v129
  %v598 = vunpack.c.h.b16 %v129
  %v599 = vunpack.c.l.b16 %v130
  %v600 = vunpack.c.h.b16 %v130
  %v601 = vunpack.c.l.b16 %v131
  %v602 = vunpack.c.h.b16 %v131
  %v603 = vunpack.c.l.b16 %v132
  %v604 = vunpack.c.h.b16 %v132
  %v605 = vunpack.c.l.b16 %v133
  %v606 = vunpack.c.h.b16 %v133
  %v607 = vunpack.c.l.b16 %v134
  %v608 = vunpack.c.h.b16 %v134
  %v609 = vunpack.c.l.b16 %v135
  %v610 = vunpack.c.h.b16 %v135
  %v611 = vunpack.c.l.b16 %v136
  %v612 = vunpack.c.h.b16 %v136
  %v613 = vunpack.c.l.b16 %v137
  %v614 = vunpack.c.h.b16 %v137
  %v615 = vunpack.c.l.b16 %v138
  %v616 = vunpack.c.h.b16 %v138
  %v617 = vunpack.c.l.b16 %v139
  %v618 = vunpack.c.h.b16 %v139
  %v619 = vunpack.c.l.b16 %v140
  %v620 = vunpack.c.h.b16 %v140
  %v621 = vunpack.c.l.b16 %v141
  %v622 = vunpack.c.h.b16 %v141
  %v623 = vunpack.c.l.b16 %v142
  %v624 = vunpack.c.h.b16 %v142
  %v625 = vunpack.c.l.b16 %v143
  %v626 = vunpack.c.h.b16 %v143
  %v627 = vunpack.c.l.b16 %v144
  %v628 = vunpack.c.h.b16 %v144
  %v629 = vunpack.c.l.b16 %v145
  %v630 = vunpack.c.h.b16 %v145
  %v631 = vunpack.c.l.b16 %v146
  %v632 = vunpack.c.h.b16 %v146
  %v633 = vunpack.c.l.b16 %v147
  %v634 = vunpack.c.h.b16 %v147
  %v635 = vunpack.c.l.b16 %v148
  %v636 = vunpack.c.h.b16 %v148
  %v637 = vunpack.c.l.b16 %v149
  %v638 = vunpack.c.h.b16 %v149
  %v639 = vunpack.c.l.b16 %v150
  %v640 = vunpack.c.h.b16 %v150
  %v641 = vunpack.c.l.b16 %v151
  %v642 = vunpack.c.h.b16 %v151
  %v643 = vunpack.c.l.b16 %v152
  %v644 = vunpack.c.h.b16 %v152
  %v645 = vunpack.c.l.b16 %v153
  %v646 = vunpack.c.h.b16 %v153
  %v647 = vunpack.c.l.b16 %v154
  %v648 = vunpack.c.h.b16 %v154
  %v649 = vunpack.c.l.b16 %v155
  %v650 = vunpack.c.h.b16 %v155
  %v651 = vunpack.c.l.b16 %v156
  %v652 = vunpack.c.h.b16 %v156
  %v653 = vunpack.c.l.b16 %v157
  %v654 = vunpack.c.h.b16 %v157
  %v655 = vunpack.c.l.b16 %v158
  %v656 = vunpack.c.h.b16 %v158
  %v657 = vunpack.c.l.b16 %v159
  %v658 = vunpack.c.h.b16 %v159
  %v659 = vunpack.c.l.b16 %v160
  %v660 = vunpack.c.h.b16 %v160
  %v661 = vunpack.c.l.b16 %v161
  %v662 = vunpack.c.h.b16 %v161
  %v663 = vunpack.c.l.b16 %v162
  %v664 = vunpack.c.h.b16 %v162
  %v665 = vunpack.c.l.b16 %v163
  %v666 = vunpack.c.h.b16 %v163
  %v667 = vunpack.c.l.b16 %v164
  %v668 = vunpack.c.h.b16 %v164
  %v669 = vunpack.c.l.b16 %v165
  %v670 = vunpack.c.h.b16 %v165
  %v671 = vunpack.c.l.b16 %v166
  %v672 = vunpack.c.h.b16 %v166
  %v673 = vunpack.c.l.b16 %v167
  %v674 = vunpack.c.h.b16 %v167
  %v675 = vunpack.c.l.b16 %v168
  %v676 = vunpack.c.h.b16 %v168
  %v677 = vunpack.c.l.b16 %v169
  %v678 = vunpack.c.h.b16 %v169
  %v679 = vunpack.c.l.b16 %v170
  %v680 = vunpack.c.h.b16 %v170
  %v681 = vunpack.c.l.b16 %v171
  %v682 = vunpack.c.h.b16 %v171
  %v683 = vunpack.c.l.b16 %v172
  %v684 = vunpack.c.h.b16 %v172
  %v685 = vunpack.c.l.b16 %v173
  %v686 = vunpack.c.h.b16 %v173
  %v687 = vunpack.c.l.b16 %v174
  %v688 = vunpack.c.h.b16 %v174
  %v689 = vunpack.c.l.b16 %v175
  %v690 = vunpack.c.h.b16 %v175
  %v691 = vunpack.c.l.b16 %v176
  %v692 = vunpack.c.h.b16 %v176
  %v693 = vunpack.c.l.b16 %v177
  %v694 = vunpack.c.h.b16 %v177
  %v695 = vunpack.c.l.b16 %v178
  %v696 = vunpack.c.h.b16 %v178
  %v697 = vunpack.c.l.b16 %v179
  %v698 = vunpack.c.h.b16 %v179
  %v699 = vunpack.c.l.b16 %v180
  %v700 = vunpack.c.h.b16 %v180
  %v701 = vunpack.c.l.b16 %v181
  %v702 = vunpack.c.h.b16 %v181
  %v703 = vunpack.c.l.b16 %v182
  %v704 = vunpack.c.h.b16 %v182
  %v705 = vunpack.c.l.b16 %v183
  %v706 = vunpack.c.h.b16 %v183
  %v707 = vunpack.c.l.b16 %v184
  %v708 = vunpack.c.h.b16 %v184
  %v709 = vunpack.c.l.b16 %v185
  %v710 = vunpack.c.h.b16 %v185
  %v711 = vunpack.c.l.b16 %v186
  %v712 = vunpack.c.h.b16 %v186
  %v713 = vunpack.c.l.b16 %v187
  %v714 = vunpack.c.h.b16 %v187
  %v715 = vunpack.c.l.b16 %v188
  %v716 = vunpack.c.h.b16 %v188
  %v717 = vpack.c.b16 %v435, %v429
  %v718 = vpack.c.b16 %v436, %v430
  %v719 = vpack.c.b16 %v437, %v431
  %v720 = vpack.c.b16 %v438, %v432
  %v721 = vpack.c.b16 %v439, %v433
  %v722 = vpack.c.b16 %v440, %v434
  %v723 = vpack.c.b16 %v447, %v441
  %v724 = vpack.c.b16 %v448, %v442
  %v725 = vpack.c.b16 %v449, %v443
  %v726 = vpack.c.b16 %v450, %v444
  %v727 = vpack.c.b16 %v451, %v445
  %v728 = vpack.c.b16 %v452, %v446
  %v729 = vpack.c.b16 %v459, %v453
  %v730 = vpack.c.b16 %v460, %v454
  %v731 = vpack.c.b16 %v461, %v455
  %v732 = vpack.c.b16 %v462, %v456
  %v733 = vpack.c.b16 %v463, %v457
  %v734 = vpack.c.b16 %v464, %v458
  %v735 = vpack.c.b16 %v471, %v465
  %v736 = vpack.c.b16 %v472, %v466
  %v737 = vpack.c.b16 %v473, %v467
  %v738 = vpack.c.b16 %v474, %v468
  %v739 = vpack.c.b16 %v475, %v469
  %v740 = vpack.c.b16 %v476, %v470
  %v741 = vpack.c.b16 %v483, %v477
  %v742 = vpack.c.b16 %v484, %v478
  %v743 = vpack.c.b16 %v485, %v479
  %v744 = vpack.c.b16 %v486, %v480
  %v745 = vpack.c.b16 %v487, %v481
  %v746 = vpack.c.b16 %v488, %v482
  %v747 = vpack.c.b16 %v495, %v489
  %v748 = vpack.c.b16 %v496, %v490
  %v749 = vpack.c.b16 %v497, %v491
  %v750 = vpack.c.b16 %v498, %v492
  %v751 = vpack.c.b16 %v499, %v493
  %v752 = vpack.c.b16 %v500, %v494
  %v753 = vpack.c.b16 %v507, %v501
  %v754 = vpack.c.b16 %v508, %v502
  %v755 = vpack.c.b16 %v509, %v503
  %v756 = vpack.c.b16 %v510, %v504
  %v757 = vpack.c.b16 %v511, %v505
  %v758 = vpack.c.b16 %v512, %v506
  %v759 = vpack.c.b16 %v519, %v513
  %v760 = vpack.c.b16 %v520, %v514
  %v761 = vpack.c.b16 %v521, %v515
  %v762 = vpack.c.b16 %v522, %v516
  %v763 = vpack.c.b16 %v523, %v517
  %v764 = vpack.c.b16 %v524, %v518
  %v765 = vpack.c.b16 %v531, %v525
  %v766 = vpack.c.b16 %v532, %v526
  %v767 = vpack.c.b16 %v533, %v527
  %v768 = vpack.c.b16 %v534, %v528
  %v769 = vpack.c.b16 %v535, %v529
  %v770 = vpack.c.b16 %v536, %v530
  %v771 = vpack.c.b16 %v543, %v537
  %v772 = vpack.c.b16 %v544, %v538
  %v773 = vpack.c.b16 %v545, %v539
  %v774 = vpack.c.b16 %v546, %v540
  %v775 = vpack.c.b16 %v547, %v541
  %v776 = vpack.c.b16 %v548, %v542
  %v777 = vpack.c.b16 %v555, %v549
  %v778 = vpack.c.b16 %v556, %v550
  %v779 = vpack.c.b16 %v557, %v551
  %v780 = vpack.c.b16 %v558, %v552
  %v781 = vpack.c.b16 %v559, %v553
  %v782 = vpack.c.b16 %v560, %v554
  %v783 = vpack.c.b16 %v567, %v561
  %v784 = vpack.c.b16 %v568, %v562
  %v785 = vpack.c.b16 %v569, %v563
  %v786 = vpack.c.b16 %v570, %v564
  %v787 = vpack.c.b16 %v571, %v565
  %v788 = vpack.c.b16 %v572, %v566
  %v789 = vpack.c.b16 %v579, %v573
  %v790 = vpack.c.b16 %v580, %v574
  %v791 = vpack.c.b16 %v581, %v575
  %v792 = vpack.c.b16 %v582, %v576
  %v793 = vpack.c.b16 %v583, %v577
  %v794 = vpack.c.b16 %v584, %v578
  %v795 = vpack.c.b16 %v591, %v585
  %v796 = vpack.c.b16 %v592, %v586
  %v797 = vpack.c.b16 %v593, %v587
  %v798 = vpack.c.b16 %v594, %v588
  %v799 = vpack.c.b16 %v595, %v589
  %v800 = vpack.c.b16 %v596, %v590
  %v801 = vpack.c.b16 %v603, %v597
  %v802 = vpack.c.b16 %v604, %v598
  %v803 = vpack.c.b16 %v605, %v599
  %v804 = vpack.c.b16 %v606, %v600
  %v805 = vpack.c.b16 %v607, %v601
  %v806 = vpack.c.b16 %v608, %v602
  %v807 = vpack.c.b16 %v615, %v609
  %v808 = vpack.c.b16 %v616, %v610
  %v809 = vpack.c.b16 %v617, %v611
  %v810 = vpack.c.b16 %v618, %v612
  %v811 = vpack.c.b16 %v619, %v613
  %v812 = vpack.c.b16 %v620, %v614
  %v813 = vpack.c.b16 %v627, %v621
  %v814 = vpack.c.b16 %v628, %v622
  %v815 = vpack.c.b16 %v629, %v623
  %v816 = vpack.c.b16 %v630, %v624
  %v817 = vpack.c.b16 %v631, %v625
  %v818 = vpack.c.b16 %v632, %v626
  %v819 = vpack.c.b16 %v639, %v633
  %v820 = vpack.c.b16 %v640, %v634
  %v821 = vpack.c.b16 %v641, %v635
  %v822 = vpack.c.b16 %v642, %v636
  %v823 = vpack.c.b16 %v643, %v637
  %v824 = vpack.c.b16 %v644, %v638
  %v825 = vpack.c.b16 %v651, %v645
  %v826 = vpack.c.b16 %v652, %v646
  %v827 = vpack.c.b16 %v653, %v647
  %v828 = vpack.c.b16 %v654, %v648
  %v829 = vpack.c.b16 %v655, %v649
  %v830 = vpack.c.b16 %v656, %v650
  %v831 = vpack.c.b16 %v663, %v657
  %v832 = vpack.c.b16 %v664, %v658
  %v833 = vpack.c.b16 %v665, %v659
  %v834 = vpack.c.b16 %v666, %v660
  %v835 = vpack.c.b16 %v667, %v661
  %v836 = vpack.c.b16 %v668, %v662
  %v837 = vpack.c.b16 %v675, %v669
  %v838 = vpack.c.b16 %v676, %v670
  %v839 = vpack.c.b16 %v677, %v671
  %v840 = vpack.c.b16 %v678, %v672
  %v841 = vpack.c.b16 %v679, %v673
  %v842 = vpack.c.b16 %v680, %v674
  %v843 = vpack.c.b16 %v687, %v681
  %v844 = vpack.c.b16 %v688, %v682
  %v845 = vpack.c.b16 %v689, %v683
  %v846 = vpack.c.b16 %v690, %v684
  %v847 = vpack.c.b16 %v691, %v685
  %v848 = vpack.c.b16 %v692, %v686
  %v849 = vpack.c.b16 %v699, %v693
  %v850 = vpack.c.b16 %v700, %v694
  %v851 = vpack.c.b16 %v701, %v695
  %v852 = vpack.c.b16 %v702, %v696
  %v853 = vpack.c.b16 %v703, %v697
  %v854 = vpack.c.b16 %v704, %v698
  %v855 = vpack.c.b16 %v711, %v705
  %v856 = vpack.c.b16 %v712, %v706
  %v857 = vpack.c.b16 %v713, %v707
  %v858 = vpack.c.b16 %v714, %v708
  %v859 = vpack.c.b16 %v715, %v709
  %v860 = vpack.c.b16 %v716, %v710
  %v1101 = vunpack.c.l.b16 %v189
  %v1102 = vunpack.c.h.b16 %v189
  %v1103 = vunpack.c.l.b16 %v190
  %v1104 = vunpack.c.h.b16 %v190
  %v1105 = vunpack.c.l.b16 %v191
  %v1106 = vunpack.c.h.b16 %v191
  %v1107 = vunpack.c.l.b16 %v192
  %v1108 = vunpack.c.h.b16 %v192
  %v1109 = vunpack.c.l.b16 %v193
  %v1110 = vunpack.c.h.b16 %v193
  %v1111 = vunpack.c.l.b16 %v194
  %v1112 = vunpack.c.h.b16 %v194
  %v1113 = vunpack.c.l.b16 %v195
  %v1114 = vunpack.c.h.b16 %v195
  %v1115 = vunpack.c.l.b16 %v196
  %v1116 = vunpack.c.h.b16 %v196
  %v1117 = vunpack.c.l.b16 %v197
  %v1118 = vunpack.c.h.b16 %v197
  %v1119 = vunpack.c.l.b16 %v198
  %v1120 = vunpack.c.h.b16 %v198
  %v1121 = vunpack.c.l.b16 %v199
  %v1122 = vunpack.c.h.b16 %v199
  %v1123 = vunpack.c.l.b16 %v200
  %v1124 = vunpack.c.h.b16 %v200
  %v1125 = vunpack.c.l.b16 %v201
  %v1126 = vunpack.c.h.b16 %v201
  %v1127 = vunpack.c.l.b16 %v202
  %v1128 = vunpack.c.h.b16 %v202
  %v1129 = vunpack.c.l.b16 %v203
  %v1130 = vunpack.c.h.b16 %v203
  %v1131 = vunpack.c.l.b16 %v204
  %v1132 = vunpack.c.h.b16 %v204
  %v1133 = vunpack.c.l.b16 %v205
  %v1134 = vunpack.c.h.b16 %v205
  %v1135 = vunpack.c.l.b16 %v206
  %v1136 = vunpack.c.h.b16 %v206
  %v1137 = vunpack.c.l.b16 %v207
  %v1138 = vunpack.c.h.b16 %v207
  %v1139 = vunpack.c.l.b16 %v208
  %v1140 = vunpack.c.h.b16 %v208
  %v1141 = vunpack.c.l.b16 %v209
  %v1142 = vunpack.c.h.b16 %v209
  %v1143 = vunpack.c.l.b16 %v210
  %v1144 = vunpack.c.h.b16 %v210
  %v1145 = vunpack.c.l.b16 %v211
  %v1146 = vunpack.c.h.b16 %v211
  %v1147 = vunpack.c.l.b16 %v212
  %v1148 = vunpack.c.h.b16 %v212
  %v1149 = vunpack.c.l.b16 %v213
  %v1150 = vunpack.c.h.b16 %v213
  %v1151 = vunpack.c.l.b16 %v214
  %v1152 = vunpack.c.h.b16 %v214
  %v1153 = vunpack.c.l.b16 %v215
  %v1154 = vunpack.c.h.b16 %v215
  %v1155 = vunpack.c.l.b16 %v216
  %v1156 = vunpack.c.h.b16 %v216
  %v1157 = vunpack.c.l.b16 %v217
  %v1158 = vunpack.c.h.b16 %v217
  %v1159 = vunpack.c.l.b16 %v218
  %v1160 = vunpack.c.h.b16 %v218
  %v1161 = vunpack.c.l.b16 %v219
  %v1162 = vunpack.c.h.b16 %v219
  %v1163 = vunpack.c.l.b16 %v220
  %v1164 = vunpack.c.h.b16 %v220
  %v1165 = vunpack.c.l.b16 %v221
  %v1166 = vunpack.c.h.b16 %v221
  %v1167 = vunpack.c.l.b16 %v222
  %v1168 = vunpack.c.h.b16 %v222
  %v1169 = vunpack.c.l.b16 %v223
  %v1170 = vunpack.c.h.b16 %v223
  %v1171 = vunpack.c.l.b16 %v224
  %v1172 = vunpack.c.h.b16 %v224
  %v1173 = vunpack.c.l.b16 %v225
  %v1174 = vunpack.c.h.b16 %v225
  %v1175 = vunpack.c.l.b16 %v226
  %v1176 = vunpack.c.h.b16 %v226
  %v1177 = vunpack.c.l.b16 %v227
  %v1178 = vunpack.c.h.b16 %v227
  %v1179 = vunpack.c.l.b16 %v228
  %v1180 = vunpack.c.h.b16 %v228
  %v1181 = vunpack.c.l.b16 %v229
  %v1182 = vunpack.c.h.b16 %v229
  %v1183 = vunpack.c.l.b16 %v230
  %v1184 = vunpack.c.h.b16 %v230
  %v1185 = vunpack.c.l.b16 %v231
  %v1186 = vunpack.c.h.b16 %v231
  %v1187 = vunpack.c.l.b16 %v232
  %v1188 = vunpack.c.h.b16 %v232
  %v1189 = vunpack.c.l.b16 %v233
  %v1190 = vunpack.c.h.b16 %v233
  %v1191 = vunpack.c.l.b16 %v234
  %v1192 = vunpack.c.h.b16 %v234
  %v1193 = vunpack.c.l.b16 %v235
  %v1194 = vunpack.c.h.b16 %v235
  %v1195 = vunpack.c.l.b16 %v236
  %v1196 = vunpack.c.h.b16 %v236
  %v1197 = vunpack.c.l.b16 %v237
  %v1198 = vunpack.c.h.b16 %v237
  %v1199 = vunpack.c.l.b16 %v238
  %v1200 = vunpack.c.h.b16 %v238
  %v1201 = vunpack.c.l.b16 %v239
  %v1202 = vunpack.c.h.b16 %v239
  %v1203 = vunpack.c.l.b16 %v240
  %v1204 = vunpack.c.h.b16 %v240
  %v1205 = vunpack.c.l.b16 %v241
  %v1206 = vunpack.c.h.b16 %v241
  %v1207 = vunpack.c.l.b16 %v242
  %v1208 = vunpack.c.h.b16 %v242
  %v1209 = vunpack.c.l.b16 %v243
  %v1210 = vunpack.c.h.b16 %v243
  %v1211 = vunpack.c.l.b16 %v244
  %v1212 = vunpack.c.h.b16 %v244
  %v1213 = vunpack.c.l.b16 %v245
  %v1214 = vunpack.c.h.b16 %v245
  %v1215 = vunpack.c.l.b16 %v246
  %v1216 = vunpack.c.h.b16 %v246
  %v1217 = vunpack.c.l.b16 %v247
  %v1218 = vunpack.c.h.b16 %v247
  %v1219 = vunpack.c.l.b16 %v248
  %v1220 = vunpack.c.h.b16 %v248
  %v1221 = vunpack.c.l.b16 %v249
  %v1222 = vunpack.c.h.b16 %v249
  %v1223 = vunpack.c.l.b16 %v250
  %v1224 = vunpack.c.h.b16 %v250
  %v1225 = vunpack.c.l.b16 %v251
  %v1226 = vunpack.c.h.b16 %v251
  %v1227 = vunpack.c.l.b16 %v252
  %v1228 = vunpack.c.h.b16 %v252
  %v1229 = vunpack.c.l.b16 %v253
  %v1230 = vunpack.c.h.b16 %v253
  %v1231 = vunpack.c.l.b16 %v254
  %v1232 = vunpack.c.h.b16 %v254
  %v1233 = vunpack.c.l.b16 %v255
  %v1234 = vunpack.c.h.b16 %v255
  %v1235 = vunpack.c.l.b16 %v256
  %v1236 = vunpack.c.h.b16 %v256
  %v1237 = vunpack.c.l.b16 %v257
  %v1238 = vunpack.c.h.b16 %v257
  %v1239 = vunpack.c.l.b16 %v258
  %v1240 = vunpack.c.h.b16 %v258
  %v1241 = vunpack.c.l.b16 %v259
  %v1242 = vunpack.c.h.b16 %v259
  %v1243 = vunpack.c.l.b16 %v260
  %v1244 = vunpack.c.h.b16 %v260
  %v1245 = vunpack.c.l.b16 %v261
  %v1246 = vunpack.c.h.b16 %v261
  %v1247 = vunpack.c.l.b16 %v262
  %v1248 = vunpack.c.h.b16 %v262
  %v1249 = vunpack.c.l.b16 %v263
  %v1250 = vunpack.c.h.b16 %v263
  %v1251 = vunpack.c.l.b16 %v264
  %v1252 = vunpack.c.h.b16 %v264
  %v1253 = vunpack.c.l.b16 %v265
  %v1254 = vunpack.c.h.b16 %v265
  %v1255 = vunpack.c.l.b16 %v266
  %v1256 = vunpack.c.h.b16 %v266
  %v1257 = vunpack.c.l.b16 %v267
  %v1258 = vunpack.c.h.b16 %v267
  %v1259 = vunpack.c.l.b16 %v268
  %v1260 = vunpack.c.h.b16 %v268
  %v1261 = vunpack.c.l.b16 %v269
  %v1262 = vunpack.c.h.b16 %v269
  %v1263 = vunpack.c.l.b16 %v270
  %v1264 = vunpack.c.h.b16 %v270
  %v1265 = vunpack.c.l.b16 %v271
  %v1266 = vunpack.c.h.b16 %v271
  %v1267 = vunpack.c.l.b16 %v272
  %v1268 = vunpack.c.h.b16 %v272
  %v1269 = vunpack.c.l.b16 %v273
  %v1270 = vunpack.c.h.b16 %v273
  %v1271 = vunpack.c.l.b16 %v274
  %v1272 = vunpack.c.h.b16 %v274
  %v1273 = vunpack.c.l.b16 %v275
  %v1274 = vunpack.c.h.b16 %v275
  %v1275 = vunpack.c.l.b16 %v276
  %v1276 = vunpack.c.h.b16 %v276
  %v1277 = vunpack.c.l.b16 %v277
  %v1278 = vunpack.c.h.b16 %v277
  %v1279 = vunpack.c.l.b16 %v278
  %v1280 = vunpack.c.h.b16 %v278
  %v1281 = vunpack.c.l.b16 %v279
  %v1282 = vunpack.c.h.b16 %v279
  %v1283 = vunpack.c.l.b16 %v280
  %v1284 = vunpack.c.h.b16 %v280
  %v1285 = vunpack.c.l.b16 %v281
  %v1286 = vunpack.c.h.b16 %v281
  %v1287 = vunpack.c.l.b16 %v282
  %v1288 = vunpack.c.h.b16 %v282
  %v1289 = vunpack.c.l.b16 %v283
  %v1290 = vunpack.c.h.b16 %v283
  %v1291 = vunpack.c.l.b16 %v284
  %v1292 = vunpack.c.h.b16 %v284
  %v1293 = vpack.c.b16 %v1103, %v1101
  %v1294 = vpack.c.b16 %v1104, %v1102
  %v1295 = vpack.c.b16 %v1107, %v1105
  %v1296 = vpack.c.b16 %v1108, %v1106
  %v1297 = vpack.c.b16 %v1111, %v1109
  %v1298 = vpack.c.b16 %v1112, %v1110
  %v1299 = vpack.c.b16 %v1115, %v1113
  %v1300 = vpack.c.b16 %v1116, %v1114
  %v1301 = vpack.c.b16 %v1119, %v1117
  %v1302 = vpack.c.b16 %v1120, %v1118
  %v1303 = vpack.c.b16 %v1123, %v1121
  %v1304 = vpack.c.b16 %v1124, %v1122
  %v1305 = vpack.c.b16 %v1127, %v1125
  %v1306 = vpack.c.b16 %v1128, %v1126
  %v1307 = vpack.c.b16 %v1131, %v1129
  %v1308 = vpack.c.b16 %v1132, %v1130
  %v1309 = vpack.c.b16 %v1135, %v1133
  %v1310 = vpack.c.b16 %v1136, %v1134
  %v1311 = vpack.c.b16 %v1139, %v1137
  %v1312 = vpack.c.b16 %v1140, %v1138
  %v1313 = vpack.c.b16 %v1143, %v1141
  %v1314 = vpack.c.b16 %v1144, %v1142
  %v1315 = vpack.c.b16 %v1147, %v1145
  %v1316 = vpack.c.b16 %v1148, %v1146
  %v1317 = vpack.c.b16 %v1151, %v1149
  %v1318 = vpack.c.b16 %v1152, %v1150
  %v1319 = vpack.c.b16 %v1155, %v1153
  %v1320 = vpack.c.b16 %v1156, %v1154
  %v1321 = vpack.c.b16 %v1159, %v1157
  %v1322 = vpack.c.b16 %v1160, %v1158
  %v1323 = vpack.c.b16 %v1163, %v1161
  %v1324 = vpack.c.b16 %v1164, %v1162
  %v1325 = vpack.c.b16 %v1167, %v1165
  %v1326 = vpack.c.b16 %v1168, %v1166
  %v1327 = vpack.c.b16 %v1171, %v1169
  %v1328 = vpack.c.b16 %v1172, %v1170
  %v1329 = vpack.c.b16 %v1175, %v1173
  %v1330 = vpack.c.b16 %v1176, %v1174
  %v1331 = vpack.c.b16 %v1179, %v1177
  %v1332 = vpack.c.b16 %v1180, %v1178
  %v1333 = vpack.c.b16 %v1183, %v1181
  %v1334 = vpack.c.b16 %v1184, %v1182
  %v1335 = vpack.c.b16 %v1187, %v1185
  %v1336 = vpack.c.b16 %v1188, %v1186
  %v1337 = vpack.c.b16 %v1191, %v1189
  %v1338 = vpack.c.b16 %v1192, %v1190
  %v1339 = vpack.c.b16 %v1195, %v1193
  %v1340 = vpack.c.b16 %v1196, %v1194
  %v1341 = vpack.c.b16 %v1199, %v1197
  %v1342 = vpack.c.b16 %v1200, %v1198
  %v1343 = vpack.c.b16 %v1203, %v1201
  %v1344 = vpack.c.b16 %v1204, %v1202
  %v1345 = vpack.c.b16 %v1207, %v1205
  %v1346 = vpack.c.b16 %v1208, %v1206
  %v1347 = vpack.c.b16 %v1211, %v1209
  %v1348 = vpack.c.b16 %v1212, %v1210
  %v1349 = vpack.c.b16 %v1215, %v1213
  %v1350 = vpack.c.b16 %v1216, %v1214
  %v1351 = vpack.c.b16 %v1219, %v1217
  %v1352 = vpack.c.b16 %v1220, %v1218
  %v1353 = vpack.c.b16 %v1223, %v1221
  %v1354 = vpack.c.b16 %v1224, %v1222
  %v1355 = vpack.c.b16 %v1227, %v1225
  %v1356 = vpack.c.b16 %v1228, %v1226
  %v1357 = vpack.c.b16 %v1231, %v1229
  %v1358 = vpack.c.b16 %v1232, %v1230
  %v1359 = vpack.c.b16 %v1235, %v1233
  %v1360 = vpack.c.b16 %v1236, %v1234
  %v1361 = vpack.c.b16 %v1239, %v1237
  %v1362 = vpack.c.b16 %v1240, %v1238
  %v1363 = vpack.c.b16 %v1243, %v1241
  %v1364 = vpack.c.b16 %v1244, %v1242
  %v1365 = vpack.c.b16 %v1247, %v1245
  %v1366 = vpack.c.b16 %v1248, %v1246
  %v1367 = vpack.c.b16 %v1251, %v1249
  %v1368 = vpack.c.b16 %v1252, %v1250
  %v1369 = vpack.c.b16 %v1255, %v1253
  %v1370 = vpack.c.b16 %v1256, %v1254
  %v1371 = vpack.c.b16 %v1259, %v1257
  %v1372 = vpack.c.b16 %v1260, %v1258
  %v1373 = vpack.c.b16 %v1263, %v1261
  %v1374 = vpack.c.b16 %v1264, %v1262
  %v1375 = vpack.c.b16 %v1267, %v1265
  %v1376 = vpack.c.b16 %v1268, %v1266
  %v1377 = vpack.c.b16 %v1271, %v1269
  %v1378 = vpack.c.b16 %v1272, %v1270
  %v1379 = vpack.c.b16 %v1275, %v1273
  %v1380 = vpack.c.b16 %v1276, %v1274
  %v1381 = vpack.c.b16 %v1279, %v1277
  %v1382 = vpack.c.b16 %v1280, %v1278
  %v1383 = vpack.c.b16 %v1283, %v1281
  %v1384 = vpack.c.b16 %v1284, %v1282
  %v1385 = vpack.c.b16 %v1287, %v1285
  %v1386 = vpack.c.b16 %v1288, %v1286
  %v1387 = vpack.c.b16 %v1291, %v1289
  %v1388 = vpack.c.b16 %v1292, %v1290
  %1485 = vmatpush.bf16.msra.mxu0 %v1307
  %1486 = vmatpush.bf16.msra.mxu0 %v1305
  %1487 = vmatpush.bf16.msra.mxu0 %v1303
  %1488 = vmatpush.bf16.msra.mxu0 %v1301
  %1489 = vmatpush.bf16.msra.mxu0 %v1299
  %1490 = vmatpush.bf16.msra.mxu0 %v1297
  %1491 = vmatpush.bf16.msra.mxu0 %v1295
  %1492 = vmatpush.bf16.msra.mxu0 %v1293
  %1493 = vmatmul.bf16.gmra.mxu0 %v717
  %v1494 = vpop.f32.mrf.mxu0
  %v1495 = vadd.f32 0.0, %v1494
  %v1496 = vpop.f32.mrf.mxu0
  %v1497 = vadd.f32 0.0, %v1496
  %1498 = vmatmul.bf16.gmra.mxu0 %v723
  %v1499 = vpop.f32.mrf.mxu0
  %v1500 = vadd.f32 0.0, %v1499
  %v1501 = vpop.f32.mrf.mxu0
  %v1502 = vadd.f32 0.0, %v1501
  %1503 = vmatmul.bf16.gmra.mxu0 %v729
  %v1504 = vpop.f32.mrf.mxu0
  %v1505 = vadd.f32 0.0, %v1504
  %v1506 = vpop.f32.mrf.mxu0
  %v1507 = vadd.f32 0.0, %v1506
  %1508 = vmatmul.bf16.gmra.mxu0 %v735
  %v1509 = vpop.f32.mrf.mxu0
  %v1510 = vadd.f32 0.0, %v1509
  %v1511 = vpop.f32.mrf.mxu0
  %v1512 = vadd.f32 0.0, %v1511
  %1513 = vmatmul.bf16.gmra.mxu0 %v741
  %v1514 = vpop.f32.mrf.mxu0
  %v1515 = vadd.f32 0.0, %v1514
  %v1516 = vpop.f32.mrf.mxu0
  %v1517 = vadd.f32 0.0, %v1516
  %1518 = vmatmul.bf16.gmra.mxu0 %v747
  %v1519 = vpop.f32.mrf.mxu0
  %v1520 = vadd.f32 0.0, %v1519
  %v1521 = vpop.f32.mrf.mxu0
  %v1522 = vadd.f32 0.0, %v1521
  %1523 = vmatmul.bf16.gmra.mxu0 %v753
  %v1524 = vpop.f32.mrf.mxu0
  %v1525 = vadd.f32 0.0, %v1524
  %v1526 = vpop.f32.mrf.mxu0
  %v1527 = vadd.f32 0.0, %v1526
  %1528 = vmatmul.bf16.gmra.mxu0 %v759
  %v1529 = vpop.f32.mrf.mxu0
  %v1530 = vadd.f32 0.0, %v1529
  %v1531 = vpop.f32.mrf.mxu0
  %v1532 = vadd.f32 0.0, %v1531
  %1533 = vmatmul.bf16.gmra.mxu0 %v765
  %v1534 = vpop.f32.mrf.mxu0
  %v1535 = vadd.f32 0.0, %v1534
  %v1536 = vpop.f32.mrf.mxu0
  %v1537 = vadd.f32 0.0, %v1536
  %1538 = vmatmul.bf16.gmra.mxu0 %v771
  %v1539 = vpop.f32.mrf.mxu0
  %v1540 = vadd.f32 0.0, %v1539
  %v1541 = vpop.f32.mrf.mxu0
  %v1542 = vadd.f32 0.0, %v1541
  %1543 = vmatmul.bf16.gmra.mxu0 %v777
  %v1544 = vpop.f32.mrf.mxu0
  %v1545 = vadd.f32 0.0, %v1544
  %v1546 = vpop.f32.mrf.mxu0
  %v1547 = vadd.f32 0.0, %v1546
  %1548 = vmatmul.bf16.gmra.mxu0 %v783
  %v1549 = vpop.f32.mrf.mxu0
  %v1550 = vadd.f32 0.0, %v1549
  %v1551 = vpop.f32.mrf.mxu0
  %v1552 = vadd.f32 0.0, %v1551
  %1553 = vmatmul.bf16.gmra.mxu0 %v789
  %v1554 = vpop.f32.mrf.mxu0
  %v1555 = vadd.f32 0.0, %v1554
  %v1556 = vpop.f32.mrf.mxu0
  %v1557 = vadd.f32 0.0, %v1556
  %1558 = vmatmul.bf16.gmra.mxu0 %v795
  %v1559 = vpop.f32.mrf.mxu0
  %v1560 = vadd.f32 0.0, %v1559
  %v1561 = vpop.f32.mrf.mxu0
  %v1562 = vadd.f32 0.0, %v1561
  %1563 = vmatmul.bf16.gmra.mxu0 %v801
  %v1564 = vpop.f32.mrf.mxu0
  %v1565 = vadd.f32 0.0, %v1564
  %v1566 = vpop.f32.mrf.mxu0
  %v1567 = vadd.f32 0.0, %v1566
  %1568 = vmatmul.bf16.gmra.mxu0 %v807
  %v1569 = vpop.f32.mrf.mxu0
  %v1570 = vadd.f32 0.0, %v1569
  %v1571 = vpop.f32.mrf.mxu0
  %v1572 = vadd.f32 0.0, %v1571
  %1573 = vmatmul.bf16.gmra.mxu0 %v813
  %v1574 = vpop.f32.mrf.mxu0
  %v1575 = vadd.f32 0.0, %v1574
  %v1576 = vpop.f32.mrf.mxu0
  %v1577 = vadd.f32 0.0, %v1576
  %1578 = vmatmul.bf16.gmra.mxu0 %v819
  %v1579 = vpop.f32.mrf.mxu0
  %v1580 = vadd.f32 0.0, %v1579
  %v1581 = vpop.f32.mrf.mxu0
  %v1582 = vadd.f32 0.0, %v1581
  %1583 = vmatmul.bf16.gmra.mxu0 %v825
  %v1584 = vpop.f32.mrf.mxu0
  %v1585 = vadd.f32 0.0, %v1584
  %v1586 = vpop.f32.mrf.mxu0
  %v1587 = vadd.f32 0.0, %v1586
  %1588 = vmatmul.bf16.gmra.mxu0 %v831
  %v1589 = vpop.f32.mrf.mxu0
  %v1590 = vadd.f32 0.0, %v1589
  %v1591 = vpop.f32.mrf.mxu0
  %v1592 = vadd.f32 0.0, %v1591
  %1593 = vmatmul.bf16.gmra.mxu0 %v837
  %v1594 = vpop.f32.mrf.mxu0
  %v1595 = vadd.f32 0.0, %v1594
  %v1596 = vpop.f32.mrf.mxu0
  %v1597 = vadd.f32 0.0, %v1596
  %1598 = vmatmul.bf16.gmra.mxu0 %v843
  %v1599 = vpop.f32.mrf.mxu0
  %v1600 = vadd.f32 0.0, %v1599
  %v1601 = vpop.f32.mrf.mxu0
  %v1602 = vadd.f32 0.0, %v1601
  %1603 = vmatmul.bf16.gmra.mxu0 %v849
  %v1604 = vpop.f32.mrf.mxu0
  %v1605 = vadd.f32 0.0, %v1604
  %v1606 = vpop.f32.mrf.mxu0
  %v1607 = vadd.f32 0.0, %v1606
  %1608 = vmatmul.bf16.gmra.mxu0 %v855
  %v1609 = vpop.f32.mrf.mxu0
  %v1610 = vadd.f32 0.0, %v1609
  %v1611 = vpop.f32.mrf.mxu0
  %1612 = vdwg.mxu0
  %1613 = vmatpush.bf16.msra.mxu0 %v1323
  %1614 = vmatpush.bf16.msra.mxu0 %v1321
  %1615 = vmatpush.bf16.msra.mxu0 %v1319
  %1616 = vmatpush.bf16.msra.mxu0 %v1317
  %1617 = vmatpush.bf16.msra.mxu0 %v1315
  %1618 = vmatpush.bf16.msra.mxu0 %v1313
  %1619 = vmatpush.bf16.msra.mxu0 %v1311
  %1620 = vmatpush.bf16.msra.mxu0 %v1309
  %1621 = vmatmul.bf16.gmra.mxu0 %v718
  %v1622 = vpop.f32.mrf.mxu0
  %v1623 = vadd.f32 %v1495, %v1622
  %v1624 = vpop.f32.mrf.mxu0
  %v1625 = vadd.f32 %v1497, %v1624
  %1626 = vmatmul.bf16.gmra.mxu0 %v724
  %v1627 = vpop.f32.mrf.mxu0
  %v1628 = vadd.f32 %v1500, %v1627
  %v1629 = vpop.f32.mrf.mxu0
  %v1630 = vadd.f32 %v1502, %v1629
  %1631 = vmatmul.bf16.gmra.mxu0 %v730
  %v1632 = vpop.f32.mrf.mxu0
  %v1633 = vadd.f32 %v1505, %v1632
  %v1634 = vpop.f32.mrf.mxu0
  %v1635 = vadd.f32 %v1507, %v1634
  %1636 = vmatmul.bf16.gmra.mxu0 %v736
  %v1637 = vpop.f32.mrf.mxu0
  %v1638 = vadd.f32 %v1510, %v1637
  %v1639 = vpop.f32.mrf.mxu0
  %v1640 = vadd.f32 %v1512, %v1639
  %1641 = vmatmul.bf16.gmra.mxu0 %v742
  %v1642 = vpop.f32.mrf.mxu0
  %v1643 = vadd.f32 %v1515, %v1642
  %v1644 = vpop.f32.mrf.mxu0
  %v1645 = vadd.f32 %v1517, %v1644
  %1646 = vmatmul.bf16.gmra.mxu0 %v748
  %v1647 = vpop.f32.mrf.mxu0
  %v1648 = vadd.f32 %v1520, %v1647
  %v1649 = vpop.f32.mrf.mxu0
  %v1650 = vadd.f32 %v1522, %v1649
  %1651 = vmatmul.bf16.gmra.mxu0 %v754
  %v1652 = vpop.f32.mrf.mxu0
  %v1653 = vadd.f32 %v1525, %v1652
  %v1654 = vpop.f32.mrf.mxu0
  %v1655 = vadd.f32 %v1527, %v1654
  %1656 = vmatmul.bf16.gmra.mxu0 %v760
  %v1657 = vpop.f32.mrf.mxu0
  %v1658 = vadd.f32 %v1530, %v1657
  %v1659 = vpop.f32.mrf.mxu0
  %v1660 = vadd.f32 %v1532, %v1659
  %1661 = vmatmul.bf16.gmra.mxu0 %v766
  %v1662 = vpop.f32.mrf.mxu0
  %v1663 = vadd.f32 %v1535, %v1662
  %v1664 = vpop.f32.mrf.mxu0
  %v1665 = vadd.f32 %v1537, %v1664
  %1666 = vmatmul.bf16.gmra.mxu0 %v772
  %v1667 = vpop.f32.mrf.mxu0
  %v1668 = vadd.f32 %v1540, %v1667
  %v1669 = vpop.f32.mrf.mxu0
  %v1670 = vadd.f32 %v1542, %v1669
  %1671 = vmatmul.bf16.gmra.mxu0 %v778
  %v1672 = vpop.f32.mrf.mxu0
  %v1673 = vadd.f32 %v1545, %v1672
  %v1674 = vpop.f32.mrf.mxu0
  %v1675 = vadd.f32 %v1547, %v1674
  %1676 = vmatmul.bf16.gmra.mxu0 %v784
  %v1677 = vpop.f32.mrf.mxu0
  %v1678 = vadd.f32 %v1550, %v1677
  %v1679 = vpop.f32.mrf.mxu0
  %v1680 = vadd.f32 %v1552, %v1679
  %1681 = vmatmul.bf16.gmra.mxu0 %v790
  %v1682 = vpop.f32.mrf.mxu0
  %v1683 = vadd.f32 %v1555, %v1682
  %v1684 = vpop.f32.mrf.mxu0
  %v1685 = vadd.f32 %v1557, %v1684
  %1686 = vmatmul.bf16.gmra.mxu0 %v796
  %v1687 = vpop.f32.mrf.mxu0
  %v1688 = vadd.f32 %v1560, %v1687
  %v1689 = vpop.f32.mrf.mxu0
  %v1690 = vadd.f32 %v1562, %v1689
  %1691 = vmatmul.bf16.gmra.mxu0 %v802
  %v1692 = vpop.f32.mrf.mxu0
  %v1693 = vadd.f32 %v1565, %v1692
  %v1694 = vpop.f32.mrf.mxu0
  %v1695 = vadd.f32 %v1567, %v1694
  %1696 = vmatmul.bf16.gmra.mxu0 %v808
  %v1697 = vpop.f32.mrf.mxu0
  %v1698 = vadd.f32 %v1570, %v1697
  %v1699 = vpop.f32.mrf.mxu0
  %v1700 = vadd.f32 %v1572, %v1699
  %1701 = vmatmul.bf16.gmra.mxu0 %v814
  %v1702 = vpop.f32.mrf.mxu0
  %v1703 = vadd.f32 %v1575, %v1702
  %v1704 = vpop.f32.mrf.mxu0
  %v1705 = vadd.f32 %v1577, %v1704
  %1706 = vmatmul.bf16.gmra.mxu0 %v820
  %v1707 = vpop.f32.mrf.mxu0
  %v1708 = vadd.f32 %v1580, %v1707
  %v1709 = vpop.f32.mrf.mxu0
  %v1710 = vadd.f32 %v1582, %v1709
  %1711 = vmatmul.bf16.gmra.mxu0 %v826
  %v1712 = vpop.f32.mrf.mxu0
  %v1713 = vadd.f32 %v1585, %v1712
  %v1714 = vpop.f32.mrf.mxu0
  %v1715 = vadd.f32 %v1587, %v1714
  %1716 = vmatmul.bf16.gmra.mxu0 %v832
  %v1717 = vpop.f32.mrf.mxu0
  %v1718 = vadd.f32 %v1590, %v1717
  %v1719 = vpop.f32.mrf.mxu0
  %v1720 = vadd.f32 %v1592, %v1719
  %1721 = vmatmul.bf16.gmra.mxu0 %v838
  %v1722 = vpop.f32.mrf.mxu0
  %v1723 = vadd.f32 %v1595, %v1722
  %v1724 = vpop.f32.mrf.mxu0
  %v1725 = vadd.f32 %v1597, %v1724
  %1726 = vmatmul.bf16.gmra.mxu0 %v844
  %v1727 = vpop.f32.mrf.mxu0
  %v1728 = vadd.f32 %v1600, %v1727
  %v1729 = vpop.f32.mrf.mxu0
  %v1730 = vadd.f32 %v1602, %v1729
  %1731 = vmatmul.bf16.gmra.mxu0 %v850
  %v1732 = vpop.f32.mrf.mxu0
  %v1733 = vadd.f32 %v1605, %v1732
  %v1734 = vpop.f32.mrf.mxu0
  %v1735 = vadd.f32 %v1607, %v1734
  %1736 = vmatmul.bf16.gmra.mxu0 %v856
  %v1737 = vpop.f32.mrf.mxu0
  %v1738 = vadd.f32 %v1610, %v1737
  %v1739 = vpop.f32.mrf.mxu0
  %1740 = vdwg.mxu0
  %1741 = vmatpush.bf16.msra.mxu0 %v1339
  %1742 = vmatpush.bf16.msra.mxu0 %v1337
  %1743 = vmatpush.bf16.msra.mxu0 %v1335
  %1744 = vmatpush.bf16.msra.mxu0 %v1333
  %1745 = vmatpush.bf16.msra.mxu0 %v1331
  %1746 = vmatpush.bf16.msra.mxu0 %v1329
  %1747 = vmatpush.bf16.msra.mxu0 %v1327
  %1748 = vmatpush.bf16.msra.mxu0 %v1325
  %1749 = vmatmul.bf16.gmra.mxu0 %v719
  %v1750 = vpop.f32.mrf.mxu0
  %v1751 = vadd.f32 %v1623, %v1750
  %v1752 = vpop.f32.mrf.mxu0
  %v1753 = vadd.f32 %v1625, %v1752
  %1754 = vmatmul.bf16.gmra.mxu0 %v725
  %v1755 = vpop.f32.mrf.mxu0
  %v1756 = vadd.f32 %v1628, %v1755
  %v1757 = vpop.f32.mrf.mxu0
  %v1758 = vadd.f32 %v1630, %v1757
  %1759 = vmatmul.bf16.gmra.mxu0 %v731
  %v1760 = vpop.f32.mrf.mxu0
  %v1761 = vadd.f32 %v1633, %v1760
  %v1762 = vpop.f32.mrf.mxu0
  %v1763 = vadd.f32 %v1635, %v1762
  %1764 = vmatmul.bf16.gmra.mxu0 %v737
  %v1765 = vpop.f32.mrf.mxu0
  %v1766 = vadd.f32 %v1638, %v1765
  %v1767 = vpop.f32.mrf.mxu0
  %v1768 = vadd.f32 %v1640, %v1767
  %1769 = vmatmul.bf16.gmra.mxu0 %v743
  %v1770 = vpop.f32.mrf.mxu0
  %v1771 = vadd.f32 %v1643, %v1770
  %v1772 = vpop.f32.mrf.mxu0
  %v1773 = vadd.f32 %v1645, %v1772
  %1774 = vmatmul.bf16.gmra.mxu0 %v749
  %v1775 = vpop.f32.mrf.mxu0
  %v1776 = vadd.f32 %v1648, %v1775
  %v1777 = vpop.f32.mrf.mxu0
  %v1778 = vadd.f32 %v1650, %v1777
  %1779 = vmatmul.bf16.gmra.mxu0 %v755
  %v1780 = vpop.f32.mrf.mxu0
  %v1781 = vadd.f32 %v1653, %v1780
  %v1782 = vpop.f32.mrf.mxu0
  %v1783 = vadd.f32 %v1655, %v1782
  %1784 = vmatmul.bf16.gmra.mxu0 %v761
  %v1785 = vpop.f32.mrf.mxu0
  %v1786 = vadd.f32 %v1658, %v1785
  %v1787 = vpop.f32.mrf.mxu0
  %v1788 = vadd.f32 %v1660, %v1787
  %1789 = vmatmul.bf16.gmra.mxu0 %v767
  %v1790 = vpop.f32.mrf.mxu0
  %v1791 = vadd.f32 %v1663, %v1790
  %v1792 = vpop.f32.mrf.mxu0
  %v1793 = vadd.f32 %v1665, %v1792
  %1794 = vmatmul.bf16.gmra.mxu0 %v773
  %v1795 = vpop.f32.mrf.mxu0
  %v1796 = vadd.f32 %v1668, %v1795
  %v1797 = vpop.f32.mrf.mxu0
  %v1798 = vadd.f32 %v1670, %v1797
  %1799 = vmatmul.bf16.gmra.mxu0 %v779
  %v1800 = vpop.f32.mrf.mxu0
  %v1801 = vadd.f32 %v1673, %v1800
  %v1802 = vpop.f32.mrf.mxu0
  %v1803 = vadd.f32 %v1675, %v1802
  %1804 = vmatmul.bf16.gmra.mxu0 %v785
  %v1805 = vpop.f32.mrf.mxu0
  %v1806 = vadd.f32 %v1678, %v1805
  %v1807 = vpop.f32.mrf.mxu0
  %v1808 = vadd.f32 %v1680, %v1807
  %1809 = vmatmul.bf16.gmra.mxu0 %v791
  %v1810 = vpop.f32.mrf.mxu0
  %v1811 = vadd.f32 %v1683, %v1810
  %v1812 = vpop.f32.mrf.mxu0
  %v1813 = vadd.f32 %v1685, %v1812
  %1814 = vmatmul.bf16.gmra.mxu0 %v797
  %v1815 = vpop.f32.mrf.mxu0
  %v1816 = vadd.f32 %v1688, %v1815
  %v1817 = vpop.f32.mrf.mxu0
  %v1818 = vadd.f32 %v1690, %v1817
  %1819 = vmatmul.bf16.gmra.mxu0 %v803
  %v1820 = vpop.f32.mrf.mxu0
  %v1821 = vadd.f32 %v1693, %v1820
  %v1822 = vpop.f32.mrf.mxu0
  %v1823 = vadd.f32 %v1695, %v1822
  %1824 = vmatmul.bf16.gmra.mxu0 %v809
  %v1825 = vpop.f32.mrf.mxu0
  %v1826 = vadd.f32 %v1698, %v1825
  %v1827 = vpop.f32.mrf.mxu0
  %v1828 = vadd.f32 %v1700, %v1827
  %1829 = vmatmul.bf16.gmra.mxu0 %v815
  %v1830 = vpop.f32.mrf.mxu0
  %v1831 = vadd.f32 %v1703, %v1830
  %v1832 = vpop.f32.mrf.mxu0
  %v1833 = vadd.f32 %v1705, %v1832
  %1834 = vmatmul.bf16.gmra.mxu0 %v821
  %v1835 = vpop.f32.mrf.mxu0
  %v1836 = vadd.f32 %v1708, %v1835
  %v1837 = vpop.f32.mrf.mxu0
  %v1838 = vadd.f32 %v1710, %v1837
  %1839 = vmatmul.bf16.gmra.mxu0 %v827
  %v1840 = vpop.f32.mrf.mxu0
  %v1841 = vadd.f32 %v1713, %v1840
  %v1842 = vpop.f32.mrf.mxu0
  %v1843 = vadd.f32 %v1715, %v1842
  %1844 = vmatmul.bf16.gmra.mxu0 %v833
  %v1845 = vpop.f32.mrf.mxu0
  %v1846 = vadd.f32 %v1718, %v1845
  %v1847 = vpop.f32.mrf.mxu0
  %v1848 = vadd.f32 %v1720, %v1847
  %1849 = vmatmul.bf16.gmra.mxu0 %v839
  %v1850 = vpop.f32.mrf.mxu0
  %v1851 = vadd.f32 %v1723, %v1850
  %v1852 = vpop.f32.mrf.mxu0
  %v1853 = vadd.f32 %v1725, %v1852
  %1854 = vmatmul.bf16.gmra.mxu0 %v845
  %v1855 = vpop.f32.mrf.mxu0
  %v1856 = vadd.f32 %v1728, %v1855
  %v1857 = vpop.f32.mrf.mxu0
  %v1858 = vadd.f32 %v1730, %v1857
  %1859 = vmatmul.bf16.gmra.mxu0 %v851
  %v1860 = vpop.f32.mrf.mxu0
  %v1861 = vadd.f32 %v1733, %v1860
  %v1862 = vpop.f32.mrf.mxu0
  %v1863 = vadd.f32 %v1735, %v1862
  %1864 = vmatmul.bf16.gmra.mxu0 %v857
  %v1865 = vpop.f32.mrf.mxu0
  %v1866 = vadd.f32 %v1738, %v1865
  %v1867 = vpop.f32.mrf.mxu0
  %1868 = vdwg.mxu0
  %1869 = vmatpush.bf16.msra.mxu0 %v1355
  %1870 = vmatpush.bf16.msra.mxu0 %v1353
  %1871 = vmatpush.bf16.msra.mxu0 %v1351
  %1872 = vmatpush.bf16.msra.mxu0 %v1349
  %1873 = vmatpush.bf16.msra.mxu0 %v1347
  %1874 = vmatpush.bf16.msra.mxu0 %v1345
  %1875 = vmatpush.bf16.msra.mxu0 %v1343
  %1876 = vmatpush.bf16.msra.mxu0 %v1341
  %1877 = vmatmul.bf16.gmra.mxu0 %v720
  %v1878 = vpop.f32.mrf.mxu0
  %v1879 = vadd.f32 %v1751, %v1878
  %v1880 = vpop.f32.mrf.mxu0
  %v1881 = vadd.f32 %v1753, %v1880
  %1882 = vmatmul.bf16.gmra.mxu0 %v726
  %v1883 = vpop.f32.mrf.mxu0
  %v1884 = vadd.f32 %v1756, %v1883
  %v1885 = vpop.f32.mrf.mxu0
  %v1886 = vadd.f32 %v1758, %v1885
  %1887 = vmatmul.bf16.gmra.mxu0 %v732
  %v1888 = vpop.f32.mrf.mxu0
  %v1889 = vadd.f32 %v1761, %v1888
  %v1890 = vpop.f32.mrf.mxu0
  %v1891 = vadd.f32 %v1763, %v1890
  %1892 = vmatmul.bf16.gmra.mxu0 %v738
  %v1893 = vpop.f32.mrf.mxu0
  %v1894 = vadd.f32 %v1766, %v1893
  %v1895 = vpop.f32.mrf.mxu0
  %v1896 = vadd.f32 %v1768, %v1895
  %1897 = vmatmul.bf16.gmra.mxu0 %v744
  %v1898 = vpop.f32.mrf.mxu0
  %v1899 = vadd.f32 %v1771, %v1898
  %v1900 = vpop.f32.mrf.mxu0
  %v1901 = vadd.f32 %v1773, %v1900
  %1902 = vmatmul.bf16.gmra.mxu0 %v750
  %v1903 = vpop.f32.mrf.mxu0
  %v1904 = vadd.f32 %v1776, %v1903
  %v1905 = vpop.f32.mrf.mxu0
  %v1906 = vadd.f32 %v1778, %v1905
  %1907 = vmatmul.bf16.gmra.mxu0 %v756
  %v1908 = vpop.f32.mrf.mxu0
  %v1909 = vadd.f32 %v1781, %v1908
  %v1910 = vpop.f32.mrf.mxu0
  %v1911 = vadd.f32 %v1783, %v1910
  %1912 = vmatmul.bf16.gmra.mxu0 %v762
  %v1913 = vpop.f32.mrf.mxu0
  %v1914 = vadd.f32 %v1786, %v1913
  %v1915 = vpop.f32.mrf.mxu0
  %v1916 = vadd.f32 %v1788, %v1915
  %1917 = vmatmul.bf16.gmra.mxu0 %v768
  %v1918 = vpop.f32.mrf.mxu0
  %v1919 = vadd.f32 %v1791, %v1918
  %v1920 = vpop.f32.mrf.mxu0
  %v1921 = vadd.f32 %v1793, %v1920
  %1922 = vmatmul.bf16.gmra.mxu0 %v774
  %v1923 = vpop.f32.mrf.mxu0
  %v1924 = vadd.f32 %v1796, %v1923
  %v1925 = vpop.f32.mrf.mxu0
  %v1926 = vadd.f32 %v1798, %v1925
  %1927 = vmatmul.bf16.gmra.mxu0 %v780
  %v1928 = vpop.f32.mrf.mxu0
  %v1929 = vadd.f32 %v1801, %v1928
  %v1930 = vpop.f32.mrf.mxu0
  %v1931 = vadd.f32 %v1803, %v1930
  %1932 = vmatmul.bf16.gmra.mxu0 %v786
  %v1933 = vpop.f32.mrf.mxu0
  %v1934 = vadd.f32 %v1806, %v1933
  %v1935 = vpop.f32.mrf.mxu0
  %v1936 = vadd.f32 %v1808, %v1935
  %1937 = vmatmul.bf16.gmra.mxu0 %v792
  %v1938 = vpop.f32.mrf.mxu0
  %v1939 = vadd.f32 %v1811, %v1938
  %v1940 = vpop.f32.mrf.mxu0
  %v1941 = vadd.f32 %v1813, %v1940
  %1942 = vmatmul.bf16.gmra.mxu0 %v798
  %v1943 = vpop.f32.mrf.mxu0
  %v1944 = vadd.f32 %v1816, %v1943
  %v1945 = vpop.f32.mrf.mxu0
  %v1946 = vadd.f32 %v1818, %v1945
  %1947 = vmatmul.bf16.gmra.mxu0 %v804
  %v1948 = vpop.f32.mrf.mxu0
  %v1949 = vadd.f32 %v1821, %v1948
  %v1950 = vpop.f32.mrf.mxu0
  %v1951 = vadd.f32 %v1823, %v1950
  %1952 = vmatmul.bf16.gmra.mxu0 %v810
  %v1953 = vpop.f32.mrf.mxu0
  %v1954 = vadd.f32 %v1826, %v1953
  %v1955 = vpop.f32.mrf.mxu0
  %v1956 = vadd.f32 %v1828, %v1955
  %1957 = vmatmul.bf16.gmra.mxu0 %v816
  %v1958 = vpop.f32.mrf.mxu0
  %v1959 = vadd.f32 %v1831, %v1958
  %v1960 = vpop.f32.mrf.mxu0
  %v1961 = vadd.f32 %v1833, %v1960
  %1962 = vmatmul.bf16.gmra.mxu0 %v822
  %v1963 = vpop.f32.mrf.mxu0
  %v1964 = vadd.f32 %v1836, %v1963
  %v1965 = vpop.f32.mrf.mxu0
  %v1966 = vadd.f32 %v1838, %v1965
  %1967 = vmatmul.bf16.gmra.mxu0 %v828
  %v1968 = vpop.f32.mrf.mxu0
  %v1969 = vadd.f32 %v1841, %v1968
  %v1970 = vpop.f32.mrf.mxu0
  %v1971 = vadd.f32 %v1843, %v1970
  %1972 = vmatmul.bf16.gmra.mxu0 %v834
  %v1973 = vpop.f32.mrf.mxu0
  %v1974 = vadd.f32 %v1846, %v1973
  %v1975 = vpop.f32.mrf.mxu0
  %v1976 = vadd.f32 %v1848, %v1975
  %1977 = vmatmul.bf16.gmra.mxu0 %v840
  %v1978 = vpop.f32.mrf.mxu0
  %v1979 = vadd.f32 %v1851, %v1978
  %v1980 = vpop.f32.mrf.mxu0
  %v1981 = vadd.f32 %v1853, %v1980
  %1982 = vmatmul.bf16.gmra.mxu0 %v846
  %v1983 = vpop.f32.mrf.mxu0
  %v1984 = vadd.f32 %v1856, %v1983
  %v1985 = vpop.f32.mrf.mxu0
  %v1986 = vadd.f32 %v1858, %v1985
  %1987 = vmatmul.bf16.gmra.mxu0 %v852
  %v1988 = vpop.f32.mrf.mxu0
  %v1989 = vadd.f32 %v1861, %v1988
  %v1990 = vpop.f32.mrf.mxu0
  %v1991 = vadd.f32 %v1863, %v1990
  %1992 = vmatmul.bf16.gmra.mxu0 %v858
  %v1993 = vpop.f32.mrf.mxu0
  %v1994 = vadd.f32 %v1866, %v1993
  %v1995 = vpop.f32.mrf.mxu0
  %1996 = vdwg.mxu0
  %1997 = vmatpush.bf16.msra.mxu0 %v1371
  %1998 = vmatpush.bf16.msra.mxu0 %v1369
  %1999 = vmatpush.bf16.msra.mxu0 %v1367
  %2000 = vmatpush.bf16.msra.mxu0 %v1365
  %2001 = vmatpush.bf16.msra.mxu0 %v1363
  %2002 = vmatpush.bf16.msra.mxu0 %v1361
  %2003 = vmatpush.bf16.msra.mxu0 %v1359
  %2004 = vmatpush.bf16.msra.mxu0 %v1357
  %2005 = vmatmul.bf16.gmra.mxu0 %v721
  %v2006 = vpop.f32.mrf.mxu0
  %v2007 = vadd.f32 %v1879, %v2006
  %v2008 = vpop.f32.mrf.mxu0
  %v2009 = vadd.f32 %v1881, %v2008
  %2010 = vmatmul.bf16.gmra.mxu0 %v727
  %v2011 = vpop.f32.mrf.mxu0
  %v2012 = vadd.f32 %v1884, %v2011
  %v2013 = vpop.f32.mrf.mxu0
  %v2014 = vadd.f32 %v1886, %v2013
  %2015 = vmatmul.bf16.gmra.mxu0 %v733
  %v2016 = vpop.f32.mrf.mxu0
  %v2017 = vadd.f32 %v1889, %v2016
  %v2018 = vpop.f32.mrf.mxu0
  %v2019 = vadd.f32 %v1891, %v2018
  %2020 = vmatmul.bf16.gmra.mxu0 %v739
  %v2021 = vpop.f32.mrf.mxu0
  %v2022 = vadd.f32 %v1894, %v2021
  %v2023 = vpop.f32.mrf.mxu0
  %v2024 = vadd.f32 %v1896, %v2023
  %2025 = vmatmul.bf16.gmra.mxu0 %v745
  %v2026 = vpop.f32.mrf.mxu0
  %v2027 = vadd.f32 %v1899, %v2026
  %v2028 = vpop.f32.mrf.mxu0
  %v2029 = vadd.f32 %v1901, %v2028
  %2030 = vmatmul.bf16.gmra.mxu0 %v751
  %v2031 = vpop.f32.mrf.mxu0
  %v2032 = vadd.f32 %v1904, %v2031
  %v2033 = vpop.f32.mrf.mxu0
  %v2034 = vadd.f32 %v1906, %v2033
  %2035 = vmatmul.bf16.gmra.mxu0 %v757
  %v2036 = vpop.f32.mrf.mxu0
  %v2037 = vadd.f32 %v1909, %v2036
  %v2038 = vpop.f32.mrf.mxu0
  %v2039 = vadd.f32 %v1911, %v2038
  %2040 = vmatmul.bf16.gmra.mxu0 %v763
  %v2041 = vpop.f32.mrf.mxu0
  %v2042 = vadd.f32 %v1914, %v2041
  %v2043 = vpop.f32.mrf.mxu0
  %v2044 = vadd.f32 %v1916, %v2043
  %2045 = vmatmul.bf16.gmra.mxu0 %v769
  %v2046 = vpop.f32.mrf.mxu0
  %v2047 = vadd.f32 %v1919, %v2046
  %v2048 = vpop.f32.mrf.mxu0
  %v2049 = vadd.f32 %v1921, %v2048
  %2050 = vmatmul.bf16.gmra.mxu0 %v775
  %v2051 = vpop.f32.mrf.mxu0
  %v2052 = vadd.f32 %v1924, %v2051
  %v2053 = vpop.f32.mrf.mxu0
  %v2054 = vadd.f32 %v1926, %v2053
  %2055 = vmatmul.bf16.gmra.mxu0 %v781
  %v2056 = vpop.f32.mrf.mxu0
  %v2057 = vadd.f32 %v1929, %v2056
  %v2058 = vpop.f32.mrf.mxu0
  %v2059 = vadd.f32 %v1931, %v2058
  %2060 = vmatmul.bf16.gmra.mxu0 %v787
  %v2061 = vpop.f32.mrf.mxu0
  %v2062 = vadd.f32 %v1934, %v2061
  %v2063 = vpop.f32.mrf.mxu0
  %v2064 = vadd.f32 %v1936, %v2063
  %2065 = vmatmul.bf16.gmra.mxu0 %v793
  %v2066 = vpop.f32.mrf.mxu0
  %v2067 = vadd.f32 %v1939, %v2066
  %v2068 = vpop.f32.mrf.mxu0
  %v2069 = vadd.f32 %v1941, %v2068
  %2070 = vmatmul.bf16.gmra.mxu0 %v799
  %v2071 = vpop.f32.mrf.mxu0
  %v2072 = vadd.f32 %v1944, %v2071
  %v2073 = vpop.f32.mrf.mxu0
  %v2074 = vadd.f32 %v1946, %v2073
  %2075 = vmatmul.bf16.gmra.mxu0 %v805
  %v2076 = vpop.f32.mrf.mxu0
  %v2077 = vadd.f32 %v1949, %v2076
  %v2078 = vpop.f32.mrf.mxu0
  %v2079 = vadd.f32 %v1951, %v2078
  %2080 = vmatmul.bf16.gmra.mxu0 %v811
  %v2081 = vpop.f32.mrf.mxu0
  %v2082 = vadd.f32 %v1954, %v2081
  %v2083 = vpop.f32.mrf.mxu0
  %v2084 = vadd.f32 %v1956, %v2083
  %2085 = vmatmul.bf16.gmra.mxu0 %v817
  %v2086 = vpop.f32.mrf.mxu0
  %v2087 = vadd.f32 %v1959, %v2086
  %v2088 = vpop.f32.mrf.mxu0
  %v2089 = vadd.f32 %v1961, %v2088
  %2090 = vmatmul.bf16.gmra.mxu0 %v823
  %v2091 = vpop.f32.mrf.mxu0
  %v2092 = vadd.f32 %v1964, %v2091
  %v2093 = vpop.f32.mrf.mxu0
  %v2094 = vadd.f32 %v1966, %v2093
  %2095 = vmatmul.bf16.gmra.mxu0 %v829
  %v2096 = vpop.f32.mrf.mxu0
  %v2097 = vadd.f32 %v1969, %v2096
  %v2098 = vpop.f32.mrf.mxu0
  %v2099 = vadd.f32 %v1971, %v2098
  %2100 = vmatmul.bf16.gmra.mxu0 %v835
  %v2101 = vpop.f32.mrf.mxu0
  %v2102 = vadd.f32 %v1974, %v2101
  %v2103 = vpop.f32.mrf.mxu0
  %v2104 = vadd.f32 %v1976, %v2103
  %2105 = vmatmul.bf16.gmra.mxu0 %v841
  %v2106 = vpop.f32.mrf.mxu0
  %v2107 = vadd.f32 %v1979, %v2106
  %v2108 = vpop.f32.mrf.mxu0
  %v2109 = vadd.f32 %v1981, %v2108
  %2110 = vmatmul.bf16.gmra.mxu0 %v847
  %v2111 = vpop.f32.mrf.mxu0
  %v2112 = vadd.f32 %v1984, %v2111
  %v2113 = vpop.f32.mrf.mxu0
  %v2114 = vadd.f32 %v1986, %v2113
  %2115 = vmatmul.bf16.gmra.mxu0 %v853
  %v2116 = vpop.f32.mrf.mxu0
  %v2117 = vadd.f32 %v1989, %v2116
  %v2118 = vpop.f32.mrf.mxu0
  %v2119 = vadd.f32 %v1991, %v2118
  %2120 = vmatmul.bf16.gmra.mxu0 %v859
  %v2121 = vpop.f32.mrf.mxu0
  %v2122 = vadd.f32 %v1994, %v2121
  %v2123 = vpop.f32.mrf.mxu0
  %2124 = vdwg.mxu0
  %2125 = vmatpush.bf16.msra.mxu0 %v1387
  %2126 = vmatpush.bf16.msra.mxu0 %v1385
  %2127 = vmatpush.bf16.msra.mxu0 %v1383
  %2128 = vmatpush.bf16.msra.mxu0 %v1381
  %2129 = vmatpush.bf16.msra.mxu0 %v1379
  %2130 = vmatpush.bf16.msra.mxu0 %v1377
  %2131 = vmatpush.bf16.msra.mxu0 %v1375
  %2132 = vmatpush.bf16.msra.mxu0 %v1373
  %2133 = vmatmul.bf16.gmra.mxu0 %v722
  %v2134 = vpop.f32.mrf.mxu0
  %v2135 = vadd.f32 %v2007, %v2134
  %v2136 = vpop.f32.mrf.mxu0
  %v2137 = vadd.f32 %v2009, %v2136
  %2138 = vmatmul.bf16.gmra.mxu0 %v728
  %v2139 = vpop.f32.mrf.mxu0
  %v2140 = vadd.f32 %v2012, %v2139
  %v2141 = vpop.f32.mrf.mxu0
  %v2142 = vadd.f32 %v2014, %v2141
  %2143 = vmatmul.bf16.gmra.mxu0 %v734
  %v2144 = vpop.f32.mrf.mxu0
  %v2145 = vadd.f32 %v2017, %v2144
  %v2146 = vpop.f32.mrf.mxu0
  %v2147 = vadd.f32 %v2019, %v2146
  %2148 = vmatmul.bf16.gmra.mxu0 %v740
  %v2149 = vpop.f32.mrf.mxu0
  %v2150 = vadd.f32 %v2022, %v2149
  %v2151 = vpop.f32.mrf.mxu0
  %v2152 = vadd.f32 %v2024, %v2151
  %2153 = vmatmul.bf16.gmra.mxu0 %v746
  %v2154 = vpop.f32.mrf.mxu0
  %v2155 = vadd.f32 %v2027, %v2154
  %v2156 = vpop.f32.mrf.mxu0
  %v2157 = vadd.f32 %v2029, %v2156
  %2158 = vmatmul.bf16.gmra.mxu0 %v752
  %v2159 = vpop.f32.mrf.mxu0
  %v2160 = vadd.f32 %v2032, %v2159
  %v2161 = vpop.f32.mrf.mxu0
  %v2162 = vadd.f32 %v2034, %v2161
  %2163 = vmatmul.bf16.gmra.mxu0 %v758
  %v2164 = vpop.f32.mrf.mxu0
  %v2165 = vadd.f32 %v2037, %v2164
  %v2166 = vpop.f32.mrf.mxu0
  %v2167 = vadd.f32 %v2039, %v2166
  %2168 = vmatmul.bf16.gmra.mxu0 %v764
  %v2169 = vpop.f32.mrf.mxu0
  %v2170 = vadd.f32 %v2042, %v2169
  %v2171 = vpop.f32.mrf.mxu0
  %v2172 = vadd.f32 %v2044, %v2171
  %2173 = vmatmul.bf16.gmra.mxu0 %v770
  %v2174 = vpop.f32.mrf.mxu0
  %v2175 = vadd.f32 %v2047, %v2174
  %v2176 = vpop.f32.mrf.mxu0
  %v2177 = vadd.f32 %v2049, %v2176
  %2178 = vmatmul.bf16.gmra.mxu0 %v776
  %v2179 = vpop.f32.mrf.mxu0
  %v2180 = vadd.f32 %v2052, %v2179
  %v2181 = vpop.f32.mrf.mxu0
  %v2182 = vadd.f32 %v2054, %v2181
  %2183 = vmatmul.bf16.gmra.mxu0 %v782
  %v2184 = vpop.f32.mrf.mxu0
  %v2185 = vadd.f32 %v2057, %v2184
  %v2186 = vpop.f32.mrf.mxu0
  %v2187 = vadd.f32 %v2059, %v2186
  %2188 = vmatmul.bf16.gmra.mxu0 %v788
  %v2189 = vpop.f32.mrf.mxu0
  %v2190 = vadd.f32 %v2062, %v2189
  %v2191 = vpop.f32.mrf.mxu0
  %v2192 = vadd.f32 %v2064, %v2191
  %2193 = vmatmul.bf16.gmra.mxu0 %v794
  %v2194 = vpop.f32.mrf.mxu0
  %v2195 = vadd.f32 %v2067, %v2194
  %v2196 = vpop.f32.mrf.mxu0
  %v2197 = vadd.f32 %v2069, %v2196
  %2198 = vmatmul.bf16.gmra.mxu0 %v800
  %v2199 = vpop.f32.mrf.mxu0
  %v2200 = vadd.f32 %v2072, %v2199
  %v2201 = vpop.f32.mrf.mxu0
  %v2202 = vadd.f32 %v2074, %v2201
  %2203 = vmatmul.bf16.gmra.mxu0 %v806
  %v2204 = vpop.f32.mrf.mxu0
  %v2205 = vadd.f32 %v2077, %v2204
  %v2206 = vpop.f32.mrf.mxu0
  %v2207 = vadd.f32 %v2079, %v2206
  %2208 = vmatmul.bf16.gmra.mxu0 %v812
  %v2209 = vpop.f32.mrf.mxu0
  %v2210 = vadd.f32 %v2082, %v2209
  %v2211 = vpop.f32.mrf.mxu0
  %v2212 = vadd.f32 %v2084, %v2211
  %2213 = vmatmul.bf16.gmra.mxu0 %v818
  %v2214 = vpop.f32.mrf.mxu0
  %v2215 = vadd.f32 %v2087, %v2214
  %v2216 = vpop.f32.mrf.mxu0
  %v2217 = vadd.f32 %v2089, %v2216
  %2218 = vmatmul.bf16.gmra.mxu0 %v824
  %v2219 = vpop.f32.mrf.mxu0
  %v2220 = vadd.f32 %v2092, %v2219
  %v2221 = vpop.f32.mrf.mxu0
  %v2222 = vadd.f32 %v2094, %v2221
  %2223 = vmatmul.bf16.gmra.mxu0 %v830
  %v2224 = vpop.f32.mrf.mxu0
  %v2225 = vadd.f32 %v2097, %v2224
  %v2226 = vpop.f32.mrf.mxu0
  %v2227 = vadd.f32 %v2099, %v2226
  %2228 = vmatmul.bf16.gmra.mxu0 %v836
  %v2229 = vpop.f32.mrf.mxu0
  %v2230 = vadd.f32 %v2102, %v2229
  %v2231 = vpop.f32.mrf.mxu0
  %v2232 = vadd.f32 %v2104, %v2231
  %2233 = vmatmul.bf16.gmra.mxu0 %v842
  %v2234 = vpop.f32.mrf.mxu0
  %v2235 = vadd.f32 %v2107, %v2234
  %v2236 = vpop.f32.mrf.mxu0
  %v2237 = vadd.f32 %v2109, %v2236
  %2238 = vmatmul.bf16.gmra.mxu0 %v848
  %v2239 = vpop.f32.mrf.mxu0
  %v2240 = vadd.f32 %v2112, %v2239
  %v2241 = vpop.f32.mrf.mxu0
  %v2242 = vadd.f32 %v2114, %v2241
  %2243 = vmatmul.bf16.gmra.mxu0 %v854
  %v2244 = vpop.f32.mrf.mxu0
  %v2245 = vadd.f32 %v2117, %v2244
  %v2246 = vpop.f32.mrf.mxu0
  %v2247 = vadd.f32 %v2119, %v2246
  %2248 = vmatmul.bf16.gmra.mxu0 %v860
  %v2249 = vpop.f32.mrf.mxu0
  %v2250 = vadd.f32 %v2122, %v2249
  %v2251 = vpop.f32.mrf.mxu0
  %2252 = vdwg.mxu0
  %2253 = vmatpush.bf16.msra.mxu0 %v1308
  %2254 = vmatpush.bf16.msra.mxu0 %v1306
  %2255 = vmatpush.bf16.msra.mxu0 %v1304
  %2256 = vmatpush.bf16.msra.mxu0 %v1302
  %2257 = vmatpush.bf16.msra.mxu0 %v1300
  %2258 = vmatpush.bf16.msra.mxu0 %v1298
  %2259 = vmatpush.bf16.msra.mxu0 %v1296
  %2260 = vmatpush.bf16.msra.mxu0 %v1294
  %2261 = vmatmul.bf16.gmra.mxu0 %v717
  %v2262 = vpop.f32.mrf.mxu0
  %v2263 = vadd.f32 0.0, %v2262
  %v2264 = vpop.f32.mrf.mxu0
  %v2265 = vadd.f32 0.0, %v2264
  %2266 = vmatmul.bf16.gmra.mxu0 %v723
  %v2267 = vpop.f32.mrf.mxu0
  %v2268 = vadd.f32 0.0, %v2267
  %v2269 = vpop.f32.mrf.mxu0
  %v2270 = vadd.f32 0.0, %v2269
  %2271 = vmatmul.bf16.gmra.mxu0 %v729
  %v2272 = vpop.f32.mrf.mxu0
  %v2273 = vadd.f32 0.0, %v2272
  %v2274 = vpop.f32.mrf.mxu0
  %v2275 = vadd.f32 0.0, %v2274
  %2276 = vmatmul.bf16.gmra.mxu0 %v735
  %v2277 = vpop.f32.mrf.mxu0
  %v2278 = vadd.f32 0.0, %v2277
  %v2279 = vpop.f32.mrf.mxu0
  %v2280 = vadd.f32 0.0, %v2279
  %2281 = vmatmul.bf16.gmra.mxu0 %v741
  %v2282 = vpop.f32.mrf.mxu0
  %v2283 = vadd.f32 0.0, %v2282
  %v2284 = vpop.f32.mrf.mxu0
  %v2285 = vadd.f32 0.0, %v2284
  %2286 = vmatmul.bf16.gmra.mxu0 %v747
  %v2287 = vpop.f32.mrf.mxu0
  %v2288 = vadd.f32 0.0, %v2287
  %v2289 = vpop.f32.mrf.mxu0
  %v2290 = vadd.f32 0.0, %v2289
  %2291 = vmatmul.bf16.gmra.mxu0 %v753
  %v2292 = vpop.f32.mrf.mxu0
  %v2293 = vadd.f32 0.0, %v2292
  %v2294 = vpop.f32.mrf.mxu0
  %v2295 = vadd.f32 0.0, %v2294
  %2296 = vmatmul.bf16.gmra.mxu0 %v759
  %v2297 = vpop.f32.mrf.mxu0
  %v2298 = vadd.f32 0.0, %v2297
  %v2299 = vpop.f32.mrf.mxu0
  %v2300 = vadd.f32 0.0, %v2299
  %2301 = vmatmul.bf16.gmra.mxu0 %v765
  %v2302 = vpop.f32.mrf.mxu0
  %v2303 = vadd.f32 0.0, %v2302
  %v2304 = vpop.f32.mrf.mxu0
  %v2305 = vadd.f32 0.0, %v2304
  %2306 = vmatmul.bf16.gmra.mxu0 %v771
  %v2307 = vpop.f32.mrf.mxu0
  %v2308 = vadd.f32 0.0, %v2307
  %v2309 = vpop.f32.mrf.mxu0
  %v2310 = vadd.f32 0.0, %v2309
  %2311 = vmatmul.bf16.gmra.mxu0 %v777
  %v2312 = vpop.f32.mrf.mxu0
  %v2313 = vadd.f32 0.0, %v2312
  %v2314 = vpop.f32.mrf.mxu0
  %v2315 = vadd.f32 0.0, %v2314
  %2316 = vmatmul.bf16.gmra.mxu0 %v783
  %v2317 = vpop.f32.mrf.mxu0
  %v2318 = vadd.f32 0.0, %v2317
  %v2319 = vpop.f32.mrf.mxu0
  %v2320 = vadd.f32 0.0, %v2319
  %2321 = vmatmul.bf16.gmra.mxu0 %v789
  %v2322 = vpop.f32.mrf.mxu0
  %v2323 = vadd.f32 0.0, %v2322
  %v2324 = vpop.f32.mrf.mxu0
  %v2325 = vadd.f32 0.0, %v2324
  %2326 = vmatmul.bf16.gmra.mxu0 %v795
  %v2327 = vpop.f32.mrf.mxu0
  %v2328 = vadd.f32 0.0, %v2327
  %v2329 = vpop.f32.mrf.mxu0
  %v2330 = vadd.f32 0.0, %v2329
  %2331 = vmatmul.bf16.gmra.mxu0 %v801
  %v2332 = vpop.f32.mrf.mxu0
  %v2333 = vadd.f32 0.0, %v2332
  %v2334 = vpop.f32.mrf.mxu0
  %v2335 = vadd.f32 0.0, %v2334
  %2336 = vmatmul.bf16.gmra.mxu0 %v807
  %v2337 = vpop.f32.mrf.mxu0
  %v2338 = vadd.f32 0.0, %v2337
  %v2339 = vpop.f32.mrf.mxu0
  %v2340 = vadd.f32 0.0, %v2339
  %2341 = vmatmul.bf16.gmra.mxu0 %v813
  %v2342 = vpop.f32.mrf.mxu0
  %v2343 = vadd.f32 0.0, %v2342
  %v2344 = vpop.f32.mrf.mxu0
  %v2345 = vadd.f32 0.0, %v2344
  %2346 = vmatmul.bf16.gmra.mxu0 %v819
  %v2347 = vpop.f32.mrf.mxu0
  %v2348 = vadd.f32 0.0, %v2347
  %v2349 = vpop.f32.mrf.mxu0
  %v2350 = vadd.f32 0.0, %v2349
  %2351 = vmatmul.bf16.gmra.mxu0 %v825
  %v2352 = vpop.f32.mrf.mxu0
  %v2353 = vadd.f32 0.0, %v2352
  %v2354 = vpop.f32.mrf.mxu0
  %v2355 = vadd.f32 0.0, %v2354
  %2356 = vmatmul.bf16.gmra.mxu0 %v831
  %v2357 = vpop.f32.mrf.mxu0
  %v2358 = vadd.f32 0.0, %v2357
  %v2359 = vpop.f32.mrf.mxu0
  %v2360 = vadd.f32 0.0, %v2359
  %2361 = vmatmul.bf16.gmra.mxu0 %v837
  %v2362 = vpop.f32.mrf.mxu0
  %v2363 = vadd.f32 0.0, %v2362
  %v2364 = vpop.f32.mrf.mxu0
  %v2365 = vadd.f32 0.0, %v2364
  %2366 = vmatmul.bf16.gmra.mxu0 %v843
  %v2367 = vpop.f32.mrf.mxu0
  %v2368 = vadd.f32 0.0, %v2367
  %v2369 = vpop.f32.mrf.mxu0
  %v2370 = vadd.f32 0.0, %v2369
  %2371 = vmatmul.bf16.gmra.mxu0 %v849
  %v2372 = vpop.f32.mrf.mxu0
  %v2373 = vadd.f32 0.0, %v2372
  %v2374 = vpop.f32.mrf.mxu0
  %v2375 = vadd.f32 0.0, %v2374
  %2376 = vmatmul.bf16.gmra.mxu0 %v855
  %v2377 = vpop.f32.mrf.mxu0
  %v2378 = vadd.f32 0.0, %v2377
  %v2379 = vpop.f32.mrf.mxu0
  %2380 = vdwg.mxu0
  %2381 = vmatpush.bf16.msra.mxu0 %v1324
  %2382 = vmatpush.bf16.msra.mxu0 %v1322
  %2383 = vmatpush.bf16.msra.mxu0 %v1320
  %2384 = vmatpush.bf16.msra.mxu0 %v1318
  %2385 = vmatpush.bf16.msra.mxu0 %v1316
  %2386 = vmatpush.bf16.msra.mxu0 %v1314
  %2387 = vmatpush.bf16.msra.mxu0 %v1312
  %2388 = vmatpush.bf16.msra.mxu0 %v1310
  %2389 = vmatmul.bf16.gmra.mxu0 %v718
  %v2390 = vpop.f32.mrf.mxu0
  %v2391 = vadd.f32 %v2263, %v2390
  %v2392 = vpop.f32.mrf.mxu0
  %v2393 = vadd.f32 %v2265, %v2392
  %2394 = vmatmul.bf16.gmra.mxu0 %v724
  %v2395 = vpop.f32.mrf.mxu0
  %v2396 = vadd.f32 %v2268, %v2395
  %v2397 = vpop.f32.mrf.mxu0
  %v2398 = vadd.f32 %v2270, %v2397
  %2399 = vmatmul.bf16.gmra.mxu0 %v730
  %v2400 = vpop.f32.mrf.mxu0
  %v2401 = vadd.f32 %v2273, %v2400
  %v2402 = vpop.f32.mrf.mxu0
  %v2403 = vadd.f32 %v2275, %v2402
  %2404 = vmatmul.bf16.gmra.mxu0 %v736
  %v2405 = vpop.f32.mrf.mxu0
  %v2406 = vadd.f32 %v2278, %v2405
  %v2407 = vpop.f32.mrf.mxu0
  %v2408 = vadd.f32 %v2280, %v2407
  %2409 = vmatmul.bf16.gmra.mxu0 %v742
  %v2410 = vpop.f32.mrf.mxu0
  %v2411 = vadd.f32 %v2283, %v2410
  %v2412 = vpop.f32.mrf.mxu0
  %v2413 = vadd.f32 %v2285, %v2412
  %2414 = vmatmul.bf16.gmra.mxu0 %v748
  %v2415 = vpop.f32.mrf.mxu0
  %v2416 = vadd.f32 %v2288, %v2415
  %v2417 = vpop.f32.mrf.mxu0
  %v2418 = vadd.f32 %v2290, %v2417
  %2419 = vmatmul.bf16.gmra.mxu0 %v754
  %v2420 = vpop.f32.mrf.mxu0
  %v2421 = vadd.f32 %v2293, %v2420
  %v2422 = vpop.f32.mrf.mxu0
  %v2423 = vadd.f32 %v2295, %v2422
  %2424 = vmatmul.bf16.gmra.mxu0 %v760
  %v2425 = vpop.f32.mrf.mxu0
  %v2426 = vadd.f32 %v2298, %v2425
  %v2427 = vpop.f32.mrf.mxu0
  %v2428 = vadd.f32 %v2300, %v2427
  %2429 = vmatmul.bf16.gmra.mxu0 %v766
  %v2430 = vpop.f32.mrf.mxu0
  %v2431 = vadd.f32 %v2303, %v2430
  %v2432 = vpop.f32.mrf.mxu0
  %v2433 = vadd.f32 %v2305, %v2432
  %2434 = vmatmul.bf16.gmra.mxu0 %v772
  %v2435 = vpop.f32.mrf.mxu0
  %v2436 = vadd.f32 %v2308, %v2435
  %v2437 = vpop.f32.mrf.mxu0
  %v2438 = vadd.f32 %v2310, %v2437
  %2439 = vmatmul.bf16.gmra.mxu0 %v778
  %v2440 = vpop.f32.mrf.mxu0
  %v2441 = vadd.f32 %v2313, %v2440
  %v2442 = vpop.f32.mrf.mxu0
  %v2443 = vadd.f32 %v2315, %v2442
  %2444 = vmatmul.bf16.gmra.mxu0 %v784
  %v2445 = vpop.f32.mrf.mxu0
  %v2446 = vadd.f32 %v2318, %v2445
  %v2447 = vpop.f32.mrf.mxu0
  %v2448 = vadd.f32 %v2320, %v2447
  %2449 = vmatmul.bf16.gmra.mxu0 %v790
  %v2450 = vpop.f32.mrf.mxu0
  %v2451 = vadd.f32 %v2323, %v2450
  %v2452 = vpop.f32.mrf.mxu0
  %v2453 = vadd.f32 %v2325, %v2452
  %2454 = vmatmul.bf16.gmra.mxu0 %v796
  %v2455 = vpop.f32.mrf.mxu0
  %v2456 = vadd.f32 %v2328, %v2455
  %v2457 = vpop.f32.mrf.mxu0
  %v2458 = vadd.f32 %v2330, %v2457
  %2459 = vmatmul.bf16.gmra.mxu0 %v802
  %v2460 = vpop.f32.mrf.mxu0
  %v2461 = vadd.f32 %v2333, %v2460
  %v2462 = vpop.f32.mrf.mxu0
  %v2463 = vadd.f32 %v2335, %v2462
  %2464 = vmatmul.bf16.gmra.mxu0 %v808
  %v2465 = vpop.f32.mrf.mxu0
  %v2466 = vadd.f32 %v2338, %v2465
  %v2467 = vpop.f32.mrf.mxu0
  %v2468 = vadd.f32 %v2340, %v2467
  %2469 = vmatmul.bf16.gmra.mxu0 %v814
  %v2470 = vpop.f32.mrf.mxu0
  %v2471 = vadd.f32 %v2343, %v2470
  %v2472 = vpop.f32.mrf.mxu0
  %v2473 = vadd.f32 %v2345, %v2472
  %2474 = vmatmul.bf16.gmra.mxu0 %v820
  %v2475 = vpop.f32.mrf.mxu0
  %v2476 = vadd.f32 %v2348, %v2475
  %v2477 = vpop.f32.mrf.mxu0
  %v2478 = vadd.f32 %v2350, %v2477
  %2479 = vmatmul.bf16.gmra.mxu0 %v826
  %v2480 = vpop.f32.mrf.mxu0
  %v2481 = vadd.f32 %v2353, %v2480
  %v2482 = vpop.f32.mrf.mxu0
  %v2483 = vadd.f32 %v2355, %v2482
  %2484 = vmatmul.bf16.gmra.mxu0 %v832
  %v2485 = vpop.f32.mrf.mxu0
  %v2486 = vadd.f32 %v2358, %v2485
  %v2487 = vpop.f32.mrf.mxu0
  %v2488 = vadd.f32 %v2360, %v2487
  %2489 = vmatmul.bf16.gmra.mxu0 %v838
  %v2490 = vpop.f32.mrf.mxu0
  %v2491 = vadd.f32 %v2363, %v2490
  %v2492 = vpop.f32.mrf.mxu0
  %v2493 = vadd.f32 %v2365, %v2492
  %2494 = vmatmul.bf16.gmra.mxu0 %v844
  %v2495 = vpop.f32.mrf.mxu0
  %v2496 = vadd.f32 %v2368, %v2495
  %v2497 = vpop.f32.mrf.mxu0
  %v2498 = vadd.f32 %v2370, %v2497
  %2499 = vmatmul.bf16.gmra.mxu0 %v850
  %v2500 = vpop.f32.mrf.mxu0
  %v2501 = vadd.f32 %v2373, %v2500
  %v2502 = vpop.f32.mrf.mxu0
  %v2503 = vadd.f32 %v2375, %v2502
  %2504 = vmatmul.bf16.gmra.mxu0 %v856
  %v2505 = vpop.f32.mrf.mxu0
  %v2506 = vadd.f32 %v2378, %v2505
  %v2507 = vpop.f32.mrf.mxu0
  %2508 = vdwg.mxu0
  %2509 = vmatpush.bf16.msra.mxu0 %v1340
  %2510 = vmatpush.bf16.msra.mxu0 %v1338
  %2511 = vmatpush.bf16.msra.mxu0 %v1336
  %2512 = vmatpush.bf16.msra.mxu0 %v1334
  %2513 = vmatpush.bf16.msra.mxu0 %v1332
  %2514 = vmatpush.bf16.msra.mxu0 %v1330
  %2515 = vmatpush.bf16.msra.mxu0 %v1328
  %2516 = vmatpush.bf16.msra.mxu0 %v1326
  %2517 = vmatmul.bf16.gmra.mxu0 %v719
  %v2518 = vpop.f32.mrf.mxu0
  %v2519 = vadd.f32 %v2391, %v2518
  %v2520 = vpop.f32.mrf.mxu0
  %v2521 = vadd.f32 %v2393, %v2520
  %2522 = vmatmul.bf16.gmra.mxu0 %v725
  %v2523 = vpop.f32.mrf.mxu0
  %v2524 = vadd.f32 %v2396, %v2523
  %v2525 = vpop.f32.mrf.mxu0
  %v2526 = vadd.f32 %v2398, %v2525
  %2527 = vmatmul.bf16.gmra.mxu0 %v731
  %v2528 = vpop.f32.mrf.mxu0
  %v2529 = vadd.f32 %v2401, %v2528
  %v2530 = vpop.f32.mrf.mxu0
  %v2531 = vadd.f32 %v2403, %v2530
  %2532 = vmatmul.bf16.gmra.mxu0 %v737
  %v2533 = vpop.f32.mrf.mxu0
  %v2534 = vadd.f32 %v2406, %v2533
  %v2535 = vpop.f32.mrf.mxu0
  %v2536 = vadd.f32 %v2408, %v2535
  %2537 = vmatmul.bf16.gmra.mxu0 %v743
  %v2538 = vpop.f32.mrf.mxu0
  %v2539 = vadd.f32 %v2411, %v2538
  %v2540 = vpop.f32.mrf.mxu0
  %v2541 = vadd.f32 %v2413, %v2540
  %2542 = vmatmul.bf16.gmra.mxu0 %v749
  %v2543 = vpop.f32.mrf.mxu0
  %v2544 = vadd.f32 %v2416, %v2543
  %v2545 = vpop.f32.mrf.mxu0
  %v2546 = vadd.f32 %v2418, %v2545
  %2547 = vmatmul.bf16.gmra.mxu0 %v755
  %v2548 = vpop.f32.mrf.mxu0
  %v2549 = vadd.f32 %v2421, %v2548
  %v2550 = vpop.f32.mrf.mxu0
  %v2551 = vadd.f32 %v2423, %v2550
  %2552 = vmatmul.bf16.gmra.mxu0 %v761
  %v2553 = vpop.f32.mrf.mxu0
  %v2554 = vadd.f32 %v2426, %v2553
  %v2555 = vpop.f32.mrf.mxu0
  %v2556 = vadd.f32 %v2428, %v2555
  %2557 = vmatmul.bf16.gmra.mxu0 %v767
  %v2558 = vpop.f32.mrf.mxu0
  %v2559 = vadd.f32 %v2431, %v2558
  %v2560 = vpop.f32.mrf.mxu0
  %v2561 = vadd.f32 %v2433, %v2560
  %2562 = vmatmul.bf16.gmra.mxu0 %v773
  %v2563 = vpop.f32.mrf.mxu0
  %v2564 = vadd.f32 %v2436, %v2563
  %v2565 = vpop.f32.mrf.mxu0
  %v2566 = vadd.f32 %v2438, %v2565
  %2567 = vmatmul.bf16.gmra.mxu0 %v779
  %v2568 = vpop.f32.mrf.mxu0
  %v2569 = vadd.f32 %v2441, %v2568
  %v2570 = vpop.f32.mrf.mxu0
  %v2571 = vadd.f32 %v2443, %v2570
  %2572 = vmatmul.bf16.gmra.mxu0 %v785
  %v2573 = vpop.f32.mrf.mxu0
  %v2574 = vadd.f32 %v2446, %v2573
  %v2575 = vpop.f32.mrf.mxu0
  %v2576 = vadd.f32 %v2448, %v2575
  %2577 = vmatmul.bf16.gmra.mxu0 %v791
  %v2578 = vpop.f32.mrf.mxu0
  %v2579 = vadd.f32 %v2451, %v2578
  %v2580 = vpop.f32.mrf.mxu0
  %v2581 = vadd.f32 %v2453, %v2580
  %2582 = vmatmul.bf16.gmra.mxu0 %v797
  %v2583 = vpop.f32.mrf.mxu0
  %v2584 = vadd.f32 %v2456, %v2583
  %v2585 = vpop.f32.mrf.mxu0
  %v2586 = vadd.f32 %v2458, %v2585
  %2587 = vmatmul.bf16.gmra.mxu0 %v803
  %v2588 = vpop.f32.mrf.mxu0
  %v2589 = vadd.f32 %v2461, %v2588
  %v2590 = vpop.f32.mrf.mxu0
  %v2591 = vadd.f32 %v2463, %v2590
  %2592 = vmatmul.bf16.gmra.mxu0 %v809
  %v2593 = vpop.f32.mrf.mxu0
  %v2594 = vadd.f32 %v2466, %v2593
  %v2595 = vpop.f32.mrf.mxu0
  %v2596 = vadd.f32 %v2468, %v2595
  %2597 = vmatmul.bf16.gmra.mxu0 %v815
  %v2598 = vpop.f32.mrf.mxu0
  %v2599 = vadd.f32 %v2471, %v2598
  %v2600 = vpop.f32.mrf.mxu0
  %v2601 = vadd.f32 %v2473, %v2600
  %2602 = vmatmul.bf16.gmra.mxu0 %v821
  %v2603 = vpop.f32.mrf.mxu0
  %v2604 = vadd.f32 %v2476, %v2603
  %v2605 = vpop.f32.mrf.mxu0
  %v2606 = vadd.f32 %v2478, %v2605
  %2607 = vmatmul.bf16.gmra.mxu0 %v827
  %v2608 = vpop.f32.mrf.mxu0
  %v2609 = vadd.f32 %v2481, %v2608
  %v2610 = vpop.f32.mrf.mxu0
  %v2611 = vadd.f32 %v2483, %v2610
  %2612 = vmatmul.bf16.gmra.mxu0 %v833
  %v2613 = vpop.f32.mrf.mxu0
  %v2614 = vadd.f32 %v2486, %v2613
  %v2615 = vpop.f32.mrf.mxu0
  %v2616 = vadd.f32 %v2488, %v2615
  %2617 = vmatmul.bf16.gmra.mxu0 %v839
  %v2618 = vpop.f32.mrf.mxu0
  %v2619 = vadd.f32 %v2491, %v2618
  %v2620 = vpop.f32.mrf.mxu0
  %v2621 = vadd.f32 %v2493, %v2620
  %2622 = vmatmul.bf16.gmra.mxu0 %v845
  %v2623 = vpop.f32.mrf.mxu0
  %v2624 = vadd.f32 %v2496, %v2623
  %v2625 = vpop.f32.mrf.mxu0
  %v2626 = vadd.f32 %v2498, %v2625
  %2627 = vmatmul.bf16.gmra.mxu0 %v851
  %v2628 = vpop.f32.mrf.mxu0
  %v2629 = vadd.f32 %v2501, %v2628
  %v2630 = vpop.f32.mrf.mxu0
  %v2631 = vadd.f32 %v2503, %v2630
  %2632 = vmatmul.bf16.gmra.mxu0 %v857
  %v2633 = vpop.f32.mrf.mxu0
  %v2634 = vadd.f32 %v2506, %v2633
  %v2635 = vpop.f32.mrf.mxu0
  %2636 = vdwg.mxu0
  %2637 = vmatpush.bf16.msra.mxu0 %v1356
  %2638 = vmatpush.bf16.msra.mxu0 %v1354
  %2639 = vmatpush.bf16.msra.mxu0 %v1352
  %2640 = vmatpush.bf16.msra.mxu0 %v1350
  %2641 = vmatpush.bf16.msra.mxu0 %v1348
  %2642 = vmatpush.bf16.msra.mxu0 %v1346
  %2643 = vmatpush.bf16.msra.mxu0 %v1344
  %2644 = vmatpush.bf16.msra.mxu0 %v1342
  %2645 = vmatmul.bf16.gmra.mxu0 %v720
  %v2646 = vpop.f32.mrf.mxu0
  %v2647 = vadd.f32 %v2519, %v2646
  %v2648 = vpop.f32.mrf.mxu0
  %v2649 = vadd.f32 %v2521, %v2648
  %2650 = vmatmul.bf16.gmra.mxu0 %v726
  %v2651 = vpop.f32.mrf.mxu0
  %v2652 = vadd.f32 %v2524, %v2651
  %v2653 = vpop.f32.mrf.mxu0
  %v2654 = vadd.f32 %v2526, %v2653
  %2655 = vmatmul.bf16.gmra.mxu0 %v732
  %v2656 = vpop.f32.mrf.mxu0
  %v2657 = vadd.f32 %v2529, %v2656
  %v2658 = vpop.f32.mrf.mxu0
  %v2659 = vadd.f32 %v2531, %v2658
  %2660 = vmatmul.bf16.gmra.mxu0 %v738
  %v2661 = vpop.f32.mrf.mxu0
  %v2662 = vadd.f32 %v2534, %v2661
  %v2663 = vpop.f32.mrf.mxu0
  %v2664 = vadd.f32 %v2536, %v2663
  %2665 = vmatmul.bf16.gmra.mxu0 %v744
  %v2666 = vpop.f32.mrf.mxu0
  %v2667 = vadd.f32 %v2539, %v2666
  %v2668 = vpop.f32.mrf.mxu0
  %v2669 = vadd.f32 %v2541, %v2668
  %2670 = vmatmul.bf16.gmra.mxu0 %v750
  %v2671 = vpop.f32.mrf.mxu0
  %v2672 = vadd.f32 %v2544, %v2671
  %v2673 = vpop.f32.mrf.mxu0
  %v2674 = vadd.f32 %v2546, %v2673
  %2675 = vmatmul.bf16.gmra.mxu0 %v756
  %v2676 = vpop.f32.mrf.mxu0
  %v2677 = vadd.f32 %v2549, %v2676
  %v2678 = vpop.f32.mrf.mxu0
  %v2679 = vadd.f32 %v2551, %v2678
  %2680 = vmatmul.bf16.gmra.mxu0 %v762
  %v2681 = vpop.f32.mrf.mxu0
  %v2682 = vadd.f32 %v2554, %v2681
  %v2683 = vpop.f32.mrf.mxu0
  %v2684 = vadd.f32 %v2556, %v2683
  %2685 = vmatmul.bf16.gmra.mxu0 %v768
  %v2686 = vpop.f32.mrf.mxu0
  %v2687 = vadd.f32 %v2559, %v2686
  %v2688 = vpop.f32.mrf.mxu0
  %v2689 = vadd.f32 %v2561, %v2688
  %2690 = vmatmul.bf16.gmra.mxu0 %v774
  %v2691 = vpop.f32.mrf.mxu0
  %v2692 = vadd.f32 %v2564, %v2691
  %v2693 = vpop.f32.mrf.mxu0
  %v2694 = vadd.f32 %v2566, %v2693
  %2695 = vmatmul.bf16.gmra.mxu0 %v780
  %v2696 = vpop.f32.mrf.mxu0
  %v2697 = vadd.f32 %v2569, %v2696
  %v2698 = vpop.f32.mrf.mxu0
  %v2699 = vadd.f32 %v2571, %v2698
  %2700 = vmatmul.bf16.gmra.mxu0 %v786
  %v2701 = vpop.f32.mrf.mxu0
  %v2702 = vadd.f32 %v2574, %v2701
  %v2703 = vpop.f32.mrf.mxu0
  %v2704 = vadd.f32 %v2576, %v2703
  %2705 = vmatmul.bf16.gmra.mxu0 %v792
  %v2706 = vpop.f32.mrf.mxu0
  %v2707 = vadd.f32 %v2579, %v2706
  %v2708 = vpop.f32.mrf.mxu0
  %v2709 = vadd.f32 %v2581, %v2708
  %2710 = vmatmul.bf16.gmra.mxu0 %v798
  %v2711 = vpop.f32.mrf.mxu0
  %v2712 = vadd.f32 %v2584, %v2711
  %v2713 = vpop.f32.mrf.mxu0
  %v2714 = vadd.f32 %v2586, %v2713
  %2715 = vmatmul.bf16.gmra.mxu0 %v804
  %v2716 = vpop.f32.mrf.mxu0
  %v2717 = vadd.f32 %v2589, %v2716
  %v2718 = vpop.f32.mrf.mxu0
  %v2719 = vadd.f32 %v2591, %v2718
  %2720 = vmatmul.bf16.gmra.mxu0 %v810
  %v2721 = vpop.f32.mrf.mxu0
  %v2722 = vadd.f32 %v2594, %v2721
  %v2723 = vpop.f32.mrf.mxu0
  %v2724 = vadd.f32 %v2596, %v2723
  %2725 = vmatmul.bf16.gmra.mxu0 %v816
  %v2726 = vpop.f32.mrf.mxu0
  %v2727 = vadd.f32 %v2599, %v2726
  %v2728 = vpop.f32.mrf.mxu0
  %v2729 = vadd.f32 %v2601, %v2728
  %2730 = vmatmul.bf16.gmra.mxu0 %v822
  %v2731 = vpop.f32.mrf.mxu0
  %v2732 = vadd.f32 %v2604, %v2731
  %v2733 = vpop.f32.mrf.mxu0
  %v2734 = vadd.f32 %v2606, %v2733
  %2735 = vmatmul.bf16.gmra.mxu0 %v828
  %v2736 = vpop.f32.mrf.mxu0
  %v2737 = vadd.f32 %v2609, %v2736
  %v2738 = vpop.f32.mrf.mxu0
  %v2739 = vadd.f32 %v2611, %v2738
  %2740 = vmatmul.bf16.gmra.mxu0 %v834
  %v2741 = vpop.f32.mrf.mxu0
  %v2742 = vadd.f32 %v2614, %v2741
  %v2743 = vpop.f32.mrf.mxu0
  %v2744 = vadd.f32 %v2616, %v2743
  %2745 = vmatmul.bf16.gmra.mxu0 %v840
  %v2746 = vpop.f32.mrf.mxu0
  %v2747 = vadd.f32 %v2619, %v2746
  %v2748 = vpop.f32.mrf.mxu0
  %v2749 = vadd.f32 %v2621, %v2748
  %2750 = vmatmul.bf16.gmra.mxu0 %v846
  %v2751 = vpop.f32.mrf.mxu0
  %v2752 = vadd.f32 %v2624, %v2751
  %v2753 = vpop.f32.mrf.mxu0
  %v2754 = vadd.f32 %v2626, %v2753
  %2755 = vmatmul.bf16.gmra.mxu0 %v852
  %v2756 = vpop.f32.mrf.mxu0
  %v2757 = vadd.f32 %v2629, %v2756
  %v2758 = vpop.f32.mrf.mxu0
  %v2759 = vadd.f32 %v2631, %v2758
  %2760 = vmatmul.bf16.gmra.mxu0 %v858
  %v2761 = vpop.f32.mrf.mxu0
  %v2762 = vadd.f32 %v2634, %v2761
  %v2763 = vpop.f32.mrf.mxu0
  %2764 = vdwg.mxu0
  %2765 = vmatpush.bf16.msra.mxu0 %v1372
  %2766 = vmatpush.bf16.msra.mxu0 %v1370
  %2767 = vmatpush.bf16.msra.mxu0 %v1368
  %2768 = vmatpush.bf16.msra.mxu0 %v1366
  %2769 = vmatpush.bf16.msra.mxu0 %v1364
  %2770 = vmatpush.bf16.msra.mxu0 %v1362
  %2771 = vmatpush.bf16.msra.mxu0 %v1360
  %2772 = vmatpush.bf16.msra.mxu0 %v1358
  %2773 = vmatmul.bf16.gmra.mxu0 %v721
  %v2774 = vpop.f32.mrf.mxu0
  %v2775 = vadd.f32 %v2647, %v2774
  %v2776 = vpop.f32.mrf.mxu0
  %v2777 = vadd.f32 %v2649, %v2776
  %2778 = vmatmul.bf16.gmra.mxu0 %v727
  %v2779 = vpop.f32.mrf.mxu0
  %v2780 = vadd.f32 %v2652, %v2779
  %v2781 = vpop.f32.mrf.mxu0
  %v2782 = vadd.f32 %v2654, %v2781
  %2783 = vmatmul.bf16.gmra.mxu0 %v733
  %v2784 = vpop.f32.mrf.mxu0
  %v2785 = vadd.f32 %v2657, %v2784
  %v2786 = vpop.f32.mrf.mxu0
  %v2787 = vadd.f32 %v2659, %v2786
  %2788 = vmatmul.bf16.gmra.mxu0 %v739
  %v2789 = vpop.f32.mrf.mxu0
  %v2790 = vadd.f32 %v2662, %v2789
  %v2791 = vpop.f32.mrf.mxu0
  %v2792 = vadd.f32 %v2664, %v2791
  %2793 = vmatmul.bf16.gmra.mxu0 %v745
  %v2794 = vpop.f32.mrf.mxu0
  %v2795 = vadd.f32 %v2667, %v2794
  %v2796 = vpop.f32.mrf.mxu0
  %v2797 = vadd.f32 %v2669, %v2796
  %2798 = vmatmul.bf16.gmra.mxu0 %v751
  %v2799 = vpop.f32.mrf.mxu0
  %v2800 = vadd.f32 %v2672, %v2799
  %v2801 = vpop.f32.mrf.mxu0
  %v2802 = vadd.f32 %v2674, %v2801
  %2803 = vmatmul.bf16.gmra.mxu0 %v757
  %v2804 = vpop.f32.mrf.mxu0
  %v2805 = vadd.f32 %v2677, %v2804
  %v2806 = vpop.f32.mrf.mxu0
  %v2807 = vadd.f32 %v2679, %v2806
  %2808 = vmatmul.bf16.gmra.mxu0 %v763
  %v2809 = vpop.f32.mrf.mxu0
  %v2810 = vadd.f32 %v2682, %v2809
  %v2811 = vpop.f32.mrf.mxu0
  %v2812 = vadd.f32 %v2684, %v2811
  %2813 = vmatmul.bf16.gmra.mxu0 %v769
  %v2814 = vpop.f32.mrf.mxu0
  %v2815 = vadd.f32 %v2687, %v2814
  %v2816 = vpop.f32.mrf.mxu0
  %v2817 = vadd.f32 %v2689, %v2816
  %2818 = vmatmul.bf16.gmra.mxu0 %v775
  %v2819 = vpop.f32.mrf.mxu0
  %v2820 = vadd.f32 %v2692, %v2819
  %v2821 = vpop.f32.mrf.mxu0
  %v2822 = vadd.f32 %v2694, %v2821
  %2823 = vmatmul.bf16.gmra.mxu0 %v781
  %v2824 = vpop.f32.mrf.mxu0
  %v2825 = vadd.f32 %v2697, %v2824
  %v2826 = vpop.f32.mrf.mxu0
  %v2827 = vadd.f32 %v2699, %v2826
  %2828 = vmatmul.bf16.gmra.mxu0 %v787
  %v2829 = vpop.f32.mrf.mxu0
  %v2830 = vadd.f32 %v2702, %v2829
  %v2831 = vpop.f32.mrf.mxu0
  %v2832 = vadd.f32 %v2704, %v2831
  %2833 = vmatmul.bf16.gmra.mxu0 %v793
  %v2834 = vpop.f32.mrf.mxu0
  %v2835 = vadd.f32 %v2707, %v2834
  %v2836 = vpop.f32.mrf.mxu0
  %v2837 = vadd.f32 %v2709, %v2836
  %2838 = vmatmul.bf16.gmra.mxu0 %v799
  %v2839 = vpop.f32.mrf.mxu0
  %v2840 = vadd.f32 %v2712, %v2839
  %v2841 = vpop.f32.mrf.mxu0
  %v2842 = vadd.f32 %v2714, %v2841
  %2843 = vmatmul.bf16.gmra.mxu0 %v805
  %v2844 = vpop.f32.mrf.mxu0
  %v2845 = vadd.f32 %v2717, %v2844
  %v2846 = vpop.f32.mrf.mxu0
  %v2847 = vadd.f32 %v2719, %v2846
  %2848 = vmatmul.bf16.gmra.mxu0 %v811
  %v2849 = vpop.f32.mrf.mxu0
  %v2850 = vadd.f32 %v2722, %v2849
  %v2851 = vpop.f32.mrf.mxu0
  %v2852 = vadd.f32 %v2724, %v2851
  %2853 = vmatmul.bf16.gmra.mxu0 %v817
  %v2854 = vpop.f32.mrf.mxu0
  %v2855 = vadd.f32 %v2727, %v2854
  %v2856 = vpop.f32.mrf.mxu0
  %v2857 = vadd.f32 %v2729, %v2856
  %2858 = vmatmul.bf16.gmra.mxu0 %v823
  %v2859 = vpop.f32.mrf.mxu0
  %v2860 = vadd.f32 %v2732, %v2859
  %v2861 = vpop.f32.mrf.mxu0
  %v2862 = vadd.f32 %v2734, %v2861
  %2863 = vmatmul.bf16.gmra.mxu0 %v829
  %v2864 = vpop.f32.mrf.mxu0
  %v2865 = vadd.f32 %v2737, %v2864
  %v2866 = vpop.f32.mrf.mxu0
  %v2867 = vadd.f32 %v2739, %v2866
  %2868 = vmatmul.bf16.gmra.mxu0 %v835
  %v2869 = vpop.f32.mrf.mxu0
  %v2870 = vadd.f32 %v2742, %v2869
  %v2871 = vpop.f32.mrf.mxu0
  %v2872 = vadd.f32 %v2744, %v2871
  %2873 = vmatmul.bf16.gmra.mxu0 %v841
  %v2874 = vpop.f32.mrf.mxu0
  %v2875 = vadd.f32 %v2747, %v2874
  %v2876 = vpop.f32.mrf.mxu0
  %v2877 = vadd.f32 %v2749, %v2876
  %2878 = vmatmul.bf16.gmra.mxu0 %v847
  %v2879 = vpop.f32.mrf.mxu0
  %v2880 = vadd.f32 %v2752, %v2879
  %v2881 = vpop.f32.mrf.mxu0
  %v2882 = vadd.f32 %v2754, %v2881
  %2883 = vmatmul.bf16.gmra.mxu0 %v853
  %v2884 = vpop.f32.mrf.mxu0
  %v2885 = vadd.f32 %v2757, %v2884
  %v2886 = vpop.f32.mrf.mxu0
  %v2887 = vadd.f32 %v2759, %v2886
  %2888 = vmatmul.bf16.gmra.mxu0 %v859
  %v2889 = vpop.f32.mrf.mxu0
  %v2890 = vadd.f32 %v2762, %v2889
  %v2891 = vpop.f32.mrf.mxu0
  %2892 = vdwg.mxu0
  %2893 = vmatpush.bf16.msra.mxu0 %v1388
  %2894 = vmatpush.bf16.msra.mxu0 %v1386
  %2895 = vmatpush.bf16.msra.mxu0 %v1384
  %2896 = vmatpush.bf16.msra.mxu0 %v1382
  %2897 = vmatpush.bf16.msra.mxu0 %v1380
  %2898 = vmatpush.bf16.msra.mxu0 %v1378
  %2899 = vmatpush.bf16.msra.mxu0 %v1376
  %2900 = vmatpush.bf16.msra.mxu0 %v1374
  %2901 = vmatmul.bf16.gmra.mxu0 %v722
  %v2902 = vpop.f32.mrf.mxu0
  %v2903 = vadd.f32 %v2775, %v2902
  %v2904 = vpop.f32.mrf.mxu0
  %v2905 = vadd.f32 %v2777, %v2904
  %2906 = vmatmul.bf16.gmra.mxu0 %v728
  %v2907 = vpop.f32.mrf.mxu0
  %v2908 = vadd.f32 %v2780, %v2907
  %v2909 = vpop.f32.mrf.mxu0
  %v2910 = vadd.f32 %v2782, %v2909
  %2911 = vmatmul.bf16.gmra.mxu0 %v734
  %v2912 = vpop.f32.mrf.mxu0
  %v2913 = vadd.f32 %v2785, %v2912
  %v2914 = vpop.f32.mrf.mxu0
  %v2915 = vadd.f32 %v2787, %v2914
  %2916 = vmatmul.bf16.gmra.mxu0 %v740
  %v2917 = vpop.f32.mrf.mxu0
  %v2918 = vadd.f32 %v2790, %v2917
  %v2919 = vpop.f32.mrf.mxu0
  %v2920 = vadd.f32 %v2792, %v2919
  %2921 = vmatmul.bf16.gmra.mxu0 %v746
  %v2922 = vpop.f32.mrf.mxu0
  %v2923 = vadd.f32 %v2795, %v2922
  %v2924 = vpop.f32.mrf.mxu0
  %v2925 = vadd.f32 %v2797, %v2924
  %2926 = vmatmul.bf16.gmra.mxu0 %v752
  %v2927 = vpop.f32.mrf.mxu0
  %v2928 = vadd.f32 %v2800, %v2927
  %v2929 = vpop.f32.mrf.mxu0
  %v2930 = vadd.f32 %v2802, %v2929
  %2931 = vmatmul.bf16.gmra.mxu0 %v758
  %v2932 = vpop.f32.mrf.mxu0
  %v2933 = vadd.f32 %v2805, %v2932
  %v2934 = vpop.f32.mrf.mxu0
  %v2935 = vadd.f32 %v2807, %v2934
  %2936 = vmatmul.bf16.gmra.mxu0 %v764
  %v2937 = vpop.f32.mrf.mxu0
  %v2938 = vadd.f32 %v2810, %v2937
  %v2939 = vpop.f32.mrf.mxu0
  %v2940 = vadd.f32 %v2812, %v2939
  %2941 = vmatmul.bf16.gmra.mxu0 %v770
  %v2942 = vpop.f32.mrf.mxu0
  %v2943 = vadd.f32 %v2815, %v2942
  %v2944 = vpop.f32.mrf.mxu0
  %v2945 = vadd.f32 %v2817, %v2944
  %2946 = vmatmul.bf16.gmra.mxu0 %v776
  %v2947 = vpop.f32.mrf.mxu0
  %v2948 = vadd.f32 %v2820, %v2947
  %v2949 = vpop.f32.mrf.mxu0
  %v2950 = vadd.f32 %v2822, %v2949
  %2951 = vmatmul.bf16.gmra.mxu0 %v782
  %v2952 = vpop.f32.mrf.mxu0
  %v2953 = vadd.f32 %v2825, %v2952
  %v2954 = vpop.f32.mrf.mxu0
  %v2955 = vadd.f32 %v2827, %v2954
  %2956 = vmatmul.bf16.gmra.mxu0 %v788
  %v2957 = vpop.f32.mrf.mxu0
  %v2958 = vadd.f32 %v2830, %v2957
  %v2959 = vpop.f32.mrf.mxu0
  %v2960 = vadd.f32 %v2832, %v2959
  %2961 = vmatmul.bf16.gmra.mxu0 %v794
  %v2962 = vpop.f32.mrf.mxu0
  %v2963 = vadd.f32 %v2835, %v2962
  %v2964 = vpop.f32.mrf.mxu0
  %v2965 = vadd.f32 %v2837, %v2964
  %2966 = vmatmul.bf16.gmra.mxu0 %v800
  %v2967 = vpop.f32.mrf.mxu0
  %v2968 = vadd.f32 %v2840, %v2967
  %v2969 = vpop.f32.mrf.mxu0
  %v2970 = vadd.f32 %v2842, %v2969
  %2971 = vmatmul.bf16.gmra.mxu0 %v806
  %v2972 = vpop.f32.mrf.mxu0
  %v2973 = vadd.f32 %v2845, %v2972
  %v2974 = vpop.f32.mrf.mxu0
  %v2975 = vadd.f32 %v2847, %v2974
  %2976 = vmatmul.bf16.gmra.mxu0 %v812
  %v2977 = vpop.f32.mrf.mxu0
  %v2978 = vadd.f32 %v2850, %v2977
  %v2979 = vpop.f32.mrf.mxu0
  %v2980 = vadd.f32 %v2852, %v2979
  %2981 = vmatmul.bf16.gmra.mxu0 %v818
  %v2982 = vpop.f32.mrf.mxu0
  %v2983 = vadd.f32 %v2855, %v2982
  %v2984 = vpop.f32.mrf.mxu0
  %v2985 = vadd.f32 %v2857, %v2984
  %2986 = vmatmul.bf16.gmra.mxu0 %v824
  %v2987 = vpop.f32.mrf.mxu0
  %v2988 = vadd.f32 %v2860, %v2987
  %v2989 = vpop.f32.mrf.mxu0
  %v2990 = vadd.f32 %v2862, %v2989
  %2991 = vmatmul.bf16.gmra.mxu0 %v830
  %v2992 = vpop.f32.mrf.mxu0
  %v2993 = vadd.f32 %v2865, %v2992
  %v2994 = vpop.f32.mrf.mxu0
  %v2995 = vadd.f32 %v2867, %v2994
  %2996 = vmatmul.bf16.gmra.mxu0 %v836
  %v2997 = vpop.f32.mrf.mxu0
  %v2998 = vadd.f32 %v2870, %v2997
  %v2999 = vpop.f32.mrf.mxu0
  %v3000 = vadd.f32 %v2872, %v2999
  %3001 = vmatmul.bf16.gmra.mxu0 %v842
  %v3002 = vpop.f32.mrf.mxu0
  %v3003 = vadd.f32 %v2875, %v3002
  %v3004 = vpop.f32.mrf.mxu0
  %v3005 = vadd.f32 %v2877, %v3004
  %3006 = vmatmul.bf16.gmra.mxu0 %v848
  %v3007 = vpop.f32.mrf.mxu0
  %v3008 = vadd.f32 %v2880, %v3007
  %v3009 = vpop.f32.mrf.mxu0
  %v3010 = vadd.f32 %v2882, %v3009
  %3011 = vmatmul.bf16.gmra.mxu0 %v854
  %v3012 = vpop.f32.mrf.mxu0
  %v3013 = vadd.f32 %v2885, %v3012
  %v3014 = vpop.f32.mrf.mxu0
  %v3015 = vadd.f32 %v2887, %v3014
  %3016 = vmatmul.bf16.gmra.mxu0 %v860
  %v3017 = vpop.f32.mrf.mxu0
  %v3018 = vadd.f32 %v2890, %v3017
  %v3019 = vpop.f32.mrf.mxu0
  %3020 = vdwg.mxu0
  %s3021 = scalar_lea.vmem %s1, 768
  %v3022 = vld [vmem:[%s3021] sm:$0xff]
  %v3023 = vld [vmem:[%s3021 + $0x8] sm:$0xff]
  %v3024 = vld [vmem:[%s3021 + $0x10] sm:$0xff]
  %v3025 = vld [vmem:[%s3021 + $0x18] sm:$0xff]
  %v3026 = vld [vmem:[%s3021 + $0x20] sm:$0xff]
  %v3027 = vld [vmem:[%s3021 + $0x28] sm:$0xff]
  %v3028 = vld [vmem:[%s3021 + $0x30] sm:$0xff]
  %v3029 = vld [vmem:[%s3021 + $0x38] sm:$0xff]
  %v3030 = vld [vmem:[%s3021 + $0x40] sm:$0xff]
  %v3031 = vld [vmem:[%s3021 + $0x48] sm:$0xff]
  %v3032 = vld [vmem:[%s3021 + $0x50] sm:$0xff]
  %v3033 = vld [vmem:[%s3021 + $0x58] sm:$0xff]
  %v3034 = vld [vmem:[%s3021 + $0x60] sm:$0xff]
  %v3035 = vld [vmem:[%s3021 + $0x68] sm:$0xff]
  %v3036 = vld [vmem:[%s3021 + $0x70] sm:$0xff]
  %v3037 = vld [vmem:[%s3021 + $0x78] sm:$0xff]
  %v3038 = vld [vmem:[%s3021 + $0x80] sm:$0xff]
  %v3039 = vld [vmem:[%s3021 + $0x88] sm:$0xff]
  %v3040 = vld [vmem:[%s3021 + $0x90] sm:$0xff]
  %v3041 = vld [vmem:[%s3021 + $0x98] sm:$0xff]
  %v3042 = vld [vmem:[%s3021 + $0xa0] sm:$0xff]
  %v3043 = vld [vmem:[%s3021 + $0xa8] sm:$0xff]
  %v3044 = vld [vmem:[%s3021 + $0xb0] sm:$0xff]
  %v3045 = vld [vmem:[%s3021 + $0xb8] sm:$0xff]
  %v3046 = vld [vmem:[%s3021 + $0xc0] sm:$0xff]
  %v3047 = vld [vmem:[%s3021 + $0xc8] sm:$0xff]
  %v3048 = vld [vmem:[%s3021 + $0xd0] sm:$0xff]
  %v3049 = vld [vmem:[%s3021 + $0xd8] sm:$0xff]
  %v3050 = vld [vmem:[%s3021 + $0xe0] sm:$0xff]
  %v3051 = vld [vmem:[%s3021 + $0xe8] sm:$0xff]
  %v3052 = vld [vmem:[%s3021 + $0xf0] sm:$0xff]
  %v3053 = vld [vmem:[%s3021 + $0xf8] sm:$0xff]
  %v3054 = vld [vmem:[%s3021 + $0x100] sm:$0xff]
  %v3055 = vld [vmem:[%s3021 + $0x108] sm:$0xff]
  %v3056 = vld [vmem:[%s3021 + $0x110] sm:$0xff]
  %v3057 = vld [vmem:[%s3021 + $0x118] sm:$0xff]
  %v3058 = vld [vmem:[%s3021 + $0x120] sm:$0xff]
  %v3059 = vld [vmem:[%s3021 + $0x128] sm:$0xff]
  %v3060 = vld [vmem:[%s3021 + $0x130] sm:$0xff]
  %v3061 = vld [vmem:[%s3021 + $0x138] sm:$0xff]
  %v3062 = vld [vmem:[%s3021 + $0x140] sm:$0xff]
  %v3063 = vld [vmem:[%s3021 + $0x148] sm:$0xff]
  %v3064 = vld [vmem:[%s3021 + $0x150] sm:$0xff]
  %v3065 = vld [vmem:[%s3021 + $0x158] sm:$0xff]
  %v3066 = vld [vmem:[%s3021 + $0x160] sm:$0xff]
  %v3067 = vld [vmem:[%s3021 + $0x168] sm:$0xff]
  %v3068 = vld [vmem:[%s3021 + $0x170] sm:$0xff]
  %v3069 = vld [vmem:[%s3021 + $0x178] sm:$0xff]
  %v3070 = vld [vmem:[%s3021 + $0x180] sm:$0xff]
  %v3071 = vld [vmem:[%s3021 + $0x188] sm:$0xff]
  %v3072 = vld [vmem:[%s3021 + $0x190] sm:$0xff]
  %v3073 = vld [vmem:[%s3021 + $0x198] sm:$0xff]
  %v3074 = vld [vmem:[%s3021 + $0x1a0] sm:$0xff]
  %v3075 = vld [vmem:[%s3021 + $0x1a8] sm:$0xff]
  %v3076 = vld [vmem:[%s3021 + $0x1b0] sm:$0xff]
  %v3077 = vld [vmem:[%s3021 + $0x1b8] sm:$0xff]
  %v3078 = vld [vmem:[%s3021 + $0x1c0] sm:$0xff]
  %v3079 = vld [vmem:[%s3021 + $0x1c8] sm:$0xff]
  %v3080 = vld [vmem:[%s3021 + $0x1d0] sm:$0xff]
  %v3081 = vld [vmem:[%s3021 + $0x1d8] sm:$0xff]
  %v3082 = vld [vmem:[%s3021 + $0x1e0] sm:$0xff]
  %v3083 = vld [vmem:[%s3021 + $0x1e8] sm:$0xff]
  %v3084 = vld [vmem:[%s3021 + $0x1f0] sm:$0xff]
  %v3085 = vld [vmem:[%s3021 + $0x1f8] sm:$0xff]
  %v3086 = vld [vmem:[%s3021 + $0x200] sm:$0xff]
  %v3087 = vld [vmem:[%s3021 + $0x208] sm:$0xff]
  %v3088 = vld [vmem:[%s3021 + $0x210] sm:$0xff]
  %v3089 = vld [vmem:[%s3021 + $0x218] sm:$0xff]
  %v3090 = vld [vmem:[%s3021 + $0x220] sm:$0xff]
  %v3091 = vld [vmem:[%s3021 + $0x228] sm:$0xff]
  %v3092 = vld [vmem:[%s3021 + $0x230] sm:$0xff]
  %v3093 = vld [vmem:[%s3021 + $0x238] sm:$0xff]
  %v3094 = vld [vmem:[%s3021 + $0x240] sm:$0xff]
  %v3095 = vld [vmem:[%s3021 + $0x248] sm:$0xff]
  %v3096 = vld [vmem:[%s3021 + $0x250] sm:$0xff]
  %v3097 = vld [vmem:[%s3021 + $0x258] sm:$0xff]
  %v3098 = vld [vmem:[%s3021 + $0x260] sm:$0xff]
  %v3099 = vld [vmem:[%s3021 + $0x268] sm:$0xff]
  %v3100 = vld [vmem:[%s3021 + $0x270] sm:$0xff]
  %v3101 = vld [vmem:[%s3021 + $0x278] sm:$0xff]
  %v3102 = vld [vmem:[%s3021 + $0x280] sm:$0xff]
  %v3103 = vld [vmem:[%s3021 + $0x288] sm:$0xff]
  %v3104 = vld [vmem:[%s3021 + $0x290] sm:$0xff]
  %v3105 = vld [vmem:[%s3021 + $0x298] sm:$0xff]
  %v3106 = vld [vmem:[%s3021 + $0x2a0] sm:$0xff]
  %v3107 = vld [vmem:[%s3021 + $0x2a8] sm:$0xff]
  %v3108 = vld [vmem:[%s3021 + $0x2b0] sm:$0xff]
  %v3109 = vld [vmem:[%s3021 + $0x2b8] sm:$0xff]
  %v3110 = vld [vmem:[%s3021 + $0x2c0] sm:$0xff]
  %v3111 = vld [vmem:[%s3021 + $0x2c8] sm:$0xff]
  %v3112 = vld [vmem:[%s3021 + $0x2d0] sm:$0xff]
  %v3113 = vld [vmem:[%s3021 + $0x2d8] sm:$0xff]
  %v3114 = vld [vmem:[%s3021 + $0x2e0] sm:$0xff]
  %v3115 = vld [vmem:[%s3021 + $0x2e8] sm:$0xff]
  %v3116 = vld [vmem:[%s3021 + $0x2f0] sm:$0xff]
  %v3117 = vld [vmem:[%s3021 + $0x2f8] sm:$0xff]
  %v3214 = vunpack.c.l.b16 %v3022
  %v3215 = vunpack.c.h.b16 %v3022
  %v3216 = vunpack.c.l.b16 %v3023
  %v3217 = vunpack.c.h.b16 %v3023
  %v3218 = vunpack.c.l.b16 %v3024
  %v3219 = vunpack.c.h.b16 %v3024
  %v3220 = vunpack.c.l.b16 %v3025
  %v3221 = vunpack.c.h.b16 %v3025
  %v3222 = vunpack.c.l.b16 %v3026
  %v3223 = vunpack.c.h.b16 %v3026
  %v3224 = vunpack.c.l.b16 %v3027
  %v3225 = vunpack.c.h.b16 %v3027
  %v3226 = vunpack.c.l.b16 %v3028
  %v3227 = vunpack.c.h.b16 %v3028
  %v3228 = vunpack.c.l.b16 %v3029
  %v3229 = vunpack.c.h.b16 %v3029
  %v3230 = vunpack.c.l.b16 %v3030
  %v3231 = vunpack.c.h.b16 %v3030
  %v3232 = vunpack.c.l.b16 %v3031
  %v3233 = vunpack.c.h.b16 %v3031
  %v3234 = vunpack.c.l.b16 %v3032
  %v3235 = vunpack.c.h.b16 %v3032
  %v3236 = vunpack.c.l.b16 %v3033
  %v3237 = vunpack.c.h.b16 %v3033
  %v3238 = vunpack.c.l.b16 %v3034
  %v3239 = vunpack.c.h.b16 %v3034
  %v3240 = vunpack.c.l.b16 %v3035
  %v3241 = vunpack.c.h.b16 %v3035
  %v3242 = vunpack.c.l.b16 %v3036
  %v3243 = vunpack.c.h.b16 %v3036
  %v3244 = vunpack.c.l.b16 %v3037
  %v3245 = vunpack.c.h.b16 %v3037
  %v3246 = vunpack.c.l.b16 %v3038
  %v3247 = vunpack.c.h.b16 %v3038
  %v3248 = vunpack.c.l.b16 %v3039
  %v3249 = vunpack.c.h.b16 %v3039
  %v3250 = vunpack.c.l.b16 %v3040
  %v3251 = vunpack.c.h.b16 %v3040
  %v3252 = vunpack.c.l.b16 %v3041
  %v3253 = vunpack.c.h.b16 %v3041
  %v3254 = vunpack.c.l.b16 %v3042
  %v3255 = vunpack.c.h.b16 %v3042
  %v3256 = vunpack.c.l.b16 %v3043
  %v3257 = vunpack.c.h.b16 %v3043
  %v3258 = vunpack.c.l.b16 %v3044
  %v3259 = vunpack.c.h.b16 %v3044
  %v3260 = vunpack.c.l.b16 %v3045
  %v3261 = vunpack.c.h.b16 %v3045
  %v3262 = vunpack.c.l.b16 %v3046
  %v3263 = vunpack.c.h.b16 %v3046
  %v3264 = vunpack.c.l.b16 %v3047
  %v3265 = vunpack.c.h.b16 %v3047
  %v3266 = vunpack.c.l.b16 %v3048
  %v3267 = vunpack.c.h.b16 %v3048
  %v3268 = vunpack.c.l.b16 %v3049
  %v3269 = vunpack.c.h.b16 %v3049
  %v3270 = vunpack.c.l.b16 %v3050
  %v3271 = vunpack.c.h.b16 %v3050
  %v3272 = vunpack.c.l.b16 %v3051
  %v3273 = vunpack.c.h.b16 %v3051
  %v3274 = vunpack.c.l.b16 %v3052
  %v3275 = vunpack.c.h.b16 %v3052
  %v3276 = vunpack.c.l.b16 %v3053
  %v3277 = vunpack.c.h.b16 %v3053
  %v3278 = vunpack.c.l.b16 %v3054
  %v3279 = vunpack.c.h.b16 %v3054
  %v3280 = vunpack.c.l.b16 %v3055
  %v3281 = vunpack.c.h.b16 %v3055
  %v3282 = vunpack.c.l.b16 %v3056
  %v3283 = vunpack.c.h.b16 %v3056
  %v3284 = vunpack.c.l.b16 %v3057
  %v3285 = vunpack.c.h.b16 %v3057
  %v3286 = vunpack.c.l.b16 %v3058
  %v3287 = vunpack.c.h.b16 %v3058
  %v3288 = vunpack.c.l.b16 %v3059
  %v3289 = vunpack.c.h.b16 %v3059
  %v3290 = vunpack.c.l.b16 %v3060
  %v3291 = vunpack.c.h.b16 %v3060
  %v3292 = vunpack.c.l.b16 %v3061
  %v3293 = vunpack.c.h.b16 %v3061
  %v3294 = vunpack.c.l.b16 %v3062
  %v3295 = vunpack.c.h.b16 %v3062
  %v3296 = vunpack.c.l.b16 %v3063
  %v3297 = vunpack.c.h.b16 %v3063
  %v3298 = vunpack.c.l.b16 %v3064
  %v3299 = vunpack.c.h.b16 %v3064
  %v3300 = vunpack.c.l.b16 %v3065
  %v3301 = vunpack.c.h.b16 %v3065
  %v3302 = vunpack.c.l.b16 %v3066
  %v3303 = vunpack.c.h.b16 %v3066
  %v3304 = vunpack.c.l.b16 %v3067
  %v3305 = vunpack.c.h.b16 %v3067
  %v3306 = vunpack.c.l.b16 %v3068
  %v3307 = vunpack.c.h.b16 %v3068
  %v3308 = vunpack.c.l.b16 %v3069
  %v3309 = vunpack.c.h.b16 %v3069
  %v3310 = vunpack.c.l.b16 %v3070
  %v3311 = vunpack.c.h.b16 %v3070
  %v3312 = vunpack.c.l.b16 %v3071
  %v3313 = vunpack.c.h.b16 %v3071
  %v3314 = vunpack.c.l.b16 %v3072
  %v3315 = vunpack.c.h.b16 %v3072
  %v3316 = vunpack.c.l.b16 %v3073
  %v3317 = vunpack.c.h.b16 %v3073
  %v3318 = vunpack.c.l.b16 %v3074
  %v3319 = vunpack.c.h.b16 %v3074
  %v3320 = vunpack.c.l.b16 %v3075
  %v3321 = vunpack.c.h.b16 %v3075
  %v3322 = vunpack.c.l.b16 %v3076
  %v3323 = vunpack.c.h.b16 %v3076
  %v3324 = vunpack.c.l.b16 %v3077
  %v3325 = vunpack.c.h.b16 %v3077
  %v3326 = vunpack.c.l.b16 %v3078
  %v3327 = vunpack.c.h.b16 %v3078
  %v3328 = vunpack.c.l.b16 %v3079
  %v3329 = vunpack.c.h.b16 %v3079
  %v3330 = vunpack.c.l.b16 %v3080
  %v3331 = vunpack.c.h.b16 %v3080
  %v3332 = vunpack.c.l.b16 %v3081
  %v3333 = vunpack.c.h.b16 %v3081
  %v3334 = vunpack.c.l.b16 %v3082
  %v3335 = vunpack.c.h.b16 %v3082
  %v3336 = vunpack.c.l.b16 %v3083
  %v3337 = vunpack.c.h.b16 %v3083
  %v3338 = vunpack.c.l.b16 %v3084
  %v3339 = vunpack.c.h.b16 %v3084
  %v3340 = vunpack.c.l.b16 %v3085
  %v3341 = vunpack.c.h.b16 %v3085
  %v3342 = vunpack.c.l.b16 %v3086
  %v3343 = vunpack.c.h.b16 %v3086
  %v3344 = vunpack.c.l.b16 %v3087
  %v3345 = vunpack.c.h.b16 %v3087
  %v3346 = vunpack.c.l.b16 %v3088
  %v3347 = vunpack.c.h.b16 %v3088
  %v3348 = vunpack.c.l.b16 %v3089
  %v3349 = vunpack.c.h.b16 %v3089
  %v3350 = vunpack.c.l.b16 %v3090
  %v3351 = vunpack.c.h.b16 %v3090
  %v3352 = vunpack.c.l.b16 %v3091
  %v3353 = vunpack.c.h.b16 %v3091
  %v3354 = vunpack.c.l.b16 %v3092
  %v3355 = vunpack.c.h.b16 %v3092
  %v3356 = vunpack.c.l.b16 %v3093
  %v3357 = vunpack.c.h.b16 %v3093
  %v3358 = vunpack.c.l.b16 %v3094
  %v3359 = vunpack.c.h.b16 %v3094
  %v3360 = vunpack.c.l.b16 %v3095
  %v3361 = vunpack.c.h.b16 %v3095
  %v3362 = vunpack.c.l.b16 %v3096
  %v3363 = vunpack.c.h.b16 %v3096
  %v3364 = vunpack.c.l.b16 %v3097
  %v3365 = vunpack.c.h.b16 %v3097
  %v3366 = vunpack.c.l.b16 %v3098
  %v3367 = vunpack.c.h.b16 %v3098
  %v3368 = vunpack.c.l.b16 %v3099
  %v3369 = vunpack.c.h.b16 %v3099
  %v3370 = vunpack.c.l.b16 %v3100
  %v3371 = vunpack.c.h.b16 %v3100
  %v3372 = vunpack.c.l.b16 %v3101
  %v3373 = vunpack.c.h.b16 %v3101
  %v3374 = vunpack.c.l.b16 %v3102
  %v3375 = vunpack.c.h.b16 %v3102
  %v3376 = vunpack.c.l.b16 %v3103
  %v3377 = vunpack.c.h.b16 %v3103
  %v3378 = vunpack.c.l.b16 %v3104
  %v3379 = vunpack.c.h.b16 %v3104
  %v3380 = vunpack.c.l.b16 %v3105
  %v3381 = vunpack.c.h.b16 %v3105
  %v3382 = vunpack.c.l.b16 %v3106
  %v3383 = vunpack.c.h.b16 %v3106
  %v3384 = vunpack.c.l.b16 %v3107
  %v3385 = vunpack.c.h.b16 %v3107
  %v3386 = vunpack.c.l.b16 %v3108
  %v3387 = vunpack.c.h.b16 %v3108
  %v3388 = vunpack.c.l.b16 %v3109
  %v3389 = vunpack.c.h.b16 %v3109
  %v3390 = vunpack.c.l.b16 %v3110
  %v3391 = vunpack.c.h.b16 %v3110
  %v3392 = vunpack.c.l.b16 %v3111
  %v3393 = vunpack.c.h.b16 %v3111
  %v3394 = vunpack.c.l.b16 %v3112
  %v3395 = vunpack.c.h.b16 %v3112
  %v3396 = vunpack.c.l.b16 %v3113
  %v3397 = vunpack.c.h.b16 %v3113
  %v3398 = vunpack.c.l.b16 %v3114
  %v3399 = vunpack.c.h.b16 %v3114
  %v3400 = vunpack.c.l.b16 %v3115
  %v3401 = vunpack.c.h.b16 %v3115
  %v3402 = vunpack.c.l.b16 %v3116
  %v3403 = vunpack.c.h.b16 %v3116
  %v3404 = vunpack.c.l.b16 %v3117
  %v3405 = vunpack.c.h.b16 %v3117
  %v3406 = vpack.c.b16 %v3216, %v3214
  %v3407 = vpack.c.b16 %v3217, %v3215
  %v3408 = vpack.c.b16 %v3220, %v3218
  %v3409 = vpack.c.b16 %v3221, %v3219
  %v3410 = vpack.c.b16 %v3224, %v3222
  %v3411 = vpack.c.b16 %v3225, %v3223
  %v3412 = vpack.c.b16 %v3228, %v3226
  %v3413 = vpack.c.b16 %v3229, %v3227
  %v3414 = vpack.c.b16 %v3232, %v3230
  %v3415 = vpack.c.b16 %v3233, %v3231
  %v3416 = vpack.c.b16 %v3236, %v3234
  %v3417 = vpack.c.b16 %v3237, %v3235
  %v3418 = vpack.c.b16 %v3240, %v3238
  %v3419 = vpack.c.b16 %v3241, %v3239
  %v3420 = vpack.c.b16 %v3244, %v3242
  %v3421 = vpack.c.b16 %v3245, %v3243
  %v3422 = vpack.c.b16 %v3248, %v3246
  %v3423 = vpack.c.b16 %v3249, %v3247
  %v3424 = vpack.c.b16 %v3252, %v3250
  %v3425 = vpack.c.b16 %v3253, %v3251
  %v3426 = vpack.c.b16 %v3256, %v3254
  %v3427 = vpack.c.b16 %v3257, %v3255
  %v3428 = vpack.c.b16 %v3260, %v3258
  %v3429 = vpack.c.b16 %v3261, %v3259
  %v3430 = vpack.c.b16 %v3264, %v3262
  %v3431 = vpack.c.b16 %v3265, %v3263
  %v3432 = vpack.c.b16 %v3268, %v3266
  %v3433 = vpack.c.b16 %v3269, %v3267
  %v3434 = vpack.c.b16 %v3272, %v3270
  %v3435 = vpack.c.b16 %v3273, %v3271
  %v3436 = vpack.c.b16 %v3276, %v3274
  %v3437 = vpack.c.b16 %v3277, %v3275
  %v3438 = vpack.c.b16 %v3280, %v3278
  %v3439 = vpack.c.b16 %v3281, %v3279
  %v3440 = vpack.c.b16 %v3284, %v3282
  %v3441 = vpack.c.b16 %v3285, %v3283
  %v3442 = vpack.c.b16 %v3288, %v3286
  %v3443 = vpack.c.b16 %v3289, %v3287
  %v3444 = vpack.c.b16 %v3292, %v3290
  %v3445 = vpack.c.b16 %v3293, %v3291
  %v3446 = vpack.c.b16 %v3296, %v3294
  %v3447 = vpack.c.b16 %v3297, %v3295
  %v3448 = vpack.c.b16 %v3300, %v3298
  %v3449 = vpack.c.b16 %v3301, %v3299
  %v3450 = vpack.c.b16 %v3304, %v3302
  %v3451 = vpack.c.b16 %v3305, %v3303
  %v3452 = vpack.c.b16 %v3308, %v3306
  %v3453 = vpack.c.b16 %v3309, %v3307
  %v3454 = vpack.c.b16 %v3312, %v3310
  %v3455 = vpack.c.b16 %v3313, %v3311
  %v3456 = vpack.c.b16 %v3316, %v3314
  %v3457 = vpack.c.b16 %v3317, %v3315
  %v3458 = vpack.c.b16 %v3320, %v3318
  %v3459 = vpack.c.b16 %v3321, %v3319
  %v3460 = vpack.c.b16 %v3324, %v3322
  %v3461 = vpack.c.b16 %v3325, %v3323
  %v3462 = vpack.c.b16 %v3328, %v3326
  %v3463 = vpack.c.b16 %v3329, %v3327
  %v3464 = vpack.c.b16 %v3332, %v3330
  %v3465 = vpack.c.b16 %v3333, %v3331
  %v3466 = vpack.c.b16 %v3336, %v3334
  %v3467 = vpack.c.b16 %v3337, %v3335
  %v3468 = vpack.c.b16 %v3340, %v3338
  %v3469 = vpack.c.b16 %v3341, %v3339
  %v3470 = vpack.c.b16 %v3344, %v3342
  %v3471 = vpack.c.b16 %v3345, %v3343
  %v3472 = vpack.c.b16 %v3348, %v3346
  %v3473 = vpack.c.b16 %v3349, %v3347
  %v3474 = vpack.c.b16 %v3352, %v3350
  %v3475 = vpack.c.b16 %v3353, %v3351
  %v3476 = vpack.c.b16 %v3356, %v3354
  %v3477 = vpack.c.b16 %v3357, %v3355
  %v3478 = vpack.c.b16 %v3360, %v3358
  %v3479 = vpack.c.b16 %v3361, %v3359
  %v3480 = vpack.c.b16 %v3364, %v3362
  %v3481 = vpack.c.b16 %v3365, %v3363
  %v3482 = vpack.c.b16 %v3368, %v3366
  %v3483 = vpack.c.b16 %v3369, %v3367
  %v3484 = vpack.c.b16 %v3372, %v3370
  %v3485 = vpack.c.b16 %v3373, %v3371
  %v3486 = vpack.c.b16 %v3376, %v3374
  %v3487 = vpack.c.b16 %v3377, %v3375
  %v3488 = vpack.c.b16 %v3380, %v3378
  %v3489 = vpack.c.b16 %v3381, %v3379
  %v3490 = vpack.c.b16 %v3384, %v3382
  %v3491 = vpack.c.b16 %v3385, %v3383
  %v3492 = vpack.c.b16 %v3388, %v3386
  %v3493 = vpack.c.b16 %v3389, %v3387
  %v3494 = vpack.c.b16 %v3392, %v3390
  %v3495 = vpack.c.b16 %v3393, %v3391
  %v3496 = vpack.c.b16 %v3396, %v3394
  %v3497 = vpack.c.b16 %v3397, %v3395
  %v3498 = vpack.c.b16 %v3400, %v3398
  %v3499 = vpack.c.b16 %v3401, %v3399
  %v3500 = vpack.c.b16 %v3404, %v3402
  %v3501 = vpack.c.b16 %v3405, %v3403
  %3598 = vmatpush.bf16.msra.mxu0 %v3420
  %3599 = vmatpush.bf16.msra.mxu0 %v3418
  %3600 = vmatpush.bf16.msra.mxu0 %v3416
  %3601 = vmatpush.bf16.msra.mxu0 %v3414
  %3602 = vmatpush.bf16.msra.mxu0 %v3412
  %3603 = vmatpush.bf16.msra.mxu0 %v3410
  %3604 = vmatpush.bf16.msra.mxu0 %v3408
  %3605 = vmatpush.bf16.msra.mxu0 %v3406
  %3606 = vmatmul.bf16.gmra.mxu0 %v717
  %v3607 = vpop.f32.mrf.mxu0
  %v3608 = vadd.f32 0.0, %v3607
  %v3609 = vpop.f32.mrf.mxu0
  %v3610 = vadd.f32 0.0, %v3609
  %3611 = vmatmul.bf16.gmra.mxu0 %v723
  %v3612 = vpop.f32.mrf.mxu0
  %v3613 = vadd.f32 0.0, %v3612
  %v3614 = vpop.f32.mrf.mxu0
  %v3615 = vadd.f32 0.0, %v3614
  %3616 = vmatmul.bf16.gmra.mxu0 %v729
  %v3617 = vpop.f32.mrf.mxu0
  %v3618 = vadd.f32 0.0, %v3617
  %v3619 = vpop.f32.mrf.mxu0
  %v3620 = vadd.f32 0.0, %v3619
  %3621 = vmatmul.bf16.gmra.mxu0 %v735
  %v3622 = vpop.f32.mrf.mxu0
  %v3623 = vadd.f32 0.0, %v3622
  %v3624 = vpop.f32.mrf.mxu0
  %v3625 = vadd.f32 0.0, %v3624
  %3626 = vmatmul.bf16.gmra.mxu0 %v741
  %v3627 = vpop.f32.mrf.mxu0
  %v3628 = vadd.f32 0.0, %v3627
  %v3629 = vpop.f32.mrf.mxu0
  %v3630 = vadd.f32 0.0, %v3629
  %3631 = vmatmul.bf16.gmra.mxu0 %v747
  %v3632 = vpop.f32.mrf.mxu0
  %v3633 = vadd.f32 0.0, %v3632
  %v3634 = vpop.f32.mrf.mxu0
  %v3635 = vadd.f32 0.0, %v3634
  %3636 = vmatmul.bf16.gmra.mxu0 %v753
  %v3637 = vpop.f32.mrf.mxu0
  %v3638 = vadd.f32 0.0, %v3637
  %v3639 = vpop.f32.mrf.mxu0
  %v3640 = vadd.f32 0.0, %v3639
  %3641 = vmatmul.bf16.gmra.mxu0 %v759
  %v3642 = vpop.f32.mrf.mxu0
  %v3643 = vadd.f32 0.0, %v3642
  %v3644 = vpop.f32.mrf.mxu0
  %v3645 = vadd.f32 0.0, %v3644
  %3646 = vmatmul.bf16.gmra.mxu0 %v765
  %v3647 = vpop.f32.mrf.mxu0
  %v3648 = vadd.f32 0.0, %v3647
  %v3649 = vpop.f32.mrf.mxu0
  %v3650 = vadd.f32 0.0, %v3649
  %3651 = vmatmul.bf16.gmra.mxu0 %v771
  %v3652 = vpop.f32.mrf.mxu0
  %v3653 = vadd.f32 0.0, %v3652
  %v3654 = vpop.f32.mrf.mxu0
  %v3655 = vadd.f32 0.0, %v3654
  %3656 = vmatmul.bf16.gmra.mxu0 %v777
  %v3657 = vpop.f32.mrf.mxu0
  %v3658 = vadd.f32 0.0, %v3657
  %v3659 = vpop.f32.mrf.mxu0
  %v3660 = vadd.f32 0.0, %v3659
  %3661 = vmatmul.bf16.gmra.mxu0 %v783
  %v3662 = vpop.f32.mrf.mxu0
  %v3663 = vadd.f32 0.0, %v3662
  %v3664 = vpop.f32.mrf.mxu0
  %v3665 = vadd.f32 0.0, %v3664
  %3666 = vmatmul.bf16.gmra.mxu0 %v789
  %v3667 = vpop.f32.mrf.mxu0
  %v3668 = vadd.f32 0.0, %v3667
  %v3669 = vpop.f32.mrf.mxu0
  %v3670 = vadd.f32 0.0, %v3669
  %3671 = vmatmul.bf16.gmra.mxu0 %v795
  %v3672 = vpop.f32.mrf.mxu0
  %v3673 = vadd.f32 0.0, %v3672
  %v3674 = vpop.f32.mrf.mxu0
  %v3675 = vadd.f32 0.0, %v3674
  %3676 = vmatmul.bf16.gmra.mxu0 %v801
  %v3677 = vpop.f32.mrf.mxu0
  %v3678 = vadd.f32 0.0, %v3677
  %v3679 = vpop.f32.mrf.mxu0
  %v3680 = vadd.f32 0.0, %v3679
  %3681 = vmatmul.bf16.gmra.mxu0 %v807
  %v3682 = vpop.f32.mrf.mxu0
  %v3683 = vadd.f32 0.0, %v3682
  %v3684 = vpop.f32.mrf.mxu0
  %v3685 = vadd.f32 0.0, %v3684
  %3686 = vmatmul.bf16.gmra.mxu0 %v813
  %v3687 = vpop.f32.mrf.mxu0
  %v3688 = vadd.f32 0.0, %v3687
  %v3689 = vpop.f32.mrf.mxu0
  %v3690 = vadd.f32 0.0, %v3689
  %3691 = vmatmul.bf16.gmra.mxu0 %v819
  %v3692 = vpop.f32.mrf.mxu0
  %v3693 = vadd.f32 0.0, %v3692
  %v3694 = vpop.f32.mrf.mxu0
  %v3695 = vadd.f32 0.0, %v3694
  %3696 = vmatmul.bf16.gmra.mxu0 %v825
  %v3697 = vpop.f32.mrf.mxu0
  %v3698 = vadd.f32 0.0, %v3697
  %v3699 = vpop.f32.mrf.mxu0
  %v3700 = vadd.f32 0.0, %v3699
  %3701 = vmatmul.bf16.gmra.mxu0 %v831
  %v3702 = vpop.f32.mrf.mxu0
  %v3703 = vadd.f32 0.0, %v3702
  %v3704 = vpop.f32.mrf.mxu0
  %v3705 = vadd.f32 0.0, %v3704
  %3706 = vmatmul.bf16.gmra.mxu0 %v837
  %v3707 = vpop.f32.mrf.mxu0
  %v3708 = vadd.f32 0.0, %v3707
  %v3709 = vpop.f32.mrf.mxu0
  %v3710 = vadd.f32 0.0, %v3709
  %3711 = vmatmul.bf16.gmra.mxu0 %v843
  %v3712 = vpop.f32.mrf.mxu0
  %v3713 = vadd.f32 0.0, %v3712
  %v3714 = vpop.f32.mrf.mxu0
  %v3715 = vadd.f32 0.0, %v3714
  %3716 = vmatmul.bf16.gmra.mxu0 %v849
  %v3717 = vpop.f32.mrf.mxu0
  %v3718 = vadd.f32 0.0, %v3717
  %v3719 = vpop.f32.mrf.mxu0
  %v3720 = vadd.f32 0.0, %v3719
  %3721 = vmatmul.bf16.gmra.mxu0 %v855
  %v3722 = vpop.f32.mrf.mxu0
  %v3723 = vadd.f32 0.0, %v3722
  %v3724 = vpop.f32.mrf.mxu0
  %v3725 = vadd.f32 0.0, %v3724
  %3726 = vdwg.mxu0
  %3727 = vmatpush.bf16.msra.mxu0 %v3436
  %3728 = vmatpush.bf16.msra.mxu0 %v3434
  %3729 = vmatpush.bf16.msra.mxu0 %v3432
  %3730 = vmatpush.bf16.msra.mxu0 %v3430
  %3731 = vmatpush.bf16.msra.mxu0 %v3428
  %3732 = vmatpush.bf16.msra.mxu0 %v3426
  %3733 = vmatpush.bf16.msra.mxu0 %v3424
  %3734 = vmatpush.bf16.msra.mxu0 %v3422
  %3735 = vmatmul.bf16.gmra.mxu0 %v718
  %v3736 = vpop.f32.mrf.mxu0
  %v3737 = vadd.f32 %v3608, %v3736
  %v3738 = vpop.f32.mrf.mxu0
  %v3739 = vadd.f32 %v3610, %v3738
  %3740 = vmatmul.bf16.gmra.mxu0 %v724
  %v3741 = vpop.f32.mrf.mxu0
  %v3742 = vadd.f32 %v3613, %v3741
  %v3743 = vpop.f32.mrf.mxu0
  %v3744 = vadd.f32 %v3615, %v3743
  %3745 = vmatmul.bf16.gmra.mxu0 %v730
  %v3746 = vpop.f32.mrf.mxu0
  %v3747 = vadd.f32 %v3618, %v3746
  %v3748 = vpop.f32.mrf.mxu0
  %v3749 = vadd.f32 %v3620, %v3748
  %3750 = vmatmul.bf16.gmra.mxu0 %v736
  %v3751 = vpop.f32.mrf.mxu0
  %v3752 = vadd.f32 %v3623, %v3751
  %v3753 = vpop.f32.mrf.mxu0
  %v3754 = vadd.f32 %v3625, %v3753
  %3755 = vmatmul.bf16.gmra.mxu0 %v742
  %v3756 = vpop.f32.mrf.mxu0
  %v3757 = vadd.f32 %v3628, %v3756
  %v3758 = vpop.f32.mrf.mxu0
  %v3759 = vadd.f32 %v3630, %v3758
  %3760 = vmatmul.bf16.gmra.mxu0 %v748
  %v3761 = vpop.f32.mrf.mxu0
  %v3762 = vadd.f32 %v3633, %v3761
  %v3763 = vpop.f32.mrf.mxu0
  %v3764 = vadd.f32 %v3635, %v3763
  %3765 = vmatmul.bf16.gmra.mxu0 %v754
  %v3766 = vpop.f32.mrf.mxu0
  %v3767 = vadd.f32 %v3638, %v3766
  %v3768 = vpop.f32.mrf.mxu0
  %v3769 = vadd.f32 %v3640, %v3768
  %3770 = vmatmul.bf16.gmra.mxu0 %v760
  %v3771 = vpop.f32.mrf.mxu0
  %v3772 = vadd.f32 %v3643, %v3771
  %v3773 = vpop.f32.mrf.mxu0
  %v3774 = vadd.f32 %v3645, %v3773
  %3775 = vmatmul.bf16.gmra.mxu0 %v766
  %v3776 = vpop.f32.mrf.mxu0
  %v3777 = vadd.f32 %v3648, %v3776
  %v3778 = vpop.f32.mrf.mxu0
  %v3779 = vadd.f32 %v3650, %v3778
  %3780 = vmatmul.bf16.gmra.mxu0 %v772
  %v3781 = vpop.f32.mrf.mxu0
  %v3782 = vadd.f32 %v3653, %v3781
  %v3783 = vpop.f32.mrf.mxu0
  %v3784 = vadd.f32 %v3655, %v3783
  %3785 = vmatmul.bf16.gmra.mxu0 %v778
  %v3786 = vpop.f32.mrf.mxu0
  %v3787 = vadd.f32 %v3658, %v3786
  %v3788 = vpop.f32.mrf.mxu0
  %v3789 = vadd.f32 %v3660, %v3788
  %3790 = vmatmul.bf16.gmra.mxu0 %v784
  %v3791 = vpop.f32.mrf.mxu0
  %v3792 = vadd.f32 %v3663, %v3791
  %v3793 = vpop.f32.mrf.mxu0
  %v3794 = vadd.f32 %v3665, %v3793
  %3795 = vmatmul.bf16.gmra.mxu0 %v790
  %v3796 = vpop.f32.mrf.mxu0
  %v3797 = vadd.f32 %v3668, %v3796
  %v3798 = vpop.f32.mrf.mxu0
  %v3799 = vadd.f32 %v3670, %v3798
  %3800 = vmatmul.bf16.gmra.mxu0 %v796
  %v3801 = vpop.f32.mrf.mxu0
  %v3802 = vadd.f32 %v3673, %v3801
  %v3803 = vpop.f32.mrf.mxu0
  %v3804 = vadd.f32 %v3675, %v3803
  %3805 = vmatmul.bf16.gmra.mxu0 %v802
  %v3806 = vpop.f32.mrf.mxu0
  %v3807 = vadd.f32 %v3678, %v3806
  %v3808 = vpop.f32.mrf.mxu0
  %v3809 = vadd.f32 %v3680, %v3808
  %3810 = vmatmul.bf16.gmra.mxu0 %v808
  %v3811 = vpop.f32.mrf.mxu0
  %v3812 = vadd.f32 %v3683, %v3811
  %v3813 = vpop.f32.mrf.mxu0
  %v3814 = vadd.f32 %v3685, %v3813
  %3815 = vmatmul.bf16.gmra.mxu0 %v814
  %v3816 = vpop.f32.mrf.mxu0
  %v3817 = vadd.f32 %v3688, %v3816
  %v3818 = vpop.f32.mrf.mxu0
  %v3819 = vadd.f32 %v3690, %v3818
  %3820 = vmatmul.bf16.gmra.mxu0 %v820
  %v3821 = vpop.f32.mrf.mxu0
  %v3822 = vadd.f32 %v3693, %v3821
  %v3823 = vpop.f32.mrf.mxu0
  %v3824 = vadd.f32 %v3695, %v3823
  %3825 = vmatmul.bf16.gmra.mxu0 %v826
  %v3826 = vpop.f32.mrf.mxu0
  %v3827 = vadd.f32 %v3698, %v3826
  %v3828 = vpop.f32.mrf.mxu0
  %v3829 = vadd.f32 %v3700, %v3828
  %3830 = vmatmul.bf16.gmra.mxu0 %v832
  %v3831 = vpop.f32.mrf.mxu0
  %v3832 = vadd.f32 %v3703, %v3831
  %v3833 = vpop.f32.mrf.mxu0
  %v3834 = vadd.f32 %v3705, %v3833
  %3835 = vmatmul.bf16.gmra.mxu0 %v838
  %v3836 = vpop.f32.mrf.mxu0
  %v3837 = vadd.f32 %v3708, %v3836
  %v3838 = vpop.f32.mrf.mxu0
  %v3839 = vadd.f32 %v3710, %v3838
  %3840 = vmatmul.bf16.gmra.mxu0 %v844
  %v3841 = vpop.f32.mrf.mxu0
  %v3842 = vadd.f32 %v3713, %v3841
  %v3843 = vpop.f32.mrf.mxu0
  %v3844 = vadd.f32 %v3715, %v3843
  %3845 = vmatmul.bf16.gmra.mxu0 %v850
  %v3846 = vpop.f32.mrf.mxu0
  %v3847 = vadd.f32 %v3718, %v3846
  %v3848 = vpop.f32.mrf.mxu0
  %v3849 = vadd.f32 %v3720, %v3848
  %3850 = vmatmul.bf16.gmra.mxu0 %v856
  %v3851 = vpop.f32.mrf.mxu0
  %v3852 = vadd.f32 %v3723, %v3851
  %v3853 = vpop.f32.mrf.mxu0
  %v3854 = vadd.f32 %v3725, %v3853
  %3855 = vdwg.mxu0
  %3856 = vmatpush.bf16.msra.mxu0 %v3452
  %3857 = vmatpush.bf16.msra.mxu0 %v3450
  %3858 = vmatpush.bf16.msra.mxu0 %v3448
  %3859 = vmatpush.bf16.msra.mxu0 %v3446
  %3860 = vmatpush.bf16.msra.mxu0 %v3444
  %3861 = vmatpush.bf16.msra.mxu0 %v3442
  %3862 = vmatpush.bf16.msra.mxu0 %v3440
  %3863 = vmatpush.bf16.msra.mxu0 %v3438
  %3864 = vmatmul.bf16.gmra.mxu0 %v719
  %v3865 = vpop.f32.mrf.mxu0
  %v3866 = vadd.f32 %v3737, %v3865
  %v3867 = vpop.f32.mrf.mxu0
  %v3868 = vadd.f32 %v3739, %v3867
  %3869 = vmatmul.bf16.gmra.mxu0 %v725
  %v3870 = vpop.f32.mrf.mxu0
  %v3871 = vadd.f32 %v3742, %v3870
  %v3872 = vpop.f32.mrf.mxu0
  %v3873 = vadd.f32 %v3744, %v3872
  %3874 = vmatmul.bf16.gmra.mxu0 %v731
  %v3875 = vpop.f32.mrf.mxu0
  %v3876 = vadd.f32 %v3747, %v3875
  %v3877 = vpop.f32.mrf.mxu0
  %v3878 = vadd.f32 %v3749, %v3877
  %3879 = vmatmul.bf16.gmra.mxu0 %v737
  %v3880 = vpop.f32.mrf.mxu0
  %v3881 = vadd.f32 %v3752, %v3880
  %v3882 = vpop.f32.mrf.mxu0
  %v3883 = vadd.f32 %v3754, %v3882
  %3884 = vmatmul.bf16.gmra.mxu0 %v743
  %v3885 = vpop.f32.mrf.mxu0
  %v3886 = vadd.f32 %v3757, %v3885
  %v3887 = vpop.f32.mrf.mxu0
  %v3888 = vadd.f32 %v3759, %v3887
  %3889 = vmatmul.bf16.gmra.mxu0 %v749
  %v3890 = vpop.f32.mrf.mxu0
  %v3891 = vadd.f32 %v3762, %v3890
  %v3892 = vpop.f32.mrf.mxu0
  %v3893 = vadd.f32 %v3764, %v3892
  %3894 = vmatmul.bf16.gmra.mxu0 %v755
  %v3895 = vpop.f32.mrf.mxu0
  %v3896 = vadd.f32 %v3767, %v3895
  %v3897 = vpop.f32.mrf.mxu0
  %v3898 = vadd.f32 %v3769, %v3897
  %3899 = vmatmul.bf16.gmra.mxu0 %v761
  %v3900 = vpop.f32.mrf.mxu0
  %v3901 = vadd.f32 %v3772, %v3900
  %v3902 = vpop.f32.mrf.mxu0
  %v3903 = vadd.f32 %v3774, %v3902
  %3904 = vmatmul.bf16.gmra.mxu0 %v767
  %v3905 = vpop.f32.mrf.mxu0
  %v3906 = vadd.f32 %v3777, %v3905
  %v3907 = vpop.f32.mrf.mxu0
  %v3908 = vadd.f32 %v3779, %v3907
  %3909 = vmatmul.bf16.gmra.mxu0 %v773
  %v3910 = vpop.f32.mrf.mxu0
  %v3911 = vadd.f32 %v3782, %v3910
  %v3912 = vpop.f32.mrf.mxu0
  %v3913 = vadd.f32 %v3784, %v3912
  %3914 = vmatmul.bf16.gmra.mxu0 %v779
  %v3915 = vpop.f32.mrf.mxu0
  %v3916 = vadd.f32 %v3787, %v3915
  %v3917 = vpop.f32.mrf.mxu0
  %v3918 = vadd.f32 %v3789, %v3917
  %3919 = vmatmul.bf16.gmra.mxu0 %v785
  %v3920 = vpop.f32.mrf.mxu0
  %v3921 = vadd.f32 %v3792, %v3920
  %v3922 = vpop.f32.mrf.mxu0
  %v3923 = vadd.f32 %v3794, %v3922
  %3924 = vmatmul.bf16.gmra.mxu0 %v791
  %v3925 = vpop.f32.mrf.mxu0
  %v3926 = vadd.f32 %v3797, %v3925
  %v3927 = vpop.f32.mrf.mxu0
  %v3928 = vadd.f32 %v3799, %v3927
  %3929 = vmatmul.bf16.gmra.mxu0 %v797
  %v3930 = vpop.f32.mrf.mxu0
  %v3931 = vadd.f32 %v3802, %v3930
  %v3932 = vpop.f32.mrf.mxu0
  %v3933 = vadd.f32 %v3804, %v3932
  %3934 = vmatmul.bf16.gmra.mxu0 %v803
  %v3935 = vpop.f32.mrf.mxu0
  %v3936 = vadd.f32 %v3807, %v3935
  %v3937 = vpop.f32.mrf.mxu0
  %v3938 = vadd.f32 %v3809, %v3937
  %3939 = vmatmul.bf16.gmra.mxu0 %v809
  %v3940 = vpop.f32.mrf.mxu0
  %v3941 = vadd.f32 %v3812, %v3940
  %v3942 = vpop.f32.mrf.mxu0
  %v3943 = vadd.f32 %v3814, %v3942
  %3944 = vmatmul.bf16.gmra.mxu0 %v815
  %v3945 = vpop.f32.mrf.mxu0
  %v3946 = vadd.f32 %v3817, %v3945
  %v3947 = vpop.f32.mrf.mxu0
  %v3948 = vadd.f32 %v3819, %v3947
  %3949 = vmatmul.bf16.gmra.mxu0 %v821
  %v3950 = vpop.f32.mrf.mxu0
  %v3951 = vadd.f32 %v3822, %v3950
  %v3952 = vpop.f32.mrf.mxu0
  %v3953 = vadd.f32 %v3824, %v3952
  %3954 = vmatmul.bf16.gmra.mxu0 %v827
  %v3955 = vpop.f32.mrf.mxu0
  %v3956 = vadd.f32 %v3827, %v3955
  %v3957 = vpop.f32.mrf.mxu0
  %v3958 = vadd.f32 %v3829, %v3957
  %3959 = vmatmul.bf16.gmra.mxu0 %v833
  %v3960 = vpop.f32.mrf.mxu0
  %v3961 = vadd.f32 %v3832, %v3960
  %v3962 = vpop.f32.mrf.mxu0
  %v3963 = vadd.f32 %v3834, %v3962
  %3964 = vmatmul.bf16.gmra.mxu0 %v839
  %v3965 = vpop.f32.mrf.mxu0
  %v3966 = vadd.f32 %v3837, %v3965
  %v3967 = vpop.f32.mrf.mxu0
  %v3968 = vadd.f32 %v3839, %v3967
  %3969 = vmatmul.bf16.gmra.mxu0 %v845
  %v3970 = vpop.f32.mrf.mxu0
  %v3971 = vadd.f32 %v3842, %v3970
  %v3972 = vpop.f32.mrf.mxu0
  %v3973 = vadd.f32 %v3844, %v3972
  %3974 = vmatmul.bf16.gmra.mxu0 %v851
  %v3975 = vpop.f32.mrf.mxu0
  %v3976 = vadd.f32 %v3847, %v3975
  %v3977 = vpop.f32.mrf.mxu0
  %v3978 = vadd.f32 %v3849, %v3977
  %3979 = vmatmul.bf16.gmra.mxu0 %v857
  %v3980 = vpop.f32.mrf.mxu0
  %v3981 = vadd.f32 %v3852, %v3980
  %v3982 = vpop.f32.mrf.mxu0
  %v3983 = vadd.f32 %v3854, %v3982
  %3984 = vdwg.mxu0
  %3985 = vmatpush.bf16.msra.mxu0 %v3468
  %3986 = vmatpush.bf16.msra.mxu0 %v3466
  %3987 = vmatpush.bf16.msra.mxu0 %v3464
  %3988 = vmatpush.bf16.msra.mxu0 %v3462
  %3989 = vmatpush.bf16.msra.mxu0 %v3460
  %3990 = vmatpush.bf16.msra.mxu0 %v3458
  %3991 = vmatpush.bf16.msra.mxu0 %v3456
  %3992 = vmatpush.bf16.msra.mxu0 %v3454
  %3993 = vmatmul.bf16.gmra.mxu0 %v720
  %v3994 = vpop.f32.mrf.mxu0
  %v3995 = vadd.f32 %v3866, %v3994
  %v3996 = vpop.f32.mrf.mxu0
  %v3997 = vadd.f32 %v3868, %v3996
  %3998 = vmatmul.bf16.gmra.mxu0 %v726
  %v3999 = vpop.f32.mrf.mxu0
  %v4000 = vadd.f32 %v3871, %v3999
  %v4001 = vpop.f32.mrf.mxu0
  %v4002 = vadd.f32 %v3873, %v4001
  %4003 = vmatmul.bf16.gmra.mxu0 %v732
  %v4004 = vpop.f32.mrf.mxu0
  %v4005 = vadd.f32 %v3876, %v4004
  %v4006 = vpop.f32.mrf.mxu0
  %v4007 = vadd.f32 %v3878, %v4006
  %4008 = vmatmul.bf16.gmra.mxu0 %v738
  %v4009 = vpop.f32.mrf.mxu0
  %v4010 = vadd.f32 %v3881, %v4009
  %v4011 = vpop.f32.mrf.mxu0
  %v4012 = vadd.f32 %v3883, %v4011
  %4013 = vmatmul.bf16.gmra.mxu0 %v744
  %v4014 = vpop.f32.mrf.mxu0
  %v4015 = vadd.f32 %v3886, %v4014
  %v4016 = vpop.f32.mrf.mxu0
  %v4017 = vadd.f32 %v3888, %v4016
  %4018 = vmatmul.bf16.gmra.mxu0 %v750
  %v4019 = vpop.f32.mrf.mxu0
  %v4020 = vadd.f32 %v3891, %v4019
  %v4021 = vpop.f32.mrf.mxu0
  %v4022 = vadd.f32 %v3893, %v4021
  %4023 = vmatmul.bf16.gmra.mxu0 %v756
  %v4024 = vpop.f32.mrf.mxu0
  %v4025 = vadd.f32 %v3896, %v4024
  %v4026 = vpop.f32.mrf.mxu0
  %v4027 = vadd.f32 %v3898, %v4026
  %4028 = vmatmul.bf16.gmra.mxu0 %v762
  %v4029 = vpop.f32.mrf.mxu0
  %v4030 = vadd.f32 %v3901, %v4029
  %v4031 = vpop.f32.mrf.mxu0
  %v4032 = vadd.f32 %v3903, %v4031
  %4033 = vmatmul.bf16.gmra.mxu0 %v768
  %v4034 = vpop.f32.mrf.mxu0
  %v4035 = vadd.f32 %v3906, %v4034
  %v4036 = vpop.f32.mrf.mxu0
  %v4037 = vadd.f32 %v3908, %v4036
  %4038 = vmatmul.bf16.gmra.mxu0 %v774
  %v4039 = vpop.f32.mrf.mxu0
  %v4040 = vadd.f32 %v3911, %v4039
  %v4041 = vpop.f32.mrf.mxu0
  %v4042 = vadd.f32 %v3913, %v4041
  %4043 = vmatmul.bf16.gmra.mxu0 %v780
  %v4044 = vpop.f32.mrf.mxu0
  %v4045 = vadd.f32 %v3916, %v4044
  %v4046 = vpop.f32.mrf.mxu0
  %v4047 = vadd.f32 %v3918, %v4046
  %4048 = vmatmul.bf16.gmra.mxu0 %v786
  %v4049 = vpop.f32.mrf.mxu0
  %v4050 = vadd.f32 %v3921, %v4049
  %v4051 = vpop.f32.mrf.mxu0
  %v4052 = vadd.f32 %v3923, %v4051
  %4053 = vmatmul.bf16.gmra.mxu0 %v792
  %v4054 = vpop.f32.mrf.mxu0
  %v4055 = vadd.f32 %v3926, %v4054
  %v4056 = vpop.f32.mrf.mxu0
  %v4057 = vadd.f32 %v3928, %v4056
  %4058 = vmatmul.bf16.gmra.mxu0 %v798
  %v4059 = vpop.f32.mrf.mxu0
  %v4060 = vadd.f32 %v3931, %v4059
  %v4061 = vpop.f32.mrf.mxu0
  %v4062 = vadd.f32 %v3933, %v4061
  %4063 = vmatmul.bf16.gmra.mxu0 %v804
  %v4064 = vpop.f32.mrf.mxu0
  %v4065 = vadd.f32 %v3936, %v4064
  %v4066 = vpop.f32.mrf.mxu0
  %v4067 = vadd.f32 %v3938, %v4066
  %4068 = vmatmul.bf16.gmra.mxu0 %v810
  %v4069 = vpop.f32.mrf.mxu0
  %v4070 = vadd.f32 %v3941, %v4069
  %v4071 = vpop.f32.mrf.mxu0
  %v4072 = vadd.f32 %v3943, %v4071
  %4073 = vmatmul.bf16.gmra.mxu0 %v816
  %v4074 = vpop.f32.mrf.mxu0
  %v4075 = vadd.f32 %v3946, %v4074
  %v4076 = vpop.f32.mrf.mxu0
  %v4077 = vadd.f32 %v3948, %v4076
  %4078 = vmatmul.bf16.gmra.mxu0 %v822
  %v4079 = vpop.f32.mrf.mxu0
  %v4080 = vadd.f32 %v3951, %v4079
  %v4081 = vpop.f32.mrf.mxu0
  %v4082 = vadd.f32 %v3953, %v4081
  %4083 = vmatmul.bf16.gmra.mxu0 %v828
  %v4084 = vpop.f32.mrf.mxu0
  %v4085 = vadd.f32 %v3956, %v4084
  %v4086 = vpop.f32.mrf.mxu0
  %v4087 = vadd.f32 %v3958, %v4086
  %4088 = vmatmul.bf16.gmra.mxu0 %v834
  %v4089 = vpop.f32.mrf.mxu0
  %v4090 = vadd.f32 %v3961, %v4089
  %v4091 = vpop.f32.mrf.mxu0
  %v4092 = vadd.f32 %v3963, %v4091
  %4093 = vmatmul.bf16.gmra.mxu0 %v840
  %v4094 = vpop.f32.mrf.mxu0
  %v4095 = vadd.f32 %v3966, %v4094
  %v4096 = vpop.f32.mrf.mxu0
  %v4097 = vadd.f32 %v3968, %v4096
  %4098 = vmatmul.bf16.gmra.mxu0 %v846
  %v4099 = vpop.f32.mrf.mxu0
  %v4100 = vadd.f32 %v3971, %v4099
  %v4101 = vpop.f32.mrf.mxu0
  %v4102 = vadd.f32 %v3973, %v4101
  %4103 = vmatmul.bf16.gmra.mxu0 %v852
  %v4104 = vpop.f32.mrf.mxu0
  %v4105 = vadd.f32 %v3976, %v4104
  %v4106 = vpop.f32.mrf.mxu0
  %v4107 = vadd.f32 %v3978, %v4106
  %4108 = vmatmul.bf16.gmra.mxu0 %v858
  %v4109 = vpop.f32.mrf.mxu0
  %v4110 = vadd.f32 %v3981, %v4109
  %v4111 = vpop.f32.mrf.mxu0
  %v4112 = vadd.f32 %v3983, %v4111
  %4113 = vdwg.mxu0
  %4114 = vmatpush.bf16.msra.mxu0 %v3484
  %4115 = vmatpush.bf16.msra.mxu0 %v3482
  %4116 = vmatpush.bf16.msra.mxu0 %v3480
  %4117 = vmatpush.bf16.msra.mxu0 %v3478
  %4118 = vmatpush.bf16.msra.mxu0 %v3476
  %4119 = vmatpush.bf16.msra.mxu0 %v3474
  %4120 = vmatpush.bf16.msra.mxu0 %v3472
  %4121 = vmatpush.bf16.msra.mxu0 %v3470
  %4122 = vmatmul.bf16.gmra.mxu0 %v721
  %v4123 = vpop.f32.mrf.mxu0
  %v4124 = vadd.f32 %v3995, %v4123
  %v4125 = vpop.f32.mrf.mxu0
  %v4126 = vadd.f32 %v3997, %v4125
  %4127 = vmatmul.bf16.gmra.mxu0 %v727
  %v4128 = vpop.f32.mrf.mxu0
  %v4129 = vadd.f32 %v4000, %v4128
  %v4130 = vpop.f32.mrf.mxu0
  %v4131 = vadd.f32 %v4002, %v4130
  %4132 = vmatmul.bf16.gmra.mxu0 %v733
  %v4133 = vpop.f32.mrf.mxu0
  %v4134 = vadd.f32 %v4005, %v4133
  %v4135 = vpop.f32.mrf.mxu0
  %v4136 = vadd.f32 %v4007, %v4135
  %4137 = vmatmul.bf16.gmra.mxu0 %v739
  %v4138 = vpop.f32.mrf.mxu0
  %v4139 = vadd.f32 %v4010, %v4138
  %v4140 = vpop.f32.mrf.mxu0
  %v4141 = vadd.f32 %v4012, %v4140
  %4142 = vmatmul.bf16.gmra.mxu0 %v745
  %v4143 = vpop.f32.mrf.mxu0
  %v4144 = vadd.f32 %v4015, %v4143
  %v4145 = vpop.f32.mrf.mxu0
  %v4146 = vadd.f32 %v4017, %v4145
  %4147 = vmatmul.bf16.gmra.mxu0 %v751
  %v4148 = vpop.f32.mrf.mxu0
  %v4149 = vadd.f32 %v4020, %v4148
  %v4150 = vpop.f32.mrf.mxu0
  %v4151 = vadd.f32 %v4022, %v4150
  %4152 = vmatmul.bf16.gmra.mxu0 %v757
  %v4153 = vpop.f32.mrf.mxu0
  %v4154 = vadd.f32 %v4025, %v4153
  %v4155 = vpop.f32.mrf.mxu0
  %v4156 = vadd.f32 %v4027, %v4155
  %4157 = vmatmul.bf16.gmra.mxu0 %v763
  %v4158 = vpop.f32.mrf.mxu0
  %v4159 = vadd.f32 %v4030, %v4158
  %v4160 = vpop.f32.mrf.mxu0
  %v4161 = vadd.f32 %v4032, %v4160
  %4162 = vmatmul.bf16.gmra.mxu0 %v769
  %v4163 = vpop.f32.mrf.mxu0
  %v4164 = vadd.f32 %v4035, %v4163
  %v4165 = vpop.f32.mrf.mxu0
  %v4166 = vadd.f32 %v4037, %v4165
  %4167 = vmatmul.bf16.gmra.mxu0 %v775
  %v4168 = vpop.f32.mrf.mxu0
  %v4169 = vadd.f32 %v4040, %v4168
  %v4170 = vpop.f32.mrf.mxu0
  %v4171 = vadd.f32 %v4042, %v4170
  %4172 = vmatmul.bf16.gmra.mxu0 %v781
  %v4173 = vpop.f32.mrf.mxu0
  %v4174 = vadd.f32 %v4045, %v4173
  %v4175 = vpop.f32.mrf.mxu0
  %v4176 = vadd.f32 %v4047, %v4175
  %4177 = vmatmul.bf16.gmra.mxu0 %v787
  %v4178 = vpop.f32.mrf.mxu0
  %v4179 = vadd.f32 %v4050, %v4178
  %v4180 = vpop.f32.mrf.mxu0
  %v4181 = vadd.f32 %v4052, %v4180
  %4182 = vmatmul.bf16.gmra.mxu0 %v793
  %v4183 = vpop.f32.mrf.mxu0
  %v4184 = vadd.f32 %v4055, %v4183
  %v4185 = vpop.f32.mrf.mxu0
  %v4186 = vadd.f32 %v4057, %v4185
  %4187 = vmatmul.bf16.gmra.mxu0 %v799
  %v4188 = vpop.f32.mrf.mxu0
  %v4189 = vadd.f32 %v4060, %v4188
  %v4190 = vpop.f32.mrf.mxu0
  %v4191 = vadd.f32 %v4062, %v4190
  %4192 = vmatmul.bf16.gmra.mxu0 %v805
  %v4193 = vpop.f32.mrf.mxu0
  %v4194 = vadd.f32 %v4065, %v4193
  %v4195 = vpop.f32.mrf.mxu0
  %v4196 = vadd.f32 %v4067, %v4195
  %4197 = vmatmul.bf16.gmra.mxu0 %v811
  %v4198 = vpop.f32.mrf.mxu0
  %v4199 = vadd.f32 %v4070, %v4198
  %v4200 = vpop.f32.mrf.mxu0
  %v4201 = vadd.f32 %v4072, %v4200
  %4202 = vmatmul.bf16.gmra.mxu0 %v817
  %v4203 = vpop.f32.mrf.mxu0
  %v4204 = vadd.f32 %v4075, %v4203
  %v4205 = vpop.f32.mrf.mxu0
  %v4206 = vadd.f32 %v4077, %v4205
  %4207 = vmatmul.bf16.gmra.mxu0 %v823
  %v4208 = vpop.f32.mrf.mxu0
  %v4209 = vadd.f32 %v4080, %v4208
  %v4210 = vpop.f32.mrf.mxu0
  %v4211 = vadd.f32 %v4082, %v4210
  %4212 = vmatmul.bf16.gmra.mxu0 %v829
  %v4213 = vpop.f32.mrf.mxu0
  %v4214 = vadd.f32 %v4085, %v4213
  %v4215 = vpop.f32.mrf.mxu0
  %v4216 = vadd.f32 %v4087, %v4215
  %4217 = vmatmul.bf16.gmra.mxu0 %v835
  %v4218 = vpop.f32.mrf.mxu0
  %v4219 = vadd.f32 %v4090, %v4218
  %v4220 = vpop.f32.mrf.mxu0
  %v4221 = vadd.f32 %v4092, %v4220
  %4222 = vmatmul.bf16.gmra.mxu0 %v841
  %v4223 = vpop.f32.mrf.mxu0
  %v4224 = vadd.f32 %v4095, %v4223
  %v4225 = vpop.f32.mrf.mxu0
  %v4226 = vadd.f32 %v4097, %v4225
  %4227 = vmatmul.bf16.gmra.mxu0 %v847
  %v4228 = vpop.f32.mrf.mxu0
  %v4229 = vadd.f32 %v4100, %v4228
  %v4230 = vpop.f32.mrf.mxu0
  %v4231 = vadd.f32 %v4102, %v4230
  %4232 = vmatmul.bf16.gmra.mxu0 %v853
  %v4233 = vpop.f32.mrf.mxu0
  %v4234 = vadd.f32 %v4105, %v4233
  %v4235 = vpop.f32.mrf.mxu0
  %v4236 = vadd.f32 %v4107, %v4235
  %4237 = vmatmul.bf16.gmra.mxu0 %v859
  %v4238 = vpop.f32.mrf.mxu0
  %v4239 = vadd.f32 %v4110, %v4238
  %v4240 = vpop.f32.mrf.mxu0
  %v4241 = vadd.f32 %v4112, %v4240
  %4242 = vdwg.mxu0
  %4243 = vmatpush.bf16.msra.mxu0 %v3500
  %4244 = vmatpush.bf16.msra.mxu0 %v3498
  %4245 = vmatpush.bf16.msra.mxu0 %v3496
  %4246 = vmatpush.bf16.msra.mxu0 %v3494
  %4247 = vmatpush.bf16.msra.mxu0 %v3492
  %4248 = vmatpush.bf16.msra.mxu0 %v3490
  %4249 = vmatpush.bf16.msra.mxu0 %v3488
  %4250 = vmatpush.bf16.msra.mxu0 %v3486
  %4251 = vmatmul.bf16.gmra.mxu0 %v722
  %v4252 = vpop.f32.mrf.mxu0
  %v4253 = vadd.f32 %v4124, %v4252
  %v4254 = vpop.f32.mrf.mxu0
  %v4255 = vadd.f32 %v4126, %v4254
  %4256 = vmatmul.bf16.gmra.mxu0 %v728
  %v4257 = vpop.f32.mrf.mxu0
  %v4258 = vadd.f32 %v4129, %v4257
  %v4259 = vpop.f32.mrf.mxu0
  %v4260 = vadd.f32 %v4131, %v4259
  %4261 = vmatmul.bf16.gmra.mxu0 %v734
  %v4262 = vpop.f32.mrf.mxu0
  %v4263 = vadd.f32 %v4134, %v4262
  %v4264 = vpop.f32.mrf.mxu0
  %v4265 = vadd.f32 %v4136, %v4264
  %4266 = vmatmul.bf16.gmra.mxu0 %v740
  %v4267 = vpop.f32.mrf.mxu0
  %v4268 = vadd.f32 %v4139, %v4267
  %v4269 = vpop.f32.mrf.mxu0
  %v4270 = vadd.f32 %v4141, %v4269
  %4271 = vmatmul.bf16.gmra.mxu0 %v746
  %v4272 = vpop.f32.mrf.mxu0
  %v4273 = vadd.f32 %v4144, %v4272
  %v4274 = vpop.f32.mrf.mxu0
  %v4275 = vadd.f32 %v4146, %v4274
  %4276 = vmatmul.bf16.gmra.mxu0 %v752
  %v4277 = vpop.f32.mrf.mxu0
  %v4278 = vadd.f32 %v4149, %v4277
  %v4279 = vpop.f32.mrf.mxu0
  %v4280 = vadd.f32 %v4151, %v4279
  %4281 = vmatmul.bf16.gmra.mxu0 %v758
  %v4282 = vpop.f32.mrf.mxu0
  %v4283 = vadd.f32 %v4154, %v4282
  %v4284 = vpop.f32.mrf.mxu0
  %v4285 = vadd.f32 %v4156, %v4284
  %4286 = vmatmul.bf16.gmra.mxu0 %v764
  %v4287 = vpop.f32.mrf.mxu0
  %v4288 = vadd.f32 %v4159, %v4287
  %v4289 = vpop.f32.mrf.mxu0
  %v4290 = vadd.f32 %v4161, %v4289
  %4291 = vmatmul.bf16.gmra.mxu0 %v770
  %v4292 = vpop.f32.mrf.mxu0
  %v4293 = vadd.f32 %v4164, %v4292
  %v4294 = vpop.f32.mrf.mxu0
  %v4295 = vadd.f32 %v4166, %v4294
  %4296 = vmatmul.bf16.gmra.mxu0 %v776
  %v4297 = vpop.f32.mrf.mxu0
  %v4298 = vadd.f32 %v4169, %v4297
  %v4299 = vpop.f32.mrf.mxu0
  %v4300 = vadd.f32 %v4171, %v4299
  %4301 = vmatmul.bf16.gmra.mxu0 %v782
  %v4302 = vpop.f32.mrf.mxu0
  %v4303 = vadd.f32 %v4174, %v4302
  %v4304 = vpop.f32.mrf.mxu0
  %v4305 = vadd.f32 %v4176, %v4304
  %4306 = vmatmul.bf16.gmra.mxu0 %v788
  %v4307 = vpop.f32.mrf.mxu0
  %v4308 = vadd.f32 %v4179, %v4307
  %v4309 = vpop.f32.mrf.mxu0
  %v4310 = vadd.f32 %v4181, %v4309
  %4311 = vmatmul.bf16.gmra.mxu0 %v794
  %v4312 = vpop.f32.mrf.mxu0
  %v4313 = vadd.f32 %v4184, %v4312
  %v4314 = vpop.f32.mrf.mxu0
  %v4315 = vadd.f32 %v4186, %v4314
  %4316 = vmatmul.bf16.gmra.mxu0 %v800
  %v4317 = vpop.f32.mrf.mxu0
  %v4318 = vadd.f32 %v4189, %v4317
  %v4319 = vpop.f32.mrf.mxu0
  %v4320 = vadd.f32 %v4191, %v4319
  %4321 = vmatmul.bf16.gmra.mxu0 %v806
  %v4322 = vpop.f32.mrf.mxu0
  %v4323 = vadd.f32 %v4194, %v4322
  %v4324 = vpop.f32.mrf.mxu0
  %v4325 = vadd.f32 %v4196, %v4324
  %4326 = vmatmul.bf16.gmra.mxu0 %v812
  %v4327 = vpop.f32.mrf.mxu0
  %v4328 = vadd.f32 %v4199, %v4327
  %v4329 = vpop.f32.mrf.mxu0
  %v4330 = vadd.f32 %v4201, %v4329
  %4331 = vmatmul.bf16.gmra.mxu0 %v818
  %v4332 = vpop.f32.mrf.mxu0
  %v4333 = vadd.f32 %v4204, %v4332
  %v4334 = vpop.f32.mrf.mxu0
  %v4335 = vadd.f32 %v4206, %v4334
  %4336 = vmatmul.bf16.gmra.mxu0 %v824
  %v4337 = vpop.f32.mrf.mxu0
  %v4338 = vadd.f32 %v4209, %v4337
  %v4339 = vpop.f32.mrf.mxu0
  %v4340 = vadd.f32 %v4211, %v4339
  %4341 = vmatmul.bf16.gmra.mxu0 %v830
  %v4342 = vpop.f32.mrf.mxu0
  %v4343 = vadd.f32 %v4214, %v4342
  %v4344 = vpop.f32.mrf.mxu0
  %v4345 = vadd.f32 %v4216, %v4344
  %4346 = vmatmul.bf16.gmra.mxu0 %v836
  %v4347 = vpop.f32.mrf.mxu0
  %v4348 = vadd.f32 %v4219, %v4347
  %v4349 = vpop.f32.mrf.mxu0
  %v4350 = vadd.f32 %v4221, %v4349
  %4351 = vmatmul.bf16.gmra.mxu0 %v842
  %v4352 = vpop.f32.mrf.mxu0
  %v4353 = vadd.f32 %v4224, %v4352
  %v4354 = vpop.f32.mrf.mxu0
  %v4355 = vadd.f32 %v4226, %v4354
  %4356 = vmatmul.bf16.gmra.mxu0 %v848
  %v4357 = vpop.f32.mrf.mxu0
  %v4358 = vadd.f32 %v4229, %v4357
  %v4359 = vpop.f32.mrf.mxu0
  %v4360 = vadd.f32 %v4231, %v4359
  %4361 = vmatmul.bf16.gmra.mxu0 %v854
  %v4362 = vpop.f32.mrf.mxu0
  %v4363 = vadd.f32 %v4234, %v4362
  %v4364 = vpop.f32.mrf.mxu0
  %v4365 = vadd.f32 %v4236, %v4364
  %4366 = vmatmul.bf16.gmra.mxu0 %v860
  %v4367 = vpop.f32.mrf.mxu0
  %v4368 = vadd.f32 %v4239, %v4367
  %v4369 = vpop.f32.mrf.mxu0
  %v4370 = vadd.f32 %v4241, %v4369
  %4371 = vdwg.mxu0
  %4372 = vmatpush.bf16.msra.mxu0 %v3421
  %4373 = vmatpush.bf16.msra.mxu0 %v3419
  %4374 = vmatpush.bf16.msra.mxu0 %v3417
  %4375 = vmatpush.bf16.msra.mxu0 %v3415
  %4376 = vmatpush.bf16.msra.mxu0 %v3413
  %4377 = vmatpush.bf16.msra.mxu0 %v3411
  %4378 = vmatpush.bf16.msra.mxu0 %v3409
  %4379 = vmatpush.bf16.msra.mxu0 %v3407
  %4380 = vmatmul.bf16.gmra.mxu0 %v717
  %v4381 = vpop.f32.mrf.mxu0
  %v4382 = vadd.f32 0.0, %v4381
  %v4383 = vpop.f32.mrf.mxu0
  %v4384 = vadd.f32 0.0, %v4383
  %4385 = vmatmul.bf16.gmra.mxu0 %v723
  %v4386 = vpop.f32.mrf.mxu0
  %v4387 = vadd.f32 0.0, %v4386
  %v4388 = vpop.f32.mrf.mxu0
  %v4389 = vadd.f32 0.0, %v4388
  %4390 = vmatmul.bf16.gmra.mxu0 %v729
  %v4391 = vpop.f32.mrf.mxu0
  %v4392 = vadd.f32 0.0, %v4391
  %v4393 = vpop.f32.mrf.mxu0
  %v4394 = vadd.f32 0.0, %v4393
  %4395 = vmatmul.bf16.gmra.mxu0 %v735
  %v4396 = vpop.f32.mrf.mxu0
  %v4397 = vadd.f32 0.0, %v4396
  %v4398 = vpop.f32.mrf.mxu0
  %v4399 = vadd.f32 0.0, %v4398
  %4400 = vmatmul.bf16.gmra.mxu0 %v741
  %v4401 = vpop.f32.mrf.mxu0
  %v4402 = vadd.f32 0.0, %v4401
  %v4403 = vpop.f32.mrf.mxu0
  %v4404 = vadd.f32 0.0, %v4403
  %4405 = vmatmul.bf16.gmra.mxu0 %v747
  %v4406 = vpop.f32.mrf.mxu0
  %v4407 = vadd.f32 0.0, %v4406
  %v4408 = vpop.f32.mrf.mxu0
  %v4409 = vadd.f32 0.0, %v4408
  %4410 = vmatmul.bf16.gmra.mxu0 %v753
  %v4411 = vpop.f32.mrf.mxu0
  %v4412 = vadd.f32 0.0, %v4411
  %v4413 = vpop.f32.mrf.mxu0
  %v4414 = vadd.f32 0.0, %v4413
  %4415 = vmatmul.bf16.gmra.mxu0 %v759
  %v4416 = vpop.f32.mrf.mxu0
  %v4417 = vadd.f32 0.0, %v4416
  %v4418 = vpop.f32.mrf.mxu0
  %v4419 = vadd.f32 0.0, %v4418
  %4420 = vmatmul.bf16.gmra.mxu0 %v765
  %v4421 = vpop.f32.mrf.mxu0
  %v4422 = vadd.f32 0.0, %v4421
  %v4423 = vpop.f32.mrf.mxu0
  %v4424 = vadd.f32 0.0, %v4423
  %4425 = vmatmul.bf16.gmra.mxu0 %v771
  %v4426 = vpop.f32.mrf.mxu0
  %v4427 = vadd.f32 0.0, %v4426
  %v4428 = vpop.f32.mrf.mxu0
  %v4429 = vadd.f32 0.0, %v4428
  %4430 = vmatmul.bf16.gmra.mxu0 %v777
  %v4431 = vpop.f32.mrf.mxu0
  %v4432 = vadd.f32 0.0, %v4431
  %v4433 = vpop.f32.mrf.mxu0
  %v4434 = vadd.f32 0.0, %v4433
  %4435 = vmatmul.bf16.gmra.mxu0 %v783
  %v4436 = vpop.f32.mrf.mxu0
  %v4437 = vadd.f32 0.0, %v4436
  %v4438 = vpop.f32.mrf.mxu0
  %v4439 = vadd.f32 0.0, %v4438
  %4440 = vmatmul.bf16.gmra.mxu0 %v789
  %v4441 = vpop.f32.mrf.mxu0
  %v4442 = vadd.f32 0.0, %v4441
  %v4443 = vpop.f32.mrf.mxu0
  %v4444 = vadd.f32 0.0, %v4443
  %4445 = vmatmul.bf16.gmra.mxu0 %v795
  %v4446 = vpop.f32.mrf.mxu0
  %v4447 = vadd.f32 0.0, %v4446
  %v4448 = vpop.f32.mrf.mxu0
  %v4449 = vadd.f32 0.0, %v4448
  %4450 = vmatmul.bf16.gmra.mxu0 %v801
  %v4451 = vpop.f32.mrf.mxu0
  %v4452 = vadd.f32 0.0, %v4451
  %v4453 = vpop.f32.mrf.mxu0
  %v4454 = vadd.f32 0.0, %v4453
  %4455 = vmatmul.bf16.gmra.mxu0 %v807
  %v4456 = vpop.f32.mrf.mxu0
  %v4457 = vadd.f32 0.0, %v4456
  %v4458 = vpop.f32.mrf.mxu0
  %v4459 = vadd.f32 0.0, %v4458
  %4460 = vmatmul.bf16.gmra.mxu0 %v813
  %v4461 = vpop.f32.mrf.mxu0
  %v4462 = vadd.f32 0.0, %v4461
  %v4463 = vpop.f32.mrf.mxu0
  %v4464 = vadd.f32 0.0, %v4463
  %4465 = vmatmul.bf16.gmra.mxu0 %v819
  %v4466 = vpop.f32.mrf.mxu0
  %v4467 = vadd.f32 0.0, %v4466
  %v4468 = vpop.f32.mrf.mxu0
  %v4469 = vadd.f32 0.0, %v4468
  %4470 = vmatmul.bf16.gmra.mxu0 %v825
  %v4471 = vpop.f32.mrf.mxu0
  %v4472 = vadd.f32 0.0, %v4471
  %v4473 = vpop.f32.mrf.mxu0
  %v4474 = vadd.f32 0.0, %v4473
  %4475 = vmatmul.bf16.gmra.mxu0 %v831
  %v4476 = vpop.f32.mrf.mxu0
  %v4477 = vadd.f32 0.0, %v4476
  %v4478 = vpop.f32.mrf.mxu0
  %v4479 = vadd.f32 0.0, %v4478
  %4480 = vmatmul.bf16.gmra.mxu0 %v837
  %v4481 = vpop.f32.mrf.mxu0
  %v4482 = vadd.f32 0.0, %v4481
  %v4483 = vpop.f32.mrf.mxu0
  %v4484 = vadd.f32 0.0, %v4483
  %4485 = vmatmul.bf16.gmra.mxu0 %v843
  %v4486 = vpop.f32.mrf.mxu0
  %v4487 = vadd.f32 0.0, %v4486
  %v4488 = vpop.f32.mrf.mxu0
  %v4489 = vadd.f32 0.0, %v4488
  %4490 = vmatmul.bf16.gmra.mxu0 %v849
  %v4491 = vpop.f32.mrf.mxu0
  %v4492 = vadd.f32 0.0, %v4491
  %v4493 = vpop.f32.mrf.mxu0
  %v4494 = vadd.f32 0.0, %v4493
  %4495 = vmatmul.bf16.gmra.mxu0 %v855
  %v4496 = vpop.f32.mrf.mxu0
  %v4497 = vadd.f32 0.0, %v4496
  %v4498 = vpop.f32.mrf.mxu0
  %v4499 = vadd.f32 0.0, %v4498
  %4500 = vdwg.mxu0
  %4501 = vmatpush.bf16.msra.mxu0 %v3437
  %4502 = vmatpush.bf16.msra.mxu0 %v3435
  %4503 = vmatpush.bf16.msra.mxu0 %v3433
  %4504 = vmatpush.bf16.msra.mxu0 %v3431
  %4505 = vmatpush.bf16.msra.mxu0 %v3429
  %4506 = vmatpush.bf16.msra.mxu0 %v3427
  %4507 = vmatpush.bf16.msra.mxu0 %v3425
  %4508 = vmatpush.bf16.msra.mxu0 %v3423
  %4509 = vmatmul.bf16.gmra.mxu0 %v718
  %v4510 = vpop.f32.mrf.mxu0
  %v4511 = vadd.f32 %v4382, %v4510
  %v4512 = vpop.f32.mrf.mxu0
  %v4513 = vadd.f32 %v4384, %v4512
  %4514 = vmatmul.bf16.gmra.mxu0 %v724
  %v4515 = vpop.f32.mrf.mxu0
  %v4516 = vadd.f32 %v4387, %v4515
  %v4517 = vpop.f32.mrf.mxu0
  %v4518 = vadd.f32 %v4389, %v4517
  %4519 = vmatmul.bf16.gmra.mxu0 %v730
  %v4520 = vpop.f32.mrf.mxu0
  %v4521 = vadd.f32 %v4392, %v4520
  %v4522 = vpop.f32.mrf.mxu0
  %v4523 = vadd.f32 %v4394, %v4522
  %4524 = vmatmul.bf16.gmra.mxu0 %v736
  %v4525 = vpop.f32.mrf.mxu0
  %v4526 = vadd.f32 %v4397, %v4525
  %v4527 = vpop.f32.mrf.mxu0
  %v4528 = vadd.f32 %v4399, %v4527
  %4529 = vmatmul.bf16.gmra.mxu0 %v742
  %v4530 = vpop.f32.mrf.mxu0
  %v4531 = vadd.f32 %v4402, %v4530
  %v4532 = vpop.f32.mrf.mxu0
  %v4533 = vadd.f32 %v4404, %v4532
  %4534 = vmatmul.bf16.gmra.mxu0 %v748
  %v4535 = vpop.f32.mrf.mxu0
  %v4536 = vadd.f32 %v4407, %v4535
  %v4537 = vpop.f32.mrf.mxu0
  %v4538 = vadd.f32 %v4409, %v4537
  %4539 = vmatmul.bf16.gmra.mxu0 %v754
  %v4540 = vpop.f32.mrf.mxu0
  %v4541 = vadd.f32 %v4412, %v4540
  %v4542 = vpop.f32.mrf.mxu0
  %v4543 = vadd.f32 %v4414, %v4542
  %4544 = vmatmul.bf16.gmra.mxu0 %v760
  %v4545 = vpop.f32.mrf.mxu0
  %v4546 = vadd.f32 %v4417, %v4545
  %v4547 = vpop.f32.mrf.mxu0
  %v4548 = vadd.f32 %v4419, %v4547
  %4549 = vmatmul.bf16.gmra.mxu0 %v766
  %v4550 = vpop.f32.mrf.mxu0
  %v4551 = vadd.f32 %v4422, %v4550
  %v4552 = vpop.f32.mrf.mxu0
  %v4553 = vadd.f32 %v4424, %v4552
  %4554 = vmatmul.bf16.gmra.mxu0 %v772
  %v4555 = vpop.f32.mrf.mxu0
  %v4556 = vadd.f32 %v4427, %v4555
  %v4557 = vpop.f32.mrf.mxu0
  %v4558 = vadd.f32 %v4429, %v4557
  %4559 = vmatmul.bf16.gmra.mxu0 %v778
  %v4560 = vpop.f32.mrf.mxu0
  %v4561 = vadd.f32 %v4432, %v4560
  %v4562 = vpop.f32.mrf.mxu0
  %v4563 = vadd.f32 %v4434, %v4562
  %4564 = vmatmul.bf16.gmra.mxu0 %v784
  %v4565 = vpop.f32.mrf.mxu0
  %v4566 = vadd.f32 %v4437, %v4565
  %v4567 = vpop.f32.mrf.mxu0
  %v4568 = vadd.f32 %v4439, %v4567
  %4569 = vmatmul.bf16.gmra.mxu0 %v790
  %v4570 = vpop.f32.mrf.mxu0
  %v4571 = vadd.f32 %v4442, %v4570
  %v4572 = vpop.f32.mrf.mxu0
  %v4573 = vadd.f32 %v4444, %v4572
  %4574 = vmatmul.bf16.gmra.mxu0 %v796
  %v4575 = vpop.f32.mrf.mxu0
  %v4576 = vadd.f32 %v4447, %v4575
  %v4577 = vpop.f32.mrf.mxu0
  %v4578 = vadd.f32 %v4449, %v4577
  %4579 = vmatmul.bf16.gmra.mxu0 %v802
  %v4580 = vpop.f32.mrf.mxu0
  %v4581 = vadd.f32 %v4452, %v4580
  %v4582 = vpop.f32.mrf.mxu0
  %v4583 = vadd.f32 %v4454, %v4582
  %4584 = vmatmul.bf16.gmra.mxu0 %v808
  %v4585 = vpop.f32.mrf.mxu0
  %v4586 = vadd.f32 %v4457, %v4585
  %v4587 = vpop.f32.mrf.mxu0
  %v4588 = vadd.f32 %v4459, %v4587
  %4589 = vmatmul.bf16.gmra.mxu0 %v814
  %v4590 = vpop.f32.mrf.mxu0
  %v4591 = vadd.f32 %v4462, %v4590
  %v4592 = vpop.f32.mrf.mxu0
  %v4593 = vadd.f32 %v4464, %v4592
  %4594 = vmatmul.bf16.gmra.mxu0 %v820
  %v4595 = vpop.f32.mrf.mxu0
  %v4596 = vadd.f32 %v4467, %v4595
  %v4597 = vpop.f32.mrf.mxu0
  %v4598 = vadd.f32 %v4469, %v4597
  %4599 = vmatmul.bf16.gmra.mxu0 %v826
  %v4600 = vpop.f32.mrf.mxu0
  %v4601 = vadd.f32 %v4472, %v4600
  %v4602 = vpop.f32.mrf.mxu0
  %v4603 = vadd.f32 %v4474, %v4602
  %4604 = vmatmul.bf16.gmra.mxu0 %v832
  %v4605 = vpop.f32.mrf.mxu0
  %v4606 = vadd.f32 %v4477, %v4605
  %v4607 = vpop.f32.mrf.mxu0
  %v4608 = vadd.f32 %v4479, %v4607
  %4609 = vmatmul.bf16.gmra.mxu0 %v838
  %v4610 = vpop.f32.mrf.mxu0
  %v4611 = vadd.f32 %v4482, %v4610
  %v4612 = vpop.f32.mrf.mxu0
  %v4613 = vadd.f32 %v4484, %v4612
  %4614 = vmatmul.bf16.gmra.mxu0 %v844
  %v4615 = vpop.f32.mrf.mxu0
  %v4616 = vadd.f32 %v4487, %v4615
  %v4617 = vpop.f32.mrf.mxu0
  %v4618 = vadd.f32 %v4489, %v4617
  %4619 = vmatmul.bf16.gmra.mxu0 %v850
  %v4620 = vpop.f32.mrf.mxu0
  %v4621 = vadd.f32 %v4492, %v4620
  %v4622 = vpop.f32.mrf.mxu0
  %v4623 = vadd.f32 %v4494, %v4622
  %4624 = vmatmul.bf16.gmra.mxu0 %v856
  %v4625 = vpop.f32.mrf.mxu0
  %v4626 = vadd.f32 %v4497, %v4625
  %v4627 = vpop.f32.mrf.mxu0
  %v4628 = vadd.f32 %v4499, %v4627
  %4629 = vdwg.mxu0
  %4630 = vmatpush.bf16.msra.mxu0 %v3453
  %4631 = vmatpush.bf16.msra.mxu0 %v3451
  %4632 = vmatpush.bf16.msra.mxu0 %v3449
  %4633 = vmatpush.bf16.msra.mxu0 %v3447
  %4634 = vmatpush.bf16.msra.mxu0 %v3445
  %4635 = vmatpush.bf16.msra.mxu0 %v3443
  %4636 = vmatpush.bf16.msra.mxu0 %v3441
  %4637 = vmatpush.bf16.msra.mxu0 %v3439
  %4638 = vmatmul.bf16.gmra.mxu0 %v719
  %v4639 = vpop.f32.mrf.mxu0
  %v4640 = vadd.f32 %v4511, %v4639
  %v4641 = vpop.f32.mrf.mxu0
  %v4642 = vadd.f32 %v4513, %v4641
  %4643 = vmatmul.bf16.gmra.mxu0 %v725
  %v4644 = vpop.f32.mrf.mxu0
  %v4645 = vadd.f32 %v4516, %v4644
  %v4646 = vpop.f32.mrf.mxu0
  %v4647 = vadd.f32 %v4518, %v4646
  %4648 = vmatmul.bf16.gmra.mxu0 %v731
  %v4649 = vpop.f32.mrf.mxu0
  %v4650 = vadd.f32 %v4521, %v4649
  %v4651 = vpop.f32.mrf.mxu0
  %v4652 = vadd.f32 %v4523, %v4651
  %4653 = vmatmul.bf16.gmra.mxu0 %v737
  %v4654 = vpop.f32.mrf.mxu0
  %v4655 = vadd.f32 %v4526, %v4654
  %v4656 = vpop.f32.mrf.mxu0
  %v4657 = vadd.f32 %v4528, %v4656
  %4658 = vmatmul.bf16.gmra.mxu0 %v743
  %v4659 = vpop.f32.mrf.mxu0
  %v4660 = vadd.f32 %v4531, %v4659
  %v4661 = vpop.f32.mrf.mxu0
  %v4662 = vadd.f32 %v4533, %v4661
  %4663 = vmatmul.bf16.gmra.mxu0 %v749
  %v4664 = vpop.f32.mrf.mxu0
  %v4665 = vadd.f32 %v4536, %v4664
  %v4666 = vpop.f32.mrf.mxu0
  %v4667 = vadd.f32 %v4538, %v4666
  %4668 = vmatmul.bf16.gmra.mxu0 %v755
  %v4669 = vpop.f32.mrf.mxu0
  %v4670 = vadd.f32 %v4541, %v4669
  %v4671 = vpop.f32.mrf.mxu0
  %v4672 = vadd.f32 %v4543, %v4671
  %4673 = vmatmul.bf16.gmra.mxu0 %v761
  %v4674 = vpop.f32.mrf.mxu0
  %v4675 = vadd.f32 %v4546, %v4674
  %v4676 = vpop.f32.mrf.mxu0
  %v4677 = vadd.f32 %v4548, %v4676
  %4678 = vmatmul.bf16.gmra.mxu0 %v767
  %v4679 = vpop.f32.mrf.mxu0
  %v4680 = vadd.f32 %v4551, %v4679
  %v4681 = vpop.f32.mrf.mxu0
  %v4682 = vadd.f32 %v4553, %v4681
  %4683 = vmatmul.bf16.gmra.mxu0 %v773
  %v4684 = vpop.f32.mrf.mxu0
  %v4685 = vadd.f32 %v4556, %v4684
  %v4686 = vpop.f32.mrf.mxu0
  %v4687 = vadd.f32 %v4558, %v4686
  %4688 = vmatmul.bf16.gmra.mxu0 %v779
  %v4689 = vpop.f32.mrf.mxu0
  %v4690 = vadd.f32 %v4561, %v4689
  %v4691 = vpop.f32.mrf.mxu0
  %v4692 = vadd.f32 %v4563, %v4691
  %4693 = vmatmul.bf16.gmra.mxu0 %v785
  %v4694 = vpop.f32.mrf.mxu0
  %v4695 = vadd.f32 %v4566, %v4694
  %v4696 = vpop.f32.mrf.mxu0
  %v4697 = vadd.f32 %v4568, %v4696
  %4698 = vmatmul.bf16.gmra.mxu0 %v791
  %v4699 = vpop.f32.mrf.mxu0
  %v4700 = vadd.f32 %v4571, %v4699
  %v4701 = vpop.f32.mrf.mxu0
  %v4702 = vadd.f32 %v4573, %v4701
  %4703 = vmatmul.bf16.gmra.mxu0 %v797
  %v4704 = vpop.f32.mrf.mxu0
  %v4705 = vadd.f32 %v4576, %v4704
  %v4706 = vpop.f32.mrf.mxu0
  %v4707 = vadd.f32 %v4578, %v4706
  %4708 = vmatmul.bf16.gmra.mxu0 %v803
  %v4709 = vpop.f32.mrf.mxu0
  %v4710 = vadd.f32 %v4581, %v4709
  %v4711 = vpop.f32.mrf.mxu0
  %v4712 = vadd.f32 %v4583, %v4711
  %4713 = vmatmul.bf16.gmra.mxu0 %v809
  %v4714 = vpop.f32.mrf.mxu0
  %v4715 = vadd.f32 %v4586, %v4714
  %v4716 = vpop.f32.mrf.mxu0
  %v4717 = vadd.f32 %v4588, %v4716
  %4718 = vmatmul.bf16.gmra.mxu0 %v815
  %v4719 = vpop.f32.mrf.mxu0
  %v4720 = vadd.f32 %v4591, %v4719
  %v4721 = vpop.f32.mrf.mxu0
  %v4722 = vadd.f32 %v4593, %v4721
  %4723 = vmatmul.bf16.gmra.mxu0 %v821
  %v4724 = vpop.f32.mrf.mxu0
  %v4725 = vadd.f32 %v4596, %v4724
  %v4726 = vpop.f32.mrf.mxu0
  %v4727 = vadd.f32 %v4598, %v4726
  %4728 = vmatmul.bf16.gmra.mxu0 %v827
  %v4729 = vpop.f32.mrf.mxu0
  %v4730 = vadd.f32 %v4601, %v4729
  %v4731 = vpop.f32.mrf.mxu0
  %v4732 = vadd.f32 %v4603, %v4731
  %4733 = vmatmul.bf16.gmra.mxu0 %v833
  %v4734 = vpop.f32.mrf.mxu0
  %v4735 = vadd.f32 %v4606, %v4734
  %v4736 = vpop.f32.mrf.mxu0
  %v4737 = vadd.f32 %v4608, %v4736
  %4738 = vmatmul.bf16.gmra.mxu0 %v839
  %v4739 = vpop.f32.mrf.mxu0
  %v4740 = vadd.f32 %v4611, %v4739
  %v4741 = vpop.f32.mrf.mxu0
  %v4742 = vadd.f32 %v4613, %v4741
  %4743 = vmatmul.bf16.gmra.mxu0 %v845
  %v4744 = vpop.f32.mrf.mxu0
  %v4745 = vadd.f32 %v4616, %v4744
  %v4746 = vpop.f32.mrf.mxu0
  %v4747 = vadd.f32 %v4618, %v4746
  %4748 = vmatmul.bf16.gmra.mxu0 %v851
  %v4749 = vpop.f32.mrf.mxu0
  %v4750 = vadd.f32 %v4621, %v4749
  %v4751 = vpop.f32.mrf.mxu0
  %v4752 = vadd.f32 %v4623, %v4751
  %4753 = vmatmul.bf16.gmra.mxu0 %v857
  %v4754 = vpop.f32.mrf.mxu0
  %v4755 = vadd.f32 %v4626, %v4754
  %v4756 = vpop.f32.mrf.mxu0
  %v4757 = vadd.f32 %v4628, %v4756
  %4758 = vdwg.mxu0
  %4759 = vmatpush.bf16.msra.mxu0 %v3469
  %4760 = vmatpush.bf16.msra.mxu0 %v3467
  %4761 = vmatpush.bf16.msra.mxu0 %v3465
  %4762 = vmatpush.bf16.msra.mxu0 %v3463
  %4763 = vmatpush.bf16.msra.mxu0 %v3461
  %4764 = vmatpush.bf16.msra.mxu0 %v3459
  %4765 = vmatpush.bf16.msra.mxu0 %v3457
  %4766 = vmatpush.bf16.msra.mxu0 %v3455
  %4767 = vmatmul.bf16.gmra.mxu0 %v720
  %v4768 = vpop.f32.mrf.mxu0
  %v4769 = vadd.f32 %v4640, %v4768
  %v4770 = vpop.f32.mrf.mxu0
  %v4771 = vadd.f32 %v4642, %v4770
  %4772 = vmatmul.bf16.gmra.mxu0 %v726
  %v4773 = vpop.f32.mrf.mxu0
  %v4774 = vadd.f32 %v4645, %v4773
  %v4775 = vpop.f32.mrf.mxu0
  %v4776 = vadd.f32 %v4647, %v4775
  %4777 = vmatmul.bf16.gmra.mxu0 %v732
  %v4778 = vpop.f32.mrf.mxu0
  %v4779 = vadd.f32 %v4650, %v4778
  %v4780 = vpop.f32.mrf.mxu0
  %v4781 = vadd.f32 %v4652, %v4780
  %4782 = vmatmul.bf16.gmra.mxu0 %v738
  %v4783 = vpop.f32.mrf.mxu0
  %v4784 = vadd.f32 %v4655, %v4783
  %v4785 = vpop.f32.mrf.mxu0
  %v4786 = vadd.f32 %v4657, %v4785
  %4787 = vmatmul.bf16.gmra.mxu0 %v744
  %v4788 = vpop.f32.mrf.mxu0
  %v4789 = vadd.f32 %v4660, %v4788
  %v4790 = vpop.f32.mrf.mxu0
  %v4791 = vadd.f32 %v4662, %v4790
  %4792 = vmatmul.bf16.gmra.mxu0 %v750
  %v4793 = vpop.f32.mrf.mxu0
  %v4794 = vadd.f32 %v4665, %v4793
  %v4795 = vpop.f32.mrf.mxu0
  %v4796 = vadd.f32 %v4667, %v4795
  %4797 = vmatmul.bf16.gmra.mxu0 %v756
  %v4798 = vpop.f32.mrf.mxu0
  %v4799 = vadd.f32 %v4670, %v4798
  %v4800 = vpop.f32.mrf.mxu0
  %v4801 = vadd.f32 %v4672, %v4800
  %4802 = vmatmul.bf16.gmra.mxu0 %v762
  %v4803 = vpop.f32.mrf.mxu0
  %v4804 = vadd.f32 %v4675, %v4803
  %v4805 = vpop.f32.mrf.mxu0
  %v4806 = vadd.f32 %v4677, %v4805
  %4807 = vmatmul.bf16.gmra.mxu0 %v768
  %v4808 = vpop.f32.mrf.mxu0
  %v4809 = vadd.f32 %v4680, %v4808
  %v4810 = vpop.f32.mrf.mxu0
  %v4811 = vadd.f32 %v4682, %v4810
  %4812 = vmatmul.bf16.gmra.mxu0 %v774
  %v4813 = vpop.f32.mrf.mxu0
  %v4814 = vadd.f32 %v4685, %v4813
  %v4815 = vpop.f32.mrf.mxu0
  %v4816 = vadd.f32 %v4687, %v4815
  %4817 = vmatmul.bf16.gmra.mxu0 %v780
  %v4818 = vpop.f32.mrf.mxu0
  %v4819 = vadd.f32 %v4690, %v4818
  %v4820 = vpop.f32.mrf.mxu0
  %v4821 = vadd.f32 %v4692, %v4820
  %4822 = vmatmul.bf16.gmra.mxu0 %v786
  %v4823 = vpop.f32.mrf.mxu0
  %v4824 = vadd.f32 %v4695, %v4823
  %v4825 = vpop.f32.mrf.mxu0
  %v4826 = vadd.f32 %v4697, %v4825
  %4827 = vmatmul.bf16.gmra.mxu0 %v792
  %v4828 = vpop.f32.mrf.mxu0
  %v4829 = vadd.f32 %v4700, %v4828
  %v4830 = vpop.f32.mrf.mxu0
  %v4831 = vadd.f32 %v4702, %v4830
  %4832 = vmatmul.bf16.gmra.mxu0 %v798
  %v4833 = vpop.f32.mrf.mxu0
  %v4834 = vadd.f32 %v4705, %v4833
  %v4835 = vpop.f32.mrf.mxu0
  %v4836 = vadd.f32 %v4707, %v4835
  %4837 = vmatmul.bf16.gmra.mxu0 %v804
  %v4838 = vpop.f32.mrf.mxu0
  %v4839 = vadd.f32 %v4710, %v4838
  %v4840 = vpop.f32.mrf.mxu0
  %v4841 = vadd.f32 %v4712, %v4840
  %4842 = vmatmul.bf16.gmra.mxu0 %v810
  %v4843 = vpop.f32.mrf.mxu0
  %v4844 = vadd.f32 %v4715, %v4843
  %v4845 = vpop.f32.mrf.mxu0
  %v4846 = vadd.f32 %v4717, %v4845
  %4847 = vmatmul.bf16.gmra.mxu0 %v816
  %v4848 = vpop.f32.mrf.mxu0
  %v4849 = vadd.f32 %v4720, %v4848
  %v4850 = vpop.f32.mrf.mxu0
  %v4851 = vadd.f32 %v4722, %v4850
  %4852 = vmatmul.bf16.gmra.mxu0 %v822
  %v4853 = vpop.f32.mrf.mxu0
  %v4854 = vadd.f32 %v4725, %v4853
  %v4855 = vpop.f32.mrf.mxu0
  %v4856 = vadd.f32 %v4727, %v4855
  %4857 = vmatmul.bf16.gmra.mxu0 %v828
  %v4858 = vpop.f32.mrf.mxu0
  %v4859 = vadd.f32 %v4730, %v4858
  %v4860 = vpop.f32.mrf.mxu0
  %v4861 = vadd.f32 %v4732, %v4860
  %4862 = vmatmul.bf16.gmra.mxu0 %v834
  %v4863 = vpop.f32.mrf.mxu0
  %v4864 = vadd.f32 %v4735, %v4863
  %v4865 = vpop.f32.mrf.mxu0
  %v4866 = vadd.f32 %v4737, %v4865
  %4867 = vmatmul.bf16.gmra.mxu0 %v840
  %v4868 = vpop.f32.mrf.mxu0
  %v4869 = vadd.f32 %v4740, %v4868
  %v4870 = vpop.f32.mrf.mxu0
  %v4871 = vadd.f32 %v4742, %v4870
  %4872 = vmatmul.bf16.gmra.mxu0 %v846
  %v4873 = vpop.f32.mrf.mxu0
  %v4874 = vadd.f32 %v4745, %v4873
  %v4875 = vpop.f32.mrf.mxu0
  %v4876 = vadd.f32 %v4747, %v4875
  %4877 = vmatmul.bf16.gmra.mxu0 %v852
  %v4878 = vpop.f32.mrf.mxu0
  %v4879 = vadd.f32 %v4750, %v4878
  %v4880 = vpop.f32.mrf.mxu0
  %v4881 = vadd.f32 %v4752, %v4880
  %4882 = vmatmul.bf16.gmra.mxu0 %v858
  %v4883 = vpop.f32.mrf.mxu0
  %v4884 = vadd.f32 %v4755, %v4883
  %v4885 = vpop.f32.mrf.mxu0
  %v4886 = vadd.f32 %v4757, %v4885
  %4887 = vdwg.mxu0
  %4888 = vmatpush.bf16.msra.mxu0 %v3485
  %4889 = vmatpush.bf16.msra.mxu0 %v3483
  %4890 = vmatpush.bf16.msra.mxu0 %v3481
  %4891 = vmatpush.bf16.msra.mxu0 %v3479
  %4892 = vmatpush.bf16.msra.mxu0 %v3477
  %4893 = vmatpush.bf16.msra.mxu0 %v3475
  %4894 = vmatpush.bf16.msra.mxu0 %v3473
  %4895 = vmatpush.bf16.msra.mxu0 %v3471
  %4896 = vmatmul.bf16.gmra.mxu0 %v721
  %v4897 = vpop.f32.mrf.mxu0
  %v4898 = vadd.f32 %v4769, %v4897
  %v4899 = vpop.f32.mrf.mxu0
  %v4900 = vadd.f32 %v4771, %v4899
  %4901 = vmatmul.bf16.gmra.mxu0 %v727
  %v4902 = vpop.f32.mrf.mxu0
  %v4903 = vadd.f32 %v4774, %v4902
  %v4904 = vpop.f32.mrf.mxu0
  %v4905 = vadd.f32 %v4776, %v4904
  %4906 = vmatmul.bf16.gmra.mxu0 %v733
  %v4907 = vpop.f32.mrf.mxu0
  %v4908 = vadd.f32 %v4779, %v4907
  %v4909 = vpop.f32.mrf.mxu0
  %v4910 = vadd.f32 %v4781, %v4909
  %4911 = vmatmul.bf16.gmra.mxu0 %v739
  %v4912 = vpop.f32.mrf.mxu0
  %v4913 = vadd.f32 %v4784, %v4912
  %v4914 = vpop.f32.mrf.mxu0
  %v4915 = vadd.f32 %v4786, %v4914
  %4916 = vmatmul.bf16.gmra.mxu0 %v745
  %v4917 = vpop.f32.mrf.mxu0
  %v4918 = vadd.f32 %v4789, %v4917
  %v4919 = vpop.f32.mrf.mxu0
  %v4920 = vadd.f32 %v4791, %v4919
  %4921 = vmatmul.bf16.gmra.mxu0 %v751
  %v4922 = vpop.f32.mrf.mxu0
  %v4923 = vadd.f32 %v4794, %v4922
  %v4924 = vpop.f32.mrf.mxu0
  %v4925 = vadd.f32 %v4796, %v4924
  %4926 = vmatmul.bf16.gmra.mxu0 %v757
  %v4927 = vpop.f32.mrf.mxu0
  %v4928 = vadd.f32 %v4799, %v4927
  %v4929 = vpop.f32.mrf.mxu0
  %v4930 = vadd.f32 %v4801, %v4929
  %4931 = vmatmul.bf16.gmra.mxu0 %v763
  %v4932 = vpop.f32.mrf.mxu0
  %v4933 = vadd.f32 %v4804, %v4932
  %v4934 = vpop.f32.mrf.mxu0
  %v4935 = vadd.f32 %v4806, %v4934
  %4936 = vmatmul.bf16.gmra.mxu0 %v769
  %v4937 = vpop.f32.mrf.mxu0
  %v4938 = vadd.f32 %v4809, %v4937
  %v4939 = vpop.f32.mrf.mxu0
  %v4940 = vadd.f32 %v4811, %v4939
  %4941 = vmatmul.bf16.gmra.mxu0 %v775
  %v4942 = vpop.f32.mrf.mxu0
  %v4943 = vadd.f32 %v4814, %v4942
  %v4944 = vpop.f32.mrf.mxu0
  %v4945 = vadd.f32 %v4816, %v4944
  %4946 = vmatmul.bf16.gmra.mxu0 %v781
  %v4947 = vpop.f32.mrf.mxu0
  %v4948 = vadd.f32 %v4819, %v4947
  %v4949 = vpop.f32.mrf.mxu0
  %v4950 = vadd.f32 %v4821, %v4949
  %4951 = vmatmul.bf16.gmra.mxu0 %v787
  %v4952 = vpop.f32.mrf.mxu0
  %v4953 = vadd.f32 %v4824, %v4952
  %v4954 = vpop.f32.mrf.mxu0
  %v4955 = vadd.f32 %v4826, %v4954
  %4956 = vmatmul.bf16.gmra.mxu0 %v793
  %v4957 = vpop.f32.mrf.mxu0
  %v4958 = vadd.f32 %v4829, %v4957
  %v4959 = vpop.f32.mrf.mxu0
  %v4960 = vadd.f32 %v4831, %v4959
  %4961 = vmatmul.bf16.gmra.mxu0 %v799
  %v4962 = vpop.f32.mrf.mxu0
  %v4963 = vadd.f32 %v4834, %v4962
  %v4964 = vpop.f32.mrf.mxu0
  %v4965 = vadd.f32 %v4836, %v4964
  %4966 = vmatmul.bf16.gmra.mxu0 %v805
  %v4967 = vpop.f32.mrf.mxu0
  %v4968 = vadd.f32 %v4839, %v4967
  %v4969 = vpop.f32.mrf.mxu0
  %v4970 = vadd.f32 %v4841, %v4969
  %4971 = vmatmul.bf16.gmra.mxu0 %v811
  %v4972 = vpop.f32.mrf.mxu0
  %v4973 = vadd.f32 %v4844, %v4972
  %v4974 = vpop.f32.mrf.mxu0
  %v4975 = vadd.f32 %v4846, %v4974
  %4976 = vmatmul.bf16.gmra.mxu0 %v817
  %v4977 = vpop.f32.mrf.mxu0
  %v4978 = vadd.f32 %v4849, %v4977
  %v4979 = vpop.f32.mrf.mxu0
  %v4980 = vadd.f32 %v4851, %v4979
  %4981 = vmatmul.bf16.gmra.mxu0 %v823
  %v4982 = vpop.f32.mrf.mxu0
  %v4983 = vadd.f32 %v4854, %v4982
  %v4984 = vpop.f32.mrf.mxu0
  %v4985 = vadd.f32 %v4856, %v4984
  %4986 = vmatmul.bf16.gmra.mxu0 %v829
  %v4987 = vpop.f32.mrf.mxu0
  %v4988 = vadd.f32 %v4859, %v4987
  %v4989 = vpop.f32.mrf.mxu0
  %v4990 = vadd.f32 %v4861, %v4989
  %4991 = vmatmul.bf16.gmra.mxu0 %v835
  %v4992 = vpop.f32.mrf.mxu0
  %v4993 = vadd.f32 %v4864, %v4992
  %v4994 = vpop.f32.mrf.mxu0
  %v4995 = vadd.f32 %v4866, %v4994
  %4996 = vmatmul.bf16.gmra.mxu0 %v841
  %v4997 = vpop.f32.mrf.mxu0
  %v4998 = vadd.f32 %v4869, %v4997
  %v4999 = vpop.f32.mrf.mxu0
  %v5000 = vadd.f32 %v4871, %v4999
  %5001 = vmatmul.bf16.gmra.mxu0 %v847
  %v5002 = vpop.f32.mrf.mxu0
  %v5003 = vadd.f32 %v4874, %v5002
  %v5004 = vpop.f32.mrf.mxu0
  %v5005 = vadd.f32 %v4876, %v5004
  %5006 = vmatmul.bf16.gmra.mxu0 %v853
  %v5007 = vpop.f32.mrf.mxu0
  %v5008 = vadd.f32 %v4879, %v5007
  %v5009 = vpop.f32.mrf.mxu0
  %v5010 = vadd.f32 %v4881, %v5009
  %5011 = vmatmul.bf16.gmra.mxu0 %v859
  %v5012 = vpop.f32.mrf.mxu0
  %v5013 = vadd.f32 %v4884, %v5012
  %v5014 = vpop.f32.mrf.mxu0
  %v5015 = vadd.f32 %v4886, %v5014
  %5016 = vdwg.mxu0
  %5017 = vmatpush.bf16.msra.mxu0 %v3501
  %5018 = vmatpush.bf16.msra.mxu0 %v3499
  %5019 = vmatpush.bf16.msra.mxu0 %v3497
  %5020 = vmatpush.bf16.msra.mxu0 %v3495
  %5021 = vmatpush.bf16.msra.mxu0 %v3493
  %5022 = vmatpush.bf16.msra.mxu0 %v3491
  %5023 = vmatpush.bf16.msra.mxu0 %v3489
  %5024 = vmatpush.bf16.msra.mxu0 %v3487
  %5025 = vmatmul.bf16.gmra.mxu0 %v722
  %v5026 = vpop.f32.mrf.mxu0
  %v5027 = vadd.f32 %v4898, %v5026
  %v5028 = vpop.f32.mrf.mxu0
  %v5029 = vadd.f32 %v4900, %v5028
  %5030 = vmatmul.bf16.gmra.mxu0 %v728
  %v5031 = vpop.f32.mrf.mxu0
  %v5032 = vadd.f32 %v4903, %v5031
  %v5033 = vpop.f32.mrf.mxu0
  %v5034 = vadd.f32 %v4905, %v5033
  %5035 = vmatmul.bf16.gmra.mxu0 %v734
  %v5036 = vpop.f32.mrf.mxu0
  %v5037 = vadd.f32 %v4908, %v5036
  %v5038 = vpop.f32.mrf.mxu0
  %v5039 = vadd.f32 %v4910, %v5038
  %5040 = vmatmul.bf16.gmra.mxu0 %v740
  %v5041 = vpop.f32.mrf.mxu0
  %v5042 = vadd.f32 %v4913, %v5041
  %v5043 = vpop.f32.mrf.mxu0
  %v5044 = vadd.f32 %v4915, %v5043
  %5045 = vmatmul.bf16.gmra.mxu0 %v746
  %v5046 = vpop.f32.mrf.mxu0
  %v5047 = vadd.f32 %v4918, %v5046
  %v5048 = vpop.f32.mrf.mxu0
  %v5049 = vadd.f32 %v4920, %v5048
  %5050 = vmatmul.bf16.gmra.mxu0 %v752
  %v5051 = vpop.f32.mrf.mxu0
  %v5052 = vadd.f32 %v4923, %v5051
  %v5053 = vpop.f32.mrf.mxu0
  %v5054 = vadd.f32 %v4925, %v5053
  %5055 = vmatmul.bf16.gmra.mxu0 %v758
  %v5056 = vpop.f32.mrf.mxu0
  %v5057 = vadd.f32 %v4928, %v5056
  %v5058 = vpop.f32.mrf.mxu0
  %v5059 = vadd.f32 %v4930, %v5058
  %5060 = vmatmul.bf16.gmra.mxu0 %v764
  %v5061 = vpop.f32.mrf.mxu0
  %v5062 = vadd.f32 %v4933, %v5061
  %v5063 = vpop.f32.mrf.mxu0
  %v5064 = vadd.f32 %v4935, %v5063
  %5065 = vmatmul.bf16.gmra.mxu0 %v770
  %v5066 = vpop.f32.mrf.mxu0
  %v5067 = vadd.f32 %v4938, %v5066
  %v5068 = vpop.f32.mrf.mxu0
  %v5069 = vadd.f32 %v4940, %v5068
  %5070 = vmatmul.bf16.gmra.mxu0 %v776
  %v5071 = vpop.f32.mrf.mxu0
  %v5072 = vadd.f32 %v4943, %v5071
  %v5073 = vpop.f32.mrf.mxu0
  %v5074 = vadd.f32 %v4945, %v5073
  %5075 = vmatmul.bf16.gmra.mxu0 %v782
  %v5076 = vpop.f32.mrf.mxu0
  %v5077 = vadd.f32 %v4948, %v5076
  %v5078 = vpop.f32.mrf.mxu0
  %v5079 = vadd.f32 %v4950, %v5078
  %5080 = vmatmul.bf16.gmra.mxu0 %v788
  %v5081 = vpop.f32.mrf.mxu0
  %v5082 = vadd.f32 %v4953, %v5081
  %v5083 = vpop.f32.mrf.mxu0
  %v5084 = vadd.f32 %v4955, %v5083
  %5085 = vmatmul.bf16.gmra.mxu0 %v794
  %v5086 = vpop.f32.mrf.mxu0
  %v5087 = vadd.f32 %v4958, %v5086
  %v5088 = vpop.f32.mrf.mxu0
  %v5089 = vadd.f32 %v4960, %v5088
  %5090 = vmatmul.bf16.gmra.mxu0 %v800
  %v5091 = vpop.f32.mrf.mxu0
  %v5092 = vadd.f32 %v4963, %v5091
  %v5093 = vpop.f32.mrf.mxu0
  %v5094 = vadd.f32 %v4965, %v5093
  %5095 = vmatmul.bf16.gmra.mxu0 %v806
  %v5096 = vpop.f32.mrf.mxu0
  %v5097 = vadd.f32 %v4968, %v5096
  %v5098 = vpop.f32.mrf.mxu0
  %v5099 = vadd.f32 %v4970, %v5098
  %5100 = vmatmul.bf16.gmra.mxu0 %v812
  %v5101 = vpop.f32.mrf.mxu0
  %v5102 = vadd.f32 %v4973, %v5101
  %v5103 = vpop.f32.mrf.mxu0
  %v5104 = vadd.f32 %v4975, %v5103
  %5105 = vmatmul.bf16.gmra.mxu0 %v818
  %v5106 = vpop.f32.mrf.mxu0
  %v5107 = vadd.f32 %v4978, %v5106
  %v5108 = vpop.f32.mrf.mxu0
  %v5109 = vadd.f32 %v4980, %v5108
  %5110 = vmatmul.bf16.gmra.mxu0 %v824
  %v5111 = vpop.f32.mrf.mxu0
  %v5112 = vadd.f32 %v4983, %v5111
  %v5113 = vpop.f32.mrf.mxu0
  %v5114 = vadd.f32 %v4985, %v5113
  %5115 = vmatmul.bf16.gmra.mxu0 %v830
  %v5116 = vpop.f32.mrf.mxu0
  %v5117 = vadd.f32 %v4988, %v5116
  %v5118 = vpop.f32.mrf.mxu0
  %v5119 = vadd.f32 %v4990, %v5118
  %5120 = vmatmul.bf16.gmra.mxu0 %v836
  %v5121 = vpop.f32.mrf.mxu0
  %v5122 = vadd.f32 %v4993, %v5121
  %v5123 = vpop.f32.mrf.mxu0
  %v5124 = vadd.f32 %v4995, %v5123
  %5125 = vmatmul.bf16.gmra.mxu0 %v842
  %v5126 = vpop.f32.mrf.mxu0
  %v5127 = vadd.f32 %v4998, %v5126
  %v5128 = vpop.f32.mrf.mxu0
  %v5129 = vadd.f32 %v5000, %v5128
  %5130 = vmatmul.bf16.gmra.mxu0 %v848
  %v5131 = vpop.f32.mrf.mxu0
  %v5132 = vadd.f32 %v5003, %v5131
  %v5133 = vpop.f32.mrf.mxu0
  %v5134 = vadd.f32 %v5005, %v5133
  %5135 = vmatmul.bf16.gmra.mxu0 %v854
  %v5136 = vpop.f32.mrf.mxu0
  %v5137 = vadd.f32 %v5008, %v5136
  %v5138 = vpop.f32.mrf.mxu0
  %v5139 = vadd.f32 %v5010, %v5138
  %5140 = vmatmul.bf16.gmra.mxu0 %v860
  %v5141 = vpop.f32.mrf.mxu0
  %v5142 = vadd.f32 %v5013, %v5141
  %v5143 = vpop.f32.mrf.mxu0
  %v5144 = vadd.f32 %v5015, %v5143
  %5145 = vdwg.mxu0
  %s5146 = scalar_lea.vmem %s1, 1536
  %v5147 = vld [vmem:[%s5146] sm:$0xff]
  %v5148 = vld [vmem:[%s5146 + $0x8] sm:$0xff]
  %v5149 = vld [vmem:[%s5146 + $0x10] sm:$0xff]
  %v5150 = vld [vmem:[%s5146 + $0x18] sm:$0xff]
  %v5151 = vld [vmem:[%s5146 + $0x20] sm:$0xff]
  %v5152 = vld [vmem:[%s5146 + $0x28] sm:$0xff]
  %v5153 = vld [vmem:[%s5146 + $0x30] sm:$0xff]
  %v5154 = vld [vmem:[%s5146 + $0x38] sm:$0xff]
  %v5155 = vld [vmem:[%s5146 + $0x40] sm:$0xff]
  %v5156 = vld [vmem:[%s5146 + $0x48] sm:$0xff]
  %v5157 = vld [vmem:[%s5146 + $0x50] sm:$0xff]
  %v5158 = vld [vmem:[%s5146 + $0x58] sm:$0xff]
  %v5159 = vld [vmem:[%s5146 + $0x60] sm:$0xff]
  %v5160 = vld [vmem:[%s5146 + $0x68] sm:$0xff]
  %v5161 = vld [vmem:[%s5146 + $0x70] sm:$0xff]
  %v5162 = vld [vmem:[%s5146 + $0x78] sm:$0xff]
  %v5163 = vld [vmem:[%s5146 + $0x80] sm:$0xff]
  %v5164 = vld [vmem:[%s5146 + $0x88] sm:$0xff]
  %v5165 = vld [vmem:[%s5146 + $0x90] sm:$0xff]
  %v5166 = vld [vmem:[%s5146 + $0x98] sm:$0xff]
  %v5167 = vld [vmem:[%s5146 + $0xa0] sm:$0xff]
  %v5168 = vld [vmem:[%s5146 + $0xa8] sm:$0xff]
  %v5169 = vld [vmem:[%s5146 + $0xb0] sm:$0xff]
  %v5170 = vld [vmem:[%s5146 + $0xb8] sm:$0xff]
  %v5171 = vld [vmem:[%s5146 + $0xc0] sm:$0xff]
  %v5172 = vld [vmem:[%s5146 + $0xc8] sm:$0xff]
  %v5173 = vld [vmem:[%s5146 + $0xd0] sm:$0xff]
  %v5174 = vld [vmem:[%s5146 + $0xd8] sm:$0xff]
  %v5175 = vld [vmem:[%s5146 + $0xe0] sm:$0xff]
  %v5176 = vld [vmem:[%s5146 + $0xe8] sm:$0xff]
  %v5177 = vld [vmem:[%s5146 + $0xf0] sm:$0xff]
  %v5178 = vld [vmem:[%s5146 + $0xf8] sm:$0xff]
  %v5179 = vld [vmem:[%s5146 + $0x100] sm:$0xff]
  %v5180 = vld [vmem:[%s5146 + $0x108] sm:$0xff]
  %v5181 = vld [vmem:[%s5146 + $0x110] sm:$0xff]
  %v5182 = vld [vmem:[%s5146 + $0x118] sm:$0xff]
  %v5183 = vld [vmem:[%s5146 + $0x120] sm:$0xff]
  %v5184 = vld [vmem:[%s5146 + $0x128] sm:$0xff]
  %v5185 = vld [vmem:[%s5146 + $0x130] sm:$0xff]
  %v5186 = vld [vmem:[%s5146 + $0x138] sm:$0xff]
  %v5187 = vld [vmem:[%s5146 + $0x140] sm:$0xff]
  %v5188 = vld [vmem:[%s5146 + $0x148] sm:$0xff]
  %v5189 = vld [vmem:[%s5146 + $0x150] sm:$0xff]
  %v5190 = vld [vmem:[%s5146 + $0x158] sm:$0xff]
  %v5191 = vld [vmem:[%s5146 + $0x160] sm:$0xff]
  %v5192 = vld [vmem:[%s5146 + $0x168] sm:$0xff]
  %v5193 = vld [vmem:[%s5146 + $0x170] sm:$0xff]
  %v5194 = vld [vmem:[%s5146 + $0x178] sm:$0xff]
  %v5195 = vld [vmem:[%s5146 + $0x180] sm:$0xff]
  %v5196 = vld [vmem:[%s5146 + $0x188] sm:$0xff]
  %v5197 = vld [vmem:[%s5146 + $0x190] sm:$0xff]
  %v5198 = vld [vmem:[%s5146 + $0x198] sm:$0xff]
  %v5199 = vld [vmem:[%s5146 + $0x1a0] sm:$0xff]
  %v5200 = vld [vmem:[%s5146 + $0x1a8] sm:$0xff]
  %v5201 = vld [vmem:[%s5146 + $0x1b0] sm:$0xff]
  %v5202 = vld [vmem:[%s5146 + $0x1b8] sm:$0xff]
  %v5203 = vld [vmem:[%s5146 + $0x1c0] sm:$0xff]
  %v5204 = vld [vmem:[%s5146 + $0x1c8] sm:$0xff]
  %v5205 = vld [vmem:[%s5146 + $0x1d0] sm:$0xff]
  %v5206 = vld [vmem:[%s5146 + $0x1d8] sm:$0xff]
  %v5207 = vld [vmem:[%s5146 + $0x1e0] sm:$0xff]
  %v5208 = vld [vmem:[%s5146 + $0x1e8] sm:$0xff]
  %v5209 = vld [vmem:[%s5146 + $0x1f0] sm:$0xff]
  %v5210 = vld [vmem:[%s5146 + $0x1f8] sm:$0xff]
  %v5211 = vld [vmem:[%s5146 + $0x200] sm:$0xff]
  %v5212 = vld [vmem:[%s5146 + $0x208] sm:$0xff]
  %v5213 = vld [vmem:[%s5146 + $0x210] sm:$0xff]
  %v5214 = vld [vmem:[%s5146 + $0x218] sm:$0xff]
  %v5215 = vld [vmem:[%s5146 + $0x220] sm:$0xff]
  %v5216 = vld [vmem:[%s5146 + $0x228] sm:$0xff]
  %v5217 = vld [vmem:[%s5146 + $0x230] sm:$0xff]
  %v5218 = vld [vmem:[%s5146 + $0x238] sm:$0xff]
  %v5219 = vld [vmem:[%s5146 + $0x240] sm:$0xff]
  %v5220 = vld [vmem:[%s5146 + $0x248] sm:$0xff]
  %v5221 = vld [vmem:[%s5146 + $0x250] sm:$0xff]
  %v5222 = vld [vmem:[%s5146 + $0x258] sm:$0xff]
  %v5223 = vld [vmem:[%s5146 + $0x260] sm:$0xff]
  %v5224 = vld [vmem:[%s5146 + $0x268] sm:$0xff]
  %v5225 = vld [vmem:[%s5146 + $0x270] sm:$0xff]
  %v5226 = vld [vmem:[%s5146 + $0x278] sm:$0xff]
  %v5227 = vld [vmem:[%s5146 + $0x280] sm:$0xff]
  %v5228 = vld [vmem:[%s5146 + $0x288] sm:$0xff]
  %v5229 = vld [vmem:[%s5146 + $0x290] sm:$0xff]
  %v5230 = vld [vmem:[%s5146 + $0x298] sm:$0xff]
  %v5231 = vld [vmem:[%s5146 + $0x2a0] sm:$0xff]
  %v5232 = vld [vmem:[%s5146 + $0x2a8] sm:$0xff]
  %v5233 = vld [vmem:[%s5146 + $0x2b0] sm:$0xff]
  %v5234 = vld [vmem:[%s5146 + $0x2b8] sm:$0xff]
  %v5235 = vld [vmem:[%s5146 + $0x2c0] sm:$0xff]
  %v5236 = vld [vmem:[%s5146 + $0x2c8] sm:$0xff]
  %v5237 = vld [vmem:[%s5146 + $0x2d0] sm:$0xff]
  %v5238 = vld [vmem:[%s5146 + $0x2d8] sm:$0xff]
  %v5239 = vld [vmem:[%s5146 + $0x2e0] sm:$0xff]
  %v5240 = vld [vmem:[%s5146 + $0x2e8] sm:$0xff]
  %v5241 = vld [vmem:[%s5146 + $0x2f0] sm:$0xff]
  %v5242 = vld [vmem:[%s5146 + $0x2f8] sm:$0xff]
  %v5339 = vunpack.c.l.b16 %v5147
  %v5340 = vunpack.c.h.b16 %v5147
  %v5341 = vunpack.c.l.b16 %v5148
  %v5342 = vunpack.c.h.b16 %v5148
  %v5343 = vunpack.c.l.b16 %v5149
  %v5344 = vunpack.c.h.b16 %v5149
  %v5345 = vunpack.c.l.b16 %v5150
  %v5346 = vunpack.c.h.b16 %v5150
  %v5347 = vunpack.c.l.b16 %v5151
  %v5348 = vunpack.c.h.b16 %v5151
  %v5349 = vunpack.c.l.b16 %v5152
  %v5350 = vunpack.c.h.b16 %v5152
  %v5351 = vunpack.c.l.b16 %v5153
  %v5352 = vunpack.c.h.b16 %v5153
  %v5353 = vunpack.c.l.b16 %v5154
  %v5354 = vunpack.c.h.b16 %v5154
  %v5355 = vunpack.c.l.b16 %v5155
  %v5356 = vunpack.c.h.b16 %v5155
  %v5357 = vunpack.c.l.b16 %v5156
  %v5358 = vunpack.c.h.b16 %v5156
  %v5359 = vunpack.c.l.b16 %v5157
  %v5360 = vunpack.c.h.b16 %v5157
  %v5361 = vunpack.c.l.b16 %v5158
  %v5362 = vunpack.c.h.b16 %v5158
  %v5363 = vunpack.c.l.b16 %v5159
  %v5364 = vunpack.c.h.b16 %v5159
  %v5365 = vunpack.c.l.b16 %v5160
  %v5366 = vunpack.c.h.b16 %v5160
  %v5367 = vunpack.c.l.b16 %v5161
  %v5368 = vunpack.c.h.b16 %v5161
  %v5369 = vunpack.c.l.b16 %v5162
  %v5370 = vunpack.c.h.b16 %v5162
  %v5371 = vunpack.c.l.b16 %v5163
  %v5372 = vunpack.c.h.b16 %v5163
  %v5373 = vunpack.c.l.b16 %v5164
  %v5374 = vunpack.c.h.b16 %v5164
  %v5375 = vunpack.c.l.b16 %v5165
  %v5376 = vunpack.c.h.b16 %v5165
  %v5377 = vunpack.c.l.b16 %v5166
  %v5378 = vunpack.c.h.b16 %v5166
  %v5379 = vunpack.c.l.b16 %v5167
  %v5380 = vunpack.c.h.b16 %v5167
  %v5381 = vunpack.c.l.b16 %v5168
  %v5382 = vunpack.c.h.b16 %v5168
  %v5383 = vunpack.c.l.b16 %v5169
  %v5384 = vunpack.c.h.b16 %v5169
  %v5385 = vunpack.c.l.b16 %v5170
  %v5386 = vunpack.c.h.b16 %v5170
  %v5387 = vunpack.c.l.b16 %v5171
  %v5388 = vunpack.c.h.b16 %v5171
  %v5389 = vunpack.c.l.b16 %v5172
  %v5390 = vunpack.c.h.b16 %v5172
  %v5391 = vunpack.c.l.b16 %v5173
  %v5392 = vunpack.c.h.b16 %v5173
  %v5393 = vunpack.c.l.b16 %v5174
  %v5394 = vunpack.c.h.b16 %v5174
  %v5395 = vunpack.c.l.b16 %v5175
  %v5396 = vunpack.c.h.b16 %v5175
  %v5397 = vunpack.c.l.b16 %v5176
  %v5398 = vunpack.c.h.b16 %v5176
  %v5399 = vunpack.c.l.b16 %v5177
  %v5400 = vunpack.c.h.b16 %v5177
  %v5401 = vunpack.c.l.b16 %v5178
  %v5402 = vunpack.c.h.b16 %v5178
  %v5403 = vunpack.c.l.b16 %v5179
  %v5404 = vunpack.c.h.b16 %v5179
  %v5405 = vunpack.c.l.b16 %v5180
  %v5406 = vunpack.c.h.b16 %v5180
  %v5407 = vunpack.c.l.b16 %v5181
  %v5408 = vunpack.c.h.b16 %v5181
  %v5409 = vunpack.c.l.b16 %v5182
  %v5410 = vunpack.c.h.b16 %v5182
  %v5411 = vunpack.c.l.b16 %v5183
  %v5412 = vunpack.c.h.b16 %v5183
  %v5413 = vunpack.c.l.b16 %v5184
  %v5414 = vunpack.c.h.b16 %v5184
  %v5415 = vunpack.c.l.b16 %v5185
  %v5416 = vunpack.c.h.b16 %v5185
  %v5417 = vunpack.c.l.b16 %v5186
  %v5418 = vunpack.c.h.b16 %v5186
  %v5419 = vunpack.c.l.b16 %v5187
  %v5420 = vunpack.c.h.b16 %v5187
  %v5421 = vunpack.c.l.b16 %v5188
  %v5422 = vunpack.c.h.b16 %v5188
  %v5423 = vunpack.c.l.b16 %v5189
  %v5424 = vunpack.c.h.b16 %v5189
  %v5425 = vunpack.c.l.b16 %v5190
  %v5426 = vunpack.c.h.b16 %v5190
  %v5427 = vunpack.c.l.b16 %v5191
  %v5428 = vunpack.c.h.b16 %v5191
  %v5429 = vunpack.c.l.b16 %v5192
  %v5430 = vunpack.c.h.b16 %v5192
  %v5431 = vunpack.c.l.b16 %v5193
  %v5432 = vunpack.c.h.b16 %v5193
  %v5433 = vunpack.c.l.b16 %v5194
  %v5434 = vunpack.c.h.b16 %v5194
  %v5435 = vunpack.c.l.b16 %v5195
  %v5436 = vunpack.c.h.b16 %v5195
  %v5437 = vunpack.c.l.b16 %v5196
  %v5438 = vunpack.c.h.b16 %v5196
  %v5439 = vunpack.c.l.b16 %v5197
  %v5440 = vunpack.c.h.b16 %v5197
  %v5441 = vunpack.c.l.b16 %v5198
  %v5442 = vunpack.c.h.b16 %v5198
  %v5443 = vunpack.c.l.b16 %v5199
  %v5444 = vunpack.c.h.b16 %v5199
  %v5445 = vunpack.c.l.b16 %v5200
  %v5446 = vunpack.c.h.b16 %v5200
  %v5447 = vunpack.c.l.b16 %v5201
  %v5448 = vunpack.c.h.b16 %v5201
  %v5449 = vunpack.c.l.b16 %v5202
  %v5450 = vunpack.c.h.b16 %v5202
  %v5451 = vunpack.c.l.b16 %v5203
  %v5452 = vunpack.c.h.b16 %v5203
  %v5453 = vunpack.c.l.b16 %v5204
  %v5454 = vunpack.c.h.b16 %v5204
  %v5455 = vunpack.c.l.b16 %v5205
  %v5456 = vunpack.c.h.b16 %v5205
  %v5457 = vunpack.c.l.b16 %v5206
  %v5458 = vunpack.c.h.b16 %v5206
  %v5459 = vunpack.c.l.b16 %v5207
  %v5460 = vunpack.c.h.b16 %v5207
  %v5461 = vunpack.c.l.b16 %v5208
  %v5462 = vunpack.c.h.b16 %v5208
  %v5463 = vunpack.c.l.b16 %v5209
  %v5464 = vunpack.c.h.b16 %v5209
  %v5465 = vunpack.c.l.b16 %v5210
  %v5466 = vunpack.c.h.b16 %v5210
  %v5467 = vunpack.c.l.b16 %v5211
  %v5468 = vunpack.c.h.b16 %v5211
  %v5469 = vunpack.c.l.b16 %v5212
  %v5470 = vunpack.c.h.b16 %v5212
  %v5471 = vunpack.c.l.b16 %v5213
  %v5472 = vunpack.c.h.b16 %v5213
  %v5473 = vunpack.c.l.b16 %v5214
  %v5474 = vunpack.c.h.b16 %v5214
  %v5475 = vunpack.c.l.b16 %v5215
  %v5476 = vunpack.c.h.b16 %v5215
  %v5477 = vunpack.c.l.b16 %v5216
  %v5478 = vunpack.c.h.b16 %v5216
  %v5479 = vunpack.c.l.b16 %v5217
  %v5480 = vunpack.c.h.b16 %v5217
  %v5481 = vunpack.c.l.b16 %v5218
  %v5482 = vunpack.c.h.b16 %v5218
  %v5483 = vunpack.c.l.b16 %v5219
  %v5484 = vunpack.c.h.b16 %v5219
  %v5485 = vunpack.c.l.b16 %v5220
  %v5486 = vunpack.c.h.b16 %v5220
  %v5487 = vunpack.c.l.b16 %v5221
  %v5488 = vunpack.c.h.b16 %v5221
  %v5489 = vunpack.c.l.b16 %v5222
  %v5490 = vunpack.c.h.b16 %v5222
  %v5491 = vunpack.c.l.b16 %v5223
  %v5492 = vunpack.c.h.b16 %v5223
  %v5493 = vunpack.c.l.b16 %v5224
  %v5494 = vunpack.c.h.b16 %v5224
  %v5495 = vunpack.c.l.b16 %v5225
  %v5496 = vunpack.c.h.b16 %v5225
  %v5497 = vunpack.c.l.b16 %v5226
  %v5498 = vunpack.c.h.b16 %v5226
  %v5499 = vunpack.c.l.b16 %v5227
  %v5500 = vunpack.c.h.b16 %v5227
  %v5501 = vunpack.c.l.b16 %v5228
  %v5502 = vunpack.c.h.b16 %v5228
  %v5503 = vunpack.c.l.b16 %v5229
  %v5504 = vunpack.c.h.b16 %v5229
  %v5505 = vunpack.c.l.b16 %v5230
  %v5506 = vunpack.c.h.b16 %v5230
  %v5507 = vunpack.c.l.b16 %v5231
  %v5508 = vunpack.c.h.b16 %v5231
  %v5509 = vunpack.c.l.b16 %v5232
  %v5510 = vunpack.c.h.b16 %v5232
  %v5511 = vunpack.c.l.b16 %v5233
  %v5512 = vunpack.c.h.b16 %v5233
  %v5513 = vunpack.c.l.b16 %v5234
  %v5514 = vunpack.c.h.b16 %v5234
  %v5515 = vunpack.c.l.b16 %v5235
  %v5516 = vunpack.c.h.b16 %v5235
  %v5517 = vunpack.c.l.b16 %v5236
  %v5518 = vunpack.c.h.b16 %v5236
  %v5519 = vunpack.c.l.b16 %v5237
  %v5520 = vunpack.c.h.b16 %v5237
  %v5521 = vunpack.c.l.b16 %v5238
  %v5522 = vunpack.c.h.b16 %v5238
  %v5523 = vunpack.c.l.b16 %v5239
  %v5524 = vunpack.c.h.b16 %v5239
  %v5525 = vunpack.c.l.b16 %v5240
  %v5526 = vunpack.c.h.b16 %v5240
  %v5527 = vunpack.c.l.b16 %v5241
  %v5528 = vunpack.c.h.b16 %v5241
  %v5529 = vunpack.c.l.b16 %v5242
  %v5530 = vunpack.c.h.b16 %v5242
  %v5531 = vpack.c.b16 %v5341, %v5339
  %v5532 = vpack.c.b16 %v5342, %v5340
  %v5533 = vpack.c.b16 %v5345, %v5343
  %v5534 = vpack.c.b16 %v5346, %v5344
  %v5535 = vpack.c.b16 %v5349, %v5347
  %v5536 = vpack.c.b16 %v5350, %v5348
  %v5537 = vpack.c.b16 %v5353, %v5351
  %v5538 = vpack.c.b16 %v5354, %v5352
  %v5539 = vpack.c.b16 %v5357, %v5355
  %v5540 = vpack.c.b16 %v5358, %v5356
  %v5541 = vpack.c.b16 %v5361, %v5359
  %v5542 = vpack.c.b16 %v5362, %v5360
  %v5543 = vpack.c.b16 %v5365, %v5363
  %v5544 = vpack.c.b16 %v5366, %v5364
  %v5545 = vpack.c.b16 %v5369, %v5367
  %v5546 = vpack.c.b16 %v5370, %v5368
  %v5547 = vpack.c.b16 %v5373, %v5371
  %v5548 = vpack.c.b16 %v5374, %v5372
  %v5549 = vpack.c.b16 %v5377, %v5375
  %v5550 = vpack.c.b16 %v5378, %v5376
  %v5551 = vpack.c.b16 %v5381, %v5379
  %v5552 = vpack.c.b16 %v5382, %v5380
  %v5553 = vpack.c.b16 %v5385, %v5383
  %v5554 = vpack.c.b16 %v5386, %v5384
  %v5555 = vpack.c.b16 %v5389, %v5387
  %v5556 = vpack.c.b16 %v5390, %v5388
  %v5557 = vpack.c.b16 %v5393, %v5391
  %v5558 = vpack.c.b16 %v5394, %v5392
  %v5559 = vpack.c.b16 %v5397, %v5395
  %v5560 = vpack.c.b16 %v5398, %v5396
  %v5561 = vpack.c.b16 %v5401, %v5399
  %v5562 = vpack.c.b16 %v5402, %v5400
  %v5563 = vpack.c.b16 %v5405, %v5403
  %v5564 = vpack.c.b16 %v5406, %v5404
  %v5565 = vpack.c.b16 %v5409, %v5407
  %v5566 = vpack.c.b16 %v5410, %v5408
  %v5567 = vpack.c.b16 %v5413, %v5411
  %v5568 = vpack.c.b16 %v5414, %v5412
  %v5569 = vpack.c.b16 %v5417, %v5415
  %v5570 = vpack.c.b16 %v5418, %v5416
  %v5571 = vpack.c.b16 %v5421, %v5419
  %v5572 = vpack.c.b16 %v5422, %v5420
  %v5573 = vpack.c.b16 %v5425, %v5423
  %v5574 = vpack.c.b16 %v5426, %v5424
  %v5575 = vpack.c.b16 %v5429, %v5427
  %v5576 = vpack.c.b16 %v5430, %v5428
  %v5577 = vpack.c.b16 %v5433, %v5431
  %v5578 = vpack.c.b16 %v5434, %v5432
  %v5579 = vpack.c.b16 %v5437, %v5435
  %v5580 = vpack.c.b16 %v5438, %v5436
  %v5581 = vpack.c.b16 %v5441, %v5439
  %v5582 = vpack.c.b16 %v5442, %v5440
  %v5583 = vpack.c.b16 %v5445, %v5443
  %v5584 = vpack.c.b16 %v5446, %v5444
  %v5585 = vpack.c.b16 %v5449, %v5447
  %v5586 = vpack.c.b16 %v5450, %v5448
  %v5587 = vpack.c.b16 %v5453, %v5451
  %v5588 = vpack.c.b16 %v5454, %v5452
  %v5589 = vpack.c.b16 %v5457, %v5455
  %v5590 = vpack.c.b16 %v5458, %v5456
  %v5591 = vpack.c.b16 %v5461, %v5459
  %v5592 = vpack.c.b16 %v5462, %v5460
  %v5593 = vpack.c.b16 %v5465, %v5463
  %v5594 = vpack.c.b16 %v5466, %v5464
  %v5595 = vpack.c.b16 %v5469, %v5467
  %v5596 = vpack.c.b16 %v5470, %v5468
  %v5597 = vpack.c.b16 %v5473, %v5471
  %v5598 = vpack.c.b16 %v5474, %v5472
  %v5599 = vpack.c.b16 %v5477, %v5475
  %v5600 = vpack.c.b16 %v5478, %v5476
  %v5601 = vpack.c.b16 %v5481, %v5479
  %v5602 = vpack.c.b16 %v5482, %v5480
  %v5603 = vpack.c.b16 %v5485, %v5483
  %v5604 = vpack.c.b16 %v5486, %v5484
  %v5605 = vpack.c.b16 %v5489, %v5487
  %v5606 = vpack.c.b16 %v5490, %v5488
  %v5607 = vpack.c.b16 %v5493, %v5491
  %v5608 = vpack.c.b16 %v5494, %v5492
  %v5609 = vpack.c.b16 %v5497, %v5495
  %v5610 = vpack.c.b16 %v5498, %v5496
  %v5611 = vpack.c.b16 %v5501, %v5499
  %v5612 = vpack.c.b16 %v5502, %v5500
  %v5613 = vpack.c.b16 %v5505, %v5503
  %v5614 = vpack.c.b16 %v5506, %v5504
  %v5615 = vpack.c.b16 %v5509, %v5507
  %v5616 = vpack.c.b16 %v5510, %v5508
  %v5617 = vpack.c.b16 %v5513, %v5511
  %v5618 = vpack.c.b16 %v5514, %v5512
  %v5619 = vpack.c.b16 %v5517, %v5515
  %v5620 = vpack.c.b16 %v5518, %v5516
  %v5621 = vpack.c.b16 %v5521, %v5519
  %v5622 = vpack.c.b16 %v5522, %v5520
  %v5623 = vpack.c.b16 %v5525, %v5523
  %v5624 = vpack.c.b16 %v5526, %v5524
  %v5625 = vpack.c.b16 %v5529, %v5527
  %v5626 = vpack.c.b16 %v5530, %v5528
  %5723 = vmatpush.bf16.msra.mxu0 %v5545
  %5724 = vmatpush.bf16.msra.mxu0 %v5543
  %5725 = vmatpush.bf16.msra.mxu0 %v5541
  %5726 = vmatpush.bf16.msra.mxu0 %v5539
  %5727 = vmatpush.bf16.msra.mxu0 %v5537
  %5728 = vmatpush.bf16.msra.mxu0 %v5535
  %5729 = vmatpush.bf16.msra.mxu0 %v5533
  %5730 = vmatpush.bf16.msra.mxu0 %v5531
  %5731 = vmatmul.bf16.gmra.mxu0 %v717
  %v5732 = vpop.f32.mrf.mxu0
  %v5733 = vpop.f32.mrf.mxu0
  %v5734 = vadd.f32 0.0, %v5733
  %5735 = vmatmul.bf16.gmra.mxu0 %v723
  %v5736 = vpop.f32.mrf.mxu0
  %v5737 = vadd.f32 0.0, %v5736
  %v5738 = vpop.f32.mrf.mxu0
  %v5739 = vadd.f32 0.0, %v5738
  %5740 = vmatmul.bf16.gmra.mxu0 %v729
  %v5741 = vpop.f32.mrf.mxu0
  %v5742 = vadd.f32 0.0, %v5741
  %v5743 = vpop.f32.mrf.mxu0
  %v5744 = vadd.f32 0.0, %v5743
  %5745 = vmatmul.bf16.gmra.mxu0 %v735
  %v5746 = vpop.f32.mrf.mxu0
  %v5747 = vadd.f32 0.0, %v5746
  %v5748 = vpop.f32.mrf.mxu0
  %v5749 = vadd.f32 0.0, %v5748
  %5750 = vmatmul.bf16.gmra.mxu0 %v741
  %v5751 = vpop.f32.mrf.mxu0
  %v5752 = vadd.f32 0.0, %v5751
  %v5753 = vpop.f32.mrf.mxu0
  %v5754 = vadd.f32 0.0, %v5753
  %5755 = vmatmul.bf16.gmra.mxu0 %v747
  %v5756 = vpop.f32.mrf.mxu0
  %v5757 = vadd.f32 0.0, %v5756
  %v5758 = vpop.f32.mrf.mxu0
  %v5759 = vadd.f32 0.0, %v5758
  %5760 = vmatmul.bf16.gmra.mxu0 %v753
  %v5761 = vpop.f32.mrf.mxu0
  %v5762 = vadd.f32 0.0, %v5761
  %v5763 = vpop.f32.mrf.mxu0
  %v5764 = vadd.f32 0.0, %v5763
  %5765 = vmatmul.bf16.gmra.mxu0 %v759
  %v5766 = vpop.f32.mrf.mxu0
  %v5767 = vadd.f32 0.0, %v5766
  %v5768 = vpop.f32.mrf.mxu0
  %v5769 = vadd.f32 0.0, %v5768
  %5770 = vmatmul.bf16.gmra.mxu0 %v765
  %v5771 = vpop.f32.mrf.mxu0
  %v5772 = vadd.f32 0.0, %v5771
  %v5773 = vpop.f32.mrf.mxu0
  %v5774 = vadd.f32 0.0, %v5773
  %5775 = vmatmul.bf16.gmra.mxu0 %v771
  %v5776 = vpop.f32.mrf.mxu0
  %v5777 = vadd.f32 0.0, %v5776
  %v5778 = vpop.f32.mrf.mxu0
  %v5779 = vadd.f32 0.0, %v5778
  %5780 = vmatmul.bf16.gmra.mxu0 %v777
  %v5781 = vpop.f32.mrf.mxu0
  %v5782 = vadd.f32 0.0, %v5781
  %v5783 = vpop.f32.mrf.mxu0
  %v5784 = vadd.f32 0.0, %v5783
  %5785 = vmatmul.bf16.gmra.mxu0 %v783
  %v5786 = vpop.f32.mrf.mxu0
  %v5787 = vadd.f32 0.0, %v5786
  %v5788 = vpop.f32.mrf.mxu0
  %v5789 = vadd.f32 0.0, %v5788
  %5790 = vmatmul.bf16.gmra.mxu0 %v789
  %v5791 = vpop.f32.mrf.mxu0
  %v5792 = vadd.f32 0.0, %v5791
  %v5793 = vpop.f32.mrf.mxu0
  %v5794 = vadd.f32 0.0, %v5793
  %5795 = vmatmul.bf16.gmra.mxu0 %v795
  %v5796 = vpop.f32.mrf.mxu0
  %v5797 = vadd.f32 0.0, %v5796
  %v5798 = vpop.f32.mrf.mxu0
  %v5799 = vadd.f32 0.0, %v5798
  %5800 = vmatmul.bf16.gmra.mxu0 %v801
  %v5801 = vpop.f32.mrf.mxu0
  %v5802 = vadd.f32 0.0, %v5801
  %v5803 = vpop.f32.mrf.mxu0
  %v5804 = vadd.f32 0.0, %v5803
  %5805 = vmatmul.bf16.gmra.mxu0 %v807
  %v5806 = vpop.f32.mrf.mxu0
  %v5807 = vadd.f32 0.0, %v5806
  %v5808 = vpop.f32.mrf.mxu0
  %v5809 = vadd.f32 0.0, %v5808
  %5810 = vmatmul.bf16.gmra.mxu0 %v813
  %v5811 = vpop.f32.mrf.mxu0
  %v5812 = vadd.f32 0.0, %v5811
  %v5813 = vpop.f32.mrf.mxu0
  %v5814 = vadd.f32 0.0, %v5813
  %5815 = vmatmul.bf16.gmra.mxu0 %v819
  %v5816 = vpop.f32.mrf.mxu0
  %v5817 = vadd.f32 0.0, %v5816
  %v5818 = vpop.f32.mrf.mxu0
  %v5819 = vadd.f32 0.0, %v5818
  %5820 = vmatmul.bf16.gmra.mxu0 %v825
  %v5821 = vpop.f32.mrf.mxu0
  %v5822 = vadd.f32 0.0, %v5821
  %v5823 = vpop.f32.mrf.mxu0
  %v5824 = vadd.f32 0.0, %v5823
  %5825 = vmatmul.bf16.gmra.mxu0 %v831
  %v5826 = vpop.f32.mrf.mxu0
  %v5827 = vadd.f32 0.0, %v5826
  %v5828 = vpop.f32.mrf.mxu0
  %v5829 = vadd.f32 0.0, %v5828
  %5830 = vmatmul.bf16.gmra.mxu0 %v837
  %v5831 = vpop.f32.mrf.mxu0
  %v5832 = vadd.f32 0.0, %v5831
  %v5833 = vpop.f32.mrf.mxu0
  %v5834 = vadd.f32 0.0, %v5833
  %5835 = vmatmul.bf16.gmra.mxu0 %v843
  %v5836 = vpop.f32.mrf.mxu0
  %v5837 = vadd.f32 0.0, %v5836
  %v5838 = vpop.f32.mrf.mxu0
  %v5839 = vadd.f32 0.0, %v5838
  %5840 = vmatmul.bf16.gmra.mxu0 %v849
  %v5841 = vpop.f32.mrf.mxu0
  %v5842 = vadd.f32 0.0, %v5841
  %v5843 = vpop.f32.mrf.mxu0
  %v5844 = vadd.f32 0.0, %v5843
  %5845 = vmatmul.bf16.gmra.mxu0 %v855
  %v5846 = vpop.f32.mrf.mxu0
  %v5847 = vadd.f32 0.0, %v5846
  %v5848 = vpop.f32.mrf.mxu0
  %v5849 = vadd.f32 0.0, %v5848
  %5850 = vdwg.mxu0
  %5851 = vmatpush.bf16.msra.mxu0 %v5561
  %5852 = vmatpush.bf16.msra.mxu0 %v5559
  %5853 = vmatpush.bf16.msra.mxu0 %v5557
  %5854 = vmatpush.bf16.msra.mxu0 %v5555
  %5855 = vmatpush.bf16.msra.mxu0 %v5553
  %5856 = vmatpush.bf16.msra.mxu0 %v5551
  %5857 = vmatpush.bf16.msra.mxu0 %v5549
  %5858 = vmatpush.bf16.msra.mxu0 %v5547
  %5859 = vmatmul.bf16.gmra.mxu0 %v718
  %v5860 = vpop.f32.mrf.mxu0
  %v5861 = vpop.f32.mrf.mxu0
  %v5862 = vadd.f32 %v5734, %v5861
  %5863 = vmatmul.bf16.gmra.mxu0 %v724
  %v5864 = vpop.f32.mrf.mxu0
  %v5865 = vadd.f32 %v5737, %v5864
  %v5866 = vpop.f32.mrf.mxu0
  %v5867 = vadd.f32 %v5739, %v5866
  %5868 = vmatmul.bf16.gmra.mxu0 %v730
  %v5869 = vpop.f32.mrf.mxu0
  %v5870 = vadd.f32 %v5742, %v5869
  %v5871 = vpop.f32.mrf.mxu0
  %v5872 = vadd.f32 %v5744, %v5871
  %5873 = vmatmul.bf16.gmra.mxu0 %v736
  %v5874 = vpop.f32.mrf.mxu0
  %v5875 = vadd.f32 %v5747, %v5874
  %v5876 = vpop.f32.mrf.mxu0
  %v5877 = vadd.f32 %v5749, %v5876
  %5878 = vmatmul.bf16.gmra.mxu0 %v742
  %v5879 = vpop.f32.mrf.mxu0
  %v5880 = vadd.f32 %v5752, %v5879
  %v5881 = vpop.f32.mrf.mxu0
  %v5882 = vadd.f32 %v5754, %v5881
  %5883 = vmatmul.bf16.gmra.mxu0 %v748
  %v5884 = vpop.f32.mrf.mxu0
  %v5885 = vadd.f32 %v5757, %v5884
  %v5886 = vpop.f32.mrf.mxu0
  %v5887 = vadd.f32 %v5759, %v5886
  %5888 = vmatmul.bf16.gmra.mxu0 %v754
  %v5889 = vpop.f32.mrf.mxu0
  %v5890 = vadd.f32 %v5762, %v5889
  %v5891 = vpop.f32.mrf.mxu0
  %v5892 = vadd.f32 %v5764, %v5891
  %5893 = vmatmul.bf16.gmra.mxu0 %v760
  %v5894 = vpop.f32.mrf.mxu0
  %v5895 = vadd.f32 %v5767, %v5894
  %v5896 = vpop.f32.mrf.mxu0
  %v5897 = vadd.f32 %v5769, %v5896
  %5898 = vmatmul.bf16.gmra.mxu0 %v766
  %v5899 = vpop.f32.mrf.mxu0
  %v5900 = vadd.f32 %v5772, %v5899
  %v5901 = vpop.f32.mrf.mxu0
  %v5902 = vadd.f32 %v5774, %v5901
  %5903 = vmatmul.bf16.gmra.mxu0 %v772
  %v5904 = vpop.f32.mrf.mxu0
  %v5905 = vadd.f32 %v5777, %v5904
  %v5906 = vpop.f32.mrf.mxu0
  %v5907 = vadd.f32 %v5779, %v5906
  %5908 = vmatmul.bf16.gmra.mxu0 %v778
  %v5909 = vpop.f32.mrf.mxu0
  %v5910 = vadd.f32 %v5782, %v5909
  %v5911 = vpop.f32.mrf.mxu0
  %v5912 = vadd.f32 %v5784, %v5911
  %5913 = vmatmul.bf16.gmra.mxu0 %v784
  %v5914 = vpop.f32.mrf.mxu0
  %v5915 = vadd.f32 %v5787, %v5914
  %v5916 = vpop.f32.mrf.mxu0
  %v5917 = vadd.f32 %v5789, %v5916
  %5918 = vmatmul.bf16.gmra.mxu0 %v790
  %v5919 = vpop.f32.mrf.mxu0
  %v5920 = vadd.f32 %v5792, %v5919
  %v5921 = vpop.f32.mrf.mxu0
  %v5922 = vadd.f32 %v5794, %v5921
  %5923 = vmatmul.bf16.gmra.mxu0 %v796
  %v5924 = vpop.f32.mrf.mxu0
  %v5925 = vadd.f32 %v5797, %v5924
  %v5926 = vpop.f32.mrf.mxu0
  %v5927 = vadd.f32 %v5799, %v5926
  %5928 = vmatmul.bf16.gmra.mxu0 %v802
  %v5929 = vpop.f32.mrf.mxu0
  %v5930 = vadd.f32 %v5802, %v5929
  %v5931 = vpop.f32.mrf.mxu0
  %v5932 = vadd.f32 %v5804, %v5931
  %5933 = vmatmul.bf16.gmra.mxu0 %v808
  %v5934 = vpop.f32.mrf.mxu0
  %v5935 = vadd.f32 %v5807, %v5934
  %v5936 = vpop.f32.mrf.mxu0
  %v5937 = vadd.f32 %v5809, %v5936
  %5938 = vmatmul.bf16.gmra.mxu0 %v814
  %v5939 = vpop.f32.mrf.mxu0
  %v5940 = vadd.f32 %v5812, %v5939
  %v5941 = vpop.f32.mrf.mxu0
  %v5942 = vadd.f32 %v5814, %v5941
  %5943 = vmatmul.bf16.gmra.mxu0 %v820
  %v5944 = vpop.f32.mrf.mxu0
  %v5945 = vadd.f32 %v5817, %v5944
  %v5946 = vpop.f32.mrf.mxu0
  %v5947 = vadd.f32 %v5819, %v5946
  %5948 = vmatmul.bf16.gmra.mxu0 %v826
  %v5949 = vpop.f32.mrf.mxu0
  %v5950 = vadd.f32 %v5822, %v5949
  %v5951 = vpop.f32.mrf.mxu0
  %v5952 = vadd.f32 %v5824, %v5951
  %5953 = vmatmul.bf16.gmra.mxu0 %v832
  %v5954 = vpop.f32.mrf.mxu0
  %v5955 = vadd.f32 %v5827, %v5954
  %v5956 = vpop.f32.mrf.mxu0
  %v5957 = vadd.f32 %v5829, %v5956
  %5958 = vmatmul.bf16.gmra.mxu0 %v838
  %v5959 = vpop.f32.mrf.mxu0
  %v5960 = vadd.f32 %v5832, %v5959
  %v5961 = vpop.f32.mrf.mxu0
  %v5962 = vadd.f32 %v5834, %v5961
  %5963 = vmatmul.bf16.gmra.mxu0 %v844
  %v5964 = vpop.f32.mrf.mxu0
  %v5965 = vadd.f32 %v5837, %v5964
  %v5966 = vpop.f32.mrf.mxu0
  %v5967 = vadd.f32 %v5839, %v5966
  %5968 = vmatmul.bf16.gmra.mxu0 %v850
  %v5969 = vpop.f32.mrf.mxu0
  %v5970 = vadd.f32 %v5842, %v5969
  %v5971 = vpop.f32.mrf.mxu0
  %v5972 = vadd.f32 %v5844, %v5971
  %5973 = vmatmul.bf16.gmra.mxu0 %v856
  %v5974 = vpop.f32.mrf.mxu0
  %v5975 = vadd.f32 %v5847, %v5974
  %v5976 = vpop.f32.mrf.mxu0
  %v5977 = vadd.f32 %v5849, %v5976
  %5978 = vdwg.mxu0
  %5979 = vmatpush.bf16.msra.mxu0 %v5577
  %5980 = vmatpush.bf16.msra.mxu0 %v5575
  %5981 = vmatpush.bf16.msra.mxu0 %v5573
  %5982 = vmatpush.bf16.msra.mxu0 %v5571
  %5983 = vmatpush.bf16.msra.mxu0 %v5569
  %5984 = vmatpush.bf16.msra.mxu0 %v5567
  %5985 = vmatpush.bf16.msra.mxu0 %v5565
  %5986 = vmatpush.bf16.msra.mxu0 %v5563
  %5987 = vmatmul.bf16.gmra.mxu0 %v719
  %v5988 = vpop.f32.mrf.mxu0
  %v5989 = vpop.f32.mrf.mxu0
  %v5990 = vadd.f32 %v5862, %v5989
  %5991 = vmatmul.bf16.gmra.mxu0 %v725
  %v5992 = vpop.f32.mrf.mxu0
  %v5993 = vadd.f32 %v5865, %v5992
  %v5994 = vpop.f32.mrf.mxu0
  %v5995 = vadd.f32 %v5867, %v5994
  %5996 = vmatmul.bf16.gmra.mxu0 %v731
  %v5997 = vpop.f32.mrf.mxu0
  %v5998 = vadd.f32 %v5870, %v5997
  %v5999 = vpop.f32.mrf.mxu0
  %v6000 = vadd.f32 %v5872, %v5999
  %6001 = vmatmul.bf16.gmra.mxu0 %v737
  %v6002 = vpop.f32.mrf.mxu0
  %v6003 = vadd.f32 %v5875, %v6002
  %v6004 = vpop.f32.mrf.mxu0
  %v6005 = vadd.f32 %v5877, %v6004
  %6006 = vmatmul.bf16.gmra.mxu0 %v743
  %v6007 = vpop.f32.mrf.mxu0
  %v6008 = vadd.f32 %v5880, %v6007
  %v6009 = vpop.f32.mrf.mxu0
  %v6010 = vadd.f32 %v5882, %v6009
  %6011 = vmatmul.bf16.gmra.mxu0 %v749
  %v6012 = vpop.f32.mrf.mxu0
  %v6013 = vadd.f32 %v5885, %v6012
  %v6014 = vpop.f32.mrf.mxu0
  %v6015 = vadd.f32 %v5887, %v6014
  %6016 = vmatmul.bf16.gmra.mxu0 %v755
  %v6017 = vpop.f32.mrf.mxu0
  %v6018 = vadd.f32 %v5890, %v6017
  %v6019 = vpop.f32.mrf.mxu0
  %v6020 = vadd.f32 %v5892, %v6019
  %6021 = vmatmul.bf16.gmra.mxu0 %v761
  %v6022 = vpop.f32.mrf.mxu0
  %v6023 = vadd.f32 %v5895, %v6022
  %v6024 = vpop.f32.mrf.mxu0
  %v6025 = vadd.f32 %v5897, %v6024
  %6026 = vmatmul.bf16.gmra.mxu0 %v767
  %v6027 = vpop.f32.mrf.mxu0
  %v6028 = vadd.f32 %v5900, %v6027
  %v6029 = vpop.f32.mrf.mxu0
  %v6030 = vadd.f32 %v5902, %v6029
  %6031 = vmatmul.bf16.gmra.mxu0 %v773
  %v6032 = vpop.f32.mrf.mxu0
  %v6033 = vadd.f32 %v5905, %v6032
  %v6034 = vpop.f32.mrf.mxu0
  %v6035 = vadd.f32 %v5907, %v6034
  %6036 = vmatmul.bf16.gmra.mxu0 %v779
  %v6037 = vpop.f32.mrf.mxu0
  %v6038 = vadd.f32 %v5910, %v6037
  %v6039 = vpop.f32.mrf.mxu0
  %v6040 = vadd.f32 %v5912, %v6039
  %6041 = vmatmul.bf16.gmra.mxu0 %v785
  %v6042 = vpop.f32.mrf.mxu0
  %v6043 = vadd.f32 %v5915, %v6042
  %v6044 = vpop.f32.mrf.mxu0
  %v6045 = vadd.f32 %v5917, %v6044
  %6046 = vmatmul.bf16.gmra.mxu0 %v791
  %v6047 = vpop.f32.mrf.mxu0
  %v6048 = vadd.f32 %v5920, %v6047
  %v6049 = vpop.f32.mrf.mxu0
  %v6050 = vadd.f32 %v5922, %v6049
  %6051 = vmatmul.bf16.gmra.mxu0 %v797
  %v6052 = vpop.f32.mrf.mxu0
  %v6053 = vadd.f32 %v5925, %v6052
  %v6054 = vpop.f32.mrf.mxu0
  %v6055 = vadd.f32 %v5927, %v6054
  %6056 = vmatmul.bf16.gmra.mxu0 %v803
  %v6057 = vpop.f32.mrf.mxu0
  %v6058 = vadd.f32 %v5930, %v6057
  %v6059 = vpop.f32.mrf.mxu0
  %v6060 = vadd.f32 %v5932, %v6059
  %6061 = vmatmul.bf16.gmra.mxu0 %v809
  %v6062 = vpop.f32.mrf.mxu0
  %v6063 = vadd.f32 %v5935, %v6062
  %v6064 = vpop.f32.mrf.mxu0
  %v6065 = vadd.f32 %v5937, %v6064
  %6066 = vmatmul.bf16.gmra.mxu0 %v815
  %v6067 = vpop.f32.mrf.mxu0
  %v6068 = vadd.f32 %v5940, %v6067
  %v6069 = vpop.f32.mrf.mxu0
  %v6070 = vadd.f32 %v5942, %v6069
  %6071 = vmatmul.bf16.gmra.mxu0 %v821
  %v6072 = vpop.f32.mrf.mxu0
  %v6073 = vadd.f32 %v5945, %v6072
  %v6074 = vpop.f32.mrf.mxu0
  %v6075 = vadd.f32 %v5947, %v6074
  %6076 = vmatmul.bf16.gmra.mxu0 %v827
  %v6077 = vpop.f32.mrf.mxu0
  %v6078 = vadd.f32 %v5950, %v6077
  %v6079 = vpop.f32.mrf.mxu0
  %v6080 = vadd.f32 %v5952, %v6079
  %6081 = vmatmul.bf16.gmra.mxu0 %v833
  %v6082 = vpop.f32.mrf.mxu0
  %v6083 = vadd.f32 %v5955, %v6082
  %v6084 = vpop.f32.mrf.mxu0
  %v6085 = vadd.f32 %v5957, %v6084
  %6086 = vmatmul.bf16.gmra.mxu0 %v839
  %v6087 = vpop.f32.mrf.mxu0
  %v6088 = vadd.f32 %v5960, %v6087
  %v6089 = vpop.f32.mrf.mxu0
  %v6090 = vadd.f32 %v5962, %v6089
  %6091 = vmatmul.bf16.gmra.mxu0 %v845
  %v6092 = vpop.f32.mrf.mxu0
  %v6093 = vadd.f32 %v5965, %v6092
  %v6094 = vpop.f32.mrf.mxu0
  %v6095 = vadd.f32 %v5967, %v6094
  %6096 = vmatmul.bf16.gmra.mxu0 %v851
  %v6097 = vpop.f32.mrf.mxu0
  %v6098 = vadd.f32 %v5970, %v6097
  %v6099 = vpop.f32.mrf.mxu0
  %v6100 = vadd.f32 %v5972, %v6099
  %6101 = vmatmul.bf16.gmra.mxu0 %v857
  %v6102 = vpop.f32.mrf.mxu0
  %v6103 = vadd.f32 %v5975, %v6102
  %v6104 = vpop.f32.mrf.mxu0
  %v6105 = vadd.f32 %v5977, %v6104
  %6106 = vdwg.mxu0
  %6107 = vmatpush.bf16.msra.mxu0 %v5593
  %6108 = vmatpush.bf16.msra.mxu0 %v5591
  %6109 = vmatpush.bf16.msra.mxu0 %v5589
  %6110 = vmatpush.bf16.msra.mxu0 %v5587
  %6111 = vmatpush.bf16.msra.mxu0 %v5585
  %6112 = vmatpush.bf16.msra.mxu0 %v5583
  %6113 = vmatpush.bf16.msra.mxu0 %v5581
  %6114 = vmatpush.bf16.msra.mxu0 %v5579
  %6115 = vmatmul.bf16.gmra.mxu0 %v720
  %v6116 = vpop.f32.mrf.mxu0
  %v6117 = vpop.f32.mrf.mxu0
  %v6118 = vadd.f32 %v5990, %v6117
  %6119 = vmatmul.bf16.gmra.mxu0 %v726
  %v6120 = vpop.f32.mrf.mxu0
  %v6121 = vadd.f32 %v5993, %v6120
  %v6122 = vpop.f32.mrf.mxu0
  %v6123 = vadd.f32 %v5995, %v6122
  %6124 = vmatmul.bf16.gmra.mxu0 %v732
  %v6125 = vpop.f32.mrf.mxu0
  %v6126 = vadd.f32 %v5998, %v6125
  %v6127 = vpop.f32.mrf.mxu0
  %v6128 = vadd.f32 %v6000, %v6127
  %6129 = vmatmul.bf16.gmra.mxu0 %v738
  %v6130 = vpop.f32.mrf.mxu0
  %v6131 = vadd.f32 %v6003, %v6130
  %v6132 = vpop.f32.mrf.mxu0
  %v6133 = vadd.f32 %v6005, %v6132
  %6134 = vmatmul.bf16.gmra.mxu0 %v744
  %v6135 = vpop.f32.mrf.mxu0
  %v6136 = vadd.f32 %v6008, %v6135
  %v6137 = vpop.f32.mrf.mxu0
  %v6138 = vadd.f32 %v6010, %v6137
  %6139 = vmatmul.bf16.gmra.mxu0 %v750
  %v6140 = vpop.f32.mrf.mxu0
  %v6141 = vadd.f32 %v6013, %v6140
  %v6142 = vpop.f32.mrf.mxu0
  %v6143 = vadd.f32 %v6015, %v6142
  %6144 = vmatmul.bf16.gmra.mxu0 %v756
  %v6145 = vpop.f32.mrf.mxu0
  %v6146 = vadd.f32 %v6018, %v6145
  %v6147 = vpop.f32.mrf.mxu0
  %v6148 = vadd.f32 %v6020, %v6147
  %6149 = vmatmul.bf16.gmra.mxu0 %v762
  %v6150 = vpop.f32.mrf.mxu0
  %v6151 = vadd.f32 %v6023, %v6150
  %v6152 = vpop.f32.mrf.mxu0
  %v6153 = vadd.f32 %v6025, %v6152
  %6154 = vmatmul.bf16.gmra.mxu0 %v768
  %v6155 = vpop.f32.mrf.mxu0
  %v6156 = vadd.f32 %v6028, %v6155
  %v6157 = vpop.f32.mrf.mxu0
  %v6158 = vadd.f32 %v6030, %v6157
  %6159 = vmatmul.bf16.gmra.mxu0 %v774
  %v6160 = vpop.f32.mrf.mxu0
  %v6161 = vadd.f32 %v6033, %v6160
  %v6162 = vpop.f32.mrf.mxu0
  %v6163 = vadd.f32 %v6035, %v6162
  %6164 = vmatmul.bf16.gmra.mxu0 %v780
  %v6165 = vpop.f32.mrf.mxu0
  %v6166 = vadd.f32 %v6038, %v6165
  %v6167 = vpop.f32.mrf.mxu0
  %v6168 = vadd.f32 %v6040, %v6167
  %6169 = vmatmul.bf16.gmra.mxu0 %v786
  %v6170 = vpop.f32.mrf.mxu0
  %v6171 = vadd.f32 %v6043, %v6170
  %v6172 = vpop.f32.mrf.mxu0
  %v6173 = vadd.f32 %v6045, %v6172
  %6174 = vmatmul.bf16.gmra.mxu0 %v792
  %v6175 = vpop.f32.mrf.mxu0
  %v6176 = vadd.f32 %v6048, %v6175
  %v6177 = vpop.f32.mrf.mxu0
  %v6178 = vadd.f32 %v6050, %v6177
  %6179 = vmatmul.bf16.gmra.mxu0 %v798
  %v6180 = vpop.f32.mrf.mxu0
  %v6181 = vadd.f32 %v6053, %v6180
  %v6182 = vpop.f32.mrf.mxu0
  %v6183 = vadd.f32 %v6055, %v6182
  %6184 = vmatmul.bf16.gmra.mxu0 %v804
  %v6185 = vpop.f32.mrf.mxu0
  %v6186 = vadd.f32 %v6058, %v6185
  %v6187 = vpop.f32.mrf.mxu0
  %v6188 = vadd.f32 %v6060, %v6187
  %6189 = vmatmul.bf16.gmra.mxu0 %v810
  %v6190 = vpop.f32.mrf.mxu0
  %v6191 = vadd.f32 %v6063, %v6190
  %v6192 = vpop.f32.mrf.mxu0
  %v6193 = vadd.f32 %v6065, %v6192
  %6194 = vmatmul.bf16.gmra.mxu0 %v816
  %v6195 = vpop.f32.mrf.mxu0
  %v6196 = vadd.f32 %v6068, %v6195
  %v6197 = vpop.f32.mrf.mxu0
  %v6198 = vadd.f32 %v6070, %v6197
  %6199 = vmatmul.bf16.gmra.mxu0 %v822
  %v6200 = vpop.f32.mrf.mxu0
  %v6201 = vadd.f32 %v6073, %v6200
  %v6202 = vpop.f32.mrf.mxu0
  %v6203 = vadd.f32 %v6075, %v6202
  %6204 = vmatmul.bf16.gmra.mxu0 %v828
  %v6205 = vpop.f32.mrf.mxu0
  %v6206 = vadd.f32 %v6078, %v6205
  %v6207 = vpop.f32.mrf.mxu0
  %v6208 = vadd.f32 %v6080, %v6207
  %6209 = vmatmul.bf16.gmra.mxu0 %v834
  %v6210 = vpop.f32.mrf.mxu0
  %v6211 = vadd.f32 %v6083, %v6210
  %v6212 = vpop.f32.mrf.mxu0
  %v6213 = vadd.f32 %v6085, %v6212
  %6214 = vmatmul.bf16.gmra.mxu0 %v840
  %v6215 = vpop.f32.mrf.mxu0
  %v6216 = vadd.f32 %v6088, %v6215
  %v6217 = vpop.f32.mrf.mxu0
  %v6218 = vadd.f32 %v6090, %v6217
  %6219 = vmatmul.bf16.gmra.mxu0 %v846
  %v6220 = vpop.f32.mrf.mxu0
  %v6221 = vadd.f32 %v6093, %v6220
  %v6222 = vpop.f32.mrf.mxu0
  %v6223 = vadd.f32 %v6095, %v6222
  %6224 = vmatmul.bf16.gmra.mxu0 %v852
  %v6225 = vpop.f32.mrf.mxu0
  %v6226 = vadd.f32 %v6098, %v6225
  %v6227 = vpop.f32.mrf.mxu0
  %v6228 = vadd.f32 %v6100, %v6227
  %6229 = vmatmul.bf16.gmra.mxu0 %v858
  %v6230 = vpop.f32.mrf.mxu0
  %v6231 = vadd.f32 %v6103, %v6230
  %v6232 = vpop.f32.mrf.mxu0
  %v6233 = vadd.f32 %v6105, %v6232
  %6234 = vdwg.mxu0
  %6235 = vmatpush.bf16.msra.mxu0 %v5609
  %6236 = vmatpush.bf16.msra.mxu0 %v5607
  %6237 = vmatpush.bf16.msra.mxu0 %v5605
  %6238 = vmatpush.bf16.msra.mxu0 %v5603
  %6239 = vmatpush.bf16.msra.mxu0 %v5601
  %6240 = vmatpush.bf16.msra.mxu0 %v5599
  %6241 = vmatpush.bf16.msra.mxu0 %v5597
  %6242 = vmatpush.bf16.msra.mxu0 %v5595
  %6243 = vmatmul.bf16.gmra.mxu0 %v721
  %v6244 = vpop.f32.mrf.mxu0
  %v6245 = vpop.f32.mrf.mxu0
  %v6246 = vadd.f32 %v6118, %v6245
  %6247 = vmatmul.bf16.gmra.mxu0 %v727
  %v6248 = vpop.f32.mrf.mxu0
  %v6249 = vadd.f32 %v6121, %v6248
  %v6250 = vpop.f32.mrf.mxu0
  %v6251 = vadd.f32 %v6123, %v6250
  %6252 = vmatmul.bf16.gmra.mxu0 %v733
  %v6253 = vpop.f32.mrf.mxu0
  %v6254 = vadd.f32 %v6126, %v6253
  %v6255 = vpop.f32.mrf.mxu0
  %v6256 = vadd.f32 %v6128, %v6255
  %6257 = vmatmul.bf16.gmra.mxu0 %v739
  %v6258 = vpop.f32.mrf.mxu0
  %v6259 = vadd.f32 %v6131, %v6258
  %v6260 = vpop.f32.mrf.mxu0
  %v6261 = vadd.f32 %v6133, %v6260
  %6262 = vmatmul.bf16.gmra.mxu0 %v745
  %v6263 = vpop.f32.mrf.mxu0
  %v6264 = vadd.f32 %v6136, %v6263
  %v6265 = vpop.f32.mrf.mxu0
  %v6266 = vadd.f32 %v6138, %v6265
  %6267 = vmatmul.bf16.gmra.mxu0 %v751
  %v6268 = vpop.f32.mrf.mxu0
  %v6269 = vadd.f32 %v6141, %v6268
  %v6270 = vpop.f32.mrf.mxu0
  %v6271 = vadd.f32 %v6143, %v6270
  %6272 = vmatmul.bf16.gmra.mxu0 %v757
  %v6273 = vpop.f32.mrf.mxu0
  %v6274 = vadd.f32 %v6146, %v6273
  %v6275 = vpop.f32.mrf.mxu0
  %v6276 = vadd.f32 %v6148, %v6275
  %6277 = vmatmul.bf16.gmra.mxu0 %v763
  %v6278 = vpop.f32.mrf.mxu0
  %v6279 = vadd.f32 %v6151, %v6278
  %v6280 = vpop.f32.mrf.mxu0
  %v6281 = vadd.f32 %v6153, %v6280
  %6282 = vmatmul.bf16.gmra.mxu0 %v769
  %v6283 = vpop.f32.mrf.mxu0
  %v6284 = vadd.f32 %v6156, %v6283
  %v6285 = vpop.f32.mrf.mxu0
  %v6286 = vadd.f32 %v6158, %v6285
  %6287 = vmatmul.bf16.gmra.mxu0 %v775
  %v6288 = vpop.f32.mrf.mxu0
  %v6289 = vadd.f32 %v6161, %v6288
  %v6290 = vpop.f32.mrf.mxu0
  %v6291 = vadd.f32 %v6163, %v6290
  %6292 = vmatmul.bf16.gmra.mxu0 %v781
  %v6293 = vpop.f32.mrf.mxu0
  %v6294 = vadd.f32 %v6166, %v6293
  %v6295 = vpop.f32.mrf.mxu0
  %v6296 = vadd.f32 %v6168, %v6295
  %6297 = vmatmul.bf16.gmra.mxu0 %v787
  %v6298 = vpop.f32.mrf.mxu0
  %v6299 = vadd.f32 %v6171, %v6298
  %v6300 = vpop.f32.mrf.mxu0
  %v6301 = vadd.f32 %v6173, %v6300
  %6302 = vmatmul.bf16.gmra.mxu0 %v793
  %v6303 = vpop.f32.mrf.mxu0
  %v6304 = vadd.f32 %v6176, %v6303
  %v6305 = vpop.f32.mrf.mxu0
  %v6306 = vadd.f32 %v6178, %v6305
  %6307 = vmatmul.bf16.gmra.mxu0 %v799
  %v6308 = vpop.f32.mrf.mxu0
  %v6309 = vadd.f32 %v6181, %v6308
  %v6310 = vpop.f32.mrf.mxu0
  %v6311 = vadd.f32 %v6183, %v6310
  %6312 = vmatmul.bf16.gmra.mxu0 %v805
  %v6313 = vpop.f32.mrf.mxu0
  %v6314 = vadd.f32 %v6186, %v6313
  %v6315 = vpop.f32.mrf.mxu0
  %v6316 = vadd.f32 %v6188, %v6315
  %6317 = vmatmul.bf16.gmra.mxu0 %v811
  %v6318 = vpop.f32.mrf.mxu0
  %v6319 = vadd.f32 %v6191, %v6318
  %v6320 = vpop.f32.mrf.mxu0
  %v6321 = vadd.f32 %v6193, %v6320
  %6322 = vmatmul.bf16.gmra.mxu0 %v817
  %v6323 = vpop.f32.mrf.mxu0
  %v6324 = vadd.f32 %v6196, %v6323
  %v6325 = vpop.f32.mrf.mxu0
  %v6326 = vadd.f32 %v6198, %v6325
  %6327 = vmatmul.bf16.gmra.mxu0 %v823
  %v6328 = vpop.f32.mrf.mxu0
  %v6329 = vadd.f32 %v6201, %v6328
  %v6330 = vpop.f32.mrf.mxu0
  %v6331 = vadd.f32 %v6203, %v6330
  %6332 = vmatmul.bf16.gmra.mxu0 %v829
  %v6333 = vpop.f32.mrf.mxu0
  %v6334 = vadd.f32 %v6206, %v6333
  %v6335 = vpop.f32.mrf.mxu0
  %v6336 = vadd.f32 %v6208, %v6335
  %6337 = vmatmul.bf16.gmra.mxu0 %v835
  %v6338 = vpop.f32.mrf.mxu0
  %v6339 = vadd.f32 %v6211, %v6338
  %v6340 = vpop.f32.mrf.mxu0
  %v6341 = vadd.f32 %v6213, %v6340
  %6342 = vmatmul.bf16.gmra.mxu0 %v841
  %v6343 = vpop.f32.mrf.mxu0
  %v6344 = vadd.f32 %v6216, %v6343
  %v6345 = vpop.f32.mrf.mxu0
  %v6346 = vadd.f32 %v6218, %v6345
  %6347 = vmatmul.bf16.gmra.mxu0 %v847
  %v6348 = vpop.f32.mrf.mxu0
  %v6349 = vadd.f32 %v6221, %v6348
  %v6350 = vpop.f32.mrf.mxu0
  %v6351 = vadd.f32 %v6223, %v6350
  %6352 = vmatmul.bf16.gmra.mxu0 %v853
  %v6353 = vpop.f32.mrf.mxu0
  %v6354 = vadd.f32 %v6226, %v6353
  %v6355 = vpop.f32.mrf.mxu0
  %v6356 = vadd.f32 %v6228, %v6355
  %6357 = vmatmul.bf16.gmra.mxu0 %v859
  %v6358 = vpop.f32.mrf.mxu0
  %v6359 = vadd.f32 %v6231, %v6358
  %v6360 = vpop.f32.mrf.mxu0
  %v6361 = vadd.f32 %v6233, %v6360
  %6362 = vdwg.mxu0
  %6363 = vmatpush.bf16.msra.mxu0 %v5625
  %6364 = vmatpush.bf16.msra.mxu0 %v5623
  %6365 = vmatpush.bf16.msra.mxu0 %v5621
  %6366 = vmatpush.bf16.msra.mxu0 %v5619
  %6367 = vmatpush.bf16.msra.mxu0 %v5617
  %6368 = vmatpush.bf16.msra.mxu0 %v5615
  %6369 = vmatpush.bf16.msra.mxu0 %v5613
  %6370 = vmatpush.bf16.msra.mxu0 %v5611
  %6371 = vmatmul.bf16.gmra.mxu0 %v722
  %v6372 = vpop.f32.mrf.mxu0
  %v6373 = vpop.f32.mrf.mxu0
  %v6374 = vadd.f32 %v6246, %v6373
  %6375 = vmatmul.bf16.gmra.mxu0 %v728
  %v6376 = vpop.f32.mrf.mxu0
  %v6377 = vadd.f32 %v6249, %v6376
  %v6378 = vpop.f32.mrf.mxu0
  %v6379 = vadd.f32 %v6251, %v6378
  %6380 = vmatmul.bf16.gmra.mxu0 %v734
  %v6381 = vpop.f32.mrf.mxu0
  %v6382 = vadd.f32 %v6254, %v6381
  %v6383 = vpop.f32.mrf.mxu0
  %v6384 = vadd.f32 %v6256, %v6383
  %6385 = vmatmul.bf16.gmra.mxu0 %v740
  %v6386 = vpop.f32.mrf.mxu0
  %v6387 = vadd.f32 %v6259, %v6386
  %v6388 = vpop.f32.mrf.mxu0
  %v6389 = vadd.f32 %v6261, %v6388
  %6390 = vmatmul.bf16.gmra.mxu0 %v746
  %v6391 = vpop.f32.mrf.mxu0
  %v6392 = vadd.f32 %v6264, %v6391
  %v6393 = vpop.f32.mrf.mxu0
  %v6394 = vadd.f32 %v6266, %v6393
  %6395 = vmatmul.bf16.gmra.mxu0 %v752
  %v6396 = vpop.f32.mrf.mxu0
  %v6397 = vadd.f32 %v6269, %v6396
  %v6398 = vpop.f32.mrf.mxu0
  %v6399 = vadd.f32 %v6271, %v6398
  %6400 = vmatmul.bf16.gmra.mxu0 %v758
  %v6401 = vpop.f32.mrf.mxu0
  %v6402 = vadd.f32 %v6274, %v6401
  %v6403 = vpop.f32.mrf.mxu0
  %v6404 = vadd.f32 %v6276, %v6403
  %6405 = vmatmul.bf16.gmra.mxu0 %v764
  %v6406 = vpop.f32.mrf.mxu0
  %v6407 = vadd.f32 %v6279, %v6406
  %v6408 = vpop.f32.mrf.mxu0
  %v6409 = vadd.f32 %v6281, %v6408
  %6410 = vmatmul.bf16.gmra.mxu0 %v770
  %v6411 = vpop.f32.mrf.mxu0
  %v6412 = vadd.f32 %v6284, %v6411
  %v6413 = vpop.f32.mrf.mxu0
  %v6414 = vadd.f32 %v6286, %v6413
  %6415 = vmatmul.bf16.gmra.mxu0 %v776
  %v6416 = vpop.f32.mrf.mxu0
  %v6417 = vadd.f32 %v6289, %v6416
  %v6418 = vpop.f32.mrf.mxu0
  %v6419 = vadd.f32 %v6291, %v6418
  %6420 = vmatmul.bf16.gmra.mxu0 %v782
  %v6421 = vpop.f32.mrf.mxu0
  %v6422 = vadd.f32 %v6294, %v6421
  %v6423 = vpop.f32.mrf.mxu0
  %v6424 = vadd.f32 %v6296, %v6423
  %6425 = vmatmul.bf16.gmra.mxu0 %v788
  %v6426 = vpop.f32.mrf.mxu0
  %v6427 = vadd.f32 %v6299, %v6426
  %v6428 = vpop.f32.mrf.mxu0
  %v6429 = vadd.f32 %v6301, %v6428
  %6430 = vmatmul.bf16.gmra.mxu0 %v794
  %v6431 = vpop.f32.mrf.mxu0
  %v6432 = vadd.f32 %v6304, %v6431
  %v6433 = vpop.f32.mrf.mxu0
  %v6434 = vadd.f32 %v6306, %v6433
  %6435 = vmatmul.bf16.gmra.mxu0 %v800
  %v6436 = vpop.f32.mrf.mxu0
  %v6437 = vadd.f32 %v6309, %v6436
  %v6438 = vpop.f32.mrf.mxu0
  %v6439 = vadd.f32 %v6311, %v6438
  %6440 = vmatmul.bf16.gmra.mxu0 %v806
  %v6441 = vpop.f32.mrf.mxu0
  %v6442 = vadd.f32 %v6314, %v6441
  %v6443 = vpop.f32.mrf.mxu0
  %v6444 = vadd.f32 %v6316, %v6443
  %6445 = vmatmul.bf16.gmra.mxu0 %v812
  %v6446 = vpop.f32.mrf.mxu0
  %v6447 = vadd.f32 %v6319, %v6446
  %v6448 = vpop.f32.mrf.mxu0
  %v6449 = vadd.f32 %v6321, %v6448
  %6450 = vmatmul.bf16.gmra.mxu0 %v818
  %v6451 = vpop.f32.mrf.mxu0
  %v6452 = vadd.f32 %v6324, %v6451
  %v6453 = vpop.f32.mrf.mxu0
  %v6454 = vadd.f32 %v6326, %v6453
  %6455 = vmatmul.bf16.gmra.mxu0 %v824
  %v6456 = vpop.f32.mrf.mxu0
  %v6457 = vadd.f32 %v6329, %v6456
  %v6458 = vpop.f32.mrf.mxu0
  %v6459 = vadd.f32 %v6331, %v6458
  %6460 = vmatmul.bf16.gmra.mxu0 %v830
  %v6461 = vpop.f32.mrf.mxu0
  %v6462 = vadd.f32 %v6334, %v6461
  %v6463 = vpop.f32.mrf.mxu0
  %v6464 = vadd.f32 %v6336, %v6463
  %6465 = vmatmul.bf16.gmra.mxu0 %v836
  %v6466 = vpop.f32.mrf.mxu0
  %v6467 = vadd.f32 %v6339, %v6466
  %v6468 = vpop.f32.mrf.mxu0
  %v6469 = vadd.f32 %v6341, %v6468
  %6470 = vmatmul.bf16.gmra.mxu0 %v842
  %v6471 = vpop.f32.mrf.mxu0
  %v6472 = vadd.f32 %v6344, %v6471
  %v6473 = vpop.f32.mrf.mxu0
  %v6474 = vadd.f32 %v6346, %v6473
  %6475 = vmatmul.bf16.gmra.mxu0 %v848
  %v6476 = vpop.f32.mrf.mxu0
  %v6477 = vadd.f32 %v6349, %v6476
  %v6478 = vpop.f32.mrf.mxu0
  %v6479 = vadd.f32 %v6351, %v6478
  %6480 = vmatmul.bf16.gmra.mxu0 %v854
  %v6481 = vpop.f32.mrf.mxu0
  %v6482 = vadd.f32 %v6354, %v6481
  %v6483 = vpop.f32.mrf.mxu0
  %v6484 = vadd.f32 %v6356, %v6483
  %6485 = vmatmul.bf16.gmra.mxu0 %v860
  %v6486 = vpop.f32.mrf.mxu0
  %v6487 = vadd.f32 %v6359, %v6486
  %v6488 = vpop.f32.mrf.mxu0
  %v6489 = vadd.f32 %v6361, %v6488
  %6490 = vdwg.mxu0
  %6491 = vmatpush.bf16.msra.mxu0 %v5546
  %6492 = vmatpush.bf16.msra.mxu0 %v5544
  %6493 = vmatpush.bf16.msra.mxu0 %v5542
  %6494 = vmatpush.bf16.msra.mxu0 %v5540
  %6495 = vmatpush.bf16.msra.mxu0 %v5538
  %6496 = vmatpush.bf16.msra.mxu0 %v5536
  %6497 = vmatpush.bf16.msra.mxu0 %v5534
  %6498 = vmatpush.bf16.msra.mxu0 %v5532
  %6499 = vmatmul.bf16.gmra.mxu0 %v717
  %v6500 = vpop.f32.mrf.mxu0
  %v6501 = vpop.f32.mrf.mxu0
  %v6502 = vadd.f32 0.0, %v6501
  %6503 = vmatmul.bf16.gmra.mxu0 %v723
  %v6504 = vpop.f32.mrf.mxu0
  %v6505 = vadd.f32 0.0, %v6504
  %v6506 = vpop.f32.mrf.mxu0
  %v6507 = vadd.f32 0.0, %v6506
  %6508 = vmatmul.bf16.gmra.mxu0 %v729
  %v6509 = vpop.f32.mrf.mxu0
  %v6510 = vadd.f32 0.0, %v6509
  %v6511 = vpop.f32.mrf.mxu0
  %v6512 = vadd.f32 0.0, %v6511
  %6513 = vmatmul.bf16.gmra.mxu0 %v735
  %v6514 = vpop.f32.mrf.mxu0
  %v6515 = vadd.f32 0.0, %v6514
  %v6516 = vpop.f32.mrf.mxu0
  %v6517 = vadd.f32 0.0, %v6516
  %6518 = vmatmul.bf16.gmra.mxu0 %v741
  %v6519 = vpop.f32.mrf.mxu0
  %v6520 = vadd.f32 0.0, %v6519
  %v6521 = vpop.f32.mrf.mxu0
  %v6522 = vadd.f32 0.0, %v6521
  %6523 = vmatmul.bf16.gmra.mxu0 %v747
  %v6524 = vpop.f32.mrf.mxu0
  %v6525 = vadd.f32 0.0, %v6524
  %v6526 = vpop.f32.mrf.mxu0
  %v6527 = vadd.f32 0.0, %v6526
  %6528 = vmatmul.bf16.gmra.mxu0 %v753
  %v6529 = vpop.f32.mrf.mxu0
  %v6530 = vadd.f32 0.0, %v6529
  %v6531 = vpop.f32.mrf.mxu0
  %v6532 = vadd.f32 0.0, %v6531
  %6533 = vmatmul.bf16.gmra.mxu0 %v759
  %v6534 = vpop.f32.mrf.mxu0
  %v6535 = vadd.f32 0.0, %v6534
  %v6536 = vpop.f32.mrf.mxu0
  %v6537 = vadd.f32 0.0, %v6536
  %6538 = vmatmul.bf16.gmra.mxu0 %v765
  %v6539 = vpop.f32.mrf.mxu0
  %v6540 = vadd.f32 0.0, %v6539
  %v6541 = vpop.f32.mrf.mxu0
  %v6542 = vadd.f32 0.0, %v6541
  %6543 = vmatmul.bf16.gmra.mxu0 %v771
  %v6544 = vpop.f32.mrf.mxu0
  %v6545 = vadd.f32 0.0, %v6544
  %v6546 = vpop.f32.mrf.mxu0
  %v6547 = vadd.f32 0.0, %v6546
  %6548 = vmatmul.bf16.gmra.mxu0 %v777
  %v6549 = vpop.f32.mrf.mxu0
  %v6550 = vadd.f32 0.0, %v6549
  %v6551 = vpop.f32.mrf.mxu0
  %v6552 = vadd.f32 0.0, %v6551
  %6553 = vmatmul.bf16.gmra.mxu0 %v783
  %v6554 = vpop.f32.mrf.mxu0
  %v6555 = vadd.f32 0.0, %v6554
  %v6556 = vpop.f32.mrf.mxu0
  %v6557 = vadd.f32 0.0, %v6556
  %6558 = vmatmul.bf16.gmra.mxu0 %v789
  %v6559 = vpop.f32.mrf.mxu0
  %v6560 = vadd.f32 0.0, %v6559
  %v6561 = vpop.f32.mrf.mxu0
  %v6562 = vadd.f32 0.0, %v6561
  %6563 = vmatmul.bf16.gmra.mxu0 %v795
  %v6564 = vpop.f32.mrf.mxu0
  %v6565 = vadd.f32 0.0, %v6564
  %v6566 = vpop.f32.mrf.mxu0
  %v6567 = vadd.f32 0.0, %v6566
  %6568 = vmatmul.bf16.gmra.mxu0 %v801
  %v6569 = vpop.f32.mrf.mxu0
  %v6570 = vadd.f32 0.0, %v6569
  %v6571 = vpop.f32.mrf.mxu0
  %v6572 = vadd.f32 0.0, %v6571
  %6573 = vmatmul.bf16.gmra.mxu0 %v807
  %v6574 = vpop.f32.mrf.mxu0
  %v6575 = vadd.f32 0.0, %v6574
  %v6576 = vpop.f32.mrf.mxu0
  %v6577 = vadd.f32 0.0, %v6576
  %6578 = vmatmul.bf16.gmra.mxu0 %v813
  %v6579 = vpop.f32.mrf.mxu0
  %v6580 = vadd.f32 0.0, %v6579
  %v6581 = vpop.f32.mrf.mxu0
  %v6582 = vadd.f32 0.0, %v6581
  %6583 = vmatmul.bf16.gmra.mxu0 %v819
  %v6584 = vpop.f32.mrf.mxu0
  %v6585 = vadd.f32 0.0, %v6584
  %v6586 = vpop.f32.mrf.mxu0
  %v6587 = vadd.f32 0.0, %v6586
  %6588 = vmatmul.bf16.gmra.mxu0 %v825
  %v6589 = vpop.f32.mrf.mxu0
  %v6590 = vadd.f32 0.0, %v6589
  %v6591 = vpop.f32.mrf.mxu0
  %v6592 = vadd.f32 0.0, %v6591
  %6593 = vmatmul.bf16.gmra.mxu0 %v831
  %v6594 = vpop.f32.mrf.mxu0
  %v6595 = vadd.f32 0.0, %v6594
  %v6596 = vpop.f32.mrf.mxu0
  %v6597 = vadd.f32 0.0, %v6596
  %6598 = vmatmul.bf16.gmra.mxu0 %v837
  %v6599 = vpop.f32.mrf.mxu0
  %v6600 = vadd.f32 0.0, %v6599
  %v6601 = vpop.f32.mrf.mxu0
  %v6602 = vadd.f32 0.0, %v6601
  %6603 = vmatmul.bf16.gmra.mxu0 %v843
  %v6604 = vpop.f32.mrf.mxu0
  %v6605 = vadd.f32 0.0, %v6604
  %v6606 = vpop.f32.mrf.mxu0
  %v6607 = vadd.f32 0.0, %v6606
  %6608 = vmatmul.bf16.gmra.mxu0 %v849
  %v6609 = vpop.f32.mrf.mxu0
  %v6610 = vadd.f32 0.0, %v6609
  %v6611 = vpop.f32.mrf.mxu0
  %v6612 = vadd.f32 0.0, %v6611
  %6613 = vmatmul.bf16.gmra.mxu0 %v855
  %v6614 = vpop.f32.mrf.mxu0
  %v6615 = vadd.f32 0.0, %v6614
  %v6616 = vpop.f32.mrf.mxu0
  %v6617 = vadd.f32 0.0, %v6616
  %6618 = vdwg.mxu0
  %6619 = vmatpush.bf16.msra.mxu0 %v5562
  %6620 = vmatpush.bf16.msra.mxu0 %v5560
  %6621 = vmatpush.bf16.msra.mxu0 %v5558
  %6622 = vmatpush.bf16.msra.mxu0 %v5556
  %6623 = vmatpush.bf16.msra.mxu0 %v5554
  %6624 = vmatpush.bf16.msra.mxu0 %v5552
  %6625 = vmatpush.bf16.msra.mxu0 %v5550
  %6626 = vmatpush.bf16.msra.mxu0 %v5548
  %6627 = vmatmul.bf16.gmra.mxu0 %v718
  %v6628 = vpop.f32.mrf.mxu0
  %v6629 = vpop.f32.mrf.mxu0
  %v6630 = vadd.f32 %v6502, %v6629
  %6631 = vmatmul.bf16.gmra.mxu0 %v724
  %v6632 = vpop.f32.mrf.mxu0
  %v6633 = vadd.f32 %v6505, %v6632
  %v6634 = vpop.f32.mrf.mxu0
  %v6635 = vadd.f32 %v6507, %v6634
  %6636 = vmatmul.bf16.gmra.mxu0 %v730
  %v6637 = vpop.f32.mrf.mxu0
  %v6638 = vadd.f32 %v6510, %v6637
  %v6639 = vpop.f32.mrf.mxu0
  %v6640 = vadd.f32 %v6512, %v6639
  %6641 = vmatmul.bf16.gmra.mxu0 %v736
  %v6642 = vpop.f32.mrf.mxu0
  %v6643 = vadd.f32 %v6515, %v6642
  %v6644 = vpop.f32.mrf.mxu0
  %v6645 = vadd.f32 %v6517, %v6644
  %6646 = vmatmul.bf16.gmra.mxu0 %v742
  %v6647 = vpop.f32.mrf.mxu0
  %v6648 = vadd.f32 %v6520, %v6647
  %v6649 = vpop.f32.mrf.mxu0
  %v6650 = vadd.f32 %v6522, %v6649
  %6651 = vmatmul.bf16.gmra.mxu0 %v748
  %v6652 = vpop.f32.mrf.mxu0
  %v6653 = vadd.f32 %v6525, %v6652
  %v6654 = vpop.f32.mrf.mxu0
  %v6655 = vadd.f32 %v6527, %v6654
  %6656 = vmatmul.bf16.gmra.mxu0 %v754
  %v6657 = vpop.f32.mrf.mxu0
  %v6658 = vadd.f32 %v6530, %v6657
  %v6659 = vpop.f32.mrf.mxu0
  %v6660 = vadd.f32 %v6532, %v6659
  %6661 = vmatmul.bf16.gmra.mxu0 %v760
  %v6662 = vpop.f32.mrf.mxu0
  %v6663 = vadd.f32 %v6535, %v6662
  %v6664 = vpop.f32.mrf.mxu0
  %v6665 = vadd.f32 %v6537, %v6664
  %6666 = vmatmul.bf16.gmra.mxu0 %v766
  %v6667 = vpop.f32.mrf.mxu0
  %v6668 = vadd.f32 %v6540, %v6667
  %v6669 = vpop.f32.mrf.mxu0
  %v6670 = vadd.f32 %v6542, %v6669
  %6671 = vmatmul.bf16.gmra.mxu0 %v772
  %v6672 = vpop.f32.mrf.mxu0
  %v6673 = vadd.f32 %v6545, %v6672
  %v6674 = vpop.f32.mrf.mxu0
  %v6675 = vadd.f32 %v6547, %v6674
  %6676 = vmatmul.bf16.gmra.mxu0 %v778
  %v6677 = vpop.f32.mrf.mxu0
  %v6678 = vadd.f32 %v6550, %v6677
  %v6679 = vpop.f32.mrf.mxu0
  %v6680 = vadd.f32 %v6552, %v6679
  %6681 = vmatmul.bf16.gmra.mxu0 %v784
  %v6682 = vpop.f32.mrf.mxu0
  %v6683 = vadd.f32 %v6555, %v6682
  %v6684 = vpop.f32.mrf.mxu0
  %v6685 = vadd.f32 %v6557, %v6684
  %6686 = vmatmul.bf16.gmra.mxu0 %v790
  %v6687 = vpop.f32.mrf.mxu0
  %v6688 = vadd.f32 %v6560, %v6687
  %v6689 = vpop.f32.mrf.mxu0
  %v6690 = vadd.f32 %v6562, %v6689
  %6691 = vmatmul.bf16.gmra.mxu0 %v796
  %v6692 = vpop.f32.mrf.mxu0
  %v6693 = vadd.f32 %v6565, %v6692
  %v6694 = vpop.f32.mrf.mxu0
  %v6695 = vadd.f32 %v6567, %v6694
  %6696 = vmatmul.bf16.gmra.mxu0 %v802
  %v6697 = vpop.f32.mrf.mxu0
  %v6698 = vadd.f32 %v6570, %v6697
  %v6699 = vpop.f32.mrf.mxu0
  %v6700 = vadd.f32 %v6572, %v6699
  %6701 = vmatmul.bf16.gmra.mxu0 %v808
  %v6702 = vpop.f32.mrf.mxu0
  %v6703 = vadd.f32 %v6575, %v6702
  %v6704 = vpop.f32.mrf.mxu0
  %v6705 = vadd.f32 %v6577, %v6704
  %6706 = vmatmul.bf16.gmra.mxu0 %v814
  %v6707 = vpop.f32.mrf.mxu0
  %v6708 = vadd.f32 %v6580, %v6707
  %v6709 = vpop.f32.mrf.mxu0
  %v6710 = vadd.f32 %v6582, %v6709
  %6711 = vmatmul.bf16.gmra.mxu0 %v820
  %v6712 = vpop.f32.mrf.mxu0
  %v6713 = vadd.f32 %v6585, %v6712
  %v6714 = vpop.f32.mrf.mxu0
  %v6715 = vadd.f32 %v6587, %v6714
  %6716 = vmatmul.bf16.gmra.mxu0 %v826
  %v6717 = vpop.f32.mrf.mxu0
  %v6718 = vadd.f32 %v6590, %v6717
  %v6719 = vpop.f32.mrf.mxu0
  %v6720 = vadd.f32 %v6592, %v6719
  %6721 = vmatmul.bf16.gmra.mxu0 %v832
  %v6722 = vpop.f32.mrf.mxu0
  %v6723 = vadd.f32 %v6595, %v6722
  %v6724 = vpop.f32.mrf.mxu0
  %v6725 = vadd.f32 %v6597, %v6724
  %6726 = vmatmul.bf16.gmra.mxu0 %v838
  %v6727 = vpop.f32.mrf.mxu0
  %v6728 = vadd.f32 %v6600, %v6727
  %v6729 = vpop.f32.mrf.mxu0
  %v6730 = vadd.f32 %v6602, %v6729
  %6731 = vmatmul.bf16.gmra.mxu0 %v844
  %v6732 = vpop.f32.mrf.mxu0
  %v6733 = vadd.f32 %v6605, %v6732
  %v6734 = vpop.f32.mrf.mxu0
  %v6735 = vadd.f32 %v6607, %v6734
  %6736 = vmatmul.bf16.gmra.mxu0 %v850
  %v6737 = vpop.f32.mrf.mxu0
  %v6738 = vadd.f32 %v6610, %v6737
  %v6739 = vpop.f32.mrf.mxu0
  %v6740 = vadd.f32 %v6612, %v6739
  %6741 = vmatmul.bf16.gmra.mxu0 %v856
  %v6742 = vpop.f32.mrf.mxu0
  %v6743 = vadd.f32 %v6615, %v6742
  %v6744 = vpop.f32.mrf.mxu0
  %v6745 = vadd.f32 %v6617, %v6744
  %6746 = vdwg.mxu0
  %6747 = vmatpush.bf16.msra.mxu0 %v5578
  %6748 = vmatpush.bf16.msra.mxu0 %v5576
  %6749 = vmatpush.bf16.msra.mxu0 %v5574
  %6750 = vmatpush.bf16.msra.mxu0 %v5572
  %6751 = vmatpush.bf16.msra.mxu0 %v5570
  %6752 = vmatpush.bf16.msra.mxu0 %v5568
  %6753 = vmatpush.bf16.msra.mxu0 %v5566
  %6754 = vmatpush.bf16.msra.mxu0 %v5564
  %6755 = vmatmul.bf16.gmra.mxu0 %v719
  %v6756 = vpop.f32.mrf.mxu0
  %v6757 = vpop.f32.mrf.mxu0
  %v6758 = vadd.f32 %v6630, %v6757
  %6759 = vmatmul.bf16.gmra.mxu0 %v725
  %v6760 = vpop.f32.mrf.mxu0
  %v6761 = vadd.f32 %v6633, %v6760
  %v6762 = vpop.f32.mrf.mxu0
  %v6763 = vadd.f32 %v6635, %v6762
  %6764 = vmatmul.bf16.gmra.mxu0 %v731
  %v6765 = vpop.f32.mrf.mxu0
  %v6766 = vadd.f32 %v6638, %v6765
  %v6767 = vpop.f32.mrf.mxu0
  %v6768 = vadd.f32 %v6640, %v6767
  %6769 = vmatmul.bf16.gmra.mxu0 %v737
  %v6770 = vpop.f32.mrf.mxu0
  %v6771 = vadd.f32 %v6643, %v6770
  %v6772 = vpop.f32.mrf.mxu0
  %v6773 = vadd.f32 %v6645, %v6772
  %6774 = vmatmul.bf16.gmra.mxu0 %v743
  %v6775 = vpop.f32.mrf.mxu0
  %v6776 = vadd.f32 %v6648, %v6775
  %v6777 = vpop.f32.mrf.mxu0
  %v6778 = vadd.f32 %v6650, %v6777
  %6779 = vmatmul.bf16.gmra.mxu0 %v749
  %v6780 = vpop.f32.mrf.mxu0
  %v6781 = vadd.f32 %v6653, %v6780
  %v6782 = vpop.f32.mrf.mxu0
  %v6783 = vadd.f32 %v6655, %v6782
  %6784 = vmatmul.bf16.gmra.mxu0 %v755
  %v6785 = vpop.f32.mrf.mxu0
  %v6786 = vadd.f32 %v6658, %v6785
  %v6787 = vpop.f32.mrf.mxu0
  %v6788 = vadd.f32 %v6660, %v6787
  %6789 = vmatmul.bf16.gmra.mxu0 %v761
  %v6790 = vpop.f32.mrf.mxu0
  %v6791 = vadd.f32 %v6663, %v6790
  %v6792 = vpop.f32.mrf.mxu0
  %v6793 = vadd.f32 %v6665, %v6792
  %6794 = vmatmul.bf16.gmra.mxu0 %v767
  %v6795 = vpop.f32.mrf.mxu0
  %v6796 = vadd.f32 %v6668, %v6795
  %v6797 = vpop.f32.mrf.mxu0
  %v6798 = vadd.f32 %v6670, %v6797
  %6799 = vmatmul.bf16.gmra.mxu0 %v773
  %v6800 = vpop.f32.mrf.mxu0
  %v6801 = vadd.f32 %v6673, %v6800
  %v6802 = vpop.f32.mrf.mxu0
  %v6803 = vadd.f32 %v6675, %v6802
  %6804 = vmatmul.bf16.gmra.mxu0 %v779
  %v6805 = vpop.f32.mrf.mxu0
  %v6806 = vadd.f32 %v6678, %v6805
  %v6807 = vpop.f32.mrf.mxu0
  %v6808 = vadd.f32 %v6680, %v6807
  %6809 = vmatmul.bf16.gmra.mxu0 %v785
  %v6810 = vpop.f32.mrf.mxu0
  %v6811 = vadd.f32 %v6683, %v6810
  %v6812 = vpop.f32.mrf.mxu0
  %v6813 = vadd.f32 %v6685, %v6812
  %6814 = vmatmul.bf16.gmra.mxu0 %v791
  %v6815 = vpop.f32.mrf.mxu0
  %v6816 = vadd.f32 %v6688, %v6815
  %v6817 = vpop.f32.mrf.mxu0
  %v6818 = vadd.f32 %v6690, %v6817
  %6819 = vmatmul.bf16.gmra.mxu0 %v797
  %v6820 = vpop.f32.mrf.mxu0
  %v6821 = vadd.f32 %v6693, %v6820
  %v6822 = vpop.f32.mrf.mxu0
  %v6823 = vadd.f32 %v6695, %v6822
  %6824 = vmatmul.bf16.gmra.mxu0 %v803
  %v6825 = vpop.f32.mrf.mxu0
  %v6826 = vadd.f32 %v6698, %v6825
  %v6827 = vpop.f32.mrf.mxu0
  %v6828 = vadd.f32 %v6700, %v6827
  %6829 = vmatmul.bf16.gmra.mxu0 %v809
  %v6830 = vpop.f32.mrf.mxu0
  %v6831 = vadd.f32 %v6703, %v6830
  %v6832 = vpop.f32.mrf.mxu0
  %v6833 = vadd.f32 %v6705, %v6832
  %6834 = vmatmul.bf16.gmra.mxu0 %v815
  %v6835 = vpop.f32.mrf.mxu0
  %v6836 = vadd.f32 %v6708, %v6835
  %v6837 = vpop.f32.mrf.mxu0
  %v6838 = vadd.f32 %v6710, %v6837
  %6839 = vmatmul.bf16.gmra.mxu0 %v821
  %v6840 = vpop.f32.mrf.mxu0
  %v6841 = vadd.f32 %v6713, %v6840
  %v6842 = vpop.f32.mrf.mxu0
  %v6843 = vadd.f32 %v6715, %v6842
  %6844 = vmatmul.bf16.gmra.mxu0 %v827
  %v6845 = vpop.f32.mrf.mxu0
  %v6846 = vadd.f32 %v6718, %v6845
  %v6847 = vpop.f32.mrf.mxu0
  %v6848 = vadd.f32 %v6720, %v6847
  %6849 = vmatmul.bf16.gmra.mxu0 %v833
  %v6850 = vpop.f32.mrf.mxu0
  %v6851 = vadd.f32 %v6723, %v6850
  %v6852 = vpop.f32.mrf.mxu0
  %v6853 = vadd.f32 %v6725, %v6852
  %6854 = vmatmul.bf16.gmra.mxu0 %v839
  %v6855 = vpop.f32.mrf.mxu0
  %v6856 = vadd.f32 %v6728, %v6855
  %v6857 = vpop.f32.mrf.mxu0
  %v6858 = vadd.f32 %v6730, %v6857
  %6859 = vmatmul.bf16.gmra.mxu0 %v845
  %v6860 = vpop.f32.mrf.mxu0
  %v6861 = vadd.f32 %v6733, %v6860
  %v6862 = vpop.f32.mrf.mxu0
  %v6863 = vadd.f32 %v6735, %v6862
  %6864 = vmatmul.bf16.gmra.mxu0 %v851
  %v6865 = vpop.f32.mrf.mxu0
  %v6866 = vadd.f32 %v6738, %v6865
  %v6867 = vpop.f32.mrf.mxu0
  %v6868 = vadd.f32 %v6740, %v6867
  %6869 = vmatmul.bf16.gmra.mxu0 %v857
  %v6870 = vpop.f32.mrf.mxu0
  %v6871 = vadd.f32 %v6743, %v6870
  %v6872 = vpop.f32.mrf.mxu0
  %v6873 = vadd.f32 %v6745, %v6872
  %6874 = vdwg.mxu0
  %6875 = vmatpush.bf16.msra.mxu0 %v5594
  %6876 = vmatpush.bf16.msra.mxu0 %v5592
  %6877 = vmatpush.bf16.msra.mxu0 %v5590
  %6878 = vmatpush.bf16.msra.mxu0 %v5588
  %6879 = vmatpush.bf16.msra.mxu0 %v5586
  %6880 = vmatpush.bf16.msra.mxu0 %v5584
  %6881 = vmatpush.bf16.msra.mxu0 %v5582
  %6882 = vmatpush.bf16.msra.mxu0 %v5580
  %6883 = vmatmul.bf16.gmra.mxu0 %v720
  %v6884 = vpop.f32.mrf.mxu0
  %v6885 = vpop.f32.mrf.mxu0
  %v6886 = vadd.f32 %v6758, %v6885
  %6887 = vmatmul.bf16.gmra.mxu0 %v726
  %v6888 = vpop.f32.mrf.mxu0
  %v6889 = vadd.f32 %v6761, %v6888
  %v6890 = vpop.f32.mrf.mxu0
  %v6891 = vadd.f32 %v6763, %v6890
  %6892 = vmatmul.bf16.gmra.mxu0 %v732
  %v6893 = vpop.f32.mrf.mxu0
  %v6894 = vadd.f32 %v6766, %v6893
  %v6895 = vpop.f32.mrf.mxu0
  %v6896 = vadd.f32 %v6768, %v6895
  %6897 = vmatmul.bf16.gmra.mxu0 %v738
  %v6898 = vpop.f32.mrf.mxu0
  %v6899 = vadd.f32 %v6771, %v6898
  %v6900 = vpop.f32.mrf.mxu0
  %v6901 = vadd.f32 %v6773, %v6900
  %6902 = vmatmul.bf16.gmra.mxu0 %v744
  %v6903 = vpop.f32.mrf.mxu0
  %v6904 = vadd.f32 %v6776, %v6903
  %v6905 = vpop.f32.mrf.mxu0
  %v6906 = vadd.f32 %v6778, %v6905
  %6907 = vmatmul.bf16.gmra.mxu0 %v750
  %v6908 = vpop.f32.mrf.mxu0
  %v6909 = vadd.f32 %v6781, %v6908
  %v6910 = vpop.f32.mrf.mxu0
  %v6911 = vadd.f32 %v6783, %v6910
  %6912 = vmatmul.bf16.gmra.mxu0 %v756
  %v6913 = vpop.f32.mrf.mxu0
  %v6914 = vadd.f32 %v6786, %v6913
  %v6915 = vpop.f32.mrf.mxu0
  %v6916 = vadd.f32 %v6788, %v6915
  %6917 = vmatmul.bf16.gmra.mxu0 %v762
  %v6918 = vpop.f32.mrf.mxu0
  %v6919 = vadd.f32 %v6791, %v6918
  %v6920 = vpop.f32.mrf.mxu0
  %v6921 = vadd.f32 %v6793, %v6920
  %6922 = vmatmul.bf16.gmra.mxu0 %v768
  %v6923 = vpop.f32.mrf.mxu0
  %v6924 = vadd.f32 %v6796, %v6923
  %v6925 = vpop.f32.mrf.mxu0
  %v6926 = vadd.f32 %v6798, %v6925
  %6927 = vmatmul.bf16.gmra.mxu0 %v774
  %v6928 = vpop.f32.mrf.mxu0
  %v6929 = vadd.f32 %v6801, %v6928
  %v6930 = vpop.f32.mrf.mxu0
  %v6931 = vadd.f32 %v6803, %v6930
  %6932 = vmatmul.bf16.gmra.mxu0 %v780
  %v6933 = vpop.f32.mrf.mxu0
  %v6934 = vadd.f32 %v6806, %v6933
  %v6935 = vpop.f32.mrf.mxu0
  %v6936 = vadd.f32 %v6808, %v6935
  %6937 = vmatmul.bf16.gmra.mxu0 %v786
  %v6938 = vpop.f32.mrf.mxu0
  %v6939 = vadd.f32 %v6811, %v6938
  %v6940 = vpop.f32.mrf.mxu0
  %v6941 = vadd.f32 %v6813, %v6940
  %6942 = vmatmul.bf16.gmra.mxu0 %v792
  %v6943 = vpop.f32.mrf.mxu0
  %v6944 = vadd.f32 %v6816, %v6943
  %v6945 = vpop.f32.mrf.mxu0
  %v6946 = vadd.f32 %v6818, %v6945
  %6947 = vmatmul.bf16.gmra.mxu0 %v798
  %v6948 = vpop.f32.mrf.mxu0
  %v6949 = vadd.f32 %v6821, %v6948
  %v6950 = vpop.f32.mrf.mxu0
  %v6951 = vadd.f32 %v6823, %v6950
  %6952 = vmatmul.bf16.gmra.mxu0 %v804
  %v6953 = vpop.f32.mrf.mxu0
  %v6954 = vadd.f32 %v6826, %v6953
  %v6955 = vpop.f32.mrf.mxu0
  %v6956 = vadd.f32 %v6828, %v6955
  %6957 = vmatmul.bf16.gmra.mxu0 %v810
  %v6958 = vpop.f32.mrf.mxu0
  %v6959 = vadd.f32 %v6831, %v6958
  %v6960 = vpop.f32.mrf.mxu0
  %v6961 = vadd.f32 %v6833, %v6960
  %6962 = vmatmul.bf16.gmra.mxu0 %v816
  %v6963 = vpop.f32.mrf.mxu0
  %v6964 = vadd.f32 %v6836, %v6963
  %v6965 = vpop.f32.mrf.mxu0
  %v6966 = vadd.f32 %v6838, %v6965
  %6967 = vmatmul.bf16.gmra.mxu0 %v822
  %v6968 = vpop.f32.mrf.mxu0
  %v6969 = vadd.f32 %v6841, %v6968
  %v6970 = vpop.f32.mrf.mxu0
  %v6971 = vadd.f32 %v6843, %v6970
  %6972 = vmatmul.bf16.gmra.mxu0 %v828
  %v6973 = vpop.f32.mrf.mxu0
  %v6974 = vadd.f32 %v6846, %v6973
  %v6975 = vpop.f32.mrf.mxu0
  %v6976 = vadd.f32 %v6848, %v6975
  %6977 = vmatmul.bf16.gmra.mxu0 %v834
  %v6978 = vpop.f32.mrf.mxu0
  %v6979 = vadd.f32 %v6851, %v6978
  %v6980 = vpop.f32.mrf.mxu0
  %v6981 = vadd.f32 %v6853, %v6980
  %6982 = vmatmul.bf16.gmra.mxu0 %v840
  %v6983 = vpop.f32.mrf.mxu0
  %v6984 = vadd.f32 %v6856, %v6983
  %v6985 = vpop.f32.mrf.mxu0
  %v6986 = vadd.f32 %v6858, %v6985
  %6987 = vmatmul.bf16.gmra.mxu0 %v846
  %v6988 = vpop.f32.mrf.mxu0
  %v6989 = vadd.f32 %v6861, %v6988
  %v6990 = vpop.f32.mrf.mxu0
  %v6991 = vadd.f32 %v6863, %v6990
  %6992 = vmatmul.bf16.gmra.mxu0 %v852
  %v6993 = vpop.f32.mrf.mxu0
  %v6994 = vadd.f32 %v6866, %v6993
  %v6995 = vpop.f32.mrf.mxu0
  %v6996 = vadd.f32 %v6868, %v6995
  %6997 = vmatmul.bf16.gmra.mxu0 %v858
  %v6998 = vpop.f32.mrf.mxu0
  %v6999 = vadd.f32 %v6871, %v6998
  %v7000 = vpop.f32.mrf.mxu0
  %v7001 = vadd.f32 %v6873, %v7000
  %7002 = vdwg.mxu0
  %7003 = vmatpush.bf16.msra.mxu0 %v5610
  %7004 = vmatpush.bf16.msra.mxu0 %v5608
  %7005 = vmatpush.bf16.msra.mxu0 %v5606
  %7006 = vmatpush.bf16.msra.mxu0 %v5604
  %7007 = vmatpush.bf16.msra.mxu0 %v5602
  %7008 = vmatpush.bf16.msra.mxu0 %v5600
  %7009 = vmatpush.bf16.msra.mxu0 %v5598
  %7010 = vmatpush.bf16.msra.mxu0 %v5596
  %7011 = vmatmul.bf16.gmra.mxu0 %v721
  %v7012 = vpop.f32.mrf.mxu0
  %v7013 = vpop.f32.mrf.mxu0
  %v7014 = vadd.f32 %v6886, %v7013
  %7015 = vmatmul.bf16.gmra.mxu0 %v727
  %v7016 = vpop.f32.mrf.mxu0
  %v7017 = vadd.f32 %v6889, %v7016
  %v7018 = vpop.f32.mrf.mxu0
  %v7019 = vadd.f32 %v6891, %v7018
  %7020 = vmatmul.bf16.gmra.mxu0 %v733
  %v7021 = vpop.f32.mrf.mxu0
  %v7022 = vadd.f32 %v6894, %v7021
  %v7023 = vpop.f32.mrf.mxu0
  %v7024 = vadd.f32 %v6896, %v7023
  %7025 = vmatmul.bf16.gmra.mxu0 %v739
  %v7026 = vpop.f32.mrf.mxu0
  %v7027 = vadd.f32 %v6899, %v7026
  %v7028 = vpop.f32.mrf.mxu0
  %v7029 = vadd.f32 %v6901, %v7028
  %7030 = vmatmul.bf16.gmra.mxu0 %v745
  %v7031 = vpop.f32.mrf.mxu0
  %v7032 = vadd.f32 %v6904, %v7031
  %v7033 = vpop.f32.mrf.mxu0
  %v7034 = vadd.f32 %v6906, %v7033
  %7035 = vmatmul.bf16.gmra.mxu0 %v751
  %v7036 = vpop.f32.mrf.mxu0
  %v7037 = vadd.f32 %v6909, %v7036
  %v7038 = vpop.f32.mrf.mxu0
  %v7039 = vadd.f32 %v6911, %v7038
  %7040 = vmatmul.bf16.gmra.mxu0 %v757
  %v7041 = vpop.f32.mrf.mxu0
  %v7042 = vadd.f32 %v6914, %v7041
  %v7043 = vpop.f32.mrf.mxu0
  %v7044 = vadd.f32 %v6916, %v7043
  %7045 = vmatmul.bf16.gmra.mxu0 %v763
  %v7046 = vpop.f32.mrf.mxu0
  %v7047 = vadd.f32 %v6919, %v7046
  %v7048 = vpop.f32.mrf.mxu0
  %v7049 = vadd.f32 %v6921, %v7048
  %7050 = vmatmul.bf16.gmra.mxu0 %v769
  %v7051 = vpop.f32.mrf.mxu0
  %v7052 = vadd.f32 %v6924, %v7051
  %v7053 = vpop.f32.mrf.mxu0
  %v7054 = vadd.f32 %v6926, %v7053
  %7055 = vmatmul.bf16.gmra.mxu0 %v775
  %v7056 = vpop.f32.mrf.mxu0
  %v7057 = vadd.f32 %v6929, %v7056
  %v7058 = vpop.f32.mrf.mxu0
  %v7059 = vadd.f32 %v6931, %v7058
  %7060 = vmatmul.bf16.gmra.mxu0 %v781
  %v7061 = vpop.f32.mrf.mxu0
  %v7062 = vadd.f32 %v6934, %v7061
  %v7063 = vpop.f32.mrf.mxu0
  %v7064 = vadd.f32 %v6936, %v7063
  %7065 = vmatmul.bf16.gmra.mxu0 %v787
  %v7066 = vpop.f32.mrf.mxu0
  %v7067 = vadd.f32 %v6939, %v7066
  %v7068 = vpop.f32.mrf.mxu0
  %v7069 = vadd.f32 %v6941, %v7068
  %7070 = vmatmul.bf16.gmra.mxu0 %v793
  %v7071 = vpop.f32.mrf.mxu0
  %v7072 = vadd.f32 %v6944, %v7071
  %v7073 = vpop.f32.mrf.mxu0
  %v7074 = vadd.f32 %v6946, %v7073
  %7075 = vmatmul.bf16.gmra.mxu0 %v799
  %v7076 = vpop.f32.mrf.mxu0
  %v7077 = vadd.f32 %v6949, %v7076
  %v7078 = vpop.f32.mrf.mxu0
  %v7079 = vadd.f32 %v6951, %v7078
  %7080 = vmatmul.bf16.gmra.mxu0 %v805
  %v7081 = vpop.f32.mrf.mxu0
  %v7082 = vadd.f32 %v6954, %v7081
  %v7083 = vpop.f32.mrf.mxu0
  %v7084 = vadd.f32 %v6956, %v7083
  %7085 = vmatmul.bf16.gmra.mxu0 %v811
  %v7086 = vpop.f32.mrf.mxu0
  %v7087 = vadd.f32 %v6959, %v7086
  %v7088 = vpop.f32.mrf.mxu0
  %v7089 = vadd.f32 %v6961, %v7088
  %7090 = vmatmul.bf16.gmra.mxu0 %v817
  %v7091 = vpop.f32.mrf.mxu0
  %v7092 = vadd.f32 %v6964, %v7091
  %v7093 = vpop.f32.mrf.mxu0
  %v7094 = vadd.f32 %v6966, %v7093
  %7095 = vmatmul.bf16.gmra.mxu0 %v823
  %v7096 = vpop.f32.mrf.mxu0
  %v7097 = vadd.f32 %v6969, %v7096
  %v7098 = vpop.f32.mrf.mxu0
  %v7099 = vadd.f32 %v6971, %v7098
  %7100 = vmatmul.bf16.gmra.mxu0 %v829
  %v7101 = vpop.f32.mrf.mxu0
  %v7102 = vadd.f32 %v6974, %v7101
  %v7103 = vpop.f32.mrf.mxu0
  %v7104 = vadd.f32 %v6976, %v7103
  %7105 = vmatmul.bf16.gmra.mxu0 %v835
  %v7106 = vpop.f32.mrf.mxu0
  %v7107 = vadd.f32 %v6979, %v7106
  %v7108 = vpop.f32.mrf.mxu0
  %v7109 = vadd.f32 %v6981, %v7108
  %7110 = vmatmul.bf16.gmra.mxu0 %v841
  %v7111 = vpop.f32.mrf.mxu0
  %v7112 = vadd.f32 %v6984, %v7111
  %v7113 = vpop.f32.mrf.mxu0
  %v7114 = vadd.f32 %v6986, %v7113
  %7115 = vmatmul.bf16.gmra.mxu0 %v847
  %v7116 = vpop.f32.mrf.mxu0
  %v7117 = vadd.f32 %v6989, %v7116
  %v7118 = vpop.f32.mrf.mxu0
  %v7119 = vadd.f32 %v6991, %v7118
  %7120 = vmatmul.bf16.gmra.mxu0 %v853
  %v7121 = vpop.f32.mrf.mxu0
  %v7122 = vadd.f32 %v6994, %v7121
  %v7123 = vpop.f32.mrf.mxu0
  %v7124 = vadd.f32 %v6996, %v7123
  %7125 = vmatmul.bf16.gmra.mxu0 %v859
  %v7126 = vpop.f32.mrf.mxu0
  %v7127 = vadd.f32 %v6999, %v7126
  %v7128 = vpop.f32.mrf.mxu0
  %v7129 = vadd.f32 %v7001, %v7128
  %7130 = vdwg.mxu0
  %7131 = vmatpush.bf16.msra.mxu0 %v5626
  %7132 = vmatpush.bf16.msra.mxu0 %v5624
  %7133 = vmatpush.bf16.msra.mxu0 %v5622
  %7134 = vmatpush.bf16.msra.mxu0 %v5620
  %7135 = vmatpush.bf16.msra.mxu0 %v5618
  %7136 = vmatpush.bf16.msra.mxu0 %v5616
  %7137 = vmatpush.bf16.msra.mxu0 %v5614
  %7138 = vmatpush.bf16.msra.mxu0 %v5612
  %7139 = vmatmul.bf16.gmra.mxu0 %v722
  %v7140 = vpop.f32.mrf.mxu0
  %v7141 = vpop.f32.mrf.mxu0
  %v7142 = vadd.f32 %v7014, %v7141
  %7143 = vmatmul.bf16.gmra.mxu0 %v728
  %v7144 = vpop.f32.mrf.mxu0
  %v7145 = vadd.f32 %v7017, %v7144
  %v7146 = vpop.f32.mrf.mxu0
  %v7147 = vadd.f32 %v7019, %v7146
  %7148 = vmatmul.bf16.gmra.mxu0 %v734
  %v7149 = vpop.f32.mrf.mxu0
  %v7150 = vadd.f32 %v7022, %v7149
  %v7151 = vpop.f32.mrf.mxu0
  %v7152 = vadd.f32 %v7024, %v7151
  %7153 = vmatmul.bf16.gmra.mxu0 %v740
  %v7154 = vpop.f32.mrf.mxu0
  %v7155 = vadd.f32 %v7027, %v7154
  %v7156 = vpop.f32.mrf.mxu0
  %v7157 = vadd.f32 %v7029, %v7156
  %7158 = vmatmul.bf16.gmra.mxu0 %v746
  %v7159 = vpop.f32.mrf.mxu0
  %v7160 = vadd.f32 %v7032, %v7159
  %v7161 = vpop.f32.mrf.mxu0
  %v7162 = vadd.f32 %v7034, %v7161
  %7163 = vmatmul.bf16.gmra.mxu0 %v752
  %v7164 = vpop.f32.mrf.mxu0
  %v7165 = vadd.f32 %v7037, %v7164
  %v7166 = vpop.f32.mrf.mxu0
  %v7167 = vadd.f32 %v7039, %v7166
  %7168 = vmatmul.bf16.gmra.mxu0 %v758
  %v7169 = vpop.f32.mrf.mxu0
  %v7170 = vadd.f32 %v7042, %v7169
  %v7171 = vpop.f32.mrf.mxu0
  %v7172 = vadd.f32 %v7044, %v7171
  %7173 = vmatmul.bf16.gmra.mxu0 %v764
  %v7174 = vpop.f32.mrf.mxu0
  %v7175 = vadd.f32 %v7047, %v7174
  %v7176 = vpop.f32.mrf.mxu0
  %v7177 = vadd.f32 %v7049, %v7176
  %7178 = vmatmul.bf16.gmra.mxu0 %v770
  %v7179 = vpop.f32.mrf.mxu0
  %v7180 = vadd.f32 %v7052, %v7179
  %v7181 = vpop.f32.mrf.mxu0
  %v7182 = vadd.f32 %v7054, %v7181
  %7183 = vmatmul.bf16.gmra.mxu0 %v776
  %v7184 = vpop.f32.mrf.mxu0
  %v7185 = vadd.f32 %v7057, %v7184
  %v7186 = vpop.f32.mrf.mxu0
  %v7187 = vadd.f32 %v7059, %v7186
  %7188 = vmatmul.bf16.gmra.mxu0 %v782
  %v7189 = vpop.f32.mrf.mxu0
  %v7190 = vadd.f32 %v7062, %v7189
  %v7191 = vpop.f32.mrf.mxu0
  %v7192 = vadd.f32 %v7064, %v7191
  %7193 = vmatmul.bf16.gmra.mxu0 %v788
  %v7194 = vpop.f32.mrf.mxu0
  %v7195 = vadd.f32 %v7067, %v7194
  %v7196 = vpop.f32.mrf.mxu0
  %v7197 = vadd.f32 %v7069, %v7196
  %7198 = vmatmul.bf16.gmra.mxu0 %v794
  %v7199 = vpop.f32.mrf.mxu0
  %v7200 = vadd.f32 %v7072, %v7199
  %v7201 = vpop.f32.mrf.mxu0
  %v7202 = vadd.f32 %v7074, %v7201
  %7203 = vmatmul.bf16.gmra.mxu0 %v800
  %v7204 = vpop.f32.mrf.mxu0
  %v7205 = vadd.f32 %v7077, %v7204
  %v7206 = vpop.f32.mrf.mxu0
  %v7207 = vadd.f32 %v7079, %v7206
  %7208 = vmatmul.bf16.gmra.mxu0 %v806
  %v7209 = vpop.f32.mrf.mxu0
  %v7210 = vadd.f32 %v7082, %v7209
  %v7211 = vpop.f32.mrf.mxu0
  %v7212 = vadd.f32 %v7084, %v7211
  %7213 = vmatmul.bf16.gmra.mxu0 %v812
  %v7214 = vpop.f32.mrf.mxu0
  %v7215 = vadd.f32 %v7087, %v7214
  %v7216 = vpop.f32.mrf.mxu0
  %v7217 = vadd.f32 %v7089, %v7216
  %7218 = vmatmul.bf16.gmra.mxu0 %v818
  %v7219 = vpop.f32.mrf.mxu0
  %v7220 = vadd.f32 %v7092, %v7219
  %v7221 = vpop.f32.mrf.mxu0
  %v7222 = vadd.f32 %v7094, %v7221
  %7223 = vmatmul.bf16.gmra.mxu0 %v824
  %v7224 = vpop.f32.mrf.mxu0
  %v7225 = vadd.f32 %v7097, %v7224
  %v7226 = vpop.f32.mrf.mxu0
  %v7227 = vadd.f32 %v7099, %v7226
  %7228 = vmatmul.bf16.gmra.mxu0 %v830
  %v7229 = vpop.f32.mrf.mxu0
  %v7230 = vadd.f32 %v7102, %v7229
  %v7231 = vpop.f32.mrf.mxu0
  %v7232 = vadd.f32 %v7104, %v7231
  %7233 = vmatmul.bf16.gmra.mxu0 %v836
  %v7234 = vpop.f32.mrf.mxu0
  %v7235 = vadd.f32 %v7107, %v7234
  %v7236 = vpop.f32.mrf.mxu0
  %v7237 = vadd.f32 %v7109, %v7236
  %7238 = vmatmul.bf16.gmra.mxu0 %v842
  %v7239 = vpop.f32.mrf.mxu0
  %v7240 = vadd.f32 %v7112, %v7239
  %v7241 = vpop.f32.mrf.mxu0
  %v7242 = vadd.f32 %v7114, %v7241
  %7243 = vmatmul.bf16.gmra.mxu0 %v848
  %v7244 = vpop.f32.mrf.mxu0
  %v7245 = vadd.f32 %v7117, %v7244
  %v7246 = vpop.f32.mrf.mxu0
  %v7247 = vadd.f32 %v7119, %v7246
  %7248 = vmatmul.bf16.gmra.mxu0 %v854
  %v7249 = vpop.f32.mrf.mxu0
  %v7250 = vadd.f32 %v7122, %v7249
  %v7251 = vpop.f32.mrf.mxu0
  %v7252 = vadd.f32 %v7124, %v7251
  %7253 = vmatmul.bf16.gmra.mxu0 %v860
  %v7254 = vpop.f32.mrf.mxu0
  %v7255 = vadd.f32 %v7127, %v7254
  %v7256 = vpop.f32.mrf.mxu0
  %v7257 = vadd.f32 %v7129, %v7256
  %7258 = vdwg.mxu0
  %v7259 = vadd.f32 %v4253, 0.0
  %v7260 = vadd.f32 %v5027, 0.0
  %v7261 = vadd.f32 %v2135, %v4255
  %v7262 = vadd.f32 %v2903, %v5029
  %v7263 = vadd.f32 %v2137, %v4258
  %v7264 = vadd.f32 %v2905, %v5032
  %v7265 = vadd.f32 %v2140, %v4260
  %v7266 = vadd.f32 %v2908, %v5034
  %v7267 = vadd.f32 %v2142, %v4263
  %v7268 = vadd.f32 %v2910, %v5037
  %v7269 = vadd.f32 %v2145, %v4265
  %v7270 = vadd.f32 %v2913, %v5039
  %v7271 = vadd.f32 %v2147, %v4268
  %v7272 = vadd.f32 %v2915, %v5042
  %v7273 = vadd.f32 %v2150, %v4270
  %v7274 = vadd.f32 %v2918, %v5044
  %v7275 = vadd.f32 %v2152, %v4273
  %v7276 = vadd.f32 %v2920, %v5047
  %v7277 = vadd.f32 %v2155, %v4275
  %v7278 = vadd.f32 %v2923, %v5049
  %v7279 = vadd.f32 %v2157, %v4278
  %v7280 = vadd.f32 %v2925, %v5052
  %v7281 = vadd.f32 %v2160, %v4280
  %v7282 = vadd.f32 %v2928, %v5054
  %v7283 = vadd.f32 %v2162, %v4283
  %v7284 = vadd.f32 %v2930, %v5057
  %v7285 = vadd.f32 %v2165, %v4285
  %v7286 = vadd.f32 %v2933, %v5059
  %v7287 = vadd.f32 %v2167, %v4288
  %v7288 = vadd.f32 %v2935, %v5062
  %v7289 = vadd.f32 %v2170, %v4290
  %v7290 = vadd.f32 %v2938, %v5064
  %v7291 = vadd.f32 %v2172, %v4293
  %v7292 = vadd.f32 %v2940, %v5067
  %v7293 = vadd.f32 %v2175, %v4295
  %v7294 = vadd.f32 %v2943, %v5069
  %v7295 = vadd.f32 %v2177, %v4298
  %v7296 = vadd.f32 %v2945, %v5072
  %v7297 = vadd.f32 %v2180, %v4300
  %v7298 = vadd.f32 %v2948, %v5074
  %v7299 = vadd.f32 %v2182, %v4303
  %v7300 = vadd.f32 %v2950, %v5077
  %v7301 = vadd.f32 %v2185, %v4305
  %v7302 = vadd.f32 %v2953, %v5079
  %v7303 = vadd.f32 %v2187, %v4308
  %v7304 = vadd.f32 %v2955, %v5082
  %v7305 = vadd.f32 %v2190, %v4310
  %v7306 = vadd.f32 %v2958, %v5084
  %v7307 = vadd.f32 %v2192, %v4313
  %v7308 = vadd.f32 %v2960, %v5087
  %v7309 = vadd.f32 %v2195, %v4315
  %v7310 = vadd.f32 %v2963, %v5089
  %v7311 = vadd.f32 %v2197, %v4318
  %v7312 = vadd.f32 %v2965, %v5092
  %v7313 = vadd.f32 %v2200, %v4320
  %v7314 = vadd.f32 %v2968, %v5094
  %v7315 = vadd.f32 %v2202, %v4323
  %v7316 = vadd.f32 %v2970, %v5097
  %v7317 = vadd.f32 %v2205, %v4325
  %v7318 = vadd.f32 %v2973, %v5099
  %v7319 = vadd.f32 %v2207, %v4328
  %v7320 = vadd.f32 %v2975, %v5102
  %v7321 = vadd.f32 %v2210, %v4330
  %v7322 = vadd.f32 %v2978, %v5104
  %v7323 = vadd.f32 %v2212, %v4333
  %v7324 = vadd.f32 %v2980, %v5107
  %v7325 = vadd.f32 %v2215, %v4335
  %v7326 = vadd.f32 %v2983, %v5109
  %v7327 = vadd.f32 %v2217, %v4338
  %v7328 = vadd.f32 %v2985, %v5112
  %v7329 = vadd.f32 %v2220, %v4340
  %v7330 = vadd.f32 %v2988, %v5114
  %v7331 = vadd.f32 %v2222, %v4343
  %v7332 = vadd.f32 %v2990, %v5117
  %v7333 = vadd.f32 %v2225, %v4345
  %v7334 = vadd.f32 %v2993, %v5119
  %v7335 = vadd.f32 %v2227, %v4348
  %v7336 = vadd.f32 %v2995, %v5122
  %v7337 = vadd.f32 %v2230, %v4350
  %v7338 = vadd.f32 %v2998, %v5124
  %v7339 = vadd.f32 %v2232, %v4353
  %v7340 = vadd.f32 %v3000, %v5127
  %v7341 = vadd.f32 %v2235, %v4355
  %v7342 = vadd.f32 %v3003, %v5129
  %v7343 = vadd.f32 %v2237, %v4358
  %v7344 = vadd.f32 %v3005, %v5132
  %v7345 = vadd.f32 %v2240, %v4360
  %v7346 = vadd.f32 %v3008, %v5134
  %v7347 = vadd.f32 %v2242, %v4363
  %v7348 = vadd.f32 %v3010, %v5137
  %v7349 = vadd.f32 %v2245, %v4365
  %v7350 = vadd.f32 %v3013, %v5139
  %v7351 = vadd.f32 %v2247, %v4368
  %v7352 = vadd.f32 %v3015, %v5142
  %v7353 = vadd.f32 %v2250, %v4370
  %v7354 = vadd.f32 %v3018, %v5144
  %v7355 = vadd.f32 %v7259, %v6374
  %v7356 = vadd.f32 %v7260, %v7142
  %v7357 = vadd.f32 %v7261, %v6377
  %v7358 = vadd.f32 %v7262, %v7145
  %v7359 = vadd.f32 %v7263, %v6379
  %v7360 = vadd.f32 %v7264, %v7147
  %v7361 = vadd.f32 %v7265, %v6382
  %v7362 = vadd.f32 %v7266, %v7150
  %v7363 = vadd.f32 %v7267, %v6384
  %v7364 = vadd.f32 %v7268, %v7152
  %v7365 = vadd.f32 %v7269, %v6387
  %v7366 = vadd.f32 %v7270, %v7155
  %v7367 = vadd.f32 %v7271, %v6389
  %v7368 = vadd.f32 %v7272, %v7157
  %v7369 = vadd.f32 %v7273, %v6392
  %v7370 = vadd.f32 %v7274, %v7160
  %v7371 = vadd.f32 %v7275, %v6394
  %v7372 = vadd.f32 %v7276, %v7162
  %v7373 = vadd.f32 %v7277, %v6397
  %v7374 = vadd.f32 %v7278, %v7165
  %v7375 = vadd.f32 %v7279, %v6399
  %v7376 = vadd.f32 %v7280, %v7167
  %v7377 = vadd.f32 %v7281, %v6402
  %v7378 = vadd.f32 %v7282, %v7170
  %v7379 = vadd.f32 %v7283, %v6404
  %v7380 = vadd.f32 %v7284, %v7172
  %v7381 = vadd.f32 %v7285, %v6407
  %v7382 = vadd.f32 %v7286, %v7175
  %v7383 = vadd.f32 %v7287, %v6409
  %v7384 = vadd.f32 %v7288, %v7177
  %v7385 = vadd.f32 %v7289, %v6412
  %v7386 = vadd.f32 %v7290, %v7180
  %v7387 = vadd.f32 %v7291, %v6414
  %v7388 = vadd.f32 %v7292, %v7182
  %v7389 = vadd.f32 %v7293, %v6417
  %v7390 = vadd.f32 %v7294, %v7185
  %v7391 = vadd.f32 %v7295, %v6419
  %v7392 = vadd.f32 %v7296, %v7187
  %v7393 = vadd.f32 %v7297, %v6422
  %v7394 = vadd.f32 %v7298, %v7190
  %v7395 = vadd.f32 %v7299, %v6424
  %v7396 = vadd.f32 %v7300, %v7192
  %v7397 = vadd.f32 %v7301, %v6427
  %v7398 = vadd.f32 %v7302, %v7195
  %v7399 = vadd.f32 %v7303, %v6429
  %v7400 = vadd.f32 %v7304, %v7197
  %v7401 = vadd.f32 %v7305, %v6432
  %v7402 = vadd.f32 %v7306, %v7200
  %v7403 = vadd.f32 %v7307, %v6434
  %v7404 = vadd.f32 %v7308, %v7202
  %v7405 = vadd.f32 %v7309, %v6437
  %v7406 = vadd.f32 %v7310, %v7205
  %v7407 = vadd.f32 %v7311, %v6439
  %v7408 = vadd.f32 %v7312, %v7207
  %v7409 = vadd.f32 %v7313, %v6442
  %v7410 = vadd.f32 %v7314, %v7210
  %v7411 = vadd.f32 %v7315, %v6444
  %v7412 = vadd.f32 %v7316, %v7212
  %v7413 = vadd.f32 %v7317, %v6447
  %v7414 = vadd.f32 %v7318, %v7215
  %v7415 = vadd.f32 %v7319, %v6449
  %v7416 = vadd.f32 %v7320, %v7217
  %v7417 = vadd.f32 %v7321, %v6452
  %v7418 = vadd.f32 %v7322, %v7220
  %v7419 = vadd.f32 %v7323, %v6454
  %v7420 = vadd.f32 %v7324, %v7222
  %v7421 = vadd.f32 %v7325, %v6457
  %v7422 = vadd.f32 %v7326, %v7225
  %v7423 = vadd.f32 %v7327, %v6459
  %v7424 = vadd.f32 %v7328, %v7227
  %v7425 = vadd.f32 %v7329, %v6462
  %v7426 = vadd.f32 %v7330, %v7230
  %v7427 = vadd.f32 %v7331, %v6464
  %v7428 = vadd.f32 %v7332, %v7232
  %v7429 = vadd.f32 %v7333, %v6467
  %v7430 = vadd.f32 %v7334, %v7235
  %v7431 = vadd.f32 %v7335, %v6469
  %v7432 = vadd.f32 %v7336, %v7237
  %v7433 = vadd.f32 %v7337, %v6472
  %v7434 = vadd.f32 %v7338, %v7240
  %v7435 = vadd.f32 %v7339, %v6474
  %v7436 = vadd.f32 %v7340, %v7242
  %v7437 = vadd.f32 %v7341, %v6477
  %v7438 = vadd.f32 %v7342, %v7245
  %v7439 = vadd.f32 %v7343, %v6479
  %v7440 = vadd.f32 %v7344, %v7247
  %v7441 = vadd.f32 %v7345, %v6482
  %v7442 = vadd.f32 %v7346, %v7250
  %v7443 = vadd.f32 %v7347, %v6484
  %v7444 = vadd.f32 %v7348, %v7252
  %v7445 = vadd.f32 %v7349, %v6487
  %v7446 = vadd.f32 %v7350, %v7255
  %v7447 = vadd.f32 %v7351, %v6489
  %v7448 = vadd.f32 %v7352, %v7257
  %v7449 = vadd.f32 %v7353, 0.0
  %v7450 = vadd.f32 %v7354, 0.0
  %v7451 = vmax.f32 %v7355, %v7357
  %v7452 = vmax.f32 %v7356, %v7358
  %v7453 = vmax.f32 %v7359, %v7361
  %v7454 = vmax.f32 %v7360, %v7362
  %v7455 = vmax.f32 %v7363, %v7365
  %v7456 = vmax.f32 %v7364, %v7366
  %v7457 = vmax.f32 %v7367, %v7369
  %v7458 = vmax.f32 %v7368, %v7370
  %v7459 = vmax.f32 %v7371, %v7373
  %v7460 = vmax.f32 %v7372, %v7374
  %v7461 = vmax.f32 %v7375, %v7377
  %v7462 = vmax.f32 %v7376, %v7378
  %v7463 = vmax.f32 %v7379, %v7381
  %v7464 = vmax.f32 %v7380, %v7382
  %v7465 = vmax.f32 %v7383, %v7385
  %v7466 = vmax.f32 %v7384, %v7386
  %v7467 = vmax.f32 %v7387, %v7389
  %v7468 = vmax.f32 %v7388, %v7390
  %v7469 = vmax.f32 %v7391, %v7393
  %v7470 = vmax.f32 %v7392, %v7394
  %v7471 = vmax.f32 %v7395, %v7397
  %v7472 = vmax.f32 %v7396, %v7398
  %v7473 = vmax.f32 %v7399, %v7401
  %v7474 = vmax.f32 %v7400, %v7402
  %v7475 = vmax.f32 %v7403, %v7405
  %v7476 = vmax.f32 %v7404, %v7406
  %v7477 = vmax.f32 %v7407, %v7409
  %v7478 = vmax.f32 %v7408, %v7410
  %v7479 = vmax.f32 %v7411, %v7413
  %v7480 = vmax.f32 %v7412, %v7414
  %v7481 = vmax.f32 %v7415, %v7417
  %v7482 = vmax.f32 %v7416, %v7418
  %v7483 = vmax.f32 %v7419, %v7421
  %v7484 = vmax.f32 %v7420, %v7422
  %v7485 = vmax.f32 %v7423, %v7425
  %v7486 = vmax.f32 %v7424, %v7426
  %v7487 = vmax.f32 %v7427, %v7429
  %v7488 = vmax.f32 %v7428, %v7430
  %v7489 = vmax.f32 %v7431, %v7433
  %v7490 = vmax.f32 %v7432, %v7434
  %v7491 = vmax.f32 %v7435, %v7437
  %v7492 = vmax.f32 %v7436, %v7438
  %v7493 = vmax.f32 %v7439, %v7441
  %v7494 = vmax.f32 %v7440, %v7442
  %v7495 = vmax.f32 %v7443, %v7445
  %v7496 = vmax.f32 %v7444, %v7446
  %v7497 = vmax.f32 %v7447, %v7449
  %v7498 = vmax.f32 %v7448, %v7450
  %v7499 = vld [vmem:[%s2] sm:$0x3]
  %v7501 = vperm.slane %v7499, 0
  %v7502 = vperm.slane %v7499, 1
  %v7505 = vadd.f32 %v7451, %v7501
  %v7506 = vadd.f32 %v7452, %v7502
  %v7507 = vadd.f32 %v7453, %v7501
  %v7508 = vadd.f32 %v7454, %v7502
  %v7509 = vadd.f32 %v7455, %v7501
  %v7510 = vadd.f32 %v7456, %v7502
  %v7511 = vadd.f32 %v7457, %v7501
  %v7512 = vadd.f32 %v7458, %v7502
  %v7513 = vadd.f32 %v7459, %v7501
  %v7514 = vadd.f32 %v7460, %v7502
  %v7515 = vadd.f32 %v7461, %v7501
  %v7516 = vadd.f32 %v7462, %v7502
  %v7517 = vadd.f32 %v7463, %v7501
  %v7518 = vadd.f32 %v7464, %v7502
  %v7519 = vadd.f32 %v7465, %v7501
  %v7520 = vadd.f32 %v7466, %v7502
  %v7521 = vadd.f32 %v7467, %v7501
  %v7522 = vadd.f32 %v7468, %v7502
  %v7523 = vadd.f32 %v7469, %v7501
  %v7524 = vadd.f32 %v7470, %v7502
  %v7525 = vadd.f32 %v7471, %v7501
  %v7526 = vadd.f32 %v7472, %v7502
  %v7527 = vadd.f32 %v7473, %v7501
  %v7528 = vadd.f32 %v7474, %v7502
  %v7529 = vadd.f32 %v7475, %v7501
  %v7530 = vadd.f32 %v7476, %v7502
  %v7531 = vadd.f32 %v7477, %v7501
  %v7532 = vadd.f32 %v7478, %v7502
  %v7533 = vadd.f32 %v7479, %v7501
  %v7534 = vadd.f32 %v7480, %v7502
  %v7535 = vadd.f32 %v7481, %v7501
  %v7536 = vadd.f32 %v7482, %v7502
  %v7537 = vadd.f32 %v7483, %v7501
  %v7538 = vadd.f32 %v7484, %v7502
  %v7539 = vadd.f32 %v7485, %v7501
  %v7540 = vadd.f32 %v7486, %v7502
  %v7541 = vadd.f32 %v7487, %v7501
  %v7542 = vadd.f32 %v7488, %v7502
  %v7543 = vadd.f32 %v7489, %v7501
  %v7544 = vadd.f32 %v7490, %v7502
  %v7545 = vadd.f32 %v7491, %v7501
  %v7546 = vadd.f32 %v7492, %v7502
  %v7547 = vadd.f32 %v7493, %v7501
  %v7548 = vadd.f32 %v7494, %v7502
  %v7549 = vadd.f32 %v7495, %v7501
  %v7550 = vadd.f32 %v7496, %v7502
  %v7551 = vadd.f32 %v7497, %v7501
  %v7552 = vadd.f32 %v7498, %v7502
  %v7553 = vmax.f32 %v7505, 0.0
  %v7554 = vmax.f32 %v7506, 0.0
  %v7555 = vmax.f32 %v7507, 0.0
  %v7556 = vmax.f32 %v7508, 0.0
  %v7557 = vmax.f32 %v7509, 0.0
  %v7558 = vmax.f32 %v7510, 0.0
  %v7559 = vmax.f32 %v7511, 0.0
  %v7560 = vmax.f32 %v7512, 0.0
  %v7561 = vmax.f32 %v7513, 0.0
  %v7562 = vmax.f32 %v7514, 0.0
  %v7563 = vmax.f32 %v7515, 0.0
  %v7564 = vmax.f32 %v7516, 0.0
  %v7565 = vmax.f32 %v7517, 0.0
  %v7566 = vmax.f32 %v7518, 0.0
  %v7567 = vmax.f32 %v7519, 0.0
  %v7568 = vmax.f32 %v7520, 0.0
  %v7569 = vmax.f32 %v7521, 0.0
  %v7570 = vmax.f32 %v7522, 0.0
  %v7571 = vmax.f32 %v7523, 0.0
  %v7572 = vmax.f32 %v7524, 0.0
  %v7573 = vmax.f32 %v7525, 0.0
  %v7574 = vmax.f32 %v7526, 0.0
  %v7575 = vmax.f32 %v7527, 0.0
  %v7576 = vmax.f32 %v7528, 0.0
  %v7577 = vmax.f32 %v7529, 0.0
  %v7578 = vmax.f32 %v7530, 0.0
  %v7579 = vmax.f32 %v7531, 0.0
  %v7580 = vmax.f32 %v7532, 0.0
  %v7581 = vmax.f32 %v7533, 0.0
  %v7582 = vmax.f32 %v7534, 0.0
  %v7583 = vmax.f32 %v7535, 0.0
  %v7584 = vmax.f32 %v7536, 0.0
  %v7585 = vmax.f32 %v7537, 0.0
  %v7586 = vmax.f32 %v7538, 0.0
  %v7587 = vmax.f32 %v7539, 0.0
  %v7588 = vmax.f32 %v7540, 0.0
  %v7589 = vmax.f32 %v7541, 0.0
  %v7590 = vmax.f32 %v7542, 0.0
  %v7591 = vmax.f32 %v7543, 0.0
  %v7592 = vmax.f32 %v7544, 0.0
  %v7593 = vmax.f32 %v7545, 0.0
  %v7594 = vmax.f32 %v7546, 0.0
  %v7595 = vmax.f32 %v7547, 0.0
  %v7596 = vmax.f32 %v7548, 0.0
  %v7597 = vmax.f32 %v7549, 0.0
  %v7598 = vmax.f32 %v7550, 0.0
  %v7599 = vmax.f32 %v7551, 0.0
  %v7600 = vmax.f32 %v7552, 0.0
  %v7601 = vpack.c.bf16 %v7555, %v7553
  %v7602 = vpack.c.bf16 %v7556, %v7554
  %v7603 = vpack.c.bf16 %v7559, %v7557
  %v7604 = vpack.c.bf16 %v7560, %v7558
  %v7605 = vpack.c.bf16 %v7563, %v7561
  %v7606 = vpack.c.bf16 %v7564, %v7562
  %v7607 = vpack.c.bf16 %v7567, %v7565
  %v7608 = vpack.c.bf16 %v7568, %v7566
  %v7609 = vpack.c.bf16 %v7571, %v7569
  %v7610 = vpack.c.bf16 %v7572, %v7570
  %v7611 = vpack.c.bf16 %v7575, %v7573
  %v7612 = vpack.c.bf16 %v7576, %v7574
  %v7613 = vpack.c.bf16 %v7579, %v7577
  %v7614 = vpack.c.bf16 %v7580, %v7578
  %v7615 = vpack.c.bf16 %v7583, %v7581
  %v7616 = vpack.c.bf16 %v7584, %v7582
  %v7617 = vpack.c.bf16 %v7587, %v7585
  %v7618 = vpack.c.bf16 %v7588, %v7586
  %v7619 = vpack.c.bf16 %v7591, %v7589
  %v7620 = vpack.c.bf16 %v7592, %v7590
  %v7621 = vpack.c.bf16 %v7595, %v7593
  %v7622 = vpack.c.bf16 %v7596, %v7594
  %v7623 = vpack.c.bf16 %v7599, %v7597
  %v7624 = vpack.c.bf16 %v7600, %v7598
  %v7625 = vld [vmem:[%s3] sm:$0xf]
  %v7626 = vld [vmem:[%s3 + $0x4] sm:$0xf]
  %v7627 = vld [vmem:[%s3 + $0x8] sm:$0xf]
  %v7628 = vld [vmem:[%s3 + $0xc] sm:$0xf]
  %v7629 = vld [vmem:[%s3 + $0x10] sm:$0xf]
  %v7630 = vld [vmem:[%s3 + $0x14] sm:$0xf]
  %v7631 = vld [vmem:[%s3 + $0x18] sm:$0xf]
  %v7632 = vld [vmem:[%s3 + $0x1c] sm:$0xf]
  %v7633 = vld [vmem:[%s3 + $0x20] sm:$0xf]
  %v7634 = vld [vmem:[%s3 + $0x24] sm:$0xf]
  %v7635 = vld [vmem:[%s3 + $0x28] sm:$0xf]
  %v7636 = vld [vmem:[%s3 + $0x2c] sm:$0xf]
  %v7637 = vld [vmem:[%s3 + $0x30] sm:$0xf]
  %v7638 = vld [vmem:[%s3 + $0x34] sm:$0xf]
  %v7639 = vld [vmem:[%s3 + $0x38] sm:$0xf]
  %v7640 = vld [vmem:[%s3 + $0x3c] sm:$0xf]
  %v7641 = vld [vmem:[%s3 + $0x40] sm:$0xf]
  %v7642 = vld [vmem:[%s3 + $0x44] sm:$0xf]
  %v7643 = vld [vmem:[%s3 + $0x48] sm:$0xf]
  %v7644 = vld [vmem:[%s3 + $0x4c] sm:$0xf]
  %v7645 = vld [vmem:[%s3 + $0x50] sm:$0xf]
  %v7646 = vld [vmem:[%s3 + $0x54] sm:$0xf]
  %v7647 = vld [vmem:[%s3 + $0x58] sm:$0xf]
  %v7648 = vld [vmem:[%s3 + $0x5c] sm:$0xf]
  %v7649 = vld [vmem:[%s3 + $0x60] sm:$0xf]
  %v7650 = vld [vmem:[%s3 + $0x64] sm:$0xf]
  %v7651 = vld [vmem:[%s3 + $0x68] sm:$0xf]
  %v7652 = vld [vmem:[%s3 + $0x6c] sm:$0xf]
  %v7653 = vld [vmem:[%s3 + $0x70] sm:$0xf]
  %v7654 = vld [vmem:[%s3 + $0x74] sm:$0xf]
  %v7655 = vld [vmem:[%s3 + $0x78] sm:$0xf]
  %v7656 = vld [vmem:[%s3 + $0x7c] sm:$0xf]
  %v7689 = vunpack.c.l.b16 %v7625
  %v7690 = vunpack.c.l.b16 %v7626
  %v7691 = vunpack.c.l.b16 %v7627
  %v7692 = vunpack.c.l.b16 %v7628
  %v7693 = vunpack.c.l.b16 %v7629
  %v7694 = vunpack.c.l.b16 %v7630
  %v7695 = vunpack.c.l.b16 %v7631
  %v7696 = vunpack.c.l.b16 %v7632
  %v7697 = vunpack.c.l.b16 %v7633
  %v7698 = vunpack.c.l.b16 %v7634
  %v7699 = vunpack.c.l.b16 %v7635
  %v7700 = vunpack.c.l.b16 %v7636
  %v7701 = vunpack.c.l.b16 %v7637
  %v7702 = vunpack.c.l.b16 %v7638
  %v7703 = vunpack.c.l.b16 %v7639
  %v7704 = vunpack.c.l.b16 %v7640
  %v7705 = vunpack.c.l.b16 %v7641
  %v7706 = vunpack.c.l.b16 %v7642
  %v7707 = vunpack.c.l.b16 %v7643
  %v7708 = vunpack.c.l.b16 %v7644
  %v7709 = vunpack.c.l.b16 %v7645
  %v7710 = vunpack.c.l.b16 %v7646
  %v7711 = vunpack.c.l.b16 %v7647
  %v7712 = vunpack.c.l.b16 %v7648
  %v7713 = vunpack.c.l.b16 %v7649
  %v7714 = vunpack.c.l.b16 %v7650
  %v7715 = vunpack.c.l.b16 %v7651
  %v7716 = vunpack.c.l.b16 %v7652
  %v7717 = vunpack.c.l.b16 %v7653
  %v7718 = vunpack.c.l.b16 %v7654
  %v7719 = vunpack.c.l.b16 %v7655
  %v7720 = vunpack.c.l.b16 %v7656
  %v7721 = vpack.c.b16 %v7690, %v7689
  %v7722 = vpack.c.b16 %v7692, %v7691
  %v7723 = vpack.c.b16 %v7694, %v7693
  %v7724 = vpack.c.b16 %v7696, %v7695
  %v7725 = vpack.c.b16 %v7698, %v7697
  %v7726 = vpack.c.b16 %v7700, %v7699
  %v7727 = vpack.c.b16 %v7702, %v7701
  %v7728 = vpack.c.b16 %v7704, %v7703
  %v7729 = vpack.c.b16 %v7706, %v7705
  %v7730 = vpack.c.b16 %v7708, %v7707
  %v7731 = vpack.c.b16 %v7710, %v7709
  %v7732 = vpack.c.b16 %v7712, %v7711
  %v7733 = vpack.c.b16 %v7714, %v7713
  %v7734 = vpack.c.b16 %v7716, %v7715
  %v7735 = vpack.c.b16 %v7718, %v7717
  %v7736 = vpack.c.b16 %v7720, %v7719
  %7753 = vmatpush.bf16.msra.mxu0 %v7728
  %7754 = vmatpush.bf16.msra.mxu0 %v7727
  %7755 = vmatpush.bf16.msra.mxu0 %v7726
  %7756 = vmatpush.bf16.msra.mxu0 %v7725
  %7757 = vmatpush.bf16.msra.mxu0 %v7724
  %7758 = vmatpush.bf16.msra.mxu0 %v7723
  %7759 = vmatpush.bf16.msra.mxu0 %v7722
  %7760 = vmatpush.bf16.msra.mxu0 %v7721
  %7761 = vmatmul.bf16.gmra.mxu0 %v7601
  %v7762 = vpop.f32.mrf.mxu0
  %v7763 = vadd.f32 0.0, %v7762
  %v7764 = vpop.f32.mrf.mxu0
  %v7765 = vadd.f32 0.0, %v7764
  %7766 = vmatmul.bf16.gmra.mxu0 %v7603
  %v7767 = vpop.f32.mrf.mxu0
  %v7768 = vadd.f32 0.0, %v7767
  %v7769 = vpop.f32.mrf.mxu0
  %v7770 = vadd.f32 0.0, %v7769
  %7771 = vmatmul.bf16.gmra.mxu0 %v7605
  %v7772 = vpop.f32.mrf.mxu0
  %v7773 = vadd.f32 0.0, %v7772
  %v7774 = vpop.f32.mrf.mxu0
  %v7775 = vadd.f32 0.0, %v7774
  %7776 = vmatmul.bf16.gmra.mxu0 %v7607
  %v7777 = vpop.f32.mrf.mxu0
  %v7778 = vadd.f32 0.0, %v7777
  %v7779 = vpop.f32.mrf.mxu0
  %v7780 = vadd.f32 0.0, %v7779
  %7781 = vmatmul.bf16.gmra.mxu0 %v7609
  %v7782 = vpop.f32.mrf.mxu0
  %v7783 = vadd.f32 0.0, %v7782
  %v7784 = vpop.f32.mrf.mxu0
  %v7785 = vadd.f32 0.0, %v7784
  %7786 = vmatmul.bf16.gmra.mxu0 %v7611
  %v7787 = vpop.f32.mrf.mxu0
  %v7788 = vadd.f32 0.0, %v7787
  %v7789 = vpop.f32.mrf.mxu0
  %v7790 = vadd.f32 0.0, %v7789
  %7791 = vmatmul.bf16.gmra.mxu0 %v7613
  %v7792 = vpop.f32.mrf.mxu0
  %v7793 = vadd.f32 0.0, %v7792
  %v7794 = vpop.f32.mrf.mxu0
  %v7795 = vadd.f32 0.0, %v7794
  %7796 = vmatmul.bf16.gmra.mxu0 %v7615
  %v7797 = vpop.f32.mrf.mxu0
  %v7798 = vadd.f32 0.0, %v7797
  %v7799 = vpop.f32.mrf.mxu0
  %v7800 = vadd.f32 0.0, %v7799
  %7801 = vmatmul.bf16.gmra.mxu0 %v7617
  %v7802 = vpop.f32.mrf.mxu0
  %v7803 = vadd.f32 0.0, %v7802
  %v7804 = vpop.f32.mrf.mxu0
  %v7805 = vadd.f32 0.0, %v7804
  %7806 = vmatmul.bf16.gmra.mxu0 %v7619
  %v7807 = vpop.f32.mrf.mxu0
  %v7808 = vadd.f32 0.0, %v7807
  %v7809 = vpop.f32.mrf.mxu0
  %v7810 = vadd.f32 0.0, %v7809
  %7811 = vmatmul.bf16.gmra.mxu0 %v7621
  %v7812 = vpop.f32.mrf.mxu0
  %v7813 = vadd.f32 0.0, %v7812
  %v7814 = vpop.f32.mrf.mxu0
  %v7815 = vadd.f32 0.0, %v7814
  %7816 = vmatmul.bf16.gmra.mxu0 %v7623
  %v7817 = vpop.f32.mrf.mxu0
  %v7818 = vadd.f32 0.0, %v7817
  %v7819 = vpop.f32.mrf.mxu0
  %7820 = vdwg.mxu0
  %7821 = vmatpush.bf16.msra.mxu0 %v7736
  %7822 = vmatpush.bf16.msra.mxu0 %v7735
  %7823 = vmatpush.bf16.msra.mxu0 %v7734
  %7824 = vmatpush.bf16.msra.mxu0 %v7733
  %7825 = vmatpush.bf16.msra.mxu0 %v7732
  %7826 = vmatpush.bf16.msra.mxu0 %v7731
  %7827 = vmatpush.bf16.msra.mxu0 %v7730
  %7828 = vmatpush.bf16.msra.mxu0 %v7729
  %7829 = vmatmul.bf16.gmra.mxu0 %v7602
  %v7830 = vpop.f32.mrf.mxu0
  %v7831 = vadd.f32 %v7763, %v7830
  %v7832 = vpop.f32.mrf.mxu0
  %v7833 = vadd.f32 %v7765, %v7832
  %7834 = vmatmul.bf16.gmra.mxu0 %v7604
  %v7835 = vpop.f32.mrf.mxu0
  %v7836 = vadd.f32 %v7768, %v7835
  %v7837 = vpop.f32.mrf.mxu0
  %v7838 = vadd.f32 %v7770, %v7837
  %7839 = vmatmul.bf16.gmra.mxu0 %v7606
  %v7840 = vpop.f32.mrf.mxu0
  %v7841 = vadd.f32 %v7773, %v7840
  %v7842 = vpop.f32.mrf.mxu0
  %v7843 = vadd.f32 %v7775, %v7842
  %7844 = vmatmul.bf16.gmra.mxu0 %v7608
  %v7845 = vpop.f32.mrf.mxu0
  %v7846 = vadd.f32 %v7778, %v7845
  %v7847 = vpop.f32.mrf.mxu0
  %v7848 = vadd.f32 %v7780, %v7847
  %7849 = vmatmul.bf16.gmra.mxu0 %v7610
  %v7850 = vpop.f32.mrf.mxu0
  %v7851 = vadd.f32 %v7783, %v7850
  %v7852 = vpop.f32.mrf.mxu0
  %v7853 = vadd.f32 %v7785, %v7852
  %7854 = vmatmul.bf16.gmra.mxu0 %v7612
  %v7855 = vpop.f32.mrf.mxu0
  %v7856 = vadd.f32 %v7788, %v7855
  %v7857 = vpop.f32.mrf.mxu0
  %v7858 = vadd.f32 %v7790, %v7857
  %7859 = vmatmul.bf16.gmra.mxu0 %v7614
  %v7860 = vpop.f32.mrf.mxu0
  %v7861 = vadd.f32 %v7793, %v7860
  %v7862 = vpop.f32.mrf.mxu0
  %v7863 = vadd.f32 %v7795, %v7862
  %7864 = vmatmul.bf16.gmra.mxu0 %v7616
  %v7865 = vpop.f32.mrf.mxu0
  %v7866 = vadd.f32 %v7798, %v7865
  %v7867 = vpop.f32.mrf.mxu0
  %v7868 = vadd.f32 %v7800, %v7867
  %7869 = vmatmul.bf16.gmra.mxu0 %v7618
  %v7870 = vpop.f32.mrf.mxu0
  %v7871 = vadd.f32 %v7803, %v7870
  %v7872 = vpop.f32.mrf.mxu0
  %v7873 = vadd.f32 %v7805, %v7872
  %7874 = vmatmul.bf16.gmra.mxu0 %v7620
  %v7875 = vpop.f32.mrf.mxu0
  %v7876 = vadd.f32 %v7808, %v7875
  %v7877 = vpop.f32.mrf.mxu0
  %v7878 = vadd.f32 %v7810, %v7877
  %7879 = vmatmul.bf16.gmra.mxu0 %v7622
  %v7880 = vpop.f32.mrf.mxu0
  %v7881 = vadd.f32 %v7813, %v7880
  %v7882 = vpop.f32.mrf.mxu0
  %v7883 = vadd.f32 %v7815, %v7882
  %7884 = vmatmul.bf16.gmra.mxu0 %v7624
  %v7885 = vpop.f32.mrf.mxu0
  %v7886 = vadd.f32 %v7818, %v7885
  %v7887 = vpop.f32.mrf.mxu0
  %7888 = vdwg.mxu0
  %s7889 = scalar_lea.vmem %s3, 128
  %v7890 = vld [vmem:[%s7889] sm:$0xf]
  %v7891 = vld [vmem:[%s7889 + $0x4] sm:$0xf]
  %v7892 = vld [vmem:[%s7889 + $0x8] sm:$0xf]
  %v7893 = vld [vmem:[%s7889 + $0xc] sm:$0xf]
  %v7894 = vld [vmem:[%s7889 + $0x10] sm:$0xf]
  %v7895 = vld [vmem:[%s7889 + $0x14] sm:$0xf]
  %v7896 = vld [vmem:[%s7889 + $0x18] sm:$0xf]
  %v7897 = vld [vmem:[%s7889 + $0x1c] sm:$0xf]
  %v7898 = vld [vmem:[%s7889 + $0x20] sm:$0xf]
  %v7899 = vld [vmem:[%s7889 + $0x24] sm:$0xf]
  %v7900 = vld [vmem:[%s7889 + $0x28] sm:$0xf]
  %v7901 = vld [vmem:[%s7889 + $0x2c] sm:$0xf]
  %v7902 = vld [vmem:[%s7889 + $0x30] sm:$0xf]
  %v7903 = vld [vmem:[%s7889 + $0x34] sm:$0xf]
  %v7904 = vld [vmem:[%s7889 + $0x38] sm:$0xf]
  %v7905 = vld [vmem:[%s7889 + $0x3c] sm:$0xf]
  %v7906 = vld [vmem:[%s7889 + $0x40] sm:$0xf]
  %v7907 = vld [vmem:[%s7889 + $0x44] sm:$0xf]
  %v7908 = vld [vmem:[%s7889 + $0x48] sm:$0xf]
  %v7909 = vld [vmem:[%s7889 + $0x4c] sm:$0xf]
  %v7910 = vld [vmem:[%s7889 + $0x50] sm:$0xf]
  %v7911 = vld [vmem:[%s7889 + $0x54] sm:$0xf]
  %v7912 = vld [vmem:[%s7889 + $0x58] sm:$0xf]
  %v7913 = vld [vmem:[%s7889 + $0x5c] sm:$0xf]
  %v7914 = vld [vmem:[%s7889 + $0x60] sm:$0xf]
  %v7915 = vld [vmem:[%s7889 + $0x64] sm:$0xf]
  %v7916 = vld [vmem:[%s7889 + $0x68] sm:$0xf]
  %v7917 = vld [vmem:[%s7889 + $0x6c] sm:$0xf]
  %v7918 = vld [vmem:[%s7889 + $0x70] sm:$0xf]
  %v7919 = vld [vmem:[%s7889 + $0x74] sm:$0xf]
  %v7920 = vld [vmem:[%s7889 + $0x78] sm:$0xf]
  %v7921 = vld [vmem:[%s7889 + $0x7c] sm:$0xf]
  %v7954 = vunpack.c.l.b16 %v7890
  %v7955 = vunpack.c.l.b16 %v7891
  %v7956 = vunpack.c.l.b16 %v7892
  %v7957 = vunpack.c.l.b16 %v7893
  %v7958 = vunpack.c.l.b16 %v7894
  %v7959 = vunpack.c.l.b16 %v7895
  %v7960 = vunpack.c.l.b16 %v7896
  %v7961 = vunpack.c.l.b16 %v7897
  %v7962 = vunpack.c.l.b16 %v7898
  %v7963 = vunpack.c.l.b16 %v7899
  %v7964 = vunpack.c.l.b16 %v7900
  %v7965 = vunpack.c.l.b16 %v7901
  %v7966 = vunpack.c.l.b16 %v7902
  %v7967 = vunpack.c.l.b16 %v7903
  %v7968 = vunpack.c.l.b16 %v7904
  %v7969 = vunpack.c.l.b16 %v7905
  %v7970 = vunpack.c.l.b16 %v7906
  %v7971 = vunpack.c.l.b16 %v7907
  %v7972 = vunpack.c.l.b16 %v7908
  %v7973 = vunpack.c.l.b16 %v7909
  %v7974 = vunpack.c.l.b16 %v7910
  %v7975 = vunpack.c.l.b16 %v7911
  %v7976 = vunpack.c.l.b16 %v7912
  %v7977 = vunpack.c.l.b16 %v7913
  %v7978 = vunpack.c.l.b16 %v7914
  %v7979 = vunpack.c.l.b16 %v7915
  %v7980 = vunpack.c.l.b16 %v7916
  %v7981 = vunpack.c.l.b16 %v7917
  %v7982 = vunpack.c.l.b16 %v7918
  %v7983 = vunpack.c.l.b16 %v7919
  %v7984 = vunpack.c.l.b16 %v7920
  %v7985 = vunpack.c.l.b16 %v7921
  %v7986 = vpack.c.b16 %v7955, %v7954
  %v7987 = vpack.c.b16 %v7957, %v7956
  %v7988 = vpack.c.b16 %v7959, %v7958
  %v7989 = vpack.c.b16 %v7961, %v7960
  %v7990 = vpack.c.b16 %v7963, %v7962
  %v7991 = vpack.c.b16 %v7965, %v7964
  %v7992 = vpack.c.b16 %v7967, %v7966
  %v7993 = vpack.c.b16 %v7969, %v7968
  %v7994 = vpack.c.b16 %v7971, %v7970
  %v7995 = vpack.c.b16 %v7973, %v7972
  %v7996 = vpack.c.b16 %v7975, %v7974
  %v7997 = vpack.c.b16 %v7977, %v7976
  %v7998 = vpack.c.b16 %v7979, %v7978
  %v7999 = vpack.c.b16 %v7981, %v7980
  %v8000 = vpack.c.b16 %v7983, %v7982
  %v8001 = vpack.c.b16 %v7985, %v7984
  %8018 = vmatpush.bf16.msra.mxu0 %v7993
  %8019 = vmatpush.bf16.msra.mxu0 %v7992
  %8020 = vmatpush.bf16.msra.mxu0 %v7991
  %8021 = vmatpush.bf16.msra.mxu0 %v7990
  %8022 = vmatpush.bf16.msra.mxu0 %v7989
  %8023 = vmatpush.bf16.msra.mxu0 %v7988
  %8024 = vmatpush.bf16.msra.mxu0 %v7987
  %8025 = vmatpush.bf16.msra.mxu0 %v7986
  %8026 = vmatmul.bf16.gmra.mxu0 %v7601
  %v8027 = vpop.f32.mrf.mxu0
  %v8028 = vadd.f32 0.0, %v8027
  %v8029 = vpop.f32.mrf.mxu0
  %v8030 = vadd.f32 0.0, %v8029
  %8031 = vmatmul.bf16.gmra.mxu0 %v7603
  %v8032 = vpop.f32.mrf.mxu0
  %v8033 = vadd.f32 0.0, %v8032
  %v8034 = vpop.f32.mrf.mxu0
  %v8035 = vadd.f32 0.0, %v8034
  %8036 = vmatmul.bf16.gmra.mxu0 %v7605
  %v8037 = vpop.f32.mrf.mxu0
  %v8038 = vadd.f32 0.0, %v8037
  %v8039 = vpop.f32.mrf.mxu0
  %v8040 = vadd.f32 0.0, %v8039
  %8041 = vmatmul.bf16.gmra.mxu0 %v7607
  %v8042 = vpop.f32.mrf.mxu0
  %v8043 = vadd.f32 0.0, %v8042
  %v8044 = vpop.f32.mrf.mxu0
  %v8045 = vadd.f32 0.0, %v8044
  %8046 = vmatmul.bf16.gmra.mxu0 %v7609
  %v8047 = vpop.f32.mrf.mxu0
  %v8048 = vadd.f32 0.0, %v8047
  %v8049 = vpop.f32.mrf.mxu0
  %v8050 = vadd.f32 0.0, %v8049
  %8051 = vmatmul.bf16.gmra.mxu0 %v7611
  %v8052 = vpop.f32.mrf.mxu0
  %v8053 = vadd.f32 0.0, %v8052
  %v8054 = vpop.f32.mrf.mxu0
  %v8055 = vadd.f32 0.0, %v8054
  %8056 = vmatmul.bf16.gmra.mxu0 %v7613
  %v8057 = vpop.f32.mrf.mxu0
  %v8058 = vadd.f32 0.0, %v8057
  %v8059 = vpop.f32.mrf.mxu0
  %v8060 = vadd.f32 0.0, %v8059
  %8061 = vmatmul.bf16.gmra.mxu0 %v7615
  %v8062 = vpop.f32.mrf.mxu0
  %v8063 = vadd.f32 0.0, %v8062
  %v8064 = vpop.f32.mrf.mxu0
  %v8065 = vadd.f32 0.0, %v8064
  %8066 = vmatmul.bf16.gmra.mxu0 %v7617
  %v8067 = vpop.f32.mrf.mxu0
  %v8068 = vadd.f32 0.0, %v8067
  %v8069 = vpop.f32.mrf.mxu0
  %v8070 = vadd.f32 0.0, %v8069
  %8071 = vmatmul.bf16.gmra.mxu0 %v7619
  %v8072 = vpop.f32.mrf.mxu0
  %v8073 = vadd.f32 0.0, %v8072
  %v8074 = vpop.f32.mrf.mxu0
  %v8075 = vadd.f32 0.0, %v8074
  %8076 = vmatmul.bf16.gmra.mxu0 %v7621
  %v8077 = vpop.f32.mrf.mxu0
  %v8078 = vadd.f32 0.0, %v8077
  %v8079 = vpop.f32.mrf.mxu0
  %v8080 = vadd.f32 0.0, %v8079
  %8081 = vmatmul.bf16.gmra.mxu0 %v7623
  %v8082 = vpop.f32.mrf.mxu0
  %v8083 = vadd.f32 0.0, %v8082
  %v8084 = vpop.f32.mrf.mxu0
  %v8085 = vadd.f32 0.0, %v8084
  %8086 = vdwg.mxu0
  %8087 = vmatpush.bf16.msra.mxu0 %v8001
  %8088 = vmatpush.bf16.msra.mxu0 %v8000
  %8089 = vmatpush.bf16.msra.mxu0 %v7999
  %8090 = vmatpush.bf16.msra.mxu0 %v7998
  %8091 = vmatpush.bf16.msra.mxu0 %v7997
  %8092 = vmatpush.bf16.msra.mxu0 %v7996
  %8093 = vmatpush.bf16.msra.mxu0 %v7995
  %8094 = vmatpush.bf16.msra.mxu0 %v7994
  %8095 = vmatmul.bf16.gmra.mxu0 %v7602
  %v8096 = vpop.f32.mrf.mxu0
  %v8097 = vadd.f32 %v8028, %v8096
  %v8098 = vpop.f32.mrf.mxu0
  %v8099 = vadd.f32 %v8030, %v8098
  %8100 = vmatmul.bf16.gmra.mxu0 %v7604
  %v8101 = vpop.f32.mrf.mxu0
  %v8102 = vadd.f32 %v8033, %v8101
  %v8103 = vpop.f32.mrf.mxu0
  %v8104 = vadd.f32 %v8035, %v8103
  %8105 = vmatmul.bf16.gmra.mxu0 %v7606
  %v8106 = vpop.f32.mrf.mxu0
  %v8107 = vadd.f32 %v8038, %v8106
  %v8108 = vpop.f32.mrf.mxu0
  %v8109 = vadd.f32 %v8040, %v8108
  %8110 = vmatmul.bf16.gmra.mxu0 %v7608
  %v8111 = vpop.f32.mrf.mxu0
  %v8112 = vadd.f32 %v8043, %v8111
  %v8113 = vpop.f32.mrf.mxu0
  %v8114 = vadd.f32 %v8045, %v8113
  %8115 = vmatmul.bf16.gmra.mxu0 %v7610
  %v8116 = vpop.f32.mrf.mxu0
  %v8117 = vadd.f32 %v8048, %v8116
  %v8118 = vpop.f32.mrf.mxu0
  %v8119 = vadd.f32 %v8050, %v8118
  %8120 = vmatmul.bf16.gmra.mxu0 %v7612
  %v8121 = vpop.f32.mrf.mxu0
  %v8122 = vadd.f32 %v8053, %v8121
  %v8123 = vpop.f32.mrf.mxu0
  %v8124 = vadd.f32 %v8055, %v8123
  %8125 = vmatmul.bf16.gmra.mxu0 %v7614
  %v8126 = vpop.f32.mrf.mxu0
  %v8127 = vadd.f32 %v8058, %v8126
  %v8128 = vpop.f32.mrf.mxu0
  %v8129 = vadd.f32 %v8060, %v8128
  %8130 = vmatmul.bf16.gmra.mxu0 %v7616
  %v8131 = vpop.f32.mrf.mxu0
  %v8132 = vadd.f32 %v8063, %v8131
  %v8133 = vpop.f32.mrf.mxu0
  %v8134 = vadd.f32 %v8065, %v8133
  %8135 = vmatmul.bf16.gmra.mxu0 %v7618
  %v8136 = vpop.f32.mrf.mxu0
  %v8137 = vadd.f32 %v8068, %v8136
  %v8138 = vpop.f32.mrf.mxu0
  %v8139 = vadd.f32 %v8070, %v8138
  %8140 = vmatmul.bf16.gmra.mxu0 %v7620
  %v8141 = vpop.f32.mrf.mxu0
  %v8142 = vadd.f32 %v8073, %v8141
  %v8143 = vpop.f32.mrf.mxu0
  %v8144 = vadd.f32 %v8075, %v8143
  %8145 = vmatmul.bf16.gmra.mxu0 %v7622
  %v8146 = vpop.f32.mrf.mxu0
  %v8147 = vadd.f32 %v8078, %v8146
  %v8148 = vpop.f32.mrf.mxu0
  %v8149 = vadd.f32 %v8080, %v8148
  %8150 = vmatmul.bf16.gmra.mxu0 %v7624
  %v8151 = vpop.f32.mrf.mxu0
  %v8152 = vadd.f32 %v8083, %v8151
  %v8153 = vpop.f32.mrf.mxu0
  %v8154 = vadd.f32 %v8085, %v8153
  %8155 = vdwg.mxu0
  %s8156 = scalar_lea.vmem %s3, 256
  %v8157 = vld [vmem:[%s8156] sm:$0xf]
  %v8158 = vld [vmem:[%s8156 + $0x4] sm:$0xf]
  %v8159 = vld [vmem:[%s8156 + $0x8] sm:$0xf]
  %v8160 = vld [vmem:[%s8156 + $0xc] sm:$0xf]
  %v8161 = vld [vmem:[%s8156 + $0x10] sm:$0xf]
  %v8162 = vld [vmem:[%s8156 + $0x14] sm:$0xf]
  %v8163 = vld [vmem:[%s8156 + $0x18] sm:$0xf]
  %v8164 = vld [vmem:[%s8156 + $0x1c] sm:$0xf]
  %v8165 = vld [vmem:[%s8156 + $0x20] sm:$0xf]
  %v8166 = vld [vmem:[%s8156 + $0x24] sm:$0xf]
  %v8167 = vld [vmem:[%s8156 + $0x28] sm:$0xf]
  %v8168 = vld [vmem:[%s8156 + $0x2c] sm:$0xf]
  %v8169 = vld [vmem:[%s8156 + $0x30] sm:$0xf]
  %v8170 = vld [vmem:[%s8156 + $0x34] sm:$0xf]
  %v8171 = vld [vmem:[%s8156 + $0x38] sm:$0xf]
  %v8172 = vld [vmem:[%s8156 + $0x3c] sm:$0xf]
  %v8173 = vld [vmem:[%s8156 + $0x40] sm:$0xf]
  %v8174 = vld [vmem:[%s8156 + $0x44] sm:$0xf]
  %v8175 = vld [vmem:[%s8156 + $0x48] sm:$0xf]
  %v8176 = vld [vmem:[%s8156 + $0x4c] sm:$0xf]
  %v8177 = vld [vmem:[%s8156 + $0x50] sm:$0xf]
  %v8178 = vld [vmem:[%s8156 + $0x54] sm:$0xf]
  %v8179 = vld [vmem:[%s8156 + $0x58] sm:$0xf]
  %v8180 = vld [vmem:[%s8156 + $0x5c] sm:$0xf]
  %v8181 = vld [vmem:[%s8156 + $0x60] sm:$0xf]
  %v8182 = vld [vmem:[%s8156 + $0x64] sm:$0xf]
  %v8183 = vld [vmem:[%s8156 + $0x68] sm:$0xf]
  %v8184 = vld [vmem:[%s8156 + $0x6c] sm:$0xf]
  %v8185 = vld [vmem:[%s8156 + $0x70] sm:$0xf]
  %v8186 = vld [vmem:[%s8156 + $0x74] sm:$0xf]
  %v8187 = vld [vmem:[%s8156 + $0x78] sm:$0xf]
  %v8188 = vld [vmem:[%s8156 + $0x7c] sm:$0xf]
  %v8221 = vunpack.c.l.b16 %v8157
  %v8222 = vunpack.c.l.b16 %v8158
  %v8223 = vunpack.c.l.b16 %v8159
  %v8224 = vunpack.c.l.b16 %v8160
  %v8225 = vunpack.c.l.b16 %v8161
  %v8226 = vunpack.c.l.b16 %v8162
  %v8227 = vunpack.c.l.b16 %v8163
  %v8228 = vunpack.c.l.b16 %v8164
  %v8229 = vunpack.c.l.b16 %v8165
  %v8230 = vunpack.c.l.b16 %v8166
  %v8231 = vunpack.c.l.b16 %v8167
  %v8232 = vunpack.c.l.b16 %v8168
  %v8233 = vunpack.c.l.b16 %v8169
  %v8234 = vunpack.c.l.b16 %v8170
  %v8235 = vunpack.c.l.b16 %v8171
  %v8236 = vunpack.c.l.b16 %v8172
  %v8237 = vunpack.c.l.b16 %v8173
  %v8238 = vunpack.c.l.b16 %v8174
  %v8239 = vunpack.c.l.b16 %v8175
  %v8240 = vunpack.c.l.b16 %v8176
  %v8241 = vunpack.c.l.b16 %v8177
  %v8242 = vunpack.c.l.b16 %v8178
  %v8243 = vunpack.c.l.b16 %v8179
  %v8244 = vunpack.c.l.b16 %v8180
  %v8245 = vunpack.c.l.b16 %v8181
  %v8246 = vunpack.c.l.b16 %v8182
  %v8247 = vunpack.c.l.b16 %v8183
  %v8248 = vunpack.c.l.b16 %v8184
  %v8249 = vunpack.c.l.b16 %v8185
  %v8250 = vunpack.c.l.b16 %v8186
  %v8251 = vunpack.c.l.b16 %v8187
  %v8252 = vunpack.c.l.b16 %v8188
  %v8253 = vpack.c.b16 %v8222, %v8221
  %v8254 = vpack.c.b16 %v8224, %v8223
  %v8255 = vpack.c.b16 %v8226, %v8225
  %v8256 = vpack.c.b16 %v8228, %v8227
  %v8257 = vpack.c.b16 %v8230, %v8229
  %v8258 = vpack.c.b16 %v8232, %v8231
  %v8259 = vpack.c.b16 %v8234, %v8233
  %v8260 = vpack.c.b16 %v8236, %v8235
  %v8261 = vpack.c.b16 %v8238, %v8237
  %v8262 = vpack.c.b16 %v8240, %v8239
  %v8263 = vpack.c.b16 %v8242, %v8241
  %v8264 = vpack.c.b16 %v8244, %v8243
  %v8265 = vpack.c.b16 %v8246, %v8245
  %v8266 = vpack.c.b16 %v8248, %v8247
  %v8267 = vpack.c.b16 %v8250, %v8249
  %v8268 = vpack.c.b16 %v8252, %v8251
  %8285 = vmatpush.bf16.msra.mxu0 %v8260
  %8286 = vmatpush.bf16.msra.mxu0 %v8259
  %8287 = vmatpush.bf16.msra.mxu0 %v8258
  %8288 = vmatpush.bf16.msra.mxu0 %v8257
  %8289 = vmatpush.bf16.msra.mxu0 %v8256
  %8290 = vmatpush.bf16.msra.mxu0 %v8255
  %8291 = vmatpush.bf16.msra.mxu0 %v8254
  %8292 = vmatpush.bf16.msra.mxu0 %v8253
  %8293 = vmatmul.bf16.gmra.mxu0 %v7601
  %v8294 = vpop.f32.mrf.mxu0
  %v8295 = vpop.f32.mrf.mxu0
  %v8296 = vadd.f32 0.0, %v8295
  %8297 = vmatmul.bf16.gmra.mxu0 %v7603
  %v8298 = vpop.f32.mrf.mxu0
  %v8299 = vadd.f32 0.0, %v8298
  %v8300 = vpop.f32.mrf.mxu0
  %v8301 = vadd.f32 0.0, %v8300
  %8302 = vmatmul.bf16.gmra.mxu0 %v7605
  %v8303 = vpop.f32.mrf.mxu0
  %v8304 = vadd.f32 0.0, %v8303
  %v8305 = vpop.f32.mrf.mxu0
  %v8306 = vadd.f32 0.0, %v8305
  %8307 = vmatmul.bf16.gmra.mxu0 %v7607
  %v8308 = vpop.f32.mrf.mxu0
  %v8309 = vadd.f32 0.0, %v8308
  %v8310 = vpop.f32.mrf.mxu0
  %v8311 = vadd.f32 0.0, %v8310
  %8312 = vmatmul.bf16.gmra.mxu0 %v7609
  %v8313 = vpop.f32.mrf.mxu0
  %v8314 = vadd.f32 0.0, %v8313
  %v8315 = vpop.f32.mrf.mxu0
  %v8316 = vadd.f32 0.0, %v8315
  %8317 = vmatmul.bf16.gmra.mxu0 %v7611
  %v8318 = vpop.f32.mrf.mxu0
  %v8319 = vadd.f32 0.0, %v8318
  %v8320 = vpop.f32.mrf.mxu0
  %v8321 = vadd.f32 0.0, %v8320
  %8322 = vmatmul.bf16.gmra.mxu0 %v7613
  %v8323 = vpop.f32.mrf.mxu0
  %v8324 = vadd.f32 0.0, %v8323
  %v8325 = vpop.f32.mrf.mxu0
  %v8326 = vadd.f32 0.0, %v8325
  %8327 = vmatmul.bf16.gmra.mxu0 %v7615
  %v8328 = vpop.f32.mrf.mxu0
  %v8329 = vadd.f32 0.0, %v8328
  %v8330 = vpop.f32.mrf.mxu0
  %v8331 = vadd.f32 0.0, %v8330
  %8332 = vmatmul.bf16.gmra.mxu0 %v7617
  %v8333 = vpop.f32.mrf.mxu0
  %v8334 = vadd.f32 0.0, %v8333
  %v8335 = vpop.f32.mrf.mxu0
  %v8336 = vadd.f32 0.0, %v8335
  %8337 = vmatmul.bf16.gmra.mxu0 %v7619
  %v8338 = vpop.f32.mrf.mxu0
  %v8339 = vadd.f32 0.0, %v8338
  %v8340 = vpop.f32.mrf.mxu0
  %v8341 = vadd.f32 0.0, %v8340
  %8342 = vmatmul.bf16.gmra.mxu0 %v7621
  %v8343 = vpop.f32.mrf.mxu0
  %v8344 = vadd.f32 0.0, %v8343
  %v8345 = vpop.f32.mrf.mxu0
  %v8346 = vadd.f32 0.0, %v8345
  %8347 = vmatmul.bf16.gmra.mxu0 %v7623
  %v8348 = vpop.f32.mrf.mxu0
  %v8349 = vadd.f32 0.0, %v8348
  %v8350 = vpop.f32.mrf.mxu0
  %v8351 = vadd.f32 0.0, %v8350
  %8352 = vdwg.mxu0
  %8353 = vmatpush.bf16.msra.mxu0 %v8268
  %8354 = vmatpush.bf16.msra.mxu0 %v8267
  %8355 = vmatpush.bf16.msra.mxu0 %v8266
  %8356 = vmatpush.bf16.msra.mxu0 %v8265
  %8357 = vmatpush.bf16.msra.mxu0 %v8264
  %8358 = vmatpush.bf16.msra.mxu0 %v8263
  %8359 = vmatpush.bf16.msra.mxu0 %v8262
  %8360 = vmatpush.bf16.msra.mxu0 %v8261
  %8361 = vmatmul.bf16.gmra.mxu0 %v7602
  %v8362 = vpop.f32.mrf.mxu0
  %v8363 = vpop.f32.mrf.mxu0
  %v8364 = vadd.f32 %v8296, %v8363
  %8365 = vmatmul.bf16.gmra.mxu0 %v7604
  %v8366 = vpop.f32.mrf.mxu0
  %v8367 = vadd.f32 %v8299, %v8366
  %v8368 = vpop.f32.mrf.mxu0
  %v8369 = vadd.f32 %v8301, %v8368
  %8370 = vmatmul.bf16.gmra.mxu0 %v7606
  %v8371 = vpop.f32.mrf.mxu0
  %v8372 = vadd.f32 %v8304, %v8371
  %v8373 = vpop.f32.mrf.mxu0
  %v8374 = vadd.f32 %v8306, %v8373
  %8375 = vmatmul.bf16.gmra.mxu0 %v7608
  %v8376 = vpop.f32.mrf.mxu0
  %v8377 = vadd.f32 %v8309, %v8376
  %v8378 = vpop.f32.mrf.mxu0
  %v8379 = vadd.f32 %v8311, %v8378
  %8380 = vmatmul.bf16.gmra.mxu0 %v7610
  %v8381 = vpop.f32.mrf.mxu0
  %v8382 = vadd.f32 %v8314, %v8381
  %v8383 = vpop.f32.mrf.mxu0
  %v8384 = vadd.f32 %v8316, %v8383
  %8385 = vmatmul.bf16.gmra.mxu0 %v7612
  %v8386 = vpop.f32.mrf.mxu0
  %v8387 = vadd.f32 %v8319, %v8386
  %v8388 = vpop.f32.mrf.mxu0
  %v8389 = vadd.f32 %v8321, %v8388
  %8390 = vmatmul.bf16.gmra.mxu0 %v7614
  %v8391 = vpop.f32.mrf.mxu0
  %v8392 = vadd.f32 %v8324, %v8391
  %v8393 = vpop.f32.mrf.mxu0
  %v8394 = vadd.f32 %v8326, %v8393
  %8395 = vmatmul.bf16.gmra.mxu0 %v7616
  %v8396 = vpop.f32.mrf.mxu0
  %v8397 = vadd.f32 %v8329, %v8396
  %v8398 = vpop.f32.mrf.mxu0
  %v8399 = vadd.f32 %v8331, %v8398
  %8400 = vmatmul.bf16.gmra.mxu0 %v7618
  %v8401 = vpop.f32.mrf.mxu0
  %v8402 = vadd.f32 %v8334, %v8401
  %v8403 = vpop.f32.mrf.mxu0
  %v8404 = vadd.f32 %v8336, %v8403
  %8405 = vmatmul.bf16.gmra.mxu0 %v7620
  %v8406 = vpop.f32.mrf.mxu0
  %v8407 = vadd.f32 %v8339, %v8406
  %v8408 = vpop.f32.mrf.mxu0
  %v8409 = vadd.f32 %v8341, %v8408
  %8410 = vmatmul.bf16.gmra.mxu0 %v7622
  %v8411 = vpop.f32.mrf.mxu0
  %v8412 = vadd.f32 %v8344, %v8411
  %v8413 = vpop.f32.mrf.mxu0
  %v8414 = vadd.f32 %v8346, %v8413
  %8415 = vmatmul.bf16.gmra.mxu0 %v7624
  %v8416 = vpop.f32.mrf.mxu0
  %v8417 = vadd.f32 %v8349, %v8416
  %v8418 = vpop.f32.mrf.mxu0
  %v8419 = vadd.f32 %v8351, %v8418
  %8420 = vdwg.mxu0
  %v8421 = vadd.f32 %v8097, 0.0
  %v8422 = vadd.f32 %v7831, %v8099
  %v8423 = vadd.f32 %v7833, %v8102
  %v8424 = vadd.f32 %v7836, %v8104
  %v8425 = vadd.f32 %v7838, %v8107
  %v8426 = vadd.f32 %v7841, %v8109
  %v8427 = vadd.f32 %v7843, %v8112
  %v8428 = vadd.f32 %v7846, %v8114
  %v8429 = vadd.f32 %v7848, %v8117
  %v8430 = vadd.f32 %v7851, %v8119
  %v8431 = vadd.f32 %v7853, %v8122
  %v8432 = vadd.f32 %v7856, %v8124
  %v8433 = vadd.f32 %v7858, %v8127
  %v8434 = vadd.f32 %v7861, %v8129
  %v8435 = vadd.f32 %v7863, %v8132
  %v8436 = vadd.f32 %v7866, %v8134
  %v8437 = vadd.f32 %v7868, %v8137
  %v8438 = vadd.f32 %v7871, %v8139
  %v8439 = vadd.f32 %v7873, %v8142
  %v8440 = vadd.f32 %v7876, %v8144
  %v8441 = vadd.f32 %v7878, %v8147
  %v8442 = vadd.f32 %v7881, %v8149
  %v8443 = vadd.f32 %v7883, %v8152
  %v8444 = vadd.f32 %v7886, %v8154
  %v8445 = vadd.f32 %v8421, %v8364
  %v8446 = vadd.f32 %v8422, %v8367
  %v8447 = vadd.f32 %v8423, %v8369
  %v8448 = vadd.f32 %v8424, %v8372
  %v8449 = vadd.f32 %v8425, %v8374
  %v8450 = vadd.f32 %v8426, %v8377
  %v8451 = vadd.f32 %v8427, %v8379
  %v8452 = vadd.f32 %v8428, %v8382
  %v8453 = vadd.f32 %v8429, %v8384
  %v8454 = vadd.f32 %v8430, %v8387
  %v8455 = vadd.f32 %v8431, %v8389
  %v8456 = vadd.f32 %v8432, %v8392
  %v8457 = vadd.f32 %v8433, %v8394
  %v8458 = vadd.f32 %v8434, %v8397
  %v8459 = vadd.f32 %v8435, %v8399
  %v8460 = vadd.f32 %v8436, %v8402
  %v8461 = vadd.f32 %v8437, %v8404
  %v8462 = vadd.f32 %v8438, %v8407
  %v8463 = vadd.f32 %v8439, %v8409
  %v8464 = vadd.f32 %v8440, %v8412
  %v8465 = vadd.f32 %v8441, %v8414
  %v8466 = vadd.f32 %v8442, %v8417
  %v8467 = vadd.f32 %v8443, %v8419
  %v8468 = vadd.f32 %v8444, 0.0
  %v8469 = vmax.f32 %v8445, %v8446
  %v8470 = vmax.f32 %v8447, %v8448
  %v8471 = vmax.f32 %v8449, %v8450
  %v8472 = vmax.f32 %v8451, %v8452
  %v8473 = vmax.f32 %v8453, %v8454
  %v8474 = vmax.f32 %v8455, %v8456
  %v8475 = vmax.f32 %v8457, %v8458
  %v8476 = vmax.f32 %v8459, %v8460
  %v8477 = vmax.f32 %v8461, %v8462
  %v8478 = vmax.f32 %v8463, %v8464
  %v8479 = vmax.f32 %v8465, %v8466
  %v8480 = vmax.f32 %v8467, %v8468
  %v8481 = vld [vmem:[%s4] sm:$0x1]
  %v8483 = vperm.slane %v8481, 0
  %v8485 = vadd.f32 %v8469, %v8483
  %v8486 = vadd.f32 %v8470, %v8483
  %v8487 = vadd.f32 %v8471, %v8483
  %v8488 = vadd.f32 %v8472, %v8483
  %v8489 = vadd.f32 %v8473, %v8483
  %v8490 = vadd.f32 %v8474, %v8483
  %v8491 = vadd.f32 %v8475, %v8483
  %v8492 = vadd.f32 %v8476, %v8483
  %v8493 = vadd.f32 %v8477, %v8483
  %v8494 = vadd.f32 %v8478, %v8483
  %v8495 = vadd.f32 %v8479, %v8483
  %v8496 = vadd.f32 %v8480, %v8483
  %v8497 = vmax.f32 %v8485, 0.0
  %v8498 = vmax.f32 %v8486, 0.0
  %v8499 = vmax.f32 %v8487, 0.0
  %v8500 = vmax.f32 %v8488, 0.0
  %v8501 = vmax.f32 %v8489, 0.0
  %v8502 = vmax.f32 %v8490, 0.0
  %v8503 = vmax.f32 %v8491, 0.0
  %v8504 = vmax.f32 %v8492, 0.0
  %v8505 = vmax.f32 %v8493, 0.0
  %v8506 = vmax.f32 %v8494, 0.0
  %v8507 = vmax.f32 %v8495, 0.0
  %v8508 = vmax.f32 %v8496, 0.0
  %v8509 = vpack.c.bf16 %v8498, %v8497
  %v8510 = vpack.c.bf16 %v8500, %v8499
  %v8511 = vpack.c.bf16 %v8502, %v8501
  %v8512 = vpack.c.bf16 %v8504, %v8503
  %v8513 = vpack.c.bf16 %v8506, %v8505
  %v8514 = vpack.c.bf16 %v8508, %v8507
  %v8515 = vld [vmem:[%s5] sm:$0xf]
  %v8516 = vld [vmem:[%s5 + $0x4] sm:$0xf]
  %v8517 = vld [vmem:[%s5 + $0x8] sm:$0xf]
  %v8518 = vld [vmem:[%s5 + $0xc] sm:$0xf]
  %v8519 = vld [vmem:[%s5 + $0x10] sm:$0xf]
  %v8520 = vld [vmem:[%s5 + $0x14] sm:$0xf]
  %v8521 = vld [vmem:[%s5 + $0x18] sm:$0xf]
  %v8522 = vld [vmem:[%s5 + $0x1c] sm:$0xf]
  %v8523 = vld [vmem:[%s5 + $0x20] sm:$0xf]
  %v8524 = vld [vmem:[%s5 + $0x24] sm:$0xf]
  %v8525 = vld [vmem:[%s5 + $0x28] sm:$0xf]
  %v8526 = vld [vmem:[%s5 + $0x2c] sm:$0xf]
  %v8527 = vld [vmem:[%s5 + $0x30] sm:$0xf]
  %v8528 = vld [vmem:[%s5 + $0x34] sm:$0xf]
  %v8529 = vld [vmem:[%s5 + $0x38] sm:$0xf]
  %v8530 = vld [vmem:[%s5 + $0x3c] sm:$0xf]
  %v8547 = vunpack.c.l.b16 %v8515
  %v8548 = vunpack.c.l.b16 %v8516
  %v8549 = vunpack.c.l.b16 %v8517
  %v8550 = vunpack.c.l.b16 %v8518
  %v8551 = vunpack.c.l.b16 %v8519
  %v8552 = vunpack.c.l.b16 %v8520
  %v8553 = vunpack.c.l.b16 %v8521
  %v8554 = vunpack.c.l.b16 %v8522
  %v8555 = vunpack.c.l.b16 %v8523
  %v8556 = vunpack.c.l.b16 %v8524
  %v8557 = vunpack.c.l.b16 %v8525
  %v8558 = vunpack.c.l.b16 %v8526
  %v8559 = vunpack.c.l.b16 %v8527
  %v8560 = vunpack.c.l.b16 %v8528
  %v8561 = vunpack.c.l.b16 %v8529
  %v8562 = vunpack.c.l.b16 %v8530
  %v8563 = vpack.c.b16 %v8548, %v8547
  %v8564 = vpack.c.b16 %v8550, %v8549
  %v8565 = vpack.c.b16 %v8552, %v8551
  %v8566 = vpack.c.b16 %v8554, %v8553
  %v8567 = vpack.c.b16 %v8556, %v8555
  %v8568 = vpack.c.b16 %v8558, %v8557
  %v8569 = vpack.c.b16 %v8560, %v8559
  %v8570 = vpack.c.b16 %v8562, %v8561
  %8579 = vmatpush.bf16.msra.mxu0 %v8570
  %8580 = vmatpush.bf16.msra.mxu0 %v8569
  %8581 = vmatpush.bf16.msra.mxu0 %v8568
  %8582 = vmatpush.bf16.msra.mxu0 %v8567
  %8583 = vmatpush.bf16.msra.mxu0 %v8566
  %8584 = vmatpush.bf16.msra.mxu0 %v8565
  %8585 = vmatpush.bf16.msra.mxu0 %v8564
  %8586 = vmatpush.bf16.msra.mxu0 %v8563
  %8587 = vmatmul.bf16.gmra.mxu0 %v8509
  %v8588 = vpop.f32.mrf.mxu0
  %v8589 = vadd.f32 0.0, %v8588
  %v8590 = vpop.f32.mrf.mxu0
  %v8591 = vadd.f32 0.0, %v8590
  %8592 = vmatmul.bf16.gmra.mxu0 %v8510
  %v8593 = vpop.f32.mrf.mxu0
  %v8594 = vadd.f32 0.0, %v8593
  %v8595 = vpop.f32.mrf.mxu0
  %v8596 = vadd.f32 0.0, %v8595
  %8597 = vmatmul.bf16.gmra.mxu0 %v8511
  %v8598 = vpop.f32.mrf.mxu0
  %v8599 = vadd.f32 0.0, %v8598
  %v8600 = vpop.f32.mrf.mxu0
  %v8601 = vadd.f32 0.0, %v8600
  %8602 = vmatmul.bf16.gmra.mxu0 %v8512
  %v8603 = vpop.f32.mrf.mxu0
  %v8604 = vadd.f32 0.0, %v8603
  %v8605 = vpop.f32.mrf.mxu0
  %v8606 = vadd.f32 0.0, %v8605
  %8607 = vmatmul.bf16.gmra.mxu0 %v8513
  %v8608 = vpop.f32.mrf.mxu0
  %v8609 = vadd.f32 0.0, %v8608
  %v8610 = vpop.f32.mrf.mxu0
  %v8611 = vadd.f32 0.0, %v8610
  %8612 = vmatmul.bf16.gmra.mxu0 %v8514
  %v8613 = vpop.f32.mrf.mxu0
  %v8614 = vadd.f32 0.0, %v8613
  %v8615 = vpop.f32.mrf.mxu0
  %8616 = vdwg.mxu0
  %s8617 = scalar_lea.vmem %s5, 64
  %v8618 = vld [vmem:[%s8617] sm:$0xf]
  %v8619 = vld [vmem:[%s8617 + $0x4] sm:$0xf]
  %v8620 = vld [vmem:[%s8617 + $0x8] sm:$0xf]
  %v8621 = vld [vmem:[%s8617 + $0xc] sm:$0xf]
  %v8622 = vld [vmem:[%s8617 + $0x10] sm:$0xf]
  %v8623 = vld [vmem:[%s8617 + $0x14] sm:$0xf]
  %v8624 = vld [vmem:[%s8617 + $0x18] sm:$0xf]
  %v8625 = vld [vmem:[%s8617 + $0x1c] sm:$0xf]
  %v8626 = vld [vmem:[%s8617 + $0x20] sm:$0xf]
  %v8627 = vld [vmem:[%s8617 + $0x24] sm:$0xf]
  %v8628 = vld [vmem:[%s8617 + $0x28] sm:$0xf]
  %v8629 = vld [vmem:[%s8617 + $0x2c] sm:$0xf]
  %v8630 = vld [vmem:[%s8617 + $0x30] sm:$0xf]
  %v8631 = vld [vmem:[%s8617 + $0x34] sm:$0xf]
  %v8632 = vld [vmem:[%s8617 + $0x38] sm:$0xf]
  %v8633 = vld [vmem:[%s8617 + $0x3c] sm:$0xf]
  %v8650 = vunpack.c.l.b16 %v8618
  %v8651 = vunpack.c.l.b16 %v8619
  %v8652 = vunpack.c.l.b16 %v8620
  %v8653 = vunpack.c.l.b16 %v8621
  %v8654 = vunpack.c.l.b16 %v8622
  %v8655 = vunpack.c.l.b16 %v8623
  %v8656 = vunpack.c.l.b16 %v8624
  %v8657 = vunpack.c.l.b16 %v8625
  %v8658 = vunpack.c.l.b16 %v8626
  %v8659 = vunpack.c.l.b16 %v8627
  %v8660 = vunpack.c.l.b16 %v8628
  %v8661 = vunpack.c.l.b16 %v8629
  %v8662 = vunpack.c.l.b16 %v8630
  %v8663 = vunpack.c.l.b16 %v8631
  %v8664 = vunpack.c.l.b16 %v8632
  %v8665 = vunpack.c.l.b16 %v8633
  %v8666 = vpack.c.b16 %v8651, %v8650
  %v8667 = vpack.c.b16 %v8653, %v8652
  %v8668 = vpack.c.b16 %v8655, %v8654
  %v8669 = vpack.c.b16 %v8657, %v8656
  %v8670 = vpack.c.b16 %v8659, %v8658
  %v8671 = vpack.c.b16 %v8661, %v8660
  %v8672 = vpack.c.b16 %v8663, %v8662
  %v8673 = vpack.c.b16 %v8665, %v8664
  %8682 = vmatpush.bf16.msra.mxu0 %v8673
  %8683 = vmatpush.bf16.msra.mxu0 %v8672
  %8684 = vmatpush.bf16.msra.mxu0 %v8671
  %8685 = vmatpush.bf16.msra.mxu0 %v8670
  %8686 = vmatpush.bf16.msra.mxu0 %v8669
  %8687 = vmatpush.bf16.msra.mxu0 %v8668
  %8688 = vmatpush.bf16.msra.mxu0 %v8667
  %8689 = vmatpush.bf16.msra.mxu0 %v8666
  %8690 = vmatmul.bf16.gmra.mxu0 %v8509
  %v8691 = vpop.f32.mrf.mxu0
  %v8692 = vadd.f32 0.0, %v8691
  %v8693 = vpop.f32.mrf.mxu0
  %v8694 = vadd.f32 0.0, %v8693
  %8695 = vmatmul.bf16.gmra.mxu0 %v8510
  %v8696 = vpop.f32.mrf.mxu0
  %v8697 = vadd.f32 0.0, %v8696
  %v8698 = vpop.f32.mrf.mxu0
  %v8699 = vadd.f32 0.0, %v8698
  %8700 = vmatmul.bf16.gmra.mxu0 %v8511
  %v8701 = vpop.f32.mrf.mxu0
  %v8702 = vadd.f32 0.0, %v8701
  %v8703 = vpop.f32.mrf.mxu0
  %v8704 = vadd.f32 0.0, %v8703
  %8705 = vmatmul.bf16.gmra.mxu0 %v8512
  %v8706 = vpop.f32.mrf.mxu0
  %v8707 = vadd.f32 0.0, %v8706
  %v8708 = vpop.f32.mrf.mxu0
  %v8709 = vadd.f32 0.0, %v8708
  %8710 = vmatmul.bf16.gmra.mxu0 %v8513
  %v8711 = vpop.f32.mrf.mxu0
  %v8712 = vadd.f32 0.0, %v8711
  %v8713 = vpop.f32.mrf.mxu0
  %v8714 = vadd.f32 0.0, %v8713
  %8715 = vmatmul.bf16.gmra.mxu0 %v8514
  %v8716 = vpop.f32.mrf.mxu0
  %v8717 = vadd.f32 0.0, %v8716
  %v8718 = vpop.f32.mrf.mxu0
  %v8719 = vadd.f32 0.0, %v8718
  %8720 = vdwg.mxu0
  %s8721 = scalar_lea.vmem %s5, 128
  %v8722 = vld [vmem:[%s8721] sm:$0xf]
  %v8723 = vld [vmem:[%s8721 + $0x4] sm:$0xf]
  %v8724 = vld [vmem:[%s8721 + $0x8] sm:$0xf]
  %v8725 = vld [vmem:[%s8721 + $0xc] sm:$0xf]
  %v8726 = vld [vmem:[%s8721 + $0x10] sm:$0xf]
  %v8727 = vld [vmem:[%s8721 + $0x14] sm:$0xf]
  %v8728 = vld [vmem:[%s8721 + $0x18] sm:$0xf]
  %v8729 = vld [vmem:[%s8721 + $0x1c] sm:$0xf]
  %v8730 = vld [vmem:[%s8721 + $0x20] sm:$0xf]
  %v8731 = vld [vmem:[%s8721 + $0x24] sm:$0xf]
  %v8732 = vld [vmem:[%s8721 + $0x28] sm:$0xf]
  %v8733 = vld [vmem:[%s8721 + $0x2c] sm:$0xf]
  %v8734 = vld [vmem:[%s8721 + $0x30] sm:$0xf]
  %v8735 = vld [vmem:[%s8721 + $0x34] sm:$0xf]
  %v8736 = vld [vmem:[%s8721 + $0x38] sm:$0xf]
  %v8737 = vld [vmem:[%s8721 + $0x3c] sm:$0xf]
  %v8754 = vunpack.c.l.b16 %v8722
  %v8755 = vunpack.c.l.b16 %v8723
  %v8756 = vunpack.c.l.b16 %v8724
  %v8757 = vunpack.c.l.b16 %v8725
  %v8758 = vunpack.c.l.b16 %v8726
  %v8759 = vunpack.c.l.b16 %v8727
  %v8760 = vunpack.c.l.b16 %v8728
  %v8761 = vunpack.c.l.b16 %v8729
  %v8762 = vunpack.c.l.b16 %v8730
  %v8763 = vunpack.c.l.b16 %v8731
  %v8764 = vunpack.c.l.b16 %v8732
  %v8765 = vunpack.c.l.b16 %v8733
  %v8766 = vunpack.c.l.b16 %v8734
  %v8767 = vunpack.c.l.b16 %v8735
  %v8768 = vunpack.c.l.b16 %v8736
  %v8769 = vunpack.c.l.b16 %v8737
  %v8770 = vpack.c.b16 %v8755, %v8754
  %v8771 = vpack.c.b16 %v8757, %v8756
  %v8772 = vpack.c.b16 %v8759, %v8758
  %v8773 = vpack.c.b16 %v8761, %v8760
  %v8774 = vpack.c.b16 %v8763, %v8762
  %v8775 = vpack.c.b16 %v8765, %v8764
  %v8776 = vpack.c.b16 %v8767, %v8766
  %v8777 = vpack.c.b16 %v8769, %v8768
  %8786 = vmatpush.bf16.msra.mxu0 %v8777
  %8787 = vmatpush.bf16.msra.mxu0 %v8776
  %8788 = vmatpush.bf16.msra.mxu0 %v8775
  %8789 = vmatpush.bf16.msra.mxu0 %v8774
  %8790 = vmatpush.bf16.msra.mxu0 %v8773
  %8791 = vmatpush.bf16.msra.mxu0 %v8772
  %8792 = vmatpush.bf16.msra.mxu0 %v8771
  %8793 = vmatpush.bf16.msra.mxu0 %v8770
  %8794 = vmatmul.bf16.gmra.mxu0 %v8509
  %v8795 = vpop.f32.mrf.mxu0
  %v8796 = vpop.f32.mrf.mxu0
  %v8797 = vadd.f32 0.0, %v8796
  %8798 = vmatmul.bf16.gmra.mxu0 %v8510
  %v8799 = vpop.f32.mrf.mxu0
  %v8800 = vadd.f32 0.0, %v8799
  %v8801 = vpop.f32.mrf.mxu0
  %v8802 = vadd.f32 0.0, %v8801
  %8803 = vmatmul.bf16.gmra.mxu0 %v8511
  %v8804 = vpop.f32.mrf.mxu0
  %v8805 = vadd.f32 0.0, %v8804
  %v8806 = vpop.f32.mrf.mxu0
  %v8807 = vadd.f32 0.0, %v8806
  %8808 = vmatmul.bf16.gmra.mxu0 %v8512
  %v8809 = vpop.f32.mrf.mxu0
  %v8810 = vadd.f32 0.0, %v8809
  %v8811 = vpop.f32.mrf.mxu0
  %v8812 = vadd.f32 0.0, %v8811
  %8813 = vmatmul.bf16.gmra.mxu0 %v8513
  %v8814 = vpop.f32.mrf.mxu0
  %v8815 = vadd.f32 0.0, %v8814
  %v8816 = vpop.f32.mrf.mxu0
  %v8817 = vadd.f32 0.0, %v8816
  %8818 = vmatmul.bf16.gmra.mxu0 %v8514
  %v8819 = vpop.f32.mrf.mxu0
  %v8820 = vadd.f32 0.0, %v8819
  %v8821 = vpop.f32.mrf.mxu0
  %v8822 = vadd.f32 0.0, %v8821
  %8823 = vdwg.mxu0
  %v8824 = vadd.f32 %v8692, 0.0
  %v8825 = vadd.f32 %v8589, %v8694
  %v8826 = vadd.f32 %v8591, %v8697
  %v8827 = vadd.f32 %v8594, %v8699
  %v8828 = vadd.f32 %v8596, %v8702
  %v8829 = vadd.f32 %v8599, %v8704
  %v8830 = vadd.f32 %v8601, %v8707
  %v8831 = vadd.f32 %v8604, %v8709
  %v8832 = vadd.f32 %v8606, %v8712
  %v8833 = vadd.f32 %v8609, %v8714
  %v8834 = vadd.f32 %v8611, %v8717
  %v8835 = vadd.f32 %v8614, %v8719
  %v8836 = vadd.f32 %v8824, %v8797
  %v8837 = vadd.f32 %v8825, %v8800
  %v8838 = vadd.f32 %v8826, %v8802
  %v8839 = vadd.f32 %v8827, %v8805
  %v8840 = vadd.f32 %v8828, %v8807
  %v8841 = vadd.f32 %v8829, %v8810
  %v8842 = vadd.f32 %v8830, %v8812
  %v8843 = vadd.f32 %v8831, %v8815
  %v8844 = vadd.f32 %v8832, %v8817
  %v8845 = vadd.f32 %v8833, %v8820
  %v8846 = vadd.f32 %v8834, %v8822
  %v8847 = vadd.f32 %v8835, 0.0
  %v8848 = vmax.f32 %v8836, %v8837
  %v8849 = vmax.f32 %v8838, %v8839
  %v8850 = vmax.f32 %v8840, %v8841
  %v8851 = vmax.f32 %v8842, %v8843
  %v8852 = vmax.f32 %v8844, %v8845
  %v8853 = vmax.f32 %v8846, %v8847
  %v8854 = vld [vmem:[%s6] sm:$0x1]
  %v8856 = vperm.slane %v8854, 0
  %v8858 = vadd.f32 %v8848, %v8856
  %v8859 = vadd.f32 %v8849, %v8856
  %v8860 = vadd.f32 %v8850, %v8856
  %v8861 = vadd.f32 %v8851, %v8856
  %v8862 = vadd.f32 %v8852, %v8856
  %v8863 = vadd.f32 %v8853, %v8856
  %v8864 = vmax.f32 %v8858, 0.0
  %v8865 = vmax.f32 %v8859, 0.0
  %v8866 = vmax.f32 %v8860, 0.0
  %v8867 = vmax.f32 %v8861, 0.0
  %v8868 = vmax.f32 %v8862, 0.0
  %v8869 = vmax.f32 %v8863, 0.0
  %v8870 = vpack.c.bf16 %v8865, %v8864
  %v8871 = vpack.c.bf16 %v8867, %v8866
  %v8872 = vpack.c.bf16 %v8869, %v8868
  %v8873 = vld [vmem:[%s7] sm:$0xf]
  %v8874 = vld [vmem:[%s7 + $0x4] sm:$0xf]
  %v8875 = vld [vmem:[%s7 + $0x8] sm:$0xf]
  %v8876 = vld [vmem:[%s7 + $0xc] sm:$0xf]
  %v8877 = vld [vmem:[%s7 + $0x10] sm:$0xf]
  %v8878 = vld [vmem:[%s7 + $0x14] sm:$0xf]
  %v8879 = vld [vmem:[%s7 + $0x18] sm:$0xf]
  %v8880 = vld [vmem:[%s7 + $0x1c] sm:$0xf]
  %v8889 = vunpack.c.l.b16 %v8873
  %v8890 = vunpack.c.l.b16 %v8874
  %v8891 = vunpack.c.l.b16 %v8875
  %v8892 = vunpack.c.l.b16 %v8876
  %v8893 = vunpack.c.l.b16 %v8877
  %v8894 = vunpack.c.l.b16 %v8878
  %v8895 = vunpack.c.l.b16 %v8879
  %v8896 = vunpack.c.l.b16 %v8880
  %v8897 = vpack.c.b16 %v8890, %v8889
  %v8898 = vpack.c.b16 %v8892, %v8891
  %v8899 = vpack.c.b16 %v8894, %v8893
  %v8900 = vpack.c.b16 %v8896, %v8895
  %vm8905 = vcmask 523264
  %v8907 = vsel %vm8905, %v8870, 0
  %v8910 = vsel %vm8905, %v8871, 0
  %v8913 = vsel %vm8905, %v8872, 0
  %8915 = vmatpush.bf16.msra.mxu0 0
  %8916 = vmatpush.bf16.msra.mxu0 0
  %8917 = vmatpush.bf16.msra.mxu0 0
  %8918 = vmatpush.bf16.msra.mxu0 0
  %8919 = vmatpush.bf16.msra.mxu0 %v8900
  %8920 = vmatpush.bf16.msra.mxu0 %v8899
  %8921 = vmatpush.bf16.msra.mxu0 %v8898
  %8922 = vmatpush.bf16.msra.mxu0 %v8897
  %8923 = vmatmul.bf16.gmra.mxu0 %v8907
  %v8924 = vpop.f32.mrf.mxu0
  %v8925 = vadd.f32 0.0, %v8924
  %v8926 = vpop.f32.mrf.mxu0
  %v8927 = vadd.f32 0.0, %v8926
  %8928 = vmatmul.bf16.gmra.mxu0 %v8910
  %v8929 = vpop.f32.mrf.mxu0
  %v8930 = vadd.f32 0.0, %v8929
  %v8931 = vpop.f32.mrf.mxu0
  %v8932 = vadd.f32 0.0, %v8931
  %8933 = vmatmul.bf16.gmra.mxu0 %v8913
  %v8934 = vpop.f32.mrf.mxu0
  %v8935 = vadd.f32 0.0, %v8934
  %v8936 = vpop.f32.mrf.mxu0
  %8937 = vdwg.mxu0
  %s8938 = scalar_lea.vmem %s7, 32
  %v8939 = vld [vmem:[%s8938] sm:$0xf]
  %v8940 = vld [vmem:[%s8938 + $0x4] sm:$0xf]
  %v8941 = vld [vmem:[%s8938 + $0x8] sm:$0xf]
  %v8942 = vld [vmem:[%s8938 + $0xc] sm:$0xf]
  %v8943 = vld [vmem:[%s8938 + $0x10] sm:$0xf]
  %v8944 = vld [vmem:[%s8938 + $0x14] sm:$0xf]
  %v8945 = vld [vmem:[%s8938 + $0x18] sm:$0xf]
  %v8946 = vld [vmem:[%s8938 + $0x1c] sm:$0xf]
  %v8955 = vunpack.c.l.b16 %v8939
  %v8956 = vunpack.c.l.b16 %v8940
  %v8957 = vunpack.c.l.b16 %v8941
  %v8958 = vunpack.c.l.b16 %v8942
  %v8959 = vunpack.c.l.b16 %v8943
  %v8960 = vunpack.c.l.b16 %v8944
  %v8961 = vunpack.c.l.b16 %v8945
  %v8962 = vunpack.c.l.b16 %v8946
  %v8963 = vpack.c.b16 %v8956, %v8955
  %v8964 = vpack.c.b16 %v8958, %v8957
  %v8965 = vpack.c.b16 %v8960, %v8959
  %v8966 = vpack.c.b16 %v8962, %v8961
  %8971 = vmatpush.bf16.msra.mxu0 0
  %8972 = vmatpush.bf16.msra.mxu0 0
  %8973 = vmatpush.bf16.msra.mxu0 0
  %8974 = vmatpush.bf16.msra.mxu0 0
  %8975 = vmatpush.bf16.msra.mxu0 %v8966
  %8976 = vmatpush.bf16.msra.mxu0 %v8965
  %8977 = vmatpush.bf16.msra.mxu0 %v8964
  %8978 = vmatpush.bf16.msra.mxu0 %v8963
  %8979 = vmatmul.bf16.gmra.mxu0 %v8907
  %v8980 = vpop.f32.mrf.mxu0
  %v8981 = vadd.f32 0.0, %v8980
  %v8982 = vpop.f32.mrf.mxu0
  %v8983 = vadd.f32 0.0, %v8982
  %8984 = vmatmul.bf16.gmra.mxu0 %v8910
  %v8985 = vpop.f32.mrf.mxu0
  %v8986 = vadd.f32 0.0, %v8985
  %v8987 = vpop.f32.mrf.mxu0
  %v8988 = vadd.f32 0.0, %v8987
  %8989 = vmatmul.bf16.gmra.mxu0 %v8913
  %v8990 = vpop.f32.mrf.mxu0
  %v8991 = vadd.f32 0.0, %v8990
  %v8992 = vpop.f32.mrf.mxu0
  %v8993 = vadd.f32 0.0, %v8992
  %8994 = vdwg.mxu0
  %s8995 = scalar_lea.vmem %s7, 64
  %v8996 = vld [vmem:[%s8995] sm:$0xf]
  %v8997 = vld [vmem:[%s8995 + $0x4] sm:$0xf]
  %v8998 = vld [vmem:[%s8995 + $0x8] sm:$0xf]
  %v8999 = vld [vmem:[%s8995 + $0xc] sm:$0xf]
  %v9000 = vld [vmem:[%s8995 + $0x10] sm:$0xf]
  %v9001 = vld [vmem:[%s8995 + $0x14] sm:$0xf]
  %v9002 = vld [vmem:[%s8995 + $0x18] sm:$0xf]
  %v9003 = vld [vmem:[%s8995 + $0x1c] sm:$0xf]
  %v9012 = vunpack.c.l.b16 %v8996
  %v9013 = vunpack.c.l.b16 %v8997
  %v9014 = vunpack.c.l.b16 %v8998
  %v9015 = vunpack.c.l.b16 %v8999
  %v9016 = vunpack.c.l.b16 %v9000
  %v9017 = vunpack.c.l.b16 %v9001
  %v9018 = vunpack.c.l.b16 %v9002
  %v9019 = vunpack.c.l.b16 %v9003
  %v9020 = vpack.c.b16 %v9013, %v9012
  %v9021 = vpack.c.b16 %v9015, %v9014
  %v9022 = vpack.c.b16 %v9017, %v9016
  %v9023 = vpack.c.b16 %v9019, %v9018
  %9028 = vmatpush.bf16.msra.mxu0 0
  %9029 = vmatpush.bf16.msra.mxu0 0
  %9030 = vmatpush.bf16.msra.mxu0 0
  %9031 = vmatpush.bf16.msra.mxu0 0
  %9032 = vmatpush.bf16.msra.mxu0 %v9023
  %9033 = vmatpush.bf16.msra.mxu0 %v9022
  %9034 = vmatpush.bf16.msra.mxu0 %v9021
  %9035 = vmatpush.bf16.msra.mxu0 %v9020
  %9036 = vmatmul.bf16.gmra.mxu0 %v8907
  %v9037 = vpop.f32.mrf.mxu0
  %v9038 = vpop.f32.mrf.mxu0
  %v9039 = vadd.f32 0.0, %v9038
  %9040 = vmatmul.bf16.gmra.mxu0 %v8910
  %v9041 = vpop.f32.mrf.mxu0
  %v9042 = vadd.f32 0.0, %v9041
  %v9043 = vpop.f32.mrf.mxu0
  %v9044 = vadd.f32 0.0, %v9043
  %9045 = vmatmul.bf16.gmra.mxu0 %v8913
  %v9046 = vpop.f32.mrf.mxu0
  %v9047 = vadd.f32 0.0, %v9046
  %v9048 = vpop.f32.mrf.mxu0
  %v9049 = vadd.f32 0.0, %v9048
  %9050 = vdwg.mxu0
  %v9051 = vadd.f32 %v8981, 0.0
  %v9052 = vadd.f32 %v8925, %v8983
  %v9053 = vadd.f32 %v8927, %v8986
  %v9054 = vadd.f32 %v8930, %v8988
  %v9055 = vadd.f32 %v8932, %v8991
  %v9056 = vadd.f32 %v8935, %v8993
  %v9057 = vadd.f32 %v9051, %v9039
  %v9058 = vadd.f32 %v9052, %v9042
  %v9059 = vadd.f32 %v9053, %v9044
  %v9060 = vadd.f32 %v9054, %v9047
  %v9061 = vadd.f32 %v9055, %v9049
  %v9062 = vadd.f32 %v9056, 0.0
  %v9063 = vld [vmem:[%s8] sm:$0x1]
  %v9065 = vperm.slane %v9063, 0
  %v9067 = vadd.f32 %v9057, %v9065
  %v9068 = vadd.f32 %v9058, %v9065
  %v9069 = vadd.f32 %v9059, %v9065
  %v9070 = vadd.f32 %v9060, %v9065
  %v9071 = vadd.f32 %v9061, %v9065
  %v9072 = vadd.f32 %v9062, %v9065
  %v9073 = vmax.f32 %v9067, 0.0
  %v9074 = vmax.f32 %v9068, 0.0
  %v9075 = vmax.f32 %v9069, 0.0
  %v9076 = vmax.f32 %v9070, 0.0
  %v9077 = vmax.f32 %v9071, 0.0
  %v9078 = vmax.f32 %v9072, 0.0
  %9080 = vrot.lane.b32.xlu0 %v9074, 32
  %v9081 = vpop.permute.xlu0 %9080
  %9084 = vrot.lane.b32.xlu0 %v9075, 64
  %v9085 = vpop.permute.xlu0 %9084
  %9088 = vrot.lane.b32.xlu0 %v9076, 96
  %v9089 = vpop.permute.xlu0 %9088
  %9092 = vrot.lane.b32.xlu0 %v9078, 32
  %v9093 = vpop.permute.xlu0 %9092
  %vm9095 = vcmask 261120
  %v9096 = vsel %vm9095, %v9073, %v9081
  %v9097 = vsel %vm8905, %v9096, %v9085
  %vm9098 = vcmask 785408
  %v9099 = vsel %vm9098, %v9097, %v9089
  %v9100 = vsel %vm9095, %v9077, %v9093
  %v9101 = vpack.c.bf16 %v9099, %v9099
  %v9102 = vpack.c.bf16 %v9100, %v9100
  %v9103 = vld [vmem:[%s9] sm:$0xf]
  %v9104 = vld [vmem:[%s9 + $0x4] sm:$0xf]
  %v9105 = vld [vmem:[%s9 + $0x8] sm:$0xf]
  %v9106 = vld [vmem:[%s9 + $0xc] sm:$0xf]
  %v9107 = vld [vmem:[%s9 + $0x10] sm:$0xf]
  %v9108 = vld [vmem:[%s9 + $0x14] sm:$0xf]
  %v9109 = vld [vmem:[%s9 + $0x18] sm:$0xf]
  %v9110 = vld [vmem:[%s9 + $0x1c] sm:$0xf]
  %v9111 = vld [vmem:[%s9 + $0x20] sm:$0xf]
  %v9112 = vld [vmem:[%s9 + $0x24] sm:$0xf]
  %v9113 = vld [vmem:[%s9 + $0x28] sm:$0xf]
  %v9114 = vld [vmem:[%s9 + $0x2c] sm:$0xf]
  %v9115 = vld [vmem:[%s9 + $0x30] sm:$0xf]
  %v9116 = vld [vmem:[%s9 + $0x34] sm:$0xf]
  %v9117 = vld [vmem:[%s9 + $0x38] sm:$0xf]
  %v9118 = vld [vmem:[%s9 + $0x3c] sm:$0xf]
  %v9119 = vld [vmem:[%s9 + $0x40] sm:$0xf]
  %v9120 = vld [vmem:[%s9 + $0x44] sm:$0xf]
  %v9121 = vld [vmem:[%s9 + $0x48] sm:$0xf]
  %v9122 = vld [vmem:[%s9 + $0x4c] sm:$0xf]
  %v9123 = vld [vmem:[%s9 + $0x50] sm:$0xf]
  %v9124 = vld [vmem:[%s9 + $0x54] sm:$0xf]
  %v9125 = vld [vmem:[%s9 + $0x58] sm:$0xf]
  %v9126 = vld [vmem:[%s9 + $0x5c] sm:$0xf]
  %v9127 = vld [vmem:[%s10] sm:$0x1]
  %v9129 = vperm.slane %v9127, 0
  %v9155 = vunpack.c.l.b16 %v9103
  %v9156 = vunpack.c.l.b16 %v9104
  %v9157 = vunpack.c.l.b16 %v9105
  %v9158 = vunpack.c.l.b16 %v9106
  %v9159 = vunpack.c.l.b16 %v9107
  %v9160 = vunpack.c.l.b16 %v9108
  %v9161 = vunpack.c.l.b16 %v9109
  %v9162 = vunpack.c.l.b16 %v9110
  %v9163 = vunpack.c.l.b16 %v9111
  %v9164 = vunpack.c.l.b16 %v9112
  %v9165 = vunpack.c.l.b16 %v9113
  %v9166 = vunpack.c.l.b16 %v9114
  %v9167 = vunpack.c.l.b16 %v9115
  %v9168 = vunpack.c.l.b16 %v9116
  %v9169 = vunpack.c.l.b16 %v9117
  %v9170 = vunpack.c.l.b16 %v9118
  %v9171 = vunpack.c.l.b16 %v9119
  %v9172 = vunpack.c.l.b16 %v9120
  %v9173 = vunpack.c.l.b16 %v9121
  %v9174 = vunpack.c.l.b16 %v9122
  %v9175 = vunpack.c.l.b16 %v9123
  %v9176 = vunpack.c.l.b16 %v9124
  %v9177 = vunpack.c.l.b16 %v9125
  %v9178 = vunpack.c.l.b16 %v9126
  %v9179 = vpack.c.b16 %v9156, %v9155
  %v9180 = vpack.c.b16 %v9158, %v9157
  %v9181 = vpack.c.b16 %v9160, %v9159
  %v9182 = vpack.c.b16 %v9162, %v9161
  %v9183 = vpack.c.b16 %v9164, %v9163
  %v9184 = vpack.c.b16 %v9166, %v9165
  %v9185 = vpack.c.b16 %v9168, %v9167
  %v9186 = vpack.c.b16 %v9170, %v9169
  %v9187 = vpack.c.b16 %v9172, %v9171
  %v9188 = vpack.c.b16 %v9174, %v9173
  %v9189 = vpack.c.b16 %v9176, %v9175
  %v9190 = vpack.c.b16 %v9178, %v9177
  %v9204 = vsel %vm8905, %v9102, 0
  %9206 = vmatpush.bf16.msra.mxu0 %v9186
  %9207 = vmatpush.bf16.msra.mxu0 %v9185
  %9208 = vmatpush.bf16.msra.mxu0 %v9184
  %9209 = vmatpush.bf16.msra.mxu0 %v9183
  %9210 = vmatpush.bf16.msra.mxu0 %v9182
  %9211 = vmatpush.bf16.msra.mxu0 %v9181
  %9212 = vmatpush.bf16.msra.mxu0 %v9180
  %9213 = vmatpush.bf16.msra.mxu0 %v9179
  %9214 = vmatmul.bf16.gmra.mxu0 %v9101
  %v9215 = vpop.f32.mrf.mxu0
  %v9216 = vadd.f32 %v9129, %v9215
  %v9217 = vpop.f32.mrf.mxu0
  %9218 = vdwg.mxu0
  %9219 = vmatpush.bf16.msra.mxu0 0
  %9220 = vmatpush.bf16.msra.mxu0 0
  %9221 = vmatpush.bf16.msra.mxu0 0
  %9222 = vmatpush.bf16.msra.mxu0 0
  %9223 = vmatpush.bf16.msra.mxu0 %v9190
  %9224 = vmatpush.bf16.msra.mxu0 %v9189
  %9225 = vmatpush.bf16.msra.mxu0 %v9188
  %9226 = vmatpush.bf16.msra.mxu0 %v9187
  %9227 = vmatmul.bf16.gmra.mxu0 %v9204
  %v9228 = vpop.f32.mrf.mxu0
  %v9229 = vadd.f32 %v9216, %v9228
  %v9230 = vpop.f32.mrf.mxu0
  %9231 = vdwg.mxu0
  %v9232 = vmax.f32 %v9229, 0.0
  %v9233 = vpack.c.bf16 %v9232, %v9232
  %v9234 = vld [vmem:[%s11] sm:$0xf]
  %v9235 = vld [vmem:[%s11 + $0x4] sm:$0xf]
  %v9236 = vld [vmem:[%s11 + $0x8] sm:$0xf]
  %v9237 = vld [vmem:[%s11 + $0xc] sm:$0xf]
  %v9238 = vld [vmem:[%s11 + $0x10] sm:$0xf]
  %v9239 = vld [vmem:[%s11 + $0x14] sm:$0xf]
  %v9240 = vld [vmem:[%s11 + $0x18] sm:$0xf]
  %v9241 = vld [vmem:[%s11 + $0x1c] sm:$0xf]
  %v9242 = vld [vmem:[%s12] sm:$0x1]
  %v9244 = vperm.slane %v9242, 0
  %v9254 = vunpack.c.l.b16 %v9234
  %v9255 = vunpack.c.l.b16 %v9235
  %v9256 = vunpack.c.l.b16 %v9236
  %v9257 = vunpack.c.l.b16 %v9237
  %v9258 = vunpack.c.l.b16 %v9238
  %v9259 = vunpack.c.l.b16 %v9239
  %v9260 = vunpack.c.l.b16 %v9240
  %v9261 = vunpack.c.l.b16 %v9241
  %v9262 = vpack.c.b16 %v9255, %v9254
  %v9263 = vpack.c.b16 %v9257, %v9256
  %v9264 = vpack.c.b16 %v9259, %v9258
  %v9265 = vpack.c.b16 %v9261, %v9260
  %v9271 = vsel %vm8905, %v9233, 0
  %9273 = vmatpush.bf16.msra.mxu0 0
  %9274 = vmatpush.bf16.msra.mxu0 0
  %9275 = vmatpush.bf16.msra.mxu0 0
  %9276 = vmatpush.bf16.msra.mxu0 0
  %9277 = vmatpush.bf16.msra.mxu0 %v9265
  %9278 = vmatpush.bf16.msra.mxu0 %v9264
  %9279 = vmatpush.bf16.msra.mxu0 %v9263
  %9280 = vmatpush.bf16.msra.mxu0 %v9262
  %9281 = vmatmul.bf16.gmra.mxu0 %v9271
  %v9282 = vpop.f32.mrf.mxu0
  %v9283 = vadd.f32 %v9244, %v9282
  %v9284 = vpop.f32.mrf.mxu0
  %9285 = vdwg.mxu0
  %9286 = vst [vmem:[%s13] sm:$0xff] %v9283
  // Predicated region
  $region54: #{text_classifier_forward.1} parent=0 // pred_check
    _
  $region55: #{text_classifier_forward.1} parent=0 // pred_check_branch
    %9288 = sbr.rel (0) target = $region57
  $region56: #{text_classifier_forward.1} parent=0 // pred_region
    _
  $region57: #{text_classifier_forward.1} parent=0 // pred_fallthru
    _
  // Predicated region
  $region58: #{text_classifier_forward.1} parent=0 // pred_check
    _
  $region59: #{text_classifier_forward.1} parent=0 // pred_check_branch
    %9290 = sbr.rel (0) target = $region61
  $region60: #{text_classifier_forward.1} parent=0 // pred_region
    _
  $region61: #{text_classifier_forward.1} parent=0 // pred_fallthru
    _

</llo_original>
